<compile_context>
chip_gen: v5e
topology: v5e:2x2
jax: 0.10.0
libtpu: 0.0.40
codegen_flags: <defaults>
</compile_context>

<pallas_src>
import numpy as np

import jax
import jax.numpy as jnp
from jax import lax
from jax.experimental import pallas as pl
from jax.experimental.pallas import tpu as pltpu

DIM_OUT = 10
_VMEM_LIMIT = 32 * 1024 * 1024

# Static EuroSATCNN geometry (3x64x64 NCHW input, implied by fc1 = 16*13*13).
_H, _W = 64, 64
_C1, _OC1, _KS = 3, 6, 5
_OH1, _OW1 = _H - _KS + 1, _W - _KS + 1          # 60, 60
_PH1, _PW1 = _OH1 // 2, _OW1 // 2                # 30, 30
_C2, _OC2 = _OC1, 16
_OH2, _OW2 = _PH1 - _KS + 1, _PW1 - _KS + 1      # 26, 26
_PH2, _PW2 = _OH2 // 2, _OW2 // 2                # 13, 13
_FC1_IN = _OC2 * _PH2 * _PW2                     # 2704


# ---------------------------------------------------------------------------
# Host-side packing: fold the conv into banded matmul operands, build the
# one-hot pooling matrices, permute fc1, cast matmul operands to bf16.
# ---------------------------------------------------------------------------
def _banded_conv_mats(w, in_w):
    """Fold (c, kw) of a KSxKS 'valid' conv into banded matmul operands.

    w: (OC, C, KH, KW) PyTorch conv weight.
    Returns B with B[kh, c*in_w + ow + kw, oc*out_w + ow] = w[oc, c, kh, kw],
    so that   out[oh, oc*out_w + ow] = sum_kh  X[kh+oh, :] @ B[kh]
    where     X[h, c*in_w + iw] = input[c, h, iw].
    """
    w = np.asarray(w, np.float32)
    oc_n, c_n, kh_n, kw_n = w.shape
    out_w = in_w - kw_n + 1
    B = np.zeros((kh_n, c_n * in_w, oc_n * out_w), np.float32)
    ow = np.arange(out_w)
    for kh in range(kh_n):
        for kw in range(kw_n):
            for c in range(c_n):
                for oc in range(oc_n):
                    B[kh, c * in_w + ow + kw, oc * out_w + ow] = w[oc, c, kh, kw]
    return B


def _pool_row_mats(out_h):
    """(2, out_h/2, out_h) one-hot row selectors for 2x2/2 max-pool rows."""
    ph = out_h // 2
    e = np.zeros((2, ph, out_h), np.float32)
    r = np.arange(ph)
    e[0, r, 2 * r] = 1.0
    e[1, r, 2 * r + 1] = 1.0
    return e


def _pool_col_mats(oc_n, out_w):
    """(2, oc*out_w, oc*out_w/2) one-hot column selectors (per-channel blocks)."""
    pw = out_w // 2
    e = np.zeros((2, oc_n * out_w, oc_n * pw), np.float32)
    s = np.arange(pw)
    for oc in range(oc_n):
        e[0, oc * out_w + 2 * s, oc * pw + s] = 1.0
        e[1, oc * out_w + 2 * s + 1, oc * pw + s] = 1.0
    return e


def _fc1_repack(w):
    """(120, 16*13*13) torch fc1 weight -> (13, 16*13, 120) matching the
    kernel's pooled-conv2 layout P2[row, oc*13 + col]."""
    d = w.shape[0]
    w4 = np.asarray(w, np.float32).reshape(d, _OC2, _PH2, _PW2)
    return np.transpose(w4, (2, 1, 3, 0)).reshape(_PH2, _OC2 * _PW2, d)


def init_params(key, dim_out=DIM_OUT):
    """Parameters in the original PyTorch layouts."""
    ks = jax.random.split(key, 10)
    s = 0.05
    return {
        "conv1_w": jax.random.normal(ks[0], (_OC1, _C1, _KS, _KS), jnp.float32) * s,
        "conv1_b": jax.random.normal(ks[1], (_OC1,), jnp.float32) * s,
        "conv2_w": jax.random.normal(ks[2], (_OC2, _C2, _KS, _KS), jnp.float32) * s,
        "conv2_b": jax.random.normal(ks[3], (_OC2,), jnp.float32) * s,
        "fc1_w": jax.random.normal(ks[4], (120, _FC1_IN), jnp.float32) * s,
        "fc1_b": jax.random.normal(ks[5], (120,), jnp.float32) * s,
        "fc2_w": jax.random.normal(ks[6], (84, 120), jnp.float32) * s,
        "fc2_b": jax.random.normal(ks[7], (84,), jnp.float32) * s,
        "fc3_w": jax.random.normal(ks[8], (dim_out, 84), jnp.float32) * s,
        "fc3_b": jax.random.normal(ks[9], (dim_out,), jnp.float32) * s,
    }


def pack_params(p):
    """One-time conversion from PyTorch layouts to kernel-resident layouts."""
    bf, f32 = jnp.bfloat16, jnp.float32
    return {
        "cb1": jnp.asarray(_banded_conv_mats(p["conv1_w"], _W), bf),
        "b1r": jnp.asarray(np.repeat(np.asarray(p["conv1_b"]), _OW1)[None, :], f32),
        "eh1": jnp.asarray(_pool_row_mats(_OH1), bf),
        "ew1": jnp.asarray(_pool_col_mats(_OC1, _OW1), bf),
        "cb2": jnp.asarray(_banded_conv_mats(p["conv2_w"], _PW1), bf),
        "b2r": jnp.asarray(np.repeat(np.asarray(p["conv2_b"]), _OW2)[None, :], f32),
        "eh2": jnp.asarray(_pool_row_mats(_OH2), bf),
        "ew2": jnp.asarray(_pool_col_mats(_OC2, _OW2), bf),
        "w1": jnp.asarray(_fc1_repack(p["fc1_w"]), bf),
        "b1": jnp.asarray(p["fc1_b"], f32)[None, :],
        "w2": jnp.asarray(np.asarray(p["fc2_w"]).T, bf),
        "b2": jnp.asarray(p["fc2_b"], f32)[None, :],
        "w3": jnp.asarray(np.asarray(p["fc3_w"]).T, bf),
        "b3": jnp.asarray(p["fc3_b"], f32)[None, :],
    }


# ---------------------------------------------------------------------------
# The fused kernel: one image per grid step, everything on the MXU.
# ---------------------------------------------------------------------------
def _fused_forward_kernel(x_ref, cb1_ref, b1r_ref, eh1_ref, ew1_ref,
                          cb2_ref, b2r_ref, eh2_ref, ew2_ref,
                          w1_ref, b1_ref, w2_ref, b2_ref, w3_ref, b3_ref,
                          o_ref):
    bf16, f32 = jnp.bfloat16, jnp.float32

    def mxu(a, b):
        return jnp.dot(a, b, preferred_element_type=f32)

    def conv_relu_pool(x_slab, cb_ref, bias_row, eh_ref, ew_ref, out_h):
        # x_slab : (in_h, C*in_w) f32, x_slab[h, c*in_w + iw] = in[c, h, iw]
        # cb_ref : (KS, C*in_w, OC*out_w) bf16 banded conv weights
        acc = None
        for kh in range(_KS):                               # unrolled, 5 matmuls
            xk = x_slab[kh:kh + out_h, :].astype(bf16)
            t = mxu(xk, cb_ref[kh])                          # (out_h, OC*out_w) f32
            acc = t if acc is None else acc + t
        a = jnp.maximum(acc + bias_row, 0.0).astype(bf16)    # bias + ReLU (VPU)
        rows = jnp.maximum(mxu(eh_ref[0], a),                # 2x2 pool: rows
                           mxu(eh_ref[1], a)).astype(bf16)
        return jnp.maximum(mxu(rows, ew_ref[0]),             # 2x2 pool: cols, f32
                           mxu(rows, ew_ref[1]))

    # conv1 + ReLU + pool:  (64, 3*64) -> (30, 6*30)
    p1 = conv_relu_pool(x_ref[0], cb1_ref, b1r_ref[...], eh1_ref, ew1_ref, _OH1)
    # conv2 + ReLU + pool:  (30, 6*30) -> (13, 16*13)   (layout feeds fc1 directly)
    p2 = conv_relu_pool(p1, cb2_ref, b2r_ref[...], eh2_ref, ew2_ref, _OH2)

    # fc1 + ReLU: contract p2 over (row, chan*col) against (13, 208, 120) weights.
    h = b1_ref[...]                                          # (1, 120) f32
    for r in range(_PH2):                                    # 13 unrolled dots
        h = h + mxu(p2[r:r + 1, :].astype(bf16), w1_ref[r])
    h = jnp.maximum(h, 0.0)

    # fc2 + ReLU
    h = jnp.maximum(mxu(h.astype(bf16), w2_ref[...]) + b2_ref[...], 0.0)

    # fc3 + log_softmax
    z = mxu(h.astype(bf16), w3_ref[...]) + b3_ref[...]       # (1, dim_out)
    z = z - jnp.max(z, axis=-1, keepdims=True)
    o_ref[0] = z - jnp.log(jnp.sum(jnp.exp(z), axis=-1, keepdims=True))


def _forward_impl(packed, x):
    n = x.shape[0]
    dim_out = packed["b3"].shape[1]
    # NCHW -> lane-dense (N, H, C*W) slab; pure layout plumbing in the wrapper.
    x_slab = jnp.transpose(x, (0, 2, 1, 3)).reshape(n, _H, _C1 * _W)

    def resident(arr):                    # weight block resident across the grid
        if arr.ndim == 2:
            return pl.BlockSpec(arr.shape, lambda b: (0, 0))
        return pl.BlockSpec(arr.shape, lambda b: (0, 0, 0))

    out = pl.pallas_call(
        _fused_forward_kernel,
        out_shape=jax.ShapeDtypeStruct((n, 1, dim_out), jnp.float32),
        grid=(n,),
        in_specs=[
            pl.BlockSpec((1, _H, _C1 * _W), lambda b: (b, 0, 0)),
            resident(packed["cb1"]), resident(packed["b1r"]),
            resident(packed["eh1"]), resident(packed["ew1"]),
            resident(packed["cb2"]), resident(packed["b2r"]),
            resident(packed["eh2"]), resident(packed["ew2"]),
            resident(packed["w1"]), resident(packed["b1"]),
            resident(packed["w2"]), resident(packed["b2"]),
            resident(packed["w3"]), resident(packed["b3"]),
        ],
        out_specs=pl.BlockSpec((1, 1, dim_out), lambda b: (b, 0, 0)),
        compiler_params=pltpu.CompilerParams(
            dimension_semantics=("parallel",),
            vmem_limit_bytes=_VMEM_LIMIT),
    )(x_slab, packed["cb1"], packed["b1r"], packed["eh1"], packed["ew1"],
      packed["cb2"], packed["b2r"], packed["eh2"], packed["ew2"],
      packed["w1"], packed["b1"], packed["w2"], packed["b2"],
      packed["w3"], packed["b3"])
    return out.reshape(n, dim_out)


eurosat_cnn_forward = jax.jit(_forward_impl)


# ---------------------------------------------------------------------------
# Plain-JAX reference of the PyTorch module (for a parity check).
# ---------------------------------------------------------------------------
def _reference_forward(params, x):
    prec = lax.Precision.HIGHEST
    dn = ("NCHW", "OIHW", "NCHW")
    y = lax.conv_general_dilated(x, params["conv1_w"], (1, 1), "VALID",
                                 dimension_numbers=dn, precision=prec)
    y = jnp.maximum(y + params["conv1_b"][None, :, None, None], 0.0)
    y = lax.reduce_window(y, -jnp.inf, lax.max, (1, 1, 2, 2), (1, 1, 2, 2), "VALID")
    y = lax.conv_general_dilated(y, params["conv2_w"], (1, 1), "VALID",
                                 dimension_numbers=dn, precision=prec)
    y = jnp.maximum(y + params["conv2_b"][None, :, None, None], 0.0)
    y = lax.reduce_window(y, -jnp.inf, lax.max, (1, 1, 2, 2), (1, 1, 2, 2), "VALID")
    flat = y.reshape(x.shape[0], -1)
    h = jnp.maximum(jnp.dot(flat, params["fc1_w"].T, precision=prec) + params["fc1_b"], 0.0)
    h = jnp.maximum(jnp.dot(h, params["fc2_w"].T, precision=prec) + params["fc2_b"], 0.0)
    z = jnp.dot(h, params["fc3_w"].T, precision=prec) + params["fc3_b"]
    return jax.nn.log_softmax(z, axis=-1)


if __name__ == "__main__":
    key = jax.random.PRNGKey(0)
    k_params, k_x = jax.random.split(key)

    params = init_params(k_params, DIM_OUT)
    packed = pack_params(params)
    # fc1 = Linear(16*13*13, 120) implies 3x64x64 NCHW inputs; small batch of 4.
    x = jax.random.normal(k_x, (4, _C1, _H, _W), jnp.float32)

    out = jax.block_until_ready(eurosat_cnn_forward(packed, x))

    assert out.shape == (4, DIM_OUT)
    assert bool(jnp.all(jnp.isfinite(out)))
    # exp(log_softmax) rows must sum to 1
    assert jnp.allclose(jnp.sum(jnp.exp(out), axis=1), 1.0, atol=1e-4)
    # parity against the plain-JAX (f32-HIGHEST) reference of the PyTorch
    # forward; the kernel uses bf16 MXU inputs, so allow bf16-class error
    # (measured ~3e-3 on log-probs).
    ref = _reference_forward(params, x)
    err = float(jnp.max(jnp.abs(out - ref)))
    assert err < 2e-2, f"mismatch vs reference: {err}"
    print("KERNEL_OK")
</pallas_src>

<mosaic_0001>
module attributes {stable_mosaic.version = 11 : i64} {
  func.func @_fused_forward_kernel(%arg0: i32, %arg1: memref<1x64x192xf32, #tpu.memory_space<vmem>>, %arg2: memref<5x192x360xbf16, #tpu.memory_space<vmem>>, %arg3: memref<1x360xf32, #tpu.memory_space<vmem>>, %arg4: memref<2x30x60xbf16, #tpu.memory_space<vmem>>, %arg5: memref<2x360x180xbf16, #tpu.memory_space<vmem>>, %arg6: memref<5x180x416xbf16, #tpu.memory_space<vmem>>, %arg7: memref<1x416xf32, #tpu.memory_space<vmem>>, %arg8: memref<2x13x26xbf16, #tpu.memory_space<vmem>>, %arg9: memref<2x416x208xbf16, #tpu.memory_space<vmem>>, %arg10: memref<13x208x120xbf16, #tpu.memory_space<vmem>>, %arg11: memref<1x120xf32, #tpu.memory_space<vmem>>, %arg12: memref<120x84xbf16, #tpu.memory_space<vmem>>, %arg13: memref<1x84xf32, #tpu.memory_space<vmem>>, %arg14: memref<84x10xbf16, #tpu.memory_space<vmem>>, %arg15: memref<1x10xf32, #tpu.memory_space<vmem>>, %arg16: memref<1x1x10xf32, #tpu.memory_space<vmem>>) attributes {dimension_semantics = [#tpu.dimension_semantics<parallel>], iteration_bounds = array<i64: 4>, scalar_prefetch = 0 : i64, scratch_operands = 0 : i64, tpu.core_type = #tpu.core_type<tc>, window_params = [{transform_indices = @transform_0, window_bounds = array<i64: 1, 64, 192>}, {pipeline_mode = #tpu.pipeline_mode<synchronous>, transform_indices = @transform_1, window_bounds = array<i64: 5, 192, 360>}, {pipeline_mode = #tpu.pipeline_mode<synchronous>, transform_indices = @transform_2, window_bounds = array<i64: 1, 360>}, {pipeline_mode = #tpu.pipeline_mode<synchronous>, transform_indices = @transform_3, window_bounds = array<i64: 2, 30, 60>}, {pipeline_mode = #tpu.pipeline_mode<synchronous>, transform_indices = @transform_4, window_bounds = array<i64: 2, 360, 180>}, {pipeline_mode = #tpu.pipeline_mode<synchronous>, transform_indices = @transform_5, window_bounds = array<i64: 5, 180, 416>}, {pipeline_mode = #tpu.pipeline_mode<synchronous>, transform_indices = @transform_6, window_bounds = array<i64: 1, 416>}, {pipeline_mode = #tpu.pipeline_mode<synchronous>, transform_indices = @transform_7, window_bounds = array<i64: 2, 13, 26>}, {pipeline_mode = #tpu.pipeline_mode<synchronous>, transform_indices = @transform_8, window_bounds = array<i64: 2, 416, 208>}, {pipeline_mode = #tpu.pipeline_mode<synchronous>, transform_indices = @transform_9, window_bounds = array<i64: 13, 208, 120>}, {pipeline_mode = #tpu.pipeline_mode<synchronous>, transform_indices = @transform_10, window_bounds = array<i64: 1, 120>}, {pipeline_mode = #tpu.pipeline_mode<synchronous>, transform_indices = @transform_11, window_bounds = array<i64: 120, 84>}, {pipeline_mode = #tpu.pipeline_mode<synchronous>, transform_indices = @transform_12, window_bounds = array<i64: 1, 84>}, {pipeline_mode = #tpu.pipeline_mode<synchronous>, transform_indices = @transform_13, window_bounds = array<i64: 84, 10>}, {pipeline_mode = #tpu.pipeline_mode<synchronous>, transform_indices = @transform_14, window_bounds = array<i64: 1, 10>}, {transform_indices = @transform_15, window_bounds = array<i64: 1, 1, 10>}]} {
    %c0 = arith.constant 0 : index
    %c0_0 = arith.constant 0 : index
    %c0_1 = arith.constant 0 : index
    %0 = vector.load %arg1[%c0, %c0_0, %c0_1] : memref<1x64x192xf32, #tpu.memory_space<vmem>>, vector<1x64x192xf32>
    %1 = vector.shape_cast %0 : vector<1x64x192xf32> to vector<64x192xf32>
    %c0_2 = arith.constant 0 : index
    %c0_3 = arith.constant 0 : index
    %2 = vector.load %arg3[%c0_2, %c0_3] : memref<1x360xf32, #tpu.memory_space<vmem>>, vector<1x360xf32>
    %3 = vector.extract_strided_slice %1 {offsets = [0, 0], sizes = [60, 192], strides = [1, 1]} : vector<64x192xf32> to vector<60x192xf32>
    %4 = arith.truncf %3 : vector<60x192xf32> to vector<60x192xbf16>
    %c0_4 = arith.constant 0 : index
    %c0_5 = arith.constant 0 : index
    %c0_6 = arith.constant 0 : index
    %5 = vector.load %arg2[%c0_4, %c0_5, %c0_6] : memref<5x192x360xbf16, #tpu.memory_space<vmem>>, vector<1x192x360xbf16>
    %6 = vector.shape_cast %5 : vector<1x192x360xbf16> to vector<192x360xbf16>
    %cst = arith.constant dense<0.000000e+00> : vector<60x360xf32>
    %7 = tpu.matmul %4, %6, %cst {dimension_numbers = #tpu.dot_dimension_numbers<[1], [0], [0], [1], [0, 0, 1, 1], [], []>} : vector<60x192xbf16>, vector<192x360xbf16>, vector<60x360xf32> -> vector<60x360xf32>
    %8 = vector.extract_strided_slice %1 {offsets = [1, 0], sizes = [60, 192], strides = [1, 1]} : vector<64x192xf32> to vector<60x192xf32>
    %9 = arith.truncf %8 : vector<60x192xf32> to vector<60x192xbf16>
    %c1 = arith.constant 1 : index
    %c0_7 = arith.constant 0 : index
    %c0_8 = arith.constant 0 : index
    %10 = vector.load %arg2[%c1, %c0_7, %c0_8] : memref<5x192x360xbf16, #tpu.memory_space<vmem>>, vector<1x192x360xbf16>
    %11 = vector.shape_cast %10 : vector<1x192x360xbf16> to vector<192x360xbf16>
    %cst_9 = arith.constant dense<0.000000e+00> : vector<60x360xf32>
    %12 = tpu.matmul %9, %11, %cst_9 {dimension_numbers = #tpu.dot_dimension_numbers<[1], [0], [0], [1], [0, 0, 1, 1], [], []>} : vector<60x192xbf16>, vector<192x360xbf16>, vector<60x360xf32> -> vector<60x360xf32>
    %13 = arith.addf %7, %12 : vector<60x360xf32>
    %14 = vector.extract_strided_slice %1 {offsets = [2, 0], sizes = [60, 192], strides = [1, 1]} : vector<64x192xf32> to vector<60x192xf32>
    %15 = arith.truncf %14 : vector<60x192xf32> to vector<60x192xbf16>
    %c2 = arith.constant 2 : index
    %c0_10 = arith.constant 0 : index
    %c0_11 = arith.constant 0 : index
    %16 = vector.load %arg2[%c2, %c0_10, %c0_11] : memref<5x192x360xbf16, #tpu.memory_space<vmem>>, vector<1x192x360xbf16>
    %17 = vector.shape_cast %16 : vector<1x192x360xbf16> to vector<192x360xbf16>
    %cst_12 = arith.constant dense<0.000000e+00> : vector<60x360xf32>
    %18 = tpu.matmul %15, %17, %cst_12 {dimension_numbers = #tpu.dot_dimension_numbers<[1], [0], [0], [1], [0, 0, 1, 1], [], []>} : vector<60x192xbf16>, vector<192x360xbf16>, vector<60x360xf32> -> vector<60x360xf32>
    %19 = arith.addf %13, %18 : vector<60x360xf32>
    %20 = vector.extract_strided_slice %1 {offsets = [3, 0], sizes = [60, 192], strides = [1, 1]} : vector<64x192xf32> to vector<60x192xf32>
    %21 = arith.truncf %20 : vector<60x192xf32> to vector<60x192xbf16>
    %c3 = arith.constant 3 : index
    %c0_13 = arith.constant 0 : index
    %c0_14 = arith.constant 0 : index
    %22 = vector.load %arg2[%c3, %c0_13, %c0_14] : memref<5x192x360xbf16, #tpu.memory_space<vmem>>, vector<1x192x360xbf16>
    %23 = vector.shape_cast %22 : vector<1x192x360xbf16> to vector<192x360xbf16>
    %cst_15 = arith.constant dense<0.000000e+00> : vector<60x360xf32>
    %24 = tpu.matmul %21, %23, %cst_15 {dimension_numbers = #tpu.dot_dimension_numbers<[1], [0], [0], [1], [0, 0, 1, 1], [], []>} : vector<60x192xbf16>, vector<192x360xbf16>, vector<60x360xf32> -> vector<60x360xf32>
    %25 = arith.addf %19, %24 : vector<60x360xf32>
    %26 = vector.extract_strided_slice %1 {offsets = [4, 0], sizes = [60, 192], strides = [1, 1]} : vector<64x192xf32> to vector<60x192xf32>
    %27 = arith.truncf %26 : vector<60x192xf32> to vector<60x192xbf16>
    %c4 = arith.constant 4 : index
    %c0_16 = arith.constant 0 : index
    %c0_17 = arith.constant 0 : index
    %28 = vector.load %arg2[%c4, %c0_16, %c0_17] : memref<5x192x360xbf16, #tpu.memory_space<vmem>>, vector<1x192x360xbf16>
    %29 = vector.shape_cast %28 : vector<1x192x360xbf16> to vector<192x360xbf16>
    %cst_18 = arith.constant dense<0.000000e+00> : vector<60x360xf32>
    %30 = tpu.matmul %27, %29, %cst_18 {dimension_numbers = #tpu.dot_dimension_numbers<[1], [0], [0], [1], [0, 0, 1, 1], [], []>} : vector<60x192xbf16>, vector<192x360xbf16>, vector<60x360xf32> -> vector<60x360xf32>
    %31 = arith.addf %25, %30 : vector<60x360xf32>
    %32 = vector.broadcast %2 : vector<1x360xf32> to vector<60x360xf32>
    %33 = arith.addf %31, %32 : vector<60x360xf32>
    %cst_19 = arith.constant 0.000000e+00 : f32
    %34 = vector.broadcast %cst_19 : f32 to vector<60x360xf32>
    %35 = arith.maximumf %33, %34 : vector<60x360xf32>
    %36 = arith.truncf %35 : vector<60x360xf32> to vector<60x360xbf16>
    %c0_20 = arith.constant 0 : index
    %c0_21 = arith.constant 0 : index
    %c0_22 = arith.constant 0 : index
    %37 = vector.load %arg4[%c0_20, %c0_21, %c0_22] : memref<2x30x60xbf16, #tpu.memory_space<vmem>>, vector<1x30x60xbf16>
    %38 = vector.shape_cast %37 : vector<1x30x60xbf16> to vector<30x60xbf16>
    %cst_23 = arith.constant dense<0.000000e+00> : vector<30x360xf32>
    %39 = tpu.matmul %38, %36, %cst_23 {dimension_numbers = #tpu.dot_dimension_numbers<[1], [0], [0], [1], [0, 0, 1, 1], [], []>} : vector<30x60xbf16>, vector<60x360xbf16>, vector<30x360xf32> -> vector<30x360xf32>
    %c1_24 = arith.constant 1 : index
    %c0_25 = arith.constant 0 : index
    %c0_26 = arith.constant 0 : index
    %40 = vector.load %arg4[%c1_24, %c0_25, %c0_26] : memref<2x30x60xbf16, #tpu.memory_space<vmem>>, vector<1x30x60xbf16>
    %41 = vector.shape_cast %40 : vector<1x30x60xbf16> to vector<30x60xbf16>
    %cst_27 = arith.constant dense<0.000000e+00> : vector<30x360xf32>
    %42 = tpu.matmul %41, %36, %cst_27 {dimension_numbers = #tpu.dot_dimension_numbers<[1], [0], [0], [1], [0, 0, 1, 1], [], []>} : vector<30x60xbf16>, vector<60x360xbf16>, vector<30x360xf32> -> vector<30x360xf32>
    %43 = arith.maximumf %39, %42 : vector<30x360xf32>
    %44 = arith.truncf %43 : vector<30x360xf32> to vector<30x360xbf16>
    %c0_28 = arith.constant 0 : index
    %c0_29 = arith.constant 0 : index
    %c0_30 = arith.constant 0 : index
    %45 = vector.load %arg5[%c0_28, %c0_29, %c0_30] : memref<2x360x180xbf16, #tpu.memory_space<vmem>>, vector<1x360x180xbf16>
    %46 = vector.shape_cast %45 : vector<1x360x180xbf16> to vector<360x180xbf16>
    %cst_31 = arith.constant dense<0.000000e+00> : vector<30x180xf32>
    %47 = tpu.matmul %44, %46, %cst_31 {dimension_numbers = #tpu.dot_dimension_numbers<[1], [0], [0], [1], [0, 0, 1, 1], [], []>} : vector<30x360xbf16>, vector<360x180xbf16>, vector<30x180xf32> -> vector<30x180xf32>
    %c1_32 = arith.constant 1 : index
    %c0_33 = arith.constant 0 : index
    %c0_34 = arith.constant 0 : index
    %48 = vector.load %arg5[%c1_32, %c0_33, %c0_34] : memref<2x360x180xbf16, #tpu.memory_space<vmem>>, vector<1x360x180xbf16>
    %49 = vector.shape_cast %48 : vector<1x360x180xbf16> to vector<360x180xbf16>
    %cst_35 = arith.constant dense<0.000000e+00> : vector<30x180xf32>
    %50 = tpu.matmul %44, %49, %cst_35 {dimension_numbers = #tpu.dot_dimension_numbers<[1], [0], [0], [1], [0, 0, 1, 1], [], []>} : vector<30x360xbf16>, vector<360x180xbf16>, vector<30x180xf32> -> vector<30x180xf32>
    %51 = arith.maximumf %47, %50 : vector<30x180xf32>
    %c0_36 = arith.constant 0 : index
    %c0_37 = arith.constant 0 : index
    %52 = vector.load %arg7[%c0_36, %c0_37] : memref<1x416xf32, #tpu.memory_space<vmem>>, vector<1x416xf32>
    %53 = vector.extract_strided_slice %51 {offsets = [0, 0], sizes = [26, 180], strides = [1, 1]} : vector<30x180xf32> to vector<26x180xf32>
    %54 = arith.truncf %53 : vector<26x180xf32> to vector<26x180xbf16>
    %c0_38 = arith.constant 0 : index
    %c0_39 = arith.constant 0 : index
    %c0_40 = arith.constant 0 : index
    %55 = vector.load %arg6[%c0_38, %c0_39, %c0_40] : memref<5x180x416xbf16, #tpu.memory_space<vmem>>, vector<1x180x416xbf16>
    %56 = vector.shape_cast %55 : vector<1x180x416xbf16> to vector<180x416xbf16>
    %cst_41 = arith.constant dense<0.000000e+00> : vector<26x416xf32>
    %57 = tpu.matmul %54, %56, %cst_41 {dimension_numbers = #tpu.dot_dimension_numbers<[1], [0], [0], [1], [0, 0, 1, 1], [], []>} : vector<26x180xbf16>, vector<180x416xbf16>, vector<26x416xf32> -> vector<26x416xf32>
    %58 = vector.extract_strided_slice %51 {offsets = [1, 0], sizes = [26, 180], strides = [1, 1]} : vector<30x180xf32> to vector<26x180xf32>
    %59 = arith.truncf %58 : vector<26x180xf32> to vector<26x180xbf16>
    %c1_42 = arith.constant 1 : index
    %c0_43 = arith.constant 0 : index
    %c0_44 = arith.constant 0 : index
    %60 = vector.load %arg6[%c1_42, %c0_43, %c0_44] : memref<5x180x416xbf16, #tpu.memory_space<vmem>>, vector<1x180x416xbf16>
    %61 = vector.shape_cast %60 : vector<1x180x416xbf16> to vector<180x416xbf16>
    %cst_45 = arith.constant dense<0.000000e+00> : vector<26x416xf32>
    %62 = tpu.matmul %59, %61, %cst_45 {dimension_numbers = #tpu.dot_dimension_numbers<[1], [0], [0], [1], [0, 0, 1, 1], [], []>} : vector<26x180xbf16>, vector<180x416xbf16>, vector<26x416xf32> -> vector<26x416xf32>
    %63 = arith.addf %57, %62 : vector<26x416xf32>
    %64 = vector.extract_strided_slice %51 {offsets = [2, 0], sizes = [26, 180], strides = [1, 1]} : vector<30x180xf32> to vector<26x180xf32>
    %65 = arith.truncf %64 : vector<26x180xf32> to vector<26x180xbf16>
    %c2_46 = arith.constant 2 : index
    %c0_47 = arith.constant 0 : index
    %c0_48 = arith.constant 0 : index
    %66 = vector.load %arg6[%c2_46, %c0_47, %c0_48] : memref<5x180x416xbf16, #tpu.memory_space<vmem>>, vector<1x180x416xbf16>
    %67 = vector.shape_cast %66 : vector<1x180x416xbf16> to vector<180x416xbf16>
    %cst_49 = arith.constant dense<0.000000e+00> : vector<26x416xf32>
    %68 = tpu.matmul %65, %67, %cst_49 {dimension_numbers = #tpu.dot_dimension_numbers<[1], [0], [0], [1], [0, 0, 1, 1], [], []>} : vector<26x180xbf16>, vector<180x416xbf16>, vector<26x416xf32> -> vector<26x416xf32>
    %69 = arith.addf %63, %68 : vector<26x416xf32>
    %70 = vector.extract_strided_slice %51 {offsets = [3, 0], sizes = [26, 180], strides = [1, 1]} : vector<30x180xf32> to vector<26x180xf32>
    %71 = arith.truncf %70 : vector<26x180xf32> to vector<26x180xbf16>
    %c3_50 = arith.constant 3 : index
    %c0_51 = arith.constant 0 : index
    %c0_52 = arith.constant 0 : index
    %72 = vector.load %arg6[%c3_50, %c0_51, %c0_52] : memref<5x180x416xbf16, #tpu.memory_space<vmem>>, vector<1x180x416xbf16>
    %73 = vector.shape_cast %72 : vector<1x180x416xbf16> to vector<180x416xbf16>
    %cst_53 = arith.constant dense<0.000000e+00> : vector<26x416xf32>
    %74 = tpu.matmul %71, %73, %cst_53 {dimension_numbers = #tpu.dot_dimension_numbers<[1], [0], [0], [1], [0, 0, 1, 1], [], []>} : vector<26x180xbf16>, vector<180x416xbf16>, vector<26x416xf32> -> vector<26x416xf32>
    %75 = arith.addf %69, %74 : vector<26x416xf32>
    %76 = vector.extract_strided_slice %51 {offsets = [4, 0], sizes = [26, 180], strides = [1, 1]} : vector<30x180xf32> to vector<26x180xf32>
    %77 = arith.truncf %76 : vector<26x180xf32> to vector<26x180xbf16>
    %c4_54 = arith.constant 4 : index
    %c0_55 = arith.constant 0 : index
    %c0_56 = arith.constant 0 : index
    %78 = vector.load %arg6[%c4_54, %c0_55, %c0_56] : memref<5x180x416xbf16, #tpu.memory_space<vmem>>, vector<1x180x416xbf16>
    %79 = vector.shape_cast %78 : vector<1x180x416xbf16> to vector<180x416xbf16>
    %cst_57 = arith.constant dense<0.000000e+00> : vector<26x416xf32>
    %80 = tpu.matmul %77, %79, %cst_57 {dimension_numbers = #tpu.dot_dimension_numbers<[1], [0], [0], [1], [0, 0, 1, 1], [], []>} : vector<26x180xbf16>, vector<180x416xbf16>, vector<26x416xf32> -> vector<26x416xf32>
    %81 = arith.addf %75, %80 : vector<26x416xf32>
    %82 = vector.broadcast %52 : vector<1x416xf32> to vector<26x416xf32>
    %83 = arith.addf %81, %82 : vector<26x416xf32>
    %cst_58 = arith.constant 0.000000e+00 : f32
    %84 = vector.broadcast %cst_58 : f32 to vector<26x416xf32>
    %85 = arith.maximumf %83, %84 : vector<26x416xf32>
    %86 = arith.truncf %85 : vector<26x416xf32> to vector<26x416xbf16>
    %c0_59 = arith.constant 0 : index
    %c0_60 = arith.constant 0 : index
    %c0_61 = arith.constant 0 : index
    %87 = vector.load %arg8[%c0_59, %c0_60, %c0_61] : memref<2x13x26xbf16, #tpu.memory_space<vmem>>, vector<1x13x26xbf16>
    %88 = vector.shape_cast %87 : vector<1x13x26xbf16> to vector<13x26xbf16>
    %cst_62 = arith.constant dense<0.000000e+00> : vector<13x416xf32>
    %89 = tpu.matmul %88, %86, %cst_62 {dimension_numbers = #tpu.dot_dimension_numbers<[1], [0], [0], [1], [0, 0, 1, 1], [], []>} : vector<13x26xbf16>, vector<26x416xbf16>, vector<13x416xf32> -> vector<13x416xf32>
    %c1_63 = arith.constant 1 : index
    %c0_64 = arith.constant 0 : index
    %c0_65 = arith.constant 0 : index
    %90 = vector.load %arg8[%c1_63, %c0_64, %c0_65] : memref<2x13x26xbf16, #tpu.memory_space<vmem>>, vector<1x13x26xbf16>
    %91 = vector.shape_cast %90 : vector<1x13x26xbf16> to vector<13x26xbf16>
    %cst_66 = arith.constant dense<0.000000e+00> : vector<13x416xf32>
    %92 = tpu.matmul %91, %86, %cst_66 {dimension_numbers = #tpu.dot_dimension_numbers<[1], [0], [0], [1], [0, 0, 1, 1], [], []>} : vector<13x26xbf16>, vector<26x416xbf16>, vector<13x416xf32> -> vector<13x416xf32>
    %93 = arith.maximumf %89, %92 : vector<13x416xf32>
    %94 = arith.truncf %93 : vector<13x416xf32> to vector<13x416xbf16>
    %c0_67 = arith.constant 0 : index
    %c0_68 = arith.constant 0 : index
    %c0_69 = arith.constant 0 : index
    %95 = vector.load %arg9[%c0_67, %c0_68, %c0_69] : memref<2x416x208xbf16, #tpu.memory_space<vmem>>, vector<1x416x208xbf16>
    %96 = vector.shape_cast %95 : vector<1x416x208xbf16> to vector<416x208xbf16>
    %cst_70 = arith.constant dense<0.000000e+00> : vector<13x208xf32>
    %97 = tpu.matmul %94, %96, %cst_70 {dimension_numbers = #tpu.dot_dimension_numbers<[1], [0], [0], [1], [0, 0, 1, 1], [], []>} : vector<13x416xbf16>, vector<416x208xbf16>, vector<13x208xf32> -> vector<13x208xf32>
    %c1_71 = arith.constant 1 : index
    %c0_72 = arith.constant 0 : index
    %c0_73 = arith.constant 0 : index
    %98 = vector.load %arg9[%c1_71, %c0_72, %c0_73] : memref<2x416x208xbf16, #tpu.memory_space<vmem>>, vector<1x416x208xbf16>
    %99 = vector.shape_cast %98 : vector<1x416x208xbf16> to vector<416x208xbf16>
    %cst_74 = arith.constant dense<0.000000e+00> : vector<13x208xf32>
    %100 = tpu.matmul %94, %99, %cst_74 {dimension_numbers = #tpu.dot_dimension_numbers<[1], [0], [0], [1], [0, 0, 1, 1], [], []>} : vector<13x416xbf16>, vector<416x208xbf16>, vector<13x208xf32> -> vector<13x208xf32>
    %101 = arith.maximumf %97, %100 : vector<13x208xf32>
    %c0_75 = arith.constant 0 : index
    %c0_76 = arith.constant 0 : index
    %102 = vector.load %arg11[%c0_75, %c0_76] : memref<1x120xf32, #tpu.memory_space<vmem>>, vector<1x120xf32>
    %103 = vector.extract_strided_slice %101 {offsets = [0, 0], sizes = [1, 208], strides = [1, 1]} : vector<13x208xf32> to vector<1x208xf32>
    %104 = arith.truncf %103 : vector<1x208xf32> to vector<1x208xbf16>
    %c0_77 = arith.constant 0 : index
    %c0_78 = arith.constant 0 : index
    %c0_79 = arith.constant 0 : index
    %105 = vector.load %arg10[%c0_77, %c0_78, %c0_79] : memref<13x208x120xbf16, #tpu.memory_space<vmem>>, vector<1x208x120xbf16>
    %106 = vector.shape_cast %105 : vector<1x208x120xbf16> to vector<208x120xbf16>
    %cst_80 = arith.constant dense<0.000000e+00> : vector<1x120xf32>
    %107 = tpu.matmul %104, %106, %cst_80 {dimension_numbers = #tpu.dot_dimension_numbers<[1], [0], [0], [1], [0, 0, 1, 1], [], []>} : vector<1x208xbf16>, vector<208x120xbf16>, vector<1x120xf32> -> vector<1x120xf32>
    %108 = arith.addf %102, %107 : vector<1x120xf32>
    %109 = vector.extract_strided_slice %101 {offsets = [1, 0], sizes = [1, 208], strides = [1, 1]} : vector<13x208xf32> to vector<1x208xf32>
    %110 = arith.truncf %109 : vector<1x208xf32> to vector<1x208xbf16>
    %c1_81 = arith.constant 1 : index
    %c0_82 = arith.constant 0 : index
    %c0_83 = arith.constant 0 : index
    %111 = vector.load %arg10[%c1_81, %c0_82, %c0_83] : memref<13x208x120xbf16, #tpu.memory_space<vmem>>, vector<1x208x120xbf16>
    %112 = vector.shape_cast %111 : vector<1x208x120xbf16> to vector<208x120xbf16>
    %cst_84 = arith.constant dense<0.000000e+00> : vector<1x120xf32>
    %113 = tpu.matmul %110, %112, %cst_84 {dimension_numbers = #tpu.dot_dimension_numbers<[1], [0], [0], [1], [0, 0, 1, 1], [], []>} : vector<1x208xbf16>, vector<208x120xbf16>, vector<1x120xf32> -> vector<1x120xf32>
    %114 = arith.addf %108, %113 : vector<1x120xf32>
    %115 = vector.extract_strided_slice %101 {offsets = [2, 0], sizes = [1, 208], strides = [1, 1]} : vector<13x208xf32> to vector<1x208xf32>
    %116 = arith.truncf %115 : vector<1x208xf32> to vector<1x208xbf16>
    %c2_85 = arith.constant 2 : index
    %c0_86 = arith.constant 0 : index
    %c0_87 = arith.constant 0 : index
    %117 = vector.load %arg10[%c2_85, %c0_86, %c0_87] : memref<13x208x120xbf16, #tpu.memory_space<vmem>>, vector<1x208x120xbf16>
    %118 = vector.shape_cast %117 : vector<1x208x120xbf16> to vector<208x120xbf16>
    %cst_88 = arith.constant dense<0.000000e+00> : vector<1x120xf32>
    %119 = tpu.matmul %116, %118, %cst_88 {dimension_numbers = #tpu.dot_dimension_numbers<[1], [0], [0], [1], [0, 0, 1, 1], [], []>} : vector<1x208xbf16>, vector<208x120xbf16>, vector<1x120xf32> -> vector<1x120xf32>
    %120 = arith.addf %114, %119 : vector<1x120xf32>
    %121 = vector.extract_strided_slice %101 {offsets = [3, 0], sizes = [1, 208], strides = [1, 1]} : vector<13x208xf32> to vector<1x208xf32>
    %122 = arith.truncf %121 : vector<1x208xf32> to vector<1x208xbf16>
    %c3_89 = arith.constant 3 : index
    %c0_90 = arith.constant 0 : index
    %c0_91 = arith.constant 0 : index
    %123 = vector.load %arg10[%c3_89, %c0_90, %c0_91] : memref<13x208x120xbf16, #tpu.memory_space<vmem>>, vector<1x208x120xbf16>
    %124 = vector.shape_cast %123 : vector<1x208x120xbf16> to vector<208x120xbf16>
    %cst_92 = arith.constant dense<0.000000e+00> : vector<1x120xf32>
    %125 = tpu.matmul %122, %124, %cst_92 {dimension_numbers = #tpu.dot_dimension_numbers<[1], [0], [0], [1], [0, 0, 1, 1], [], []>} : vector<1x208xbf16>, vector<208x120xbf16>, vector<1x120xf32> -> vector<1x120xf32>
    %126 = arith.addf %120, %125 : vector<1x120xf32>
    %127 = vector.extract_strided_slice %101 {offsets = [4, 0], sizes = [1, 208], strides = [1, 1]} : vector<13x208xf32> to vector<1x208xf32>
    %128 = arith.truncf %127 : vector<1x208xf32> to vector<1x208xbf16>
    %c4_93 = arith.constant 4 : index
    %c0_94 = arith.constant 0 : index
    %c0_95 = arith.constant 0 : index
    %129 = vector.load %arg10[%c4_93, %c0_94, %c0_95] : memref<13x208x120xbf16, #tpu.memory_space<vmem>>, vector<1x208x120xbf16>
    %130 = vector.shape_cast %129 : vector<1x208x120xbf16> to vector<208x120xbf16>
    %cst_96 = arith.constant dense<0.000000e+00> : vector<1x120xf32>
    %131 = tpu.matmul %128, %130, %cst_96 {dimension_numbers = #tpu.dot_dimension_numbers<[1], [0], [0], [1], [0, 0, 1, 1], [], []>} : vector<1x208xbf16>, vector<208x120xbf16>, vector<1x120xf32> -> vector<1x120xf32>
    %132 = arith.addf %126, %131 : vector<1x120xf32>
    %133 = vector.extract_strided_slice %101 {offsets = [5, 0], sizes = [1, 208], strides = [1, 1]} : vector<13x208xf32> to vector<1x208xf32>
    %134 = arith.truncf %133 : vector<1x208xf32> to vector<1x208xbf16>
    %c5 = arith.constant 5 : index
    %c0_97 = arith.constant 0 : index
    %c0_98 = arith.constant 0 : index
    %135 = vector.load %arg10[%c5, %c0_97, %c0_98] : memref<13x208x120xbf16, #tpu.memory_space<vmem>>, vector<1x208x120xbf16>
    %136 = vector.shape_cast %135 : vector<1x208x120xbf16> to vector<208x120xbf16>
    %cst_99 = arith.constant dense<0.000000e+00> : vector<1x120xf32>
    %137 = tpu.matmul %134, %136, %cst_99 {dimension_numbers = #tpu.dot_dimension_numbers<[1], [0], [0], [1], [0, 0, 1, 1], [], []>} : vector<1x208xbf16>, vector<208x120xbf16>, vector<1x120xf32> -> vector<1x120xf32>
    %138 = arith.addf %132, %137 : vector<1x120xf32>
    %139 = vector.extract_strided_slice %101 {offsets = [6, 0], sizes = [1, 208], strides = [1, 1]} : vector<13x208xf32> to vector<1x208xf32>
    %140 = arith.truncf %139 : vector<1x208xf32> to vector<1x208xbf16>
    %c6 = arith.constant 6 : index
    %c0_100 = arith.constant 0 : index
    %c0_101 = arith.constant 0 : index
    %141 = vector.load %arg10[%c6, %c0_100, %c0_101] : memref<13x208x120xbf16, #tpu.memory_space<vmem>>, vector<1x208x120xbf16>
    %142 = vector.shape_cast %141 : vector<1x208x120xbf16> to vector<208x120xbf16>
    %cst_102 = arith.constant dense<0.000000e+00> : vector<1x120xf32>
    %143 = tpu.matmul %140, %142, %cst_102 {dimension_numbers = #tpu.dot_dimension_numbers<[1], [0], [0], [1], [0, 0, 1, 1], [], []>} : vector<1x208xbf16>, vector<208x120xbf16>, vector<1x120xf32> -> vector<1x120xf32>
    %144 = arith.addf %138, %143 : vector<1x120xf32>
    %145 = vector.extract_strided_slice %101 {offsets = [7, 0], sizes = [1, 208], strides = [1, 1]} : vector<13x208xf32> to vector<1x208xf32>
    %146 = arith.truncf %145 : vector<1x208xf32> to vector<1x208xbf16>
    %c7 = arith.constant 7 : index
    %c0_103 = arith.constant 0 : index
    %c0_104 = arith.constant 0 : index
    %147 = vector.load %arg10[%c7, %c0_103, %c0_104] : memref<13x208x120xbf16, #tpu.memory_space<vmem>>, vector<1x208x120xbf16>
    %148 = vector.shape_cast %147 : vector<1x208x120xbf16> to vector<208x120xbf16>
    %cst_105 = arith.constant dense<0.000000e+00> : vector<1x120xf32>
    %149 = tpu.matmul %146, %148, %cst_105 {dimension_numbers = #tpu.dot_dimension_numbers<[1], [0], [0], [1], [0, 0, 1, 1], [], []>} : vector<1x208xbf16>, vector<208x120xbf16>, vector<1x120xf32> -> vector<1x120xf32>
    %150 = arith.addf %144, %149 : vector<1x120xf32>
    %151 = vector.extract_strided_slice %101 {offsets = [8, 0], sizes = [1, 208], strides = [1, 1]} : vector<13x208xf32> to vector<1x208xf32>
    %152 = arith.truncf %151 : vector<1x208xf32> to vector<1x208xbf16>
    %c8 = arith.constant 8 : index
    %c0_106 = arith.constant 0 : index
    %c0_107 = arith.constant 0 : index
    %153 = vector.load %arg10[%c8, %c0_106, %c0_107] : memref<13x208x120xbf16, #tpu.memory_space<vmem>>, vector<1x208x120xbf16>
    %154 = vector.shape_cast %153 : vector<1x208x120xbf16> to vector<208x120xbf16>
    %cst_108 = arith.constant dense<0.000000e+00> : vector<1x120xf32>
    %155 = tpu.matmul %152, %154, %cst_108 {dimension_numbers = #tpu.dot_dimension_numbers<[1], [0], [0], [1], [0, 0, 1, 1], [], []>} : vector<1x208xbf16>, vector<208x120xbf16>, vector<1x120xf32> -> vector<1x120xf32>
    %156 = arith.addf %150, %155 : vector<1x120xf32>
    %157 = vector.extract_strided_slice %101 {offsets = [9, 0], sizes = [1, 208], strides = [1, 1]} : vector<13x208xf32> to vector<1x208xf32>
    %158 = arith.truncf %157 : vector<1x208xf32> to vector<1x208xbf16>
    %c9 = arith.constant 9 : index
    %c0_109 = arith.constant 0 : index
    %c0_110 = arith.constant 0 : index
    %159 = vector.load %arg10[%c9, %c0_109, %c0_110] : memref<13x208x120xbf16, #tpu.memory_space<vmem>>, vector<1x208x120xbf16>
    %160 = vector.shape_cast %159 : vector<1x208x120xbf16> to vector<208x120xbf16>
    %cst_111 = arith.constant dense<0.000000e+00> : vector<1x120xf32>
    %161 = tpu.matmul %158, %160, %cst_111 {dimension_numbers = #tpu.dot_dimension_numbers<[1], [0], [0], [1], [0, 0, 1, 1], [], []>} : vector<1x208xbf16>, vector<208x120xbf16>, vector<1x120xf32> -> vector<1x120xf32>
    %162 = arith.addf %156, %161 : vector<1x120xf32>
    %163 = vector.extract_strided_slice %101 {offsets = [10, 0], sizes = [1, 208], strides = [1, 1]} : vector<13x208xf32> to vector<1x208xf32>
    %164 = arith.truncf %163 : vector<1x208xf32> to vector<1x208xbf16>
    %c10 = arith.constant 10 : index
    %c0_112 = arith.constant 0 : index
    %c0_113 = arith.constant 0 : index
    %165 = vector.load %arg10[%c10, %c0_112, %c0_113] : memref<13x208x120xbf16, #tpu.memory_space<vmem>>, vector<1x208x120xbf16>
    %166 = vector.shape_cast %165 : vector<1x208x120xbf16> to vector<208x120xbf16>
    %cst_114 = arith.constant dense<0.000000e+00> : vector<1x120xf32>
    %167 = tpu.matmul %164, %166, %cst_114 {dimension_numbers = #tpu.dot_dimension_numbers<[1], [0], [0], [1], [0, 0, 1, 1], [], []>} : vector<1x208xbf16>, vector<208x120xbf16>, vector<1x120xf32> -> vector<1x120xf32>
    %168 = arith.addf %162, %167 : vector<1x120xf32>
    %169 = vector.extract_strided_slice %101 {offsets = [11, 0], sizes = [1, 208], strides = [1, 1]} : vector<13x208xf32> to vector<1x208xf32>
    %170 = arith.truncf %169 : vector<1x208xf32> to vector<1x208xbf16>
    %c11 = arith.constant 11 : index
    %c0_115 = arith.constant 0 : index
    %c0_116 = arith.constant 0 : index
    %171 = vector.load %arg10[%c11, %c0_115, %c0_116] : memref<13x208x120xbf16, #tpu.memory_space<vmem>>, vector<1x208x120xbf16>
    %172 = vector.shape_cast %171 : vector<1x208x120xbf16> to vector<208x120xbf16>
    %cst_117 = arith.constant dense<0.000000e+00> : vector<1x120xf32>
    %173 = tpu.matmul %170, %172, %cst_117 {dimension_numbers = #tpu.dot_dimension_numbers<[1], [0], [0], [1], [0, 0, 1, 1], [], []>} : vector<1x208xbf16>, vector<208x120xbf16>, vector<1x120xf32> -> vector<1x120xf32>
    %174 = arith.addf %168, %173 : vector<1x120xf32>
    %175 = vector.extract_strided_slice %101 {offsets = [12, 0], sizes = [1, 208], strides = [1, 1]} : vector<13x208xf32> to vector<1x208xf32>
    %176 = arith.truncf %175 : vector<1x208xf32> to vector<1x208xbf16>
    %c12 = arith.constant 12 : index
    %c0_118 = arith.constant 0 : index
    %c0_119 = arith.constant 0 : index
    %177 = vector.load %arg10[%c12, %c0_118, %c0_119] : memref<13x208x120xbf16, #tpu.memory_space<vmem>>, vector<1x208x120xbf16>
    %178 = vector.shape_cast %177 : vector<1x208x120xbf16> to vector<208x120xbf16>
    %cst_120 = arith.constant dense<0.000000e+00> : vector<1x120xf32>
    %179 = tpu.matmul %176, %178, %cst_120 {dimension_numbers = #tpu.dot_dimension_numbers<[1], [0], [0], [1], [0, 0, 1, 1], [], []>} : vector<1x208xbf16>, vector<208x120xbf16>, vector<1x120xf32> -> vector<1x120xf32>
    %180 = arith.addf %174, %179 : vector<1x120xf32>
    %cst_121 = arith.constant 0.000000e+00 : f32
    %181 = vector.broadcast %cst_121 : f32 to vector<1x120xf32>
    %182 = arith.maximumf %180, %181 : vector<1x120xf32>
    %183 = arith.truncf %182 : vector<1x120xf32> to vector<1x120xbf16>
    %c0_122 = arith.constant 0 : index
    %c0_123 = arith.constant 0 : index
    %184 = vector.load %arg12[%c0_122, %c0_123] : memref<120x84xbf16, #tpu.memory_space<vmem>>, vector<120x84xbf16>
    %cst_124 = arith.constant dense<0.000000e+00> : vector<1x84xf32>
    %185 = tpu.matmul %183, %184, %cst_124 {dimension_numbers = #tpu.dot_dimension_numbers<[1], [0], [0], [1], [0, 0, 1, 1], [], []>} : vector<1x120xbf16>, vector<120x84xbf16>, vector<1x84xf32> -> vector<1x84xf32>
    %c0_125 = arith.constant 0 : index
    %c0_126 = arith.constant 0 : index
    %186 = vector.load %arg13[%c0_125, %c0_126] : memref<1x84xf32, #tpu.memory_space<vmem>>, vector<1x84xf32>
    %187 = arith.addf %185, %186 : vector<1x84xf32>
    %cst_127 = arith.constant 0.000000e+00 : f32
    %188 = vector.broadcast %cst_127 : f32 to vector<1x84xf32>
    %189 = arith.maximumf %187, %188 : vector<1x84xf32>
    %190 = arith.truncf %189 : vector<1x84xf32> to vector<1x84xbf16>
    %c0_128 = arith.constant 0 : index
    %c0_129 = arith.constant 0 : index
    %191 = vector.load %arg14[%c0_128, %c0_129] : memref<84x10xbf16, #tpu.memory_space<vmem>>, vector<84x10xbf16>
    %cst_130 = arith.constant dense<0.000000e+00> : vector<1x10xf32>
    %192 = tpu.matmul %190, %191, %cst_130 {dimension_numbers = #tpu.dot_dimension_numbers<[1], [0], [0], [1], [0, 0, 1, 1], [], []>} : vector<1x84xbf16>, vector<84x10xbf16>, vector<1x10xf32> -> vector<1x10xf32>
    %c0_131 = arith.constant 0 : index
    %c0_132 = arith.constant 0 : index
    %193 = vector.load %arg15[%c0_131, %c0_132] : memref<1x10xf32, #tpu.memory_space<vmem>>, vector<1x10xf32>
    %194 = arith.addf %192, %193 : vector<1x10xf32>
    %cst_133 = arith.constant dense<0xFF800000> : vector<1xf32>
    %195 = vector.multi_reduction <maximumf>, %194, %cst_133 [1] : vector<1x10xf32> to vector<1xf32>
    %196 = vector.shape_cast %195 : vector<1xf32> to vector<1x1xf32>
    %197 = vector.broadcast %196 : vector<1x1xf32> to vector<1x10xf32>
    %198 = arith.subf %194, %197 : vector<1x10xf32>
    %199 = math.exp %198 : vector<1x10xf32>
    %cst_134 = arith.constant dense<0.000000e+00> : vector<1xf32>
    %200 = vector.multi_reduction <add>, %199, %cst_134 [1] : vector<1x10xf32> to vector<1xf32>
    %201 = vector.shape_cast %200 : vector<1xf32> to vector<1x1xf32>
    %202 = math.log %201 : vector<1x1xf32>
    %203 = vector.broadcast %202 : vector<1x1xf32> to vector<1x10xf32>
    %204 = arith.subf %198, %203 : vector<1x10xf32>
    %c0_135 = arith.constant 0 : index
    %c0_136 = arith.constant 0 : index
    %c0_137 = arith.constant 0 : index
    %205 = vector.load %arg16[%c0_135, %c0_136, %c0_137] : memref<1x1x10xf32, #tpu.memory_space<vmem>>, vector<1x1x10xf32>
    %206 = vector.shape_cast %205 : vector<1x1x10xf32> to vector<1x10xf32>
    %207 = vector.shape_cast %204 : vector<1x10xf32> to vector<1x1x10xf32>
    tpu.vector_store %arg16[%c0_135, %c0_136, %c0_137], %207 {strides = array<i32>} : memref<1x1x10xf32, #tpu.memory_space<vmem>>, vector<1x1x10xf32>,
    return
  }
  func.func @transform_0(%arg0: i32) -> (i32, i32, i32) {
    %c0_i32 = arith.constant 0 : i32
    %c0_i32_0 = arith.constant 0 : i32
    %c0_i32_1 = arith.constant 0 : i32
    return %arg0, %c0_i32, %c0_i32_0 : i32, i32, i32
  }
  func.func @transform_1(%arg0: i32) -> (i32, i32, i32) {
    %c0_i32 = arith.constant 0 : i32
    %c0_i32_0 = arith.constant 0 : i32
    %c0_i32_1 = arith.constant 0 : i32
    %c0_i32_2 = arith.constant 0 : i32
    return %c0_i32, %c0_i32_0, %c0_i32_1 : i32, i32, i32
  }
  func.func @transform_2(%arg0: i32) -> (i32, i32) {
    %c0_i32 = arith.constant 0 : i32
    %c0_i32_0 = arith.constant 0 : i32
    %c0_i32_1 = arith.constant 0 : i32
    return %c0_i32, %c0_i32_0 : i32, i32
  }
  func.func @transform_3(%arg0: i32) -> (i32, i32, i32) {
    %c0_i32 = arith.constant 0 : i32
    %c0_i32_0 = arith.constant 0 : i32
    %c0_i32_1 = arith.constant 0 : i32
    %c0_i32_2 = arith.constant 0 : i32
    return %c0_i32, %c0_i32_0, %c0_i32_1 : i32, i32, i32
  }
  func.func @transform_4(%arg0: i32) -> (i32, i32, i32) {
    %c0_i32 = arith.constant 0 : i32
    %c0_i32_0 = arith.constant 0 : i32
    %c0_i32_1 = arith.constant 0 : i32
    %c0_i32_2 = arith.constant 0 : i32
    return %c0_i32, %c0_i32_0, %c0_i32_1 : i32, i32, i32
  }
  func.func @transform_5(%arg0: i32) -> (i32, i32, i32) {
    %c0_i32 = arith.constant 0 : i32
    %c0_i32_0 = arith.constant 0 : i32
    %c0_i32_1 = arith.constant 0 : i32
    %c0_i32_2 = arith.constant 0 : i32
    return %c0_i32, %c0_i32_0, %c0_i32_1 : i32, i32, i32
  }
  func.func @transform_6(%arg0: i32) -> (i32, i32) {
    %c0_i32 = arith.constant 0 : i32
    %c0_i32_0 = arith.constant 0 : i32
    %c0_i32_1 = arith.constant 0 : i32
    return %c0_i32, %c0_i32_0 : i32, i32
  }
  func.func @transform_7(%arg0: i32) -> (i32, i32, i32) {
    %c0_i32 = arith.constant 0 : i32
    %c0_i32_0 = arith.constant 0 : i32
    %c0_i32_1 = arith.constant 0 : i32
    %c0_i32_2 = arith.constant 0 : i32
    return %c0_i32, %c0_i32_0, %c0_i32_1 : i32, i32, i32
  }
  func.func @transform_8(%arg0: i32) -> (i32, i32, i32) {
    %c0_i32 = arith.constant 0 : i32
    %c0_i32_0 = arith.constant 0 : i32
    %c0_i32_1 = arith.constant 0 : i32
    %c0_i32_2 = arith.constant 0 : i32
    return %c0_i32, %c0_i32_0, %c0_i32_1 : i32, i32, i32
  }
  func.func @transform_9(%arg0: i32) -> (i32, i32, i32) {
    %c0_i32 = arith.constant 0 : i32
    %c0_i32_0 = arith.constant 0 : i32
    %c0_i32_1 = arith.constant 0 : i32
    %c0_i32_2 = arith.constant 0 : i32
    return %c0_i32, %c0_i32_0, %c0_i32_1 : i32, i32, i32
  }
  func.func @transform_10(%arg0: i32) -> (i32, i32) {
    %c0_i32 = arith.constant 0 : i32
    %c0_i32_0 = arith.constant 0 : i32
    %c0_i32_1 = arith.constant 0 : i32
    return %c0_i32, %c0_i32_0 : i32, i32
  }
  func.func @transform_11(%arg0: i32) -> (i32, i32) {
    %c0_i32 = arith.constant 0 : i32
    %c0_i32_0 = arith.constant 0 : i32
    %c0_i32_1 = arith.constant 0 : i32
    return %c0_i32, %c0_i32_0 : i32, i32
  }
  func.func @transform_12(%arg0: i32) -> (i32, i32) {
    %c0_i32 = arith.constant 0 : i32
    %c0_i32_0 = arith.constant 0 : i32
    %c0_i32_1 = arith.constant 0 : i32
    return %c0_i32, %c0_i32_0 : i32, i32
  }
  func.func @transform_13(%arg0: i32) -> (i32, i32) {
    %c0_i32 = arith.constant 0 : i32
    %c0_i32_0 = arith.constant 0 : i32
    %c0_i32_1 = arith.constant 0 : i32
    return %c0_i32, %c0_i32_0 : i32, i32
  }
  func.func @transform_14(%arg0: i32) -> (i32, i32) {
    %c0_i32 = arith.constant 0 : i32
    %c0_i32_0 = arith.constant 0 : i32
    %c0_i32_1 = arith.constant 0 : i32
    return %c0_i32, %c0_i32_0 : i32, i32
  }
  func.func @transform_15(%arg0: i32) -> (i32, i32, i32) {
    %c0_i32 = arith.constant 0 : i32
    %c0_i32_0 = arith.constant 0 : i32
    %c0_i32_1 = arith.constant 0 : i32
    return %arg0, %c0_i32, %c0_i32_0 : i32, i32, i32
  }
}

</mosaic_0001>

<llo_original>
// kernel: _forward_impl.1
$region0: #{_forward_impl.1}
  #allocation0 [shape = 'u32[]', space=smem, size = 0x4, offset = 0x4, fixed_abs, tag = 'smem constant byte address 0x4 - core index']
  #allocation1 [shape = 'u32[72,128]{1,0:T(1,128)}', space=vmem, size = 0x9000, scoped, tag = 'internal scratch']
  %s0 = inlined_call_operand.vmem [shape: f32[4,64,192], index: 0, kind: input, shape index: {}]
  %s1 = inlined_call_operand.vmem [shape: bf16[5,192,360], index: 1, kind: input, shape index: {}]
  %s2 = inlined_call_operand.vmem [shape: f32[1,360], index: 2, kind: input, shape index: {}]
  %s3 = inlined_call_operand.vmem [shape: bf16[2,30,60], index: 3, kind: input, shape index: {}]
  %s4 = inlined_call_operand.vmem [shape: bf16[2,360,180], index: 4, kind: input, shape index: {}]
  %s5 = inlined_call_operand.vmem [shape: bf16[5,180,416], index: 5, kind: input, shape index: {}]
  %s6 = inlined_call_operand.vmem [shape: f32[1,416], index: 6, kind: input, shape index: {}]
  %s7 = inlined_call_operand.vmem [shape: bf16[2,13,26], index: 7, kind: input, shape index: {}]
  %s8 = inlined_call_operand.hbm [shape: bf16[2,416,208], index: 8, kind: input, shape index: {}]
  %s9 = inlined_call_operand.hbm [shape: bf16[13,208,120], index: 9, kind: input, shape index: {}]
  %s10 = inlined_call_operand.vmem [shape: f32[1,120], index: 10, kind: input, shape index: {}]
  %s11 = inlined_call_operand.vmem [shape: bf16[120,84], index: 11, kind: input, shape index: {}]
  %s12 = inlined_call_operand.vmem [shape: f32[1,84], index: 12, kind: input, shape index: {}]
  %s13 = inlined_call_operand.vmem [shape: bf16[84,10], index: 13, kind: input, shape index: {}]
  %s14 = inlined_call_operand.vmem [shape: f32[1,10], index: 14, kind: input, shape index: {}]
  %s15 = inlined_call_operand.hbm [shape: f32[4,1,10], index: 15, kind: output, shape index: {}]
  %s16 = sld [smem:[#allocation0]]
  $region101: #{_forward_impl.1} parent=0
    _
  %s18 = ssub.s32 1, %s16
  %s19 = scalar_select 0, %s18, %s16
  $region1: #{_forward_impl.1} parent=0
    #allocation2 [shape = 'u8[425984]{0}', space=vmem, size = 0x68000, scoped, tag = 'input window, operand 8, single buffered']
    #allocation3 [shape = 's32[2]{0}', space=sflag, size = 0x8, scoped, tag = 'scoped memory for _forward_impl.1']
    #allocation4 [shape = 's32[2]{0}', space=sflag, size = 0x8, scoped, tag = 'scoped memory for _forward_impl.1']
    #allocation5 [shape = 'u8[692224]{0}', space=vmem, size = 0xa9000, scoped, tag = 'input window, operand 9, single buffered']
    #allocation6 [shape = 's32[1]{0}', space=sflag, size = 0x4, scoped, tag = 'scoped memory for _forward_impl.1']
    #allocation7 [shape = 'u8[1024]{0}', space=vmem, size = 0x400, scoped, tag = 'output window, operand 0']
    %20 = vsyncpa [#allocation3], 0
    %21 = vsyncpa [#allocation6], 0
    %22 = vsyncpa [#allocation4], 0
    %s23 = scalar_lea.sflag [#allocation4], 1
    %24 = vsyncpa %s23, 0
    loop: start=0, step=1, limit=6
    $region2: #{_forward_impl.1} parent=1 // loop_pre_header
      _
    $region3: #{_forward_impl.1} parent=1 // loop_header
      %s26 = sphi 0, %s30
      %p27 = scmp.ge.s32.totalorder %s26, 6
      %s36 = sphi 0, %s38
      %s39 = sphi 0, %s36
      %s40 = sphi 0, %s39
      %s56 = sphi 0, %s40
      %s60 = sphi 0, %s60
      %s62 = sphi 0, %s60
      %s63 = sphi 0, %s62
      %s77 = sphi 0, %s63
      %s81 = sphi 0, %s81
      %s83 = sphi 0, %s81
      %s84 = sphi 0, %s83
      %s98 = sphi 0, %s84
      %s102 = sphi 0, %s102
      %s104 = sphi 0, %s102
      %s105 = sphi 0, %s104
      %s119 = sphi 0, %s105
      %s123 = sphi 0, %s123
      %s125 = sphi 0, %s123
      %s126 = sphi 0, %s125
      %s140 = sphi 0, %s126
      %s144 = sphi 0, %s144
      %s146 = sphi 0, %s144
      %s147 = sphi 0, %s146
      %s161 = sphi 0, %s147
      %s165 = sphi 0, %s165
      %s167 = sphi 0, %s165
      %s168 = sphi 0, %s167
      %s182 = sphi 0, %s168
      %s186 = sphi 0, %s186
      %s188 = sphi 0, %s186
      %s189 = sphi 0, %s188
      %s203 = sphi 0, %s189
      %s207 = sphi 0, %s207
      %s209 = sphi 0, %s207
      %s210 = sphi 0, %s209
      %s224 = sphi 0, %s210
      %s228 = sphi 0, %s228
      %s230 = sphi 0, %s228
      %s231 = sphi 0, %s230
      %s245 = sphi 0, %s231
      %s249 = sphi 0, %s249
      %s251 = sphi 0, %s249
      %s252 = sphi 0, %s251
      %s266 = sphi 0, %s252
      %s270 = sphi 0, %s270
      %s272 = sphi 0, %s270
      %s273 = sphi 0, %s272
      %s287 = sphi 0, %s273
      %s291 = sphi 0, %s291
      %s293 = sphi 0, %s291
      %s294 = sphi 0, %s293
      %s308 = sphi 0, %s294
      %s312 = sphi 0, %s312
      %s314 = sphi 0, %s312
      %s315 = sphi 0, %s314
      %s329 = sphi 0, %s315
      %s333 = sphi 0, %s333
      %s335 = sphi 0, %s333
      %s336 = sphi 0, %s335
      %s350 = sphi 0, %s336
      %s356 = sphi 0, %s358
      %s359 = sphi 0, %s356
      %s360 = sphi 0, %s359
      %s376 = sphi 0, %s360
    $region4: #{_forward_impl.1} parent=1 // loop_header_branch
      %29 = sbr.rel (%p27) target = $region8
    $region5: #{_forward_impl.1} parent=1 // loop_body
      %s31 = ssub.s32 %s26, 1
      %s32 = ssub.s32 %s26, 2
      %s33 = sadd.s32 %s26, 1
      %s34 = ssub.s32 %s26, %s33
      %p35 = scmp.eq.s32.totalorder %s34, 0
      %s37 = sadd.s32 %s36, 1
      %s38 = scalar_select %p35, %s36, %s37
      %p41 = pneg %p35
      %p42 = scmp.eq.s32.totalorder %s26, 3
      %p43 = por %p41, %p42
      %p44 = scmp.ne.s32.totalorder %s36, %s39
      %p45 = scmp.eq.s32.totalorder %s26, 0
      %p46 = por %p44, %p45
      %p47 = scmp.ne.s32.totalorder %s36, %s39
      %p48 = scmp.eq.s32.totalorder %s31, 3
      %p49 = por %p47, %p48
      %p50 = scmp.ne.s32.totalorder %s39, %s40
      %p51 = scmp.eq.s32.totalorder %s31, 0
      %p52 = por %p50, %p51
      %p53 = scmp.ne.s32.totalorder %s39, %s40
      %p54 = scmp.eq.s32.totalorder %s32, 3
      %p55 = por %p53, %p54
      %p57 = scmp.ne.s32.totalorder %s40, %s56
      %p58 = scmp.eq.s32.totalorder %s32, 0
      %p59 = por %p57, %p58
      %s61 = sadd.s32 %s60, 1
      %p64 = scmp.eq.s32.totalorder %s26, 3
      %p65 = scmp.ne.s32.totalorder %s60, %s62
      %p66 = scmp.eq.s32.totalorder %s26, 0
      %p67 = por %p65, %p66
      %p68 = scmp.ne.s32.totalorder %s60, %s62
      %p69 = scmp.eq.s32.totalorder %s31, 3
      %p70 = por %p68, %p69
      %p71 = scmp.ne.s32.totalorder %s62, %s63
      %p72 = scmp.eq.s32.totalorder %s31, 0
      %p73 = por %p71, %p72
      %p74 = scmp.ne.s32.totalorder %s62, %s63
      %p75 = scmp.eq.s32.totalorder %s32, 3
      %p76 = por %p74, %p75
      %p78 = scmp.ne.s32.totalorder %s63, %s77
      %p79 = scmp.eq.s32.totalorder %s32, 0
      %p80 = por %p78, %p79
      %s82 = sadd.s32 %s81, 1
      %p85 = scmp.eq.s32.totalorder %s26, 3
      %p86 = scmp.ne.s32.totalorder %s81, %s83
      %p87 = scmp.eq.s32.totalorder %s26, 0
      %p88 = por %p86, %p87
      %p89 = scmp.ne.s32.totalorder %s81, %s83
      %p90 = scmp.eq.s32.totalorder %s31, 3
      %p91 = por %p89, %p90
      %p92 = scmp.ne.s32.totalorder %s83, %s84
      %p93 = scmp.eq.s32.totalorder %s31, 0
      %p94 = por %p92, %p93
      %p95 = scmp.ne.s32.totalorder %s83, %s84
      %p96 = scmp.eq.s32.totalorder %s32, 3
      %p97 = por %p95, %p96
      %p99 = scmp.ne.s32.totalorder %s84, %s98
      %p100 = scmp.eq.s32.totalorder %s32, 0
      %p101 = por %p99, %p100
      %s103 = sadd.s32 %s102, 1
      %p106 = scmp.eq.s32.totalorder %s26, 3
      %p107 = scmp.ne.s32.totalorder %s102, %s104
      %p108 = scmp.eq.s32.totalorder %s26, 0
      %p109 = por %p107, %p108
      %p110 = scmp.ne.s32.totalorder %s102, %s104
      %p111 = scmp.eq.s32.totalorder %s31, 3
      %p112 = por %p110, %p111
      %p113 = scmp.ne.s32.totalorder %s104, %s105
      %p114 = scmp.eq.s32.totalorder %s31, 0
      %p115 = por %p113, %p114
      %p116 = scmp.ne.s32.totalorder %s104, %s105
      %p117 = scmp.eq.s32.totalorder %s32, 3
      %p118 = por %p116, %p117
      %p120 = scmp.ne.s32.totalorder %s105, %s119
      %p121 = scmp.eq.s32.totalorder %s32, 0
      %p122 = por %p120, %p121
      %s124 = sadd.s32 %s123, 1
      %p127 = scmp.eq.s32.totalorder %s26, 3
      %p128 = scmp.ne.s32.totalorder %s123, %s125
      %p129 = scmp.eq.s32.totalorder %s26, 0
      %p130 = por %p128, %p129
      %p131 = scmp.ne.s32.totalorder %s123, %s125
      %p132 = scmp.eq.s32.totalorder %s31, 3
      %p133 = por %p131, %p132
      %p134 = scmp.ne.s32.totalorder %s125, %s126
      %p135 = scmp.eq.s32.totalorder %s31, 0
      %p136 = por %p134, %p135
      %p137 = scmp.ne.s32.totalorder %s125, %s126
      %p138 = scmp.eq.s32.totalorder %s32, 3
      %p139 = por %p137, %p138
      %p141 = scmp.ne.s32.totalorder %s126, %s140
      %p142 = scmp.eq.s32.totalorder %s32, 0
      %p143 = por %p141, %p142
      %s145 = sadd.s32 %s144, 1
      %p148 = scmp.eq.s32.totalorder %s26, 3
      %p149 = scmp.ne.s32.totalorder %s144, %s146
      %p150 = scmp.eq.s32.totalorder %s26, 0
      %p151 = por %p149, %p150
      %p152 = scmp.ne.s32.totalorder %s144, %s146
      %p153 = scmp.eq.s32.totalorder %s31, 3
      %p154 = por %p152, %p153
      %p155 = scmp.ne.s32.totalorder %s146, %s147
      %p156 = scmp.eq.s32.totalorder %s31, 0
      %p157 = por %p155, %p156
      %p158 = scmp.ne.s32.totalorder %s146, %s147
      %p159 = scmp.eq.s32.totalorder %s32, 3
      %p160 = por %p158, %p159
      %p162 = scmp.ne.s32.totalorder %s147, %s161
      %p163 = scmp.eq.s32.totalorder %s32, 0
      %p164 = por %p162, %p163
      %s166 = sadd.s32 %s165, 1
      %p169 = scmp.eq.s32.totalorder %s26, 3
      %p170 = scmp.ne.s32.totalorder %s165, %s167
      %p171 = scmp.eq.s32.totalorder %s26, 0
      %p172 = por %p170, %p171
      %p173 = scmp.ne.s32.totalorder %s165, %s167
      %p174 = scmp.eq.s32.totalorder %s31, 3
      %p175 = por %p173, %p174
      %p176 = scmp.ne.s32.totalorder %s167, %s168
      %p177 = scmp.eq.s32.totalorder %s31, 0
      %p178 = por %p176, %p177
      %p179 = scmp.ne.s32.totalorder %s167, %s168
      %p180 = scmp.eq.s32.totalorder %s32, 3
      %p181 = por %p179, %p180
      %p183 = scmp.ne.s32.totalorder %s168, %s182
      %p184 = scmp.eq.s32.totalorder %s32, 0
      %p185 = por %p183, %p184
      %s187 = sadd.s32 %s186, 1
      %p190 = scmp.eq.s32.totalorder %s26, 3
      %p191 = scmp.ne.s32.totalorder %s186, %s188
      %p192 = scmp.eq.s32.totalorder %s26, 0
      %p193 = por %p191, %p192
      %p194 = scmp.ne.s32.totalorder %s186, %s188
      %p195 = scmp.eq.s32.totalorder %s31, 3
      %p196 = por %p194, %p195
      %p197 = scmp.ne.s32.totalorder %s188, %s189
      %p198 = scmp.eq.s32.totalorder %s31, 0
      %p199 = por %p197, %p198
      %p200 = scmp.ne.s32.totalorder %s188, %s189
      %p201 = scmp.eq.s32.totalorder %s32, 3
      %p202 = por %p200, %p201
      %p204 = scmp.ne.s32.totalorder %s189, %s203
      %p205 = scmp.eq.s32.totalorder %s32, 0
      %p206 = por %p204, %p205
      %s208 = sadd.s32 %s207, 1
      %p211 = scmp.eq.s32.totalorder %s26, 3
      %p212 = scmp.ne.s32.totalorder %s207, %s209
      %p213 = scmp.eq.s32.totalorder %s26, 0
      %p214 = por %p212, %p213
      %p215 = scmp.ne.s32.totalorder %s207, %s209
      %p216 = scmp.eq.s32.totalorder %s31, 3
      %p217 = por %p215, %p216
      %p218 = scmp.ne.s32.totalorder %s209, %s210
      %p219 = scmp.eq.s32.totalorder %s31, 0
      %p220 = por %p218, %p219
      %p221 = scmp.ne.s32.totalorder %s209, %s210
      %p222 = scmp.eq.s32.totalorder %s32, 3
      %p223 = por %p221, %p222
      %p225 = scmp.ne.s32.totalorder %s210, %s224
      %p226 = scmp.eq.s32.totalorder %s32, 0
      %p227 = por %p225, %p226
      %s229 = sadd.s32 %s228, 1
      %p232 = scmp.eq.s32.totalorder %s26, 3
      %p233 = scmp.ne.s32.totalorder %s228, %s230
      %p234 = scmp.eq.s32.totalorder %s26, 0
      %p235 = por %p233, %p234
      %p236 = scmp.ne.s32.totalorder %s228, %s230
      %p237 = scmp.eq.s32.totalorder %s31, 3
      %p238 = por %p236, %p237
      %p239 = scmp.ne.s32.totalorder %s230, %s231
      %p240 = scmp.eq.s32.totalorder %s31, 0
      %p241 = por %p239, %p240
      %p242 = scmp.ne.s32.totalorder %s230, %s231
      %p243 = scmp.eq.s32.totalorder %s32, 3
      %p244 = por %p242, %p243
      %p246 = scmp.ne.s32.totalorder %s231, %s245
      %p247 = scmp.eq.s32.totalorder %s32, 0
      %p248 = por %p246, %p247
      %s250 = sadd.s32 %s249, 1
      %p253 = scmp.eq.s32.totalorder %s26, 3
      %p254 = scmp.ne.s32.totalorder %s249, %s251
      %p255 = scmp.eq.s32.totalorder %s26, 0
      %p256 = por %p254, %p255
      %p257 = scmp.ne.s32.totalorder %s249, %s251
      %p258 = scmp.eq.s32.totalorder %s31, 3
      %p259 = por %p257, %p258
      %p260 = scmp.ne.s32.totalorder %s251, %s252
      %p261 = scmp.eq.s32.totalorder %s31, 0
      %p262 = por %p260, %p261
      %p263 = scmp.ne.s32.totalorder %s251, %s252
      %p264 = scmp.eq.s32.totalorder %s32, 3
      %p265 = por %p263, %p264
      %p267 = scmp.ne.s32.totalorder %s252, %s266
      %p268 = scmp.eq.s32.totalorder %s32, 0
      %p269 = por %p267, %p268
      %s271 = sadd.s32 %s270, 1
      %p274 = scmp.eq.s32.totalorder %s26, 3
      %p275 = scmp.ne.s32.totalorder %s270, %s272
      %p276 = scmp.eq.s32.totalorder %s26, 0
      %p277 = por %p275, %p276
      %p278 = scmp.ne.s32.totalorder %s270, %s272
      %p279 = scmp.eq.s32.totalorder %s31, 3
      %p280 = por %p278, %p279
      %p281 = scmp.ne.s32.totalorder %s272, %s273
      %p282 = scmp.eq.s32.totalorder %s31, 0
      %p283 = por %p281, %p282
      %p284 = scmp.ne.s32.totalorder %s272, %s273
      %p285 = scmp.eq.s32.totalorder %s32, 3
      %p286 = por %p284, %p285
      %p288 = scmp.ne.s32.totalorder %s273, %s287
      %p289 = scmp.eq.s32.totalorder %s32, 0
      %p290 = por %p288, %p289
      %s292 = sadd.s32 %s291, 1
      %p295 = scmp.eq.s32.totalorder %s26, 3
      %p296 = scmp.ne.s32.totalorder %s291, %s293
      %p297 = scmp.eq.s32.totalorder %s26, 0
      %p298 = por %p296, %p297
      %p299 = scmp.ne.s32.totalorder %s291, %s293
      %p300 = scmp.eq.s32.totalorder %s31, 3
      %p301 = por %p299, %p300
      %p302 = scmp.ne.s32.totalorder %s293, %s294
      %p303 = scmp.eq.s32.totalorder %s31, 0
      %p304 = por %p302, %p303
      %p305 = scmp.ne.s32.totalorder %s293, %s294
      %p306 = scmp.eq.s32.totalorder %s32, 3
      %p307 = por %p305, %p306
      %p309 = scmp.ne.s32.totalorder %s294, %s308
      %p310 = scmp.eq.s32.totalorder %s32, 0
      %p311 = por %p309, %p310
      %s313 = sadd.s32 %s312, 1
      %p316 = scmp.eq.s32.totalorder %s26, 3
      %p317 = scmp.ne.s32.totalorder %s312, %s314
      %p318 = scmp.eq.s32.totalorder %s26, 0
      %p319 = por %p317, %p318
      %p320 = scmp.ne.s32.totalorder %s312, %s314
      %p321 = scmp.eq.s32.totalorder %s31, 3
      %p322 = por %p320, %p321
      %p323 = scmp.ne.s32.totalorder %s314, %s315
      %p324 = scmp.eq.s32.totalorder %s31, 0
      %p325 = por %p323, %p324
      %p326 = scmp.ne.s32.totalorder %s314, %s315
      %p327 = scmp.eq.s32.totalorder %s32, 3
      %p328 = por %p326, %p327
      %p330 = scmp.ne.s32.totalorder %s315, %s329
      %p331 = scmp.eq.s32.totalorder %s32, 0
      %p332 = por %p330, %p331
      %s334 = sadd.s32 %s333, 1
      %p337 = scmp.eq.s32.totalorder %s26, 3
      %p338 = scmp.ne.s32.totalorder %s333, %s335
      %p339 = scmp.eq.s32.totalorder %s26, 0
      %p340 = por %p338, %p339
      %p341 = scmp.ne.s32.totalorder %s333, %s335
      %p342 = scmp.eq.s32.totalorder %s31, 3
      %p343 = por %p341, %p342
      %p344 = scmp.ne.s32.totalorder %s335, %s336
      %p345 = scmp.eq.s32.totalorder %s31, 0
      %p346 = por %p344, %p345
      %p347 = scmp.ne.s32.totalorder %s335, %s336
      %p348 = scmp.eq.s32.totalorder %s32, 3
      %p349 = por %p347, %p348
      %p351 = scmp.ne.s32.totalorder %s336, %s350
      %p352 = scmp.eq.s32.totalorder %s32, 0
      %p353 = por %p351, %p352
      %s354 = ssub.s32 %s26, %s33
      %p355 = scmp.eq.s32.totalorder %s354, 0
      %s357 = sadd.s32 %s356, 1
      %s358 = scalar_select %p355, %s356, %s357
      %p361 = pneg %p355
      %p362 = scmp.eq.s32.totalorder %s26, 3
      %p363 = por %p361, %p362
      %p364 = scmp.ne.s32.totalorder %s356, %s359
      %p365 = scmp.eq.s32.totalorder %s26, 0
      %p366 = por %p364, %p365
      %p367 = scmp.ne.s32.totalorder %s356, %s359
      %p368 = scmp.eq.s32.totalorder %s31, 3
      %p369 = por %p367, %p368
      %p370 = scmp.ne.s32.totalorder %s359, %s360
      %p371 = scmp.eq.s32.totalorder %s31, 0
      %p372 = por %p370, %p371
      %p373 = scmp.ne.s32.totalorder %s359, %s360
      %p374 = scmp.eq.s32.totalorder %s32, 3
      %p375 = por %p373, %p374
      %p377 = scmp.ne.s32.totalorder %s360, %s376
      %p378 = scmp.eq.s32.totalorder %s32, 0
      %p379 = por %p377, %p378
      %p380 = scmp.le.s32.totalorder 1, %s26
      %p381 = scmp.lt.s32.totalorder %s26, 5
      %p382 = pnand %p380, %p381
      %p383 = pneg %p382
      // Predicated region
      $region9: #{_forward_impl.1} parent=5 // pred_check
        _
      $region10: #{_forward_impl.1} parent=5 // pred_check_branch
        %385 = sbr.rel (%p382) target = $region12
      $region11: #{_forward_impl.1} parent=5 // pred_region
        %s386 = ssub.s32 %s26, 1
        // Predicated region
        $region13: #{_forward_impl.1} parent=11 // pred_check
          %p387 = pneg %p73
        $region14: #{_forward_impl.1} parent=11 // pred_check_branch
          %389 = sbr.rel (%p387) target = $region16
        $region15: #{_forward_impl.1} parent=11 // pred_region
          _
        $region16: #{_forward_impl.1} parent=11 // pred_fallthru
          _
        // Predicated region
        $region17: #{_forward_impl.1} parent=11 // pred_check
          %p390 = pneg %p94
        $region18: #{_forward_impl.1} parent=11 // pred_check_branch
          %392 = sbr.rel (%p390) target = $region20
        $region19: #{_forward_impl.1} parent=11 // pred_region
          _
        $region20: #{_forward_impl.1} parent=11 // pred_fallthru
          _
        // Predicated region
        $region21: #{_forward_impl.1} parent=11 // pred_check
          %p393 = pneg %p115
        $region22: #{_forward_impl.1} parent=11 // pred_check_branch
          %395 = sbr.rel (%p393) target = $region24
        $region23: #{_forward_impl.1} parent=11 // pred_region
          _
        $region24: #{_forward_impl.1} parent=11 // pred_fallthru
          _
        // Predicated region
        $region25: #{_forward_impl.1} parent=11 // pred_check
          %p396 = pneg %p136
        $region26: #{_forward_impl.1} parent=11 // pred_check_branch
          %398 = sbr.rel (%p396) target = $region28
        $region27: #{_forward_impl.1} parent=11 // pred_region
          _
        $region28: #{_forward_impl.1} parent=11 // pred_fallthru
          _
        // Predicated region
        $region29: #{_forward_impl.1} parent=11 // pred_check
          %p399 = pneg %p157
        $region30: #{_forward_impl.1} parent=11 // pred_check_branch
          %401 = sbr.rel (%p399) target = $region32
        $region31: #{_forward_impl.1} parent=11 // pred_region
          _
        $region32: #{_forward_impl.1} parent=11 // pred_fallthru
          _
        // Predicated region
        $region33: #{_forward_impl.1} parent=11 // pred_check
          %p402 = pneg %p178
        $region34: #{_forward_impl.1} parent=11 // pred_check_branch
          %404 = sbr.rel (%p402) target = $region36
        $region35: #{_forward_impl.1} parent=11 // pred_region
          _
        $region36: #{_forward_impl.1} parent=11 // pred_fallthru
          _
        // Predicated region
        $region37: #{_forward_impl.1} parent=11 // pred_check
          %p405 = pneg %p199
        $region38: #{_forward_impl.1} parent=11 // pred_check_branch
          %407 = sbr.rel (%p405) target = $region40
        $region39: #{_forward_impl.1} parent=11 // pred_region
          _
        $region40: #{_forward_impl.1} parent=11 // pred_fallthru
          _
        // Predicated region
        $region41: #{_forward_impl.1} parent=11 // pred_check
          %p408 = pneg %p220
        $region42: #{_forward_impl.1} parent=11 // pred_check_branch
          %410 = sbr.rel (%p408) target = $region44
        $region43: #{_forward_impl.1} parent=11 // pred_region
          %412 = vsyncadd [#allocation3], 0
          %s413 = sshll.u32 %s8, 4
          %s414 = int_to_ptr.hbm [resolvable:$true] %s413
          %s415 = sshll.u32 [#allocation2], 4
          %s416 = int_to_ptr.vmem [resolvable:$true] %s415
          %421 = dma.hbm_to_vmem [thread:$0]  %s414, 13312, %s416, [#allocation3], 128, 128, 8
        $region44: #{_forward_impl.1} parent=11 // pred_fallthru
          _
        // Predicated region
        $region45: #{_forward_impl.1} parent=11 // pred_check
          %p422 = pneg %p241
        $region46: #{_forward_impl.1} parent=11 // pred_check_branch
          %424 = sbr.rel (%p422) target = $region48
        $region47: #{_forward_impl.1} parent=11 // pred_region
          %426 = vsyncadd [#allocation6], 0
          %s427 = sshll.u32 %s9, 4
          %s428 = int_to_ptr.hbm [resolvable:$true] %s427
          %s429 = sshll.u32 [#allocation5], 4
          %s430 = int_to_ptr.vmem [resolvable:$true] %s429
          %435 = dma.hbm_to_vmem [thread:$0]  %s428, 21632, %s430, [#allocation6], 64, 64, 4
        $region48: #{_forward_impl.1} parent=11 // pred_fallthru
          _
        // Predicated region
        $region49: #{_forward_impl.1} parent=11 // pred_check
          %p436 = pneg %p262
        $region50: #{_forward_impl.1} parent=11 // pred_check_branch
          %438 = sbr.rel (%p436) target = $region52
        $region51: #{_forward_impl.1} parent=11 // pred_region
          _
        $region52: #{_forward_impl.1} parent=11 // pred_fallthru
          _
        // Predicated region
        $region53: #{_forward_impl.1} parent=11 // pred_check
          %p439 = pneg %p283
        $region54: #{_forward_impl.1} parent=11 // pred_check_branch
          %441 = sbr.rel (%p439) target = $region56
        $region55: #{_forward_impl.1} parent=11 // pred_region
          _
        $region56: #{_forward_impl.1} parent=11 // pred_fallthru
          _
        // Predicated region
        $region57: #{_forward_impl.1} parent=11 // pred_check
          %p442 = pneg %p304
        $region58: #{_forward_impl.1} parent=11 // pred_check_branch
          %444 = sbr.rel (%p442) target = $region60
        $region59: #{_forward_impl.1} parent=11 // pred_region
          _
        $region60: #{_forward_impl.1} parent=11 // pred_fallthru
          _
        // Predicated region
        $region61: #{_forward_impl.1} parent=11 // pred_check
          %p445 = pneg %p325
        $region62: #{_forward_impl.1} parent=11 // pred_check_branch
          %447 = sbr.rel (%p445) target = $region64
        $region63: #{_forward_impl.1} parent=11 // pred_region
          _
        $region64: #{_forward_impl.1} parent=11 // pred_fallthru
          _
        // Predicated region
        $region65: #{_forward_impl.1} parent=11 // pred_check
          %p448 = pneg %p346
        $region66: #{_forward_impl.1} parent=11 // pred_check_branch
          %450 = sbr.rel (%p448) target = $region68
        $region67: #{_forward_impl.1} parent=11 // pred_region
          _
        $region68: #{_forward_impl.1} parent=11 // pred_fallthru
          _
      $region12: #{_forward_impl.1} parent=5 // pred_fallthru
        _
      %p451 = scmp.lt.s32.totalorder %s26, 4
      // Predicated region
      $region69: #{_forward_impl.1} parent=5 // pred_check
        %p452 = pneg %p451
      $region70: #{_forward_impl.1} parent=5 // pred_check_branch
        %454 = sbr.rel (%p452) target = $region72
      $region71: #{_forward_impl.1} parent=5 // pred_region
        // Predicated region
        $region73: #{_forward_impl.1} parent=71 // pred_check
          %p455 = pneg %p46
        $region74: #{_forward_impl.1} parent=71 // pred_check_branch
          %457 = sbr.rel (%p455) target = $region76
        $region75: #{_forward_impl.1} parent=71 // pred_region
          %p458 = scmp.lt.s32.totalorder %s26, 3
          %s459 = scalar_select %p458, %s26, 3
          %s460 = smul.addr %s459, 16
          %s461 = smul.addr %s460, 8
          %s462 = scalar_lea.vmem %s0, %s461
        $region76: #{_forward_impl.1} parent=71 // pred_fallthru
          _
      $region72: #{_forward_impl.1} parent=5 // pred_fallthru
        _
      %p463 = scmp.le.s32.totalorder 1, %s26
      %p464 = scmp.lt.s32.totalorder %s26, 5
      %p465 = pnand %p463, %p464
      %p466 = pneg %p465
      // Predicated region
      $region77: #{_forward_impl.1} parent=5 // pred_check
        _
      $region78: #{_forward_impl.1} parent=5 // pred_check_branch
        %468 = sbr.rel (%p465) target = $region80
      $region79: #{_forward_impl.1} parent=5 // pred_region
        %s469 = ssub.s32 %s26, 1
        // Predicated region
        $region81: #{_forward_impl.1} parent=79 // pred_check
          %p470 = pneg %p220
        $region82: #{_forward_impl.1} parent=79 // pred_check_branch
          %472 = sbr.rel (%p470) target = $region84
        $region83: #{_forward_impl.1} parent=79 // pred_region
          %474 = dma.done [#allocation3], 13312
        $region84: #{_forward_impl.1} parent=79 // pred_fallthru
          _
        // Predicated region
        $region85: #{_forward_impl.1} parent=79 // pred_check
          %p475 = pneg %p241
        $region86: #{_forward_impl.1} parent=79 // pred_check_branch
          %477 = sbr.rel (%p475) target = $region88
        $region87: #{_forward_impl.1} parent=79 // pred_region
          %479 = dma.done [#allocation6], 21632
        $region88: #{_forward_impl.1} parent=79 // pred_fallthru
          _
        %p480 = scmp.lt.s32.totalorder %s31, 3
        %s481 = scalar_select %p480, %s31, 3
        %s482 = smul.addr %s481, 16
        %s483 = smul.addr %s482, 8
        %s484 = scalar_lea.vmem %s0, %s483
        %p485 = pneg %p52
        %p486 = pneg %p49
        %p487 = pneg %p73
        %p488 = pneg %p70
        %p489 = pneg %p94
        %p490 = pneg %p91
        %p491 = pneg %p115
        %p492 = pneg %p112
        %p493 = pneg %p136
        %p494 = pneg %p133
        %p495 = pneg %p157
        %p496 = pneg %p154
        %p497 = pneg %p178
        %p498 = pneg %p175
        %p499 = pneg %p199
        %p500 = pneg %p196
        %p501 = pneg %p220
        %p502 = pneg %p217
        %p503 = pneg %p241
        %p504 = pneg %p238
        %p505 = pneg %p262
        %p506 = pneg %p259
        %p507 = pneg %p283
        %p508 = pneg %p280
        %p509 = pneg %p304
        %p510 = pneg %p301
        %p511 = pneg %p325
        %p512 = pneg %p322
        %p513 = pneg %p346
        %p514 = pneg %p343
        %p515 = pneg %p372
        %p516 = pneg %p369
        %s517 = sand.u32 %s359, 1
        %s518 = scalar_lea.sflag [#allocation4], %s517
        %s519 = sand.u32 %s359, 1
        %s520 = scalar_lea.vmem [#allocation7], %s519
        %p521 = scmp.lt.s32.totalorder %s31, 3
        %s522 = scalar_select %p521, %s31, 3
        %s523 = smul.addr %s522, 16
        %s524 = smul.addr %s523, 8
        %s525 = scalar_lea.vmem %s0, %s524
        %v527 = vld [vmem:[%s525] sm:$0xff]
        %v528 = vld [vmem:[%s525 + $0x8] sm:$0xff]
        %v529 = vld [vmem:[%s525 + $0x10] sm:$0xff]
        %v530 = vld [vmem:[%s525 + $0x18] sm:$0xff]
        %v531 = vld [vmem:[%s525 + $0x20] sm:$0xff]
        %v532 = vld [vmem:[%s525 + $0x28] sm:$0xff]
        %v533 = vld [vmem:[%s525 + $0x30] sm:$0xff]
        %v534 = vld [vmem:[%s525 + $0x38] sm:$0xff]
        %v535 = vld [vmem:[%s525 + $0x40] sm:$0xff]
        %v536 = vld [vmem:[%s525 + $0x48] sm:$0xff]
        %v537 = vld [vmem:[%s525 + $0x50] sm:$0xff]
        %v538 = vld [vmem:[%s525 + $0x58] sm:$0xff]
        %v539 = vld [vmem:[%s525 + $0x60] sm:$0xff]
        %v540 = vld [vmem:[%s525 + $0x68] sm:$0xff]
        %v541 = vld [vmem:[%s525 + $0x70] sm:$0xff]
        %v542 = vld [vmem:[%s525 + $0x78] sm:$0xff]
        %v543 = vld [vmem:[%s2] sm:$0x7]
        %v544 = vpack.c.bf16 %v529, %v527
        %v545 = vpack.c.bf16 %v530, %v528
        %v546 = vpack.c.bf16 %v533, %v531
        %v547 = vpack.c.bf16 %v534, %v532
        %v548 = vpack.c.bf16 %v537, %v535
        %v549 = vpack.c.bf16 %v538, %v536
        %v550 = vpack.c.bf16 %v541, %v539
        %v551 = vpack.c.bf16 %v542, %v540
        %v552 = vld [vmem:[%s1] sm:$0xff]
        %v553 = vld [vmem:[%s1 + $0x8] sm:$0xf]
        %v554 = vld [vmem:[%s1 + $0xc] sm:$0xff]
        %v555 = vld [vmem:[%s1 + $0x14] sm:$0xf]
        %v556 = vld [vmem:[%s1 + $0x18] sm:$0xff]
        %v557 = vld [vmem:[%s1 + $0x20] sm:$0xf]
        %v558 = vld [vmem:[%s1 + $0x24] sm:$0xff]
        %v559 = vld [vmem:[%s1 + $0x2c] sm:$0xf]
        %v560 = vld [vmem:[%s1 + $0x30] sm:$0xff]
        %v561 = vld [vmem:[%s1 + $0x38] sm:$0xf]
        %v562 = vld [vmem:[%s1 + $0x3c] sm:$0xff]
        %v563 = vld [vmem:[%s1 + $0x44] sm:$0xf]
        %v564 = vld [vmem:[%s1 + $0x48] sm:$0xff]
        %v565 = vld [vmem:[%s1 + $0x50] sm:$0xf]
        %v566 = vld [vmem:[%s1 + $0x54] sm:$0xff]
        %v567 = vld [vmem:[%s1 + $0x5c] sm:$0xf]
        %v568 = vld [vmem:[%s1 + $0x60] sm:$0xff]
        %v569 = vld [vmem:[%s1 + $0x68] sm:$0xf]
        %v570 = vld [vmem:[%s1 + $0x6c] sm:$0xff]
        %v571 = vld [vmem:[%s1 + $0x74] sm:$0xf]
        %v572 = vld [vmem:[%s1 + $0x78] sm:$0xff]
        %v573 = vld [vmem:[%s1 + $0x80] sm:$0xf]
        %v574 = vld [vmem:[%s1 + $0x84] sm:$0xff]
        %v575 = vld [vmem:[%s1 + $0x8c] sm:$0xf]
        %v576 = vld [vmem:[%s1 + $0x90] sm:$0xff]
        %v577 = vld [vmem:[%s1 + $0x98] sm:$0xf]
        %v578 = vld [vmem:[%s1 + $0x9c] sm:$0xff]
        %v579 = vld [vmem:[%s1 + $0xa4] sm:$0xf]
        %v580 = vld [vmem:[%s1 + $0xa8] sm:$0xff]
        %v581 = vld [vmem:[%s1 + $0xb0] sm:$0xf]
        %v582 = vld [vmem:[%s1 + $0xb4] sm:$0xff]
        %v583 = vld [vmem:[%s1 + $0xbc] sm:$0xf]
        %v584 = vld [vmem:[%s1 + $0xc0] sm:$0xff]
        %v585 = vld [vmem:[%s1 + $0xc8] sm:$0xf]
        %v586 = vld [vmem:[%s1 + $0xcc] sm:$0xff]
        %v587 = vld [vmem:[%s1 + $0xd4] sm:$0xf]
        %v588 = vld [vmem:[%s1 + $0xd8] sm:$0xff]
        %v589 = vld [vmem:[%s1 + $0xe0] sm:$0xf]
        %v590 = vld [vmem:[%s1 + $0xe4] sm:$0xff]
        %v591 = vld [vmem:[%s1 + $0xec] sm:$0xf]
        %v592 = vld [vmem:[%s1 + $0xf0] sm:$0xff]
        %v593 = vld [vmem:[%s1 + $0xf8] sm:$0xf]
        %v594 = vld [vmem:[%s1 + $0xfc] sm:$0xff]
        %v595 = vld [vmem:[%s1 + $0x104] sm:$0xf]
        %v596 = vld [vmem:[%s1 + $0x108] sm:$0xff]
        %v597 = vld [vmem:[%s1 + $0x110] sm:$0xf]
        %v598 = vld [vmem:[%s1 + $0x114] sm:$0xff]
        %v599 = vld [vmem:[%s1 + $0x11c] sm:$0xf]
        %s600 = scalar_lea.vmem %s1, 288
        %v601 = vld [vmem:[%s600] sm:$0xff]
        %v602 = vld [vmem:[%s600 + $0x8] sm:$0xf]
        %v603 = vld [vmem:[%s600 + $0xc] sm:$0xff]
        %v604 = vld [vmem:[%s600 + $0x14] sm:$0xf]
        %v605 = vld [vmem:[%s600 + $0x18] sm:$0xff]
        %v606 = vld [vmem:[%s600 + $0x20] sm:$0xf]
        %v607 = vld [vmem:[%s600 + $0x24] sm:$0xff]
        %v608 = vld [vmem:[%s600 + $0x2c] sm:$0xf]
        %v609 = vld [vmem:[%s600 + $0x30] sm:$0xff]
        %v610 = vld [vmem:[%s600 + $0x38] sm:$0xf]
        %v611 = vld [vmem:[%s600 + $0x3c] sm:$0xff]
        %v612 = vld [vmem:[%s600 + $0x44] sm:$0xf]
        %v613 = vld [vmem:[%s600 + $0x48] sm:$0xff]
        %v614 = vld [vmem:[%s600 + $0x50] sm:$0xf]
        %v615 = vld [vmem:[%s600 + $0x54] sm:$0xff]
        %v616 = vld [vmem:[%s600 + $0x5c] sm:$0xf]
        %v617 = vld [vmem:[%s600 + $0x60] sm:$0xff]
        %v618 = vld [vmem:[%s600 + $0x68] sm:$0xf]
        %v619 = vld [vmem:[%s600 + $0x6c] sm:$0xff]
        %v620 = vld [vmem:[%s600 + $0x74] sm:$0xf]
        %v621 = vld [vmem:[%s600 + $0x78] sm:$0xff]
        %v622 = vld [vmem:[%s600 + $0x80] sm:$0xf]
        %v623 = vld [vmem:[%s600 + $0x84] sm:$0xff]
        %v624 = vld [vmem:[%s600 + $0x8c] sm:$0xf]
        %v625 = vld [vmem:[%s600 + $0x90] sm:$0xff]
        %v626 = vld [vmem:[%s600 + $0x98] sm:$0xf]
        %v627 = vld [vmem:[%s600 + $0x9c] sm:$0xff]
        %v628 = vld [vmem:[%s600 + $0xa4] sm:$0xf]
        %v629 = vld [vmem:[%s600 + $0xa8] sm:$0xff]
        %v630 = vld [vmem:[%s600 + $0xb0] sm:$0xf]
        %v631 = vld [vmem:[%s600 + $0xb4] sm:$0xff]
        %v632 = vld [vmem:[%s600 + $0xbc] sm:$0xf]
        %v633 = vld [vmem:[%s600 + $0xc0] sm:$0xff]
        %v634 = vld [vmem:[%s600 + $0xc8] sm:$0xf]
        %v635 = vld [vmem:[%s600 + $0xcc] sm:$0xff]
        %v636 = vld [vmem:[%s600 + $0xd4] sm:$0xf]
        %v637 = vld [vmem:[%s600 + $0xd8] sm:$0xff]
        %v638 = vld [vmem:[%s600 + $0xe0] sm:$0xf]
        %v639 = vld [vmem:[%s600 + $0xe4] sm:$0xff]
        %v640 = vld [vmem:[%s600 + $0xec] sm:$0xf]
        %v641 = vld [vmem:[%s600 + $0xf0] sm:$0xff]
        %v642 = vld [vmem:[%s600 + $0xf8] sm:$0xf]
        %v643 = vld [vmem:[%s600 + $0xfc] sm:$0xff]
        %v644 = vld [vmem:[%s600 + $0x104] sm:$0xf]
        %v645 = vld [vmem:[%s600 + $0x108] sm:$0xff]
        %v646 = vld [vmem:[%s600 + $0x110] sm:$0xf]
        %v647 = vld [vmem:[%s600 + $0x114] sm:$0xff]
        %v648 = vld [vmem:[%s600 + $0x11c] sm:$0xf]
        %vm649 = vsmask.f32 7424
        %v651 = vshrl.u32 %v544, 16
        %v653 = vshll.u32 %v544, 16
        %v655 = vrot.slane %v653, 1
        %v656 = vor.u32 %v651, %v655
        %v658 = vshll.u32 %v546, 16
        %v660 = vrot.slane %v658, 1
        %v661 = vsel %vm649, %v656, %v660
        %v663 = vshrl.u32 %v545, 16
        %v665 = vshll.u32 %v545, 16
        %v667 = vrot.slane %v665, 1
        %v668 = vor.u32 %v663, %v667
        %v670 = vshll.u32 %v547, 16
        %v672 = vrot.slane %v670, 1
        %v673 = vsel %vm649, %v668, %v672
        %v674 = vshrl.u32 %v546, 16
        %v676 = vor.u32 %v674, %v660
        %v678 = vshll.u32 %v548, 16
        %v680 = vrot.slane %v678, 1
        %v681 = vsel %vm649, %v676, %v680
        %v682 = vshrl.u32 %v547, 16
        %v684 = vor.u32 %v682, %v672
        %v686 = vshll.u32 %v549, 16
        %v688 = vrot.slane %v686, 1
        %v689 = vsel %vm649, %v684, %v688
        %v690 = vshrl.u32 %v548, 16
        %v692 = vor.u32 %v690, %v680
        %v694 = vshll.u32 %v550, 16
        %v696 = vrot.slane %v694, 1
        %v697 = vsel %vm649, %v692, %v696
        %v698 = vshrl.u32 %v549, 16
        %v700 = vor.u32 %v698, %v688
        %v702 = vshll.u32 %v551, 16
        %v704 = vrot.slane %v702, 1
        %v705 = vsel %vm649, %v700, %v704
        %v706 = vshrl.u32 %v550, 16
        %v708 = vor.u32 %v706, %v696
        %v709 = vshrl.u32 %v551, 16
        %v711 = vor.u32 %v709, %v704
        %v764 = vunpack.c.l.b16 %v601
        %v765 = vunpack.c.h.b16 %v601
        %v766 = vunpack.c.l.b16 %v602
        %v767 = vunpack.c.l.b16 %v603
        %v768 = vunpack.c.h.b16 %v603
        %v769 = vunpack.c.l.b16 %v604
        %v770 = vunpack.c.l.b16 %v605
        %v771 = vunpack.c.h.b16 %v605
        %v772 = vunpack.c.l.b16 %v606
        %v773 = vunpack.c.l.b16 %v607
        %v774 = vunpack.c.h.b16 %v607
        %v775 = vunpack.c.l.b16 %v608
        %v776 = vunpack.c.l.b16 %v609
        %v777 = vunpack.c.h.b16 %v609
        %v778 = vunpack.c.l.b16 %v610
        %v779 = vunpack.c.l.b16 %v611
        %v780 = vunpack.c.h.b16 %v611
        %v781 = vunpack.c.l.b16 %v612
        %v782 = vunpack.c.l.b16 %v613
        %v783 = vunpack.c.h.b16 %v613
        %v784 = vunpack.c.l.b16 %v614
        %v785 = vunpack.c.l.b16 %v615
        %v786 = vunpack.c.h.b16 %v615
        %v787 = vunpack.c.l.b16 %v616
        %v788 = vunpack.c.l.b16 %v617
        %v789 = vunpack.c.h.b16 %v617
        %v790 = vunpack.c.l.b16 %v618
        %v791 = vunpack.c.l.b16 %v619
        %v792 = vunpack.c.h.b16 %v619
        %v793 = vunpack.c.l.b16 %v620
        %v794 = vunpack.c.l.b16 %v621
        %v795 = vunpack.c.h.b16 %v621
        %v796 = vunpack.c.l.b16 %v622
        %v797 = vunpack.c.l.b16 %v623
        %v798 = vunpack.c.h.b16 %v623
        %v799 = vunpack.c.l.b16 %v624
        %v800 = vunpack.c.l.b16 %v625
        %v801 = vunpack.c.h.b16 %v625
        %v802 = vunpack.c.l.b16 %v626
        %v803 = vunpack.c.l.b16 %v627
        %v804 = vunpack.c.h.b16 %v627
        %v805 = vunpack.c.l.b16 %v628
        %v806 = vunpack.c.l.b16 %v629
        %v807 = vunpack.c.h.b16 %v629
        %v808 = vunpack.c.l.b16 %v630
        %v809 = vunpack.c.l.b16 %v631
        %v810 = vunpack.c.h.b16 %v631
        %v811 = vunpack.c.l.b16 %v632
        %v812 = vunpack.c.l.b16 %v633
        %v813 = vunpack.c.h.b16 %v633
        %v814 = vunpack.c.l.b16 %v634
        %v815 = vunpack.c.l.b16 %v635
        %v816 = vunpack.c.h.b16 %v635
        %v817 = vunpack.c.l.b16 %v636
        %v818 = vunpack.c.l.b16 %v637
        %v819 = vunpack.c.h.b16 %v637
        %v820 = vunpack.c.l.b16 %v638
        %v821 = vunpack.c.l.b16 %v639
        %v822 = vunpack.c.h.b16 %v639
        %v823 = vunpack.c.l.b16 %v640
        %v824 = vunpack.c.l.b16 %v641
        %v825 = vunpack.c.h.b16 %v641
        %v826 = vunpack.c.l.b16 %v642
        %v827 = vunpack.c.l.b16 %v643
        %v828 = vunpack.c.h.b16 %v643
        %v829 = vunpack.c.l.b16 %v644
        %v830 = vunpack.c.l.b16 %v645
        %v831 = vunpack.c.h.b16 %v645
        %v832 = vunpack.c.l.b16 %v646
        %v833 = vunpack.c.l.b16 %v647
        %v834 = vunpack.c.h.b16 %v647
        %v835 = vunpack.c.l.b16 %v648
        %v836 = vpack.c.b16 %v767, %v764
        %v837 = vpack.c.b16 %v768, %v765
        %v838 = vpack.c.b16 %v769, %v766
        %v839 = vpack.c.b16 %v773, %v770
        %v840 = vpack.c.b16 %v774, %v771
        %v841 = vpack.c.b16 %v775, %v772
        %v842 = vpack.c.b16 %v779, %v776
        %v843 = vpack.c.b16 %v780, %v777
        %v844 = vpack.c.b16 %v781, %v778
        %v845 = vpack.c.b16 %v785, %v782
        %v846 = vpack.c.b16 %v786, %v783
        %v847 = vpack.c.b16 %v787, %v784
        %v848 = vpack.c.b16 %v791, %v788
        %v849 = vpack.c.b16 %v792, %v789
        %v850 = vpack.c.b16 %v793, %v790
        %v851 = vpack.c.b16 %v797, %v794
        %v852 = vpack.c.b16 %v798, %v795
        %v853 = vpack.c.b16 %v799, %v796
        %v854 = vpack.c.b16 %v803, %v800
        %v855 = vpack.c.b16 %v804, %v801
        %v856 = vpack.c.b16 %v805, %v802
        %v857 = vpack.c.b16 %v809, %v806
        %v858 = vpack.c.b16 %v810, %v807
        %v859 = vpack.c.b16 %v811, %v808
        %v860 = vpack.c.b16 %v815, %v812
        %v861 = vpack.c.b16 %v816, %v813
        %v862 = vpack.c.b16 %v817, %v814
        %v863 = vpack.c.b16 %v821, %v818
        %v864 = vpack.c.b16 %v822, %v819
        %v865 = vpack.c.b16 %v823, %v820
        %v866 = vpack.c.b16 %v827, %v824
        %v867 = vpack.c.b16 %v828, %v825
        %v868 = vpack.c.b16 %v829, %v826
        %v869 = vpack.c.b16 %v833, %v830
        %v870 = vpack.c.b16 %v834, %v831
        %v871 = vpack.c.b16 %v835, %v832
        %vm908 = vcmask 523264
        %v910 = vsel %vm908, %v673, 0
        %v913 = vsel %vm908, %v689, 0
        %v916 = vsel %vm908, %v705, 0
        %v919 = vsel %vm908, %v711, 0
        %921 = vmatpush.bf16.msra.mxu0 %v857
        %922 = vmatpush.bf16.msra.mxu0 %v854
        %923 = vmatpush.bf16.msra.mxu0 %v851
        %924 = vmatpush.bf16.msra.mxu0 %v848
        %925 = vmatpush.bf16.msra.mxu0 %v845
        %926 = vmatpush.bf16.msra.mxu0 %v842
        %927 = vmatpush.bf16.msra.mxu0 %v839
        %928 = vmatpush.bf16.msra.mxu0 %v836
        %929 = vmatmul.bf16.gmra.mxu0 %v661
        %v930 = vpop.f32.mrf.mxu0
        %v931 = vadd.f32 0.0, %v930
        %v932 = vpop.f32.mrf.mxu0
        %v933 = vadd.f32 0.0, %v932
        %934 = vmatmul.bf16.gmra.mxu0 %v681
        %v935 = vpop.f32.mrf.mxu0
        %v936 = vadd.f32 0.0, %v935
        %v937 = vpop.f32.mrf.mxu0
        %v938 = vadd.f32 0.0, %v937
        %939 = vmatmul.bf16.gmra.mxu0 %v697
        %v940 = vpop.f32.mrf.mxu0
        %v941 = vadd.f32 0.0, %v940
        %v942 = vpop.f32.mrf.mxu0
        %v943 = vadd.f32 0.0, %v942
        %944 = vmatmul.bf16.gmra.mxu0 %v708
        %v945 = vpop.f32.mrf.mxu0
        %v946 = vadd.f32 0.0, %v945
        %v947 = vpop.f32.mrf.mxu0
        %v948 = vadd.f32 0.0, %v947
        %949 = vdwg.mxu0
        %950 = vmatpush.bf16.msra.mxu0 0
        %951 = vmatpush.bf16.msra.mxu0 0
        %952 = vmatpush.bf16.msra.mxu0 0
        %953 = vmatpush.bf16.msra.mxu0 0
        %954 = vmatpush.bf16.msra.mxu0 %v869
        %955 = vmatpush.bf16.msra.mxu0 %v866
        %956 = vmatpush.bf16.msra.mxu0 %v863
        %957 = vmatpush.bf16.msra.mxu0 %v860
        %958 = vmatmul.bf16.gmra.mxu0 %v910
        %v959 = vpop.f32.mrf.mxu0
        %v960 = vadd.f32 %v931, %v959
        %v961 = vpop.f32.mrf.mxu0
        %v962 = vadd.f32 %v933, %v961
        %963 = vmatmul.bf16.gmra.mxu0 %v913
        %v964 = vpop.f32.mrf.mxu0
        %v965 = vadd.f32 %v936, %v964
        %v966 = vpop.f32.mrf.mxu0
        %v967 = vadd.f32 %v938, %v966
        %968 = vmatmul.bf16.gmra.mxu0 %v916
        %v969 = vpop.f32.mrf.mxu0
        %v970 = vadd.f32 %v941, %v969
        %v971 = vpop.f32.mrf.mxu0
        %v972 = vadd.f32 %v943, %v971
        %973 = vmatmul.bf16.gmra.mxu0 %v919
        %v974 = vpop.f32.mrf.mxu0
        %v975 = vadd.f32 %v946, %v974
        %v976 = vpop.f32.mrf.mxu0
        %v977 = vadd.f32 %v948, %v976
        %978 = vdwg.mxu0
        %979 = vmatpush.bf16.msra.mxu0 %v858
        %980 = vmatpush.bf16.msra.mxu0 %v855
        %981 = vmatpush.bf16.msra.mxu0 %v852
        %982 = vmatpush.bf16.msra.mxu0 %v849
        %983 = vmatpush.bf16.msra.mxu0 %v846
        %984 = vmatpush.bf16.msra.mxu0 %v843
        %985 = vmatpush.bf16.msra.mxu0 %v840
        %986 = vmatpush.bf16.msra.mxu0 %v837
        %987 = vmatmul.bf16.gmra.mxu0 %v661
        %v988 = vpop.f32.mrf.mxu0
        %v989 = vadd.f32 0.0, %v988
        %v990 = vpop.f32.mrf.mxu0
        %v991 = vadd.f32 0.0, %v990
        %992 = vmatmul.bf16.gmra.mxu0 %v681
        %v993 = vpop.f32.mrf.mxu0
        %v994 = vadd.f32 0.0, %v993
        %v995 = vpop.f32.mrf.mxu0
        %v996 = vadd.f32 0.0, %v995
        %997 = vmatmul.bf16.gmra.mxu0 %v697
        %v998 = vpop.f32.mrf.mxu0
        %v999 = vadd.f32 0.0, %v998
        %v1000 = vpop.f32.mrf.mxu0
        %v1001 = vadd.f32 0.0, %v1000
        %1002 = vmatmul.bf16.gmra.mxu0 %v708
        %v1003 = vpop.f32.mrf.mxu0
        %v1004 = vadd.f32 0.0, %v1003
        %v1005 = vpop.f32.mrf.mxu0
        %v1006 = vadd.f32 0.0, %v1005
        %1007 = vdwg.mxu0
        %1008 = vmatpush.bf16.msra.mxu0 0
        %1009 = vmatpush.bf16.msra.mxu0 0
        %1010 = vmatpush.bf16.msra.mxu0 0
        %1011 = vmatpush.bf16.msra.mxu0 0
        %1012 = vmatpush.bf16.msra.mxu0 %v870
        %1013 = vmatpush.bf16.msra.mxu0 %v867
        %1014 = vmatpush.bf16.msra.mxu0 %v864
        %1015 = vmatpush.bf16.msra.mxu0 %v861
        %1016 = vmatmul.bf16.gmra.mxu0 %v910
        %v1017 = vpop.f32.mrf.mxu0
        %v1018 = vadd.f32 %v989, %v1017
        %v1019 = vpop.f32.mrf.mxu0
        %v1020 = vadd.f32 %v991, %v1019
        %1021 = vmatmul.bf16.gmra.mxu0 %v913
        %v1022 = vpop.f32.mrf.mxu0
        %v1023 = vadd.f32 %v994, %v1022
        %v1024 = vpop.f32.mrf.mxu0
        %v1025 = vadd.f32 %v996, %v1024
        %1026 = vmatmul.bf16.gmra.mxu0 %v916
        %v1027 = vpop.f32.mrf.mxu0
        %v1028 = vadd.f32 %v999, %v1027
        %v1029 = vpop.f32.mrf.mxu0
        %v1030 = vadd.f32 %v1001, %v1029
        %1031 = vmatmul.bf16.gmra.mxu0 %v919
        %v1032 = vpop.f32.mrf.mxu0
        %v1033 = vadd.f32 %v1004, %v1032
        %v1034 = vpop.f32.mrf.mxu0
        %v1035 = vadd.f32 %v1006, %v1034
        %1036 = vdwg.mxu0
        %1037 = vmatpush.bf16.msra.mxu0 %v859
        %1038 = vmatpush.bf16.msra.mxu0 %v856
        %1039 = vmatpush.bf16.msra.mxu0 %v853
        %1040 = vmatpush.bf16.msra.mxu0 %v850
        %1041 = vmatpush.bf16.msra.mxu0 %v847
        %1042 = vmatpush.bf16.msra.mxu0 %v844
        %1043 = vmatpush.bf16.msra.mxu0 %v841
        %1044 = vmatpush.bf16.msra.mxu0 %v838
        %1045 = vmatmul.bf16.gmra.mxu0 %v661
        %v1046 = vpop.f32.mrf.mxu0
        %v1047 = vadd.f32 0.0, %v1046
        %v1048 = vpop.f32.mrf.mxu0
        %v1049 = vadd.f32 0.0, %v1048
        %1050 = vmatmul.bf16.gmra.mxu0 %v681
        %v1051 = vpop.f32.mrf.mxu0
        %v1052 = vadd.f32 0.0, %v1051
        %v1053 = vpop.f32.mrf.mxu0
        %v1054 = vadd.f32 0.0, %v1053
        %1055 = vmatmul.bf16.gmra.mxu0 %v697
        %v1056 = vpop.f32.mrf.mxu0
        %v1057 = vadd.f32 0.0, %v1056
        %v1058 = vpop.f32.mrf.mxu0
        %v1059 = vadd.f32 0.0, %v1058
        %1060 = vmatmul.bf16.gmra.mxu0 %v708
        %v1061 = vpop.f32.mrf.mxu0
        %v1062 = vadd.f32 0.0, %v1061
        %v1063 = vpop.f32.mrf.mxu0
        %v1064 = vadd.f32 0.0, %v1063
        %1065 = vdwg.mxu0
        %1066 = vmatpush.bf16.msra.mxu0 0
        %1067 = vmatpush.bf16.msra.mxu0 0
        %1068 = vmatpush.bf16.msra.mxu0 0
        %1069 = vmatpush.bf16.msra.mxu0 0
        %1070 = vmatpush.bf16.msra.mxu0 %v871
        %1071 = vmatpush.bf16.msra.mxu0 %v868
        %1072 = vmatpush.bf16.msra.mxu0 %v865
        %1073 = vmatpush.bf16.msra.mxu0 %v862
        %1074 = vmatmul.bf16.gmra.mxu0 %v910
        %v1075 = vpop.f32.mrf.mxu0
        %v1076 = vadd.f32 %v1047, %v1075
        %v1077 = vpop.f32.mrf.mxu0
        %v1078 = vadd.f32 %v1049, %v1077
        %1079 = vmatmul.bf16.gmra.mxu0 %v913
        %v1080 = vpop.f32.mrf.mxu0
        %v1081 = vadd.f32 %v1052, %v1080
        %v1082 = vpop.f32.mrf.mxu0
        %v1083 = vadd.f32 %v1054, %v1082
        %1084 = vmatmul.bf16.gmra.mxu0 %v916
        %v1085 = vpop.f32.mrf.mxu0
        %v1086 = vadd.f32 %v1057, %v1085
        %v1087 = vpop.f32.mrf.mxu0
        %v1088 = vadd.f32 %v1059, %v1087
        %1089 = vmatmul.bf16.gmra.mxu0 %v919
        %v1090 = vpop.f32.mrf.mxu0
        %v1091 = vadd.f32 %v1062, %v1090
        %v1092 = vpop.f32.mrf.mxu0
        %v1093 = vadd.f32 %v1064, %v1092
        %1094 = vdwg.mxu0
        %v1143 = vunpack.c.l.b16 %v552
        %v1144 = vunpack.c.h.b16 %v552
        %v1145 = vunpack.c.l.b16 %v553
        %v1146 = vunpack.c.l.b16 %v554
        %v1147 = vunpack.c.h.b16 %v554
        %v1148 = vunpack.c.l.b16 %v555
        %v1149 = vunpack.c.l.b16 %v556
        %v1150 = vunpack.c.h.b16 %v556
        %v1151 = vunpack.c.l.b16 %v557
        %v1152 = vunpack.c.l.b16 %v558
        %v1153 = vunpack.c.h.b16 %v558
        %v1154 = vunpack.c.l.b16 %v559
        %v1155 = vunpack.c.l.b16 %v560
        %v1156 = vunpack.c.h.b16 %v560
        %v1157 = vunpack.c.l.b16 %v561
        %v1158 = vunpack.c.l.b16 %v562
        %v1159 = vunpack.c.h.b16 %v562
        %v1160 = vunpack.c.l.b16 %v563
        %v1161 = vunpack.c.l.b16 %v564
        %v1162 = vunpack.c.h.b16 %v564
        %v1163 = vunpack.c.l.b16 %v565
        %v1164 = vunpack.c.l.b16 %v566
        %v1165 = vunpack.c.h.b16 %v566
        %v1166 = vunpack.c.l.b16 %v567
        %v1167 = vunpack.c.l.b16 %v568
        %v1168 = vunpack.c.h.b16 %v568
        %v1169 = vunpack.c.l.b16 %v569
        %v1170 = vunpack.c.l.b16 %v570
        %v1171 = vunpack.c.h.b16 %v570
        %v1172 = vunpack.c.l.b16 %v571
        %v1173 = vunpack.c.l.b16 %v572
        %v1174 = vunpack.c.h.b16 %v572
        %v1175 = vunpack.c.l.b16 %v573
        %v1176 = vunpack.c.l.b16 %v574
        %v1177 = vunpack.c.h.b16 %v574
        %v1178 = vunpack.c.l.b16 %v575
        %v1179 = vunpack.c.l.b16 %v576
        %v1180 = vunpack.c.h.b16 %v576
        %v1181 = vunpack.c.l.b16 %v577
        %v1182 = vunpack.c.l.b16 %v578
        %v1183 = vunpack.c.h.b16 %v578
        %v1184 = vunpack.c.l.b16 %v579
        %v1185 = vunpack.c.l.b16 %v580
        %v1186 = vunpack.c.h.b16 %v580
        %v1187 = vunpack.c.l.b16 %v581
        %v1188 = vunpack.c.l.b16 %v582
        %v1189 = vunpack.c.h.b16 %v582
        %v1190 = vunpack.c.l.b16 %v583
        %v1191 = vunpack.c.l.b16 %v584
        %v1192 = vunpack.c.h.b16 %v584
        %v1193 = vunpack.c.l.b16 %v585
        %v1194 = vunpack.c.l.b16 %v586
        %v1195 = vunpack.c.h.b16 %v586
        %v1196 = vunpack.c.l.b16 %v587
        %v1197 = vunpack.c.l.b16 %v588
        %v1198 = vunpack.c.h.b16 %v588
        %v1199 = vunpack.c.l.b16 %v589
        %v1200 = vunpack.c.l.b16 %v590
        %v1201 = vunpack.c.h.b16 %v590
        %v1202 = vunpack.c.l.b16 %v591
        %v1203 = vunpack.c.l.b16 %v592
        %v1204 = vunpack.c.h.b16 %v592
        %v1205 = vunpack.c.l.b16 %v593
        %v1206 = vunpack.c.l.b16 %v594
        %v1207 = vunpack.c.h.b16 %v594
        %v1208 = vunpack.c.l.b16 %v595
        %v1209 = vunpack.c.l.b16 %v596
        %v1210 = vunpack.c.h.b16 %v596
        %v1211 = vunpack.c.l.b16 %v597
        %v1212 = vunpack.c.l.b16 %v598
        %v1213 = vunpack.c.h.b16 %v598
        %v1214 = vunpack.c.l.b16 %v599
        %v1215 = vpack.c.b16 %v1146, %v1143
        %v1216 = vpack.c.b16 %v1147, %v1144
        %v1217 = vpack.c.b16 %v1148, %v1145
        %v1218 = vpack.c.b16 %v1152, %v1149
        %v1219 = vpack.c.b16 %v1153, %v1150
        %v1220 = vpack.c.b16 %v1154, %v1151
        %v1221 = vpack.c.b16 %v1158, %v1155
        %v1222 = vpack.c.b16 %v1159, %v1156
        %v1223 = vpack.c.b16 %v1160, %v1157
        %v1224 = vpack.c.b16 %v1164, %v1161
        %v1225 = vpack.c.b16 %v1165, %v1162
        %v1226 = vpack.c.b16 %v1166, %v1163
        %v1227 = vpack.c.b16 %v1170, %v1167
        %v1228 = vpack.c.b16 %v1171, %v1168
        %v1229 = vpack.c.b16 %v1172, %v1169
        %v1230 = vpack.c.b16 %v1176, %v1173
        %v1231 = vpack.c.b16 %v1177, %v1174
        %v1232 = vpack.c.b16 %v1178, %v1175
        %v1233 = vpack.c.b16 %v1182, %v1179
        %v1234 = vpack.c.b16 %v1183, %v1180
        %v1235 = vpack.c.b16 %v1184, %v1181
        %v1236 = vpack.c.b16 %v1188, %v1185
        %v1237 = vpack.c.b16 %v1189, %v1186
        %v1238 = vpack.c.b16 %v1190, %v1187
        %v1239 = vpack.c.b16 %v1194, %v1191
        %v1240 = vpack.c.b16 %v1195, %v1192
        %v1241 = vpack.c.b16 %v1196, %v1193
        %v1242 = vpack.c.b16 %v1200, %v1197
        %v1243 = vpack.c.b16 %v1201, %v1198
        %v1244 = vpack.c.b16 %v1202, %v1199
        %v1245 = vpack.c.b16 %v1206, %v1203
        %v1246 = vpack.c.b16 %v1207, %v1204
        %v1247 = vpack.c.b16 %v1208, %v1205
        %v1248 = vpack.c.b16 %v1212, %v1209
        %v1249 = vpack.c.b16 %v1213, %v1210
        %v1250 = vpack.c.b16 %v1214, %v1211
        %v1287 = vsel %vm908, %v545, 0
        %v1289 = vsel %vm908, %v547, 0
        %v1291 = vsel %vm908, %v549, 0
        %v1293 = vsel %vm908, %v551, 0
        %1295 = vmatpush.bf16.msra.mxu0 %v1236
        %1296 = vmatpush.bf16.msra.mxu0 %v1233
        %1297 = vmatpush.bf16.msra.mxu0 %v1230
        %1298 = vmatpush.bf16.msra.mxu0 %v1227
        %1299 = vmatpush.bf16.msra.mxu0 %v1224
        %1300 = vmatpush.bf16.msra.mxu0 %v1221
        %1301 = vmatpush.bf16.msra.mxu0 %v1218
        %1302 = vmatpush.bf16.msra.mxu0 %v1215
        %1303 = vmatmul.bf16.gmra.mxu0 %v544
        %v1304 = vpop.f32.mrf.mxu0
        %v1305 = vadd.f32 %v960, %v1304
        %v1306 = vpop.f32.mrf.mxu0
        %v1307 = vadd.f32 %v962, %v1306
        %1308 = vmatmul.bf16.gmra.mxu0 %v546
        %v1309 = vpop.f32.mrf.mxu0
        %v1310 = vadd.f32 %v965, %v1309
        %v1311 = vpop.f32.mrf.mxu0
        %v1312 = vadd.f32 %v967, %v1311
        %1313 = vmatmul.bf16.gmra.mxu0 %v548
        %v1314 = vpop.f32.mrf.mxu0
        %v1315 = vadd.f32 %v970, %v1314
        %v1316 = vpop.f32.mrf.mxu0
        %v1317 = vadd.f32 %v972, %v1316
        %1318 = vmatmul.bf16.gmra.mxu0 %v550
        %v1319 = vpop.f32.mrf.mxu0
        %v1320 = vadd.f32 %v975, %v1319
        %v1321 = vpop.f32.mrf.mxu0
        %v1322 = vadd.f32 %v977, %v1321
        %1323 = vdwg.mxu0
        %1324 = vmatpush.bf16.msra.mxu0 0
        %1325 = vmatpush.bf16.msra.mxu0 0
        %1326 = vmatpush.bf16.msra.mxu0 0
        %1327 = vmatpush.bf16.msra.mxu0 0
        %1328 = vmatpush.bf16.msra.mxu0 %v1248
        %1329 = vmatpush.bf16.msra.mxu0 %v1245
        %1330 = vmatpush.bf16.msra.mxu0 %v1242
        %1331 = vmatpush.bf16.msra.mxu0 %v1239
        %1332 = vmatmul.bf16.gmra.mxu0 %v1287
        %v1333 = vpop.f32.mrf.mxu0
        %v1334 = vadd.f32 %v1305, %v1333
        %v1335 = vpop.f32.mrf.mxu0
        %v1336 = vadd.f32 %v1307, %v1335
        %1337 = vmatmul.bf16.gmra.mxu0 %v1289
        %v1338 = vpop.f32.mrf.mxu0
        %v1339 = vadd.f32 %v1310, %v1338
        %v1340 = vpop.f32.mrf.mxu0
        %v1341 = vadd.f32 %v1312, %v1340
        %1342 = vmatmul.bf16.gmra.mxu0 %v1291
        %v1343 = vpop.f32.mrf.mxu0
        %v1344 = vadd.f32 %v1315, %v1343
        %v1345 = vpop.f32.mrf.mxu0
        %v1346 = vadd.f32 %v1317, %v1345
        %1347 = vmatmul.bf16.gmra.mxu0 %v1293
        %v1348 = vpop.f32.mrf.mxu0
        %v1349 = vadd.f32 %v1320, %v1348
        %v1350 = vpop.f32.mrf.mxu0
        %v1351 = vadd.f32 %v1322, %v1350
        %1352 = vdwg.mxu0
        %1353 = vmatpush.bf16.msra.mxu0 %v1237
        %1354 = vmatpush.bf16.msra.mxu0 %v1234
        %1355 = vmatpush.bf16.msra.mxu0 %v1231
        %1356 = vmatpush.bf16.msra.mxu0 %v1228
        %1357 = vmatpush.bf16.msra.mxu0 %v1225
        %1358 = vmatpush.bf16.msra.mxu0 %v1222
        %1359 = vmatpush.bf16.msra.mxu0 %v1219
        %1360 = vmatpush.bf16.msra.mxu0 %v1216
        %1361 = vmatmul.bf16.gmra.mxu0 %v544
        %v1362 = vpop.f32.mrf.mxu0
        %v1363 = vadd.f32 %v1018, %v1362
        %v1364 = vpop.f32.mrf.mxu0
        %v1365 = vadd.f32 %v1020, %v1364
        %1366 = vmatmul.bf16.gmra.mxu0 %v546
        %v1367 = vpop.f32.mrf.mxu0
        %v1368 = vadd.f32 %v1023, %v1367
        %v1369 = vpop.f32.mrf.mxu0
        %v1370 = vadd.f32 %v1025, %v1369
        %1371 = vmatmul.bf16.gmra.mxu0 %v548
        %v1372 = vpop.f32.mrf.mxu0
        %v1373 = vadd.f32 %v1028, %v1372
        %v1374 = vpop.f32.mrf.mxu0
        %v1375 = vadd.f32 %v1030, %v1374
        %1376 = vmatmul.bf16.gmra.mxu0 %v550
        %v1377 = vpop.f32.mrf.mxu0
        %v1378 = vadd.f32 %v1033, %v1377
        %v1379 = vpop.f32.mrf.mxu0
        %v1380 = vadd.f32 %v1035, %v1379
        %1381 = vdwg.mxu0
        %1382 = vmatpush.bf16.msra.mxu0 0
        %1383 = vmatpush.bf16.msra.mxu0 0
        %1384 = vmatpush.bf16.msra.mxu0 0
        %1385 = vmatpush.bf16.msra.mxu0 0
        %1386 = vmatpush.bf16.msra.mxu0 %v1249
        %1387 = vmatpush.bf16.msra.mxu0 %v1246
        %1388 = vmatpush.bf16.msra.mxu0 %v1243
        %1389 = vmatpush.bf16.msra.mxu0 %v1240
        %1390 = vmatmul.bf16.gmra.mxu0 %v1287
        %v1391 = vpop.f32.mrf.mxu0
        %v1392 = vadd.f32 %v1363, %v1391
        %v1393 = vpop.f32.mrf.mxu0
        %v1394 = vadd.f32 %v1365, %v1393
        %1395 = vmatmul.bf16.gmra.mxu0 %v1289
        %v1396 = vpop.f32.mrf.mxu0
        %v1397 = vadd.f32 %v1368, %v1396
        %v1398 = vpop.f32.mrf.mxu0
        %v1399 = vadd.f32 %v1370, %v1398
        %1400 = vmatmul.bf16.gmra.mxu0 %v1291
        %v1401 = vpop.f32.mrf.mxu0
        %v1402 = vadd.f32 %v1373, %v1401
        %v1403 = vpop.f32.mrf.mxu0
        %v1404 = vadd.f32 %v1375, %v1403
        %1405 = vmatmul.bf16.gmra.mxu0 %v1293
        %v1406 = vpop.f32.mrf.mxu0
        %v1407 = vadd.f32 %v1378, %v1406
        %v1408 = vpop.f32.mrf.mxu0
        %v1409 = vadd.f32 %v1380, %v1408
        %1410 = vdwg.mxu0
        %1411 = vmatpush.bf16.msra.mxu0 %v1238
        %1412 = vmatpush.bf16.msra.mxu0 %v1235
        %1413 = vmatpush.bf16.msra.mxu0 %v1232
        %1414 = vmatpush.bf16.msra.mxu0 %v1229
        %1415 = vmatpush.bf16.msra.mxu0 %v1226
        %1416 = vmatpush.bf16.msra.mxu0 %v1223
        %1417 = vmatpush.bf16.msra.mxu0 %v1220
        %1418 = vmatpush.bf16.msra.mxu0 %v1217
        %1419 = vmatmul.bf16.gmra.mxu0 %v544
        %v1420 = vpop.f32.mrf.mxu0
        %v1421 = vadd.f32 %v1076, %v1420
        %v1422 = vpop.f32.mrf.mxu0
        %v1423 = vadd.f32 %v1078, %v1422
        %1424 = vmatmul.bf16.gmra.mxu0 %v546
        %v1425 = vpop.f32.mrf.mxu0
        %v1426 = vadd.f32 %v1081, %v1425
        %v1427 = vpop.f32.mrf.mxu0
        %v1428 = vadd.f32 %v1083, %v1427
        %1429 = vmatmul.bf16.gmra.mxu0 %v548
        %v1430 = vpop.f32.mrf.mxu0
        %v1431 = vadd.f32 %v1086, %v1430
        %v1432 = vpop.f32.mrf.mxu0
        %v1433 = vadd.f32 %v1088, %v1432
        %1434 = vmatmul.bf16.gmra.mxu0 %v550
        %v1435 = vpop.f32.mrf.mxu0
        %v1436 = vadd.f32 %v1091, %v1435
        %v1437 = vpop.f32.mrf.mxu0
        %v1438 = vadd.f32 %v1093, %v1437
        %1439 = vdwg.mxu0
        %1440 = vmatpush.bf16.msra.mxu0 0
        %1441 = vmatpush.bf16.msra.mxu0 0
        %1442 = vmatpush.bf16.msra.mxu0 0
        %1443 = vmatpush.bf16.msra.mxu0 0
        %1444 = vmatpush.bf16.msra.mxu0 %v1250
        %1445 = vmatpush.bf16.msra.mxu0 %v1247
        %1446 = vmatpush.bf16.msra.mxu0 %v1244
        %1447 = vmatpush.bf16.msra.mxu0 %v1241
        %1448 = vmatmul.bf16.gmra.mxu0 %v1287
        %v1449 = vpop.f32.mrf.mxu0
        %v1450 = vadd.f32 %v1421, %v1449
        %v1451 = vpop.f32.mrf.mxu0
        %v1452 = vadd.f32 %v1423, %v1451
        %1453 = vmatmul.bf16.gmra.mxu0 %v1289
        %v1454 = vpop.f32.mrf.mxu0
        %v1455 = vadd.f32 %v1426, %v1454
        %v1456 = vpop.f32.mrf.mxu0
        %v1457 = vadd.f32 %v1428, %v1456
        %1458 = vmatmul.bf16.gmra.mxu0 %v1291
        %v1459 = vpop.f32.mrf.mxu0
        %v1460 = vadd.f32 %v1431, %v1459
        %v1461 = vpop.f32.mrf.mxu0
        %v1462 = vadd.f32 %v1433, %v1461
        %1463 = vmatmul.bf16.gmra.mxu0 %v1293
        %v1464 = vpop.f32.mrf.mxu0
        %v1465 = vadd.f32 %v1436, %v1464
        %v1466 = vpop.f32.mrf.mxu0
        %v1467 = vadd.f32 %v1438, %v1466
        %1468 = vdwg.mxu0
        %s1469 = scalar_lea.vmem %s1, 576
        %v1470 = vld [vmem:[%s1469] sm:$0xff]
        %v1471 = vld [vmem:[%s1469 + $0x8] sm:$0xf]
        %v1472 = vld [vmem:[%s1469 + $0xc] sm:$0xff]
        %v1473 = vld [vmem:[%s1469 + $0x14] sm:$0xf]
        %v1474 = vld [vmem:[%s1469 + $0x18] sm:$0xff]
        %v1475 = vld [vmem:[%s1469 + $0x20] sm:$0xf]
        %v1476 = vld [vmem:[%s1469 + $0x24] sm:$0xff]
        %v1477 = vld [vmem:[%s1469 + $0x2c] sm:$0xf]
        %v1478 = vld [vmem:[%s1469 + $0x30] sm:$0xff]
        %v1479 = vld [vmem:[%s1469 + $0x38] sm:$0xf]
        %v1480 = vld [vmem:[%s1469 + $0x3c] sm:$0xff]
        %v1481 = vld [vmem:[%s1469 + $0x44] sm:$0xf]
        %v1482 = vld [vmem:[%s1469 + $0x48] sm:$0xff]
        %v1483 = vld [vmem:[%s1469 + $0x50] sm:$0xf]
        %v1484 = vld [vmem:[%s1469 + $0x54] sm:$0xff]
        %v1485 = vld [vmem:[%s1469 + $0x5c] sm:$0xf]
        %v1486 = vld [vmem:[%s1469 + $0x60] sm:$0xff]
        %v1487 = vld [vmem:[%s1469 + $0x68] sm:$0xf]
        %v1488 = vld [vmem:[%s1469 + $0x6c] sm:$0xff]
        %v1489 = vld [vmem:[%s1469 + $0x74] sm:$0xf]
        %v1490 = vld [vmem:[%s1469 + $0x78] sm:$0xff]
        %v1491 = vld [vmem:[%s1469 + $0x80] sm:$0xf]
        %v1492 = vld [vmem:[%s1469 + $0x84] sm:$0xff]
        %v1493 = vld [vmem:[%s1469 + $0x8c] sm:$0xf]
        %v1494 = vld [vmem:[%s1469 + $0x90] sm:$0xff]
        %v1495 = vld [vmem:[%s1469 + $0x98] sm:$0xf]
        %v1496 = vld [vmem:[%s1469 + $0x9c] sm:$0xff]
        %v1497 = vld [vmem:[%s1469 + $0xa4] sm:$0xf]
        %v1498 = vld [vmem:[%s1469 + $0xa8] sm:$0xff]
        %v1499 = vld [vmem:[%s1469 + $0xb0] sm:$0xf]
        %v1500 = vld [vmem:[%s1469 + $0xb4] sm:$0xff]
        %v1501 = vld [vmem:[%s1469 + $0xbc] sm:$0xf]
        %v1502 = vld [vmem:[%s1469 + $0xc0] sm:$0xff]
        %v1503 = vld [vmem:[%s1469 + $0xc8] sm:$0xf]
        %v1504 = vld [vmem:[%s1469 + $0xcc] sm:$0xff]
        %v1505 = vld [vmem:[%s1469 + $0xd4] sm:$0xf]
        %v1506 = vld [vmem:[%s1469 + $0xd8] sm:$0xff]
        %v1507 = vld [vmem:[%s1469 + $0xe0] sm:$0xf]
        %v1508 = vld [vmem:[%s1469 + $0xe4] sm:$0xff]
        %v1509 = vld [vmem:[%s1469 + $0xec] sm:$0xf]
        %v1510 = vld [vmem:[%s1469 + $0xf0] sm:$0xff]
        %v1511 = vld [vmem:[%s1469 + $0xf8] sm:$0xf]
        %v1512 = vld [vmem:[%s1469 + $0xfc] sm:$0xff]
        %v1513 = vld [vmem:[%s1469 + $0x104] sm:$0xf]
        %v1514 = vld [vmem:[%s1469 + $0x108] sm:$0xff]
        %v1515 = vld [vmem:[%s1469 + $0x110] sm:$0xf]
        %v1516 = vld [vmem:[%s1469 + $0x114] sm:$0xff]
        %v1517 = vld [vmem:[%s1469 + $0x11c] sm:$0xf]
        %vm1526 = vcmask 1046528
        %v1527 = vrot.slane %v544, 1
        %v1528 = vrot.slane %v546, 1
        %v1529 = vsel %vm1526, %v1527, %v1528
        %v1530 = vrot.slane %v545, 1
        %v1531 = vrot.slane %v547, 1
        %v1532 = vsel %vm1526, %v1530, %v1531
        %v1533 = vrot.slane %v548, 1
        %v1534 = vsel %vm1526, %v1528, %v1533
        %v1535 = vrot.slane %v549, 1
        %v1536 = vsel %vm1526, %v1531, %v1535
        %v1537 = vrot.slane %v550, 1
        %v1538 = vsel %vm1526, %v1533, %v1537
        %v1539 = vrot.slane %v551, 1
        %v1540 = vsel %vm1526, %v1535, %v1539
        %v1593 = vunpack.c.l.b16 %v1470
        %v1594 = vunpack.c.h.b16 %v1470
        %v1595 = vunpack.c.l.b16 %v1471
        %v1596 = vunpack.c.l.b16 %v1472
        %v1597 = vunpack.c.h.b16 %v1472
        %v1598 = vunpack.c.l.b16 %v1473
        %v1599 = vunpack.c.l.b16 %v1474
        %v1600 = vunpack.c.h.b16 %v1474
        %v1601 = vunpack.c.l.b16 %v1475
        %v1602 = vunpack.c.l.b16 %v1476
        %v1603 = vunpack.c.h.b16 %v1476
        %v1604 = vunpack.c.l.b16 %v1477
        %v1605 = vunpack.c.l.b16 %v1478
        %v1606 = vunpack.c.h.b16 %v1478
        %v1607 = vunpack.c.l.b16 %v1479
        %v1608 = vunpack.c.l.b16 %v1480
        %v1609 = vunpack.c.h.b16 %v1480
        %v1610 = vunpack.c.l.b16 %v1481
        %v1611 = vunpack.c.l.b16 %v1482
        %v1612 = vunpack.c.h.b16 %v1482
        %v1613 = vunpack.c.l.b16 %v1483
        %v1614 = vunpack.c.l.b16 %v1484
        %v1615 = vunpack.c.h.b16 %v1484
        %v1616 = vunpack.c.l.b16 %v1485
        %v1617 = vunpack.c.l.b16 %v1486
        %v1618 = vunpack.c.h.b16 %v1486
        %v1619 = vunpack.c.l.b16 %v1487
        %v1620 = vunpack.c.l.b16 %v1488
        %v1621 = vunpack.c.h.b16 %v1488
        %v1622 = vunpack.c.l.b16 %v1489
        %v1623 = vunpack.c.l.b16 %v1490
        %v1624 = vunpack.c.h.b16 %v1490
        %v1625 = vunpack.c.l.b16 %v1491
        %v1626 = vunpack.c.l.b16 %v1492
        %v1627 = vunpack.c.h.b16 %v1492
        %v1628 = vunpack.c.l.b16 %v1493
        %v1629 = vunpack.c.l.b16 %v1494
        %v1630 = vunpack.c.h.b16 %v1494
        %v1631 = vunpack.c.l.b16 %v1495
        %v1632 = vunpack.c.l.b16 %v1496
        %v1633 = vunpack.c.h.b16 %v1496
        %v1634 = vunpack.c.l.b16 %v1497
        %v1635 = vunpack.c.l.b16 %v1498
        %v1636 = vunpack.c.h.b16 %v1498
        %v1637 = vunpack.c.l.b16 %v1499
        %v1638 = vunpack.c.l.b16 %v1500
        %v1639 = vunpack.c.h.b16 %v1500
        %v1640 = vunpack.c.l.b16 %v1501
        %v1641 = vunpack.c.l.b16 %v1502
        %v1642 = vunpack.c.h.b16 %v1502
        %v1643 = vunpack.c.l.b16 %v1503
        %v1644 = vunpack.c.l.b16 %v1504
        %v1645 = vunpack.c.h.b16 %v1504
        %v1646 = vunpack.c.l.b16 %v1505
        %v1647 = vunpack.c.l.b16 %v1506
        %v1648 = vunpack.c.h.b16 %v1506
        %v1649 = vunpack.c.l.b16 %v1507
        %v1650 = vunpack.c.l.b16 %v1508
        %v1651 = vunpack.c.h.b16 %v1508
        %v1652 = vunpack.c.l.b16 %v1509
        %v1653 = vunpack.c.l.b16 %v1510
        %v1654 = vunpack.c.h.b16 %v1510
        %v1655 = vunpack.c.l.b16 %v1511
        %v1656 = vunpack.c.l.b16 %v1512
        %v1657 = vunpack.c.h.b16 %v1512
        %v1658 = vunpack.c.l.b16 %v1513
        %v1659 = vunpack.c.l.b16 %v1514
        %v1660 = vunpack.c.h.b16 %v1514
        %v1661 = vunpack.c.l.b16 %v1515
        %v1662 = vunpack.c.l.b16 %v1516
        %v1663 = vunpack.c.h.b16 %v1516
        %v1664 = vunpack.c.l.b16 %v1517
        %v1665 = vpack.c.b16 %v1596, %v1593
        %v1666 = vpack.c.b16 %v1597, %v1594
        %v1667 = vpack.c.b16 %v1598, %v1595
        %v1668 = vpack.c.b16 %v1602, %v1599
        %v1669 = vpack.c.b16 %v1603, %v1600
        %v1670 = vpack.c.b16 %v1604, %v1601
        %v1671 = vpack.c.b16 %v1608, %v1605
        %v1672 = vpack.c.b16 %v1609, %v1606
        %v1673 = vpack.c.b16 %v1610, %v1607
        %v1674 = vpack.c.b16 %v1614, %v1611
        %v1675 = vpack.c.b16 %v1615, %v1612
        %v1676 = vpack.c.b16 %v1616, %v1613
        %v1677 = vpack.c.b16 %v1620, %v1617
        %v1678 = vpack.c.b16 %v1621, %v1618
        %v1679 = vpack.c.b16 %v1622, %v1619
        %v1680 = vpack.c.b16 %v1626, %v1623
        %v1681 = vpack.c.b16 %v1627, %v1624
        %v1682 = vpack.c.b16 %v1628, %v1625
        %v1683 = vpack.c.b16 %v1632, %v1629
        %v1684 = vpack.c.b16 %v1633, %v1630
        %v1685 = vpack.c.b16 %v1634, %v1631
        %v1686 = vpack.c.b16 %v1638, %v1635
        %v1687 = vpack.c.b16 %v1639, %v1636
        %v1688 = vpack.c.b16 %v1640, %v1637
        %v1689 = vpack.c.b16 %v1644, %v1641
        %v1690 = vpack.c.b16 %v1645, %v1642
        %v1691 = vpack.c.b16 %v1646, %v1643
        %v1692 = vpack.c.b16 %v1650, %v1647
        %v1693 = vpack.c.b16 %v1651, %v1648
        %v1694 = vpack.c.b16 %v1652, %v1649
        %v1695 = vpack.c.b16 %v1656, %v1653
        %v1696 = vpack.c.b16 %v1657, %v1654
        %v1697 = vpack.c.b16 %v1658, %v1655
        %v1698 = vpack.c.b16 %v1662, %v1659
        %v1699 = vpack.c.b16 %v1663, %v1660
        %v1700 = vpack.c.b16 %v1664, %v1661
        %v1738 = vsel %vm908, %v1532, 0
        %v1741 = vsel %vm908, %v1536, 0
        %v1744 = vsel %vm908, %v1540, 0
        %v1747 = vsel %vm908, %v1539, 0
        %1749 = vmatpush.bf16.msra.mxu0 %v1686
        %1750 = vmatpush.bf16.msra.mxu0 %v1683
        %1751 = vmatpush.bf16.msra.mxu0 %v1680
        %1752 = vmatpush.bf16.msra.mxu0 %v1677
        %1753 = vmatpush.bf16.msra.mxu0 %v1674
        %1754 = vmatpush.bf16.msra.mxu0 %v1671
        %1755 = vmatpush.bf16.msra.mxu0 %v1668
        %1756 = vmatpush.bf16.msra.mxu0 %v1665
        %1757 = vmatmul.bf16.gmra.mxu0 %v1529
        %v1758 = vpop.f32.mrf.mxu0
        %v1759 = vadd.f32 0.0, %v1758
        %v1760 = vpop.f32.mrf.mxu0
        %v1761 = vadd.f32 0.0, %v1760
        %1762 = vmatmul.bf16.gmra.mxu0 %v1534
        %v1763 = vpop.f32.mrf.mxu0
        %v1764 = vadd.f32 0.0, %v1763
        %v1765 = vpop.f32.mrf.mxu0
        %v1766 = vadd.f32 0.0, %v1765
        %1767 = vmatmul.bf16.gmra.mxu0 %v1538
        %v1768 = vpop.f32.mrf.mxu0
        %v1769 = vadd.f32 0.0, %v1768
        %v1770 = vpop.f32.mrf.mxu0
        %v1771 = vadd.f32 0.0, %v1770
        %1772 = vmatmul.bf16.gmra.mxu0 %v1537
        %v1773 = vpop.f32.mrf.mxu0
        %v1774 = vadd.f32 0.0, %v1773
        %v1775 = vpop.f32.mrf.mxu0
        %v1776 = vadd.f32 0.0, %v1775
        %1777 = vdwg.mxu0
        %1778 = vmatpush.bf16.msra.mxu0 0
        %1779 = vmatpush.bf16.msra.mxu0 0
        %1780 = vmatpush.bf16.msra.mxu0 0
        %1781 = vmatpush.bf16.msra.mxu0 0
        %1782 = vmatpush.bf16.msra.mxu0 %v1698
        %1783 = vmatpush.bf16.msra.mxu0 %v1695
        %1784 = vmatpush.bf16.msra.mxu0 %v1692
        %1785 = vmatpush.bf16.msra.mxu0 %v1689
        %1786 = vmatmul.bf16.gmra.mxu0 %v1738
        %v1787 = vpop.f32.mrf.mxu0
        %v1788 = vadd.f32 %v1759, %v1787
        %v1789 = vpop.f32.mrf.mxu0
        %v1790 = vadd.f32 %v1761, %v1789
        %1791 = vmatmul.bf16.gmra.mxu0 %v1741
        %v1792 = vpop.f32.mrf.mxu0
        %v1793 = vadd.f32 %v1764, %v1792
        %v1794 = vpop.f32.mrf.mxu0
        %v1795 = vadd.f32 %v1766, %v1794
        %1796 = vmatmul.bf16.gmra.mxu0 %v1744
        %v1797 = vpop.f32.mrf.mxu0
        %v1798 = vadd.f32 %v1769, %v1797
        %v1799 = vpop.f32.mrf.mxu0
        %v1800 = vadd.f32 %v1771, %v1799
        %1801 = vmatmul.bf16.gmra.mxu0 %v1747
        %v1802 = vpop.f32.mrf.mxu0
        %v1803 = vadd.f32 %v1774, %v1802
        %v1804 = vpop.f32.mrf.mxu0
        %v1805 = vadd.f32 %v1776, %v1804
        %1806 = vdwg.mxu0
        %1807 = vmatpush.bf16.msra.mxu0 %v1687
        %1808 = vmatpush.bf16.msra.mxu0 %v1684
        %1809 = vmatpush.bf16.msra.mxu0 %v1681
        %1810 = vmatpush.bf16.msra.mxu0 %v1678
        %1811 = vmatpush.bf16.msra.mxu0 %v1675
        %1812 = vmatpush.bf16.msra.mxu0 %v1672
        %1813 = vmatpush.bf16.msra.mxu0 %v1669
        %1814 = vmatpush.bf16.msra.mxu0 %v1666
        %1815 = vmatmul.bf16.gmra.mxu0 %v1529
        %v1816 = vpop.f32.mrf.mxu0
        %v1817 = vadd.f32 0.0, %v1816
        %v1818 = vpop.f32.mrf.mxu0
        %v1819 = vadd.f32 0.0, %v1818
        %1820 = vmatmul.bf16.gmra.mxu0 %v1534
        %v1821 = vpop.f32.mrf.mxu0
        %v1822 = vadd.f32 0.0, %v1821
        %v1823 = vpop.f32.mrf.mxu0
        %v1824 = vadd.f32 0.0, %v1823
        %1825 = vmatmul.bf16.gmra.mxu0 %v1538
        %v1826 = vpop.f32.mrf.mxu0
        %v1827 = vadd.f32 0.0, %v1826
        %v1828 = vpop.f32.mrf.mxu0
        %v1829 = vadd.f32 0.0, %v1828
        %1830 = vmatmul.bf16.gmra.mxu0 %v1537
        %v1831 = vpop.f32.mrf.mxu0
        %v1832 = vadd.f32 0.0, %v1831
        %v1833 = vpop.f32.mrf.mxu0
        %v1834 = vadd.f32 0.0, %v1833
        %1835 = vdwg.mxu0
        %1836 = vmatpush.bf16.msra.mxu0 0
        %1837 = vmatpush.bf16.msra.mxu0 0
        %1838 = vmatpush.bf16.msra.mxu0 0
        %1839 = vmatpush.bf16.msra.mxu0 0
        %1840 = vmatpush.bf16.msra.mxu0 %v1699
        %1841 = vmatpush.bf16.msra.mxu0 %v1696
        %1842 = vmatpush.bf16.msra.mxu0 %v1693
        %1843 = vmatpush.bf16.msra.mxu0 %v1690
        %1844 = vmatmul.bf16.gmra.mxu0 %v1738
        %v1845 = vpop.f32.mrf.mxu0
        %v1846 = vadd.f32 %v1817, %v1845
        %v1847 = vpop.f32.mrf.mxu0
        %v1848 = vadd.f32 %v1819, %v1847
        %1849 = vmatmul.bf16.gmra.mxu0 %v1741
        %v1850 = vpop.f32.mrf.mxu0
        %v1851 = vadd.f32 %v1822, %v1850
        %v1852 = vpop.f32.mrf.mxu0
        %v1853 = vadd.f32 %v1824, %v1852
        %1854 = vmatmul.bf16.gmra.mxu0 %v1744
        %v1855 = vpop.f32.mrf.mxu0
        %v1856 = vadd.f32 %v1827, %v1855
        %v1857 = vpop.f32.mrf.mxu0
        %v1858 = vadd.f32 %v1829, %v1857
        %1859 = vmatmul.bf16.gmra.mxu0 %v1747
        %v1860 = vpop.f32.mrf.mxu0
        %v1861 = vadd.f32 %v1832, %v1860
        %v1862 = vpop.f32.mrf.mxu0
        %v1863 = vadd.f32 %v1834, %v1862
        %1864 = vdwg.mxu0
        %1865 = vmatpush.bf16.msra.mxu0 %v1688
        %1866 = vmatpush.bf16.msra.mxu0 %v1685
        %1867 = vmatpush.bf16.msra.mxu0 %v1682
        %1868 = vmatpush.bf16.msra.mxu0 %v1679
        %1869 = vmatpush.bf16.msra.mxu0 %v1676
        %1870 = vmatpush.bf16.msra.mxu0 %v1673
        %1871 = vmatpush.bf16.msra.mxu0 %v1670
        %1872 = vmatpush.bf16.msra.mxu0 %v1667
        %1873 = vmatmul.bf16.gmra.mxu0 %v1529
        %v1874 = vpop.f32.mrf.mxu0
        %v1875 = vadd.f32 0.0, %v1874
        %v1876 = vpop.f32.mrf.mxu0
        %v1877 = vadd.f32 0.0, %v1876
        %1878 = vmatmul.bf16.gmra.mxu0 %v1534
        %v1879 = vpop.f32.mrf.mxu0
        %v1880 = vadd.f32 0.0, %v1879
        %v1881 = vpop.f32.mrf.mxu0
        %v1882 = vadd.f32 0.0, %v1881
        %1883 = vmatmul.bf16.gmra.mxu0 %v1538
        %v1884 = vpop.f32.mrf.mxu0
        %v1885 = vadd.f32 0.0, %v1884
        %v1886 = vpop.f32.mrf.mxu0
        %v1887 = vadd.f32 0.0, %v1886
        %1888 = vmatmul.bf16.gmra.mxu0 %v1537
        %v1889 = vpop.f32.mrf.mxu0
        %v1890 = vadd.f32 0.0, %v1889
        %v1891 = vpop.f32.mrf.mxu0
        %v1892 = vadd.f32 0.0, %v1891
        %1893 = vdwg.mxu0
        %1894 = vmatpush.bf16.msra.mxu0 0
        %1895 = vmatpush.bf16.msra.mxu0 0
        %1896 = vmatpush.bf16.msra.mxu0 0
        %1897 = vmatpush.bf16.msra.mxu0 0
        %1898 = vmatpush.bf16.msra.mxu0 %v1700
        %1899 = vmatpush.bf16.msra.mxu0 %v1697
        %1900 = vmatpush.bf16.msra.mxu0 %v1694
        %1901 = vmatpush.bf16.msra.mxu0 %v1691
        %1902 = vmatmul.bf16.gmra.mxu0 %v1738
        %v1903 = vpop.f32.mrf.mxu0
        %v1904 = vadd.f32 %v1875, %v1903
        %v1905 = vpop.f32.mrf.mxu0
        %v1906 = vadd.f32 %v1877, %v1905
        %1907 = vmatmul.bf16.gmra.mxu0 %v1741
        %v1908 = vpop.f32.mrf.mxu0
        %v1909 = vadd.f32 %v1880, %v1908
        %v1910 = vpop.f32.mrf.mxu0
        %v1911 = vadd.f32 %v1882, %v1910
        %1912 = vmatmul.bf16.gmra.mxu0 %v1744
        %v1913 = vpop.f32.mrf.mxu0
        %v1914 = vadd.f32 %v1885, %v1913
        %v1915 = vpop.f32.mrf.mxu0
        %v1916 = vadd.f32 %v1887, %v1915
        %1917 = vmatmul.bf16.gmra.mxu0 %v1747
        %v1918 = vpop.f32.mrf.mxu0
        %v1919 = vadd.f32 %v1890, %v1918
        %v1920 = vpop.f32.mrf.mxu0
        %v1921 = vadd.f32 %v1892, %v1920
        %1922 = vdwg.mxu0
        %v1923 = vadd.f32 %v1334, %v1788
        %v1924 = vadd.f32 %v1392, %v1846
        %v1925 = vadd.f32 %v1450, %v1904
        %v1926 = vadd.f32 %v1336, %v1790
        %v1927 = vadd.f32 %v1394, %v1848
        %v1928 = vadd.f32 %v1452, %v1906
        %v1929 = vadd.f32 %v1339, %v1793
        %v1930 = vadd.f32 %v1397, %v1851
        %v1931 = vadd.f32 %v1455, %v1909
        %v1932 = vadd.f32 %v1341, %v1795
        %v1933 = vadd.f32 %v1399, %v1853
        %v1934 = vadd.f32 %v1457, %v1911
        %v1935 = vadd.f32 %v1344, %v1798
        %v1936 = vadd.f32 %v1402, %v1856
        %v1937 = vadd.f32 %v1460, %v1914
        %v1938 = vadd.f32 %v1346, %v1800
        %v1939 = vadd.f32 %v1404, %v1858
        %v1940 = vadd.f32 %v1462, %v1916
        %v1941 = vadd.f32 %v1349, %v1803
        %v1942 = vadd.f32 %v1407, %v1861
        %v1943 = vadd.f32 %v1465, %v1919
        %v1944 = vadd.f32 %v1351, %v1805
        %v1945 = vadd.f32 %v1409, %v1863
        %v1946 = vadd.f32 %v1467, %v1921
        %s1947 = scalar_lea.vmem %s1, 864
        %v1948 = vld [vmem:[%s1947] sm:$0xff]
        %v1949 = vld [vmem:[%s1947 + $0x8] sm:$0xf]
        %v1950 = vld [vmem:[%s1947 + $0xc] sm:$0xff]
        %v1951 = vld [vmem:[%s1947 + $0x14] sm:$0xf]
        %v1952 = vld [vmem:[%s1947 + $0x18] sm:$0xff]
        %v1953 = vld [vmem:[%s1947 + $0x20] sm:$0xf]
        %v1954 = vld [vmem:[%s1947 + $0x24] sm:$0xff]
        %v1955 = vld [vmem:[%s1947 + $0x2c] sm:$0xf]
        %v1956 = vld [vmem:[%s1947 + $0x30] sm:$0xff]
        %v1957 = vld [vmem:[%s1947 + $0x38] sm:$0xf]
        %v1958 = vld [vmem:[%s1947 + $0x3c] sm:$0xff]
        %v1959 = vld [vmem:[%s1947 + $0x44] sm:$0xf]
        %v1960 = vld [vmem:[%s1947 + $0x48] sm:$0xff]
        %v1961 = vld [vmem:[%s1947 + $0x50] sm:$0xf]
        %v1962 = vld [vmem:[%s1947 + $0x54] sm:$0xff]
        %v1963 = vld [vmem:[%s1947 + $0x5c] sm:$0xf]
        %v1964 = vld [vmem:[%s1947 + $0x60] sm:$0xff]
        %v1965 = vld [vmem:[%s1947 + $0x68] sm:$0xf]
        %v1966 = vld [vmem:[%s1947 + $0x6c] sm:$0xff]
        %v1967 = vld [vmem:[%s1947 + $0x74] sm:$0xf]
        %v1968 = vld [vmem:[%s1947 + $0x78] sm:$0xff]
        %v1969 = vld [vmem:[%s1947 + $0x80] sm:$0xf]
        %v1970 = vld [vmem:[%s1947 + $0x84] sm:$0xff]
        %v1971 = vld [vmem:[%s1947 + $0x8c] sm:$0xf]
        %v1972 = vld [vmem:[%s1947 + $0x90] sm:$0xff]
        %v1973 = vld [vmem:[%s1947 + $0x98] sm:$0xf]
        %v1974 = vld [vmem:[%s1947 + $0x9c] sm:$0xff]
        %v1975 = vld [vmem:[%s1947 + $0xa4] sm:$0xf]
        %v1976 = vld [vmem:[%s1947 + $0xa8] sm:$0xff]
        %v1977 = vld [vmem:[%s1947 + $0xb0] sm:$0xf]
        %v1978 = vld [vmem:[%s1947 + $0xb4] sm:$0xff]
        %v1979 = vld [vmem:[%s1947 + $0xbc] sm:$0xf]
        %v1980 = vld [vmem:[%s1947 + $0xc0] sm:$0xff]
        %v1981 = vld [vmem:[%s1947 + $0xc8] sm:$0xf]
        %v1982 = vld [vmem:[%s1947 + $0xcc] sm:$0xff]
        %v1983 = vld [vmem:[%s1947 + $0xd4] sm:$0xf]
        %v1984 = vld [vmem:[%s1947 + $0xd8] sm:$0xff]
        %v1985 = vld [vmem:[%s1947 + $0xe0] sm:$0xf]
        %v1986 = vld [vmem:[%s1947 + $0xe4] sm:$0xff]
        %v1987 = vld [vmem:[%s1947 + $0xec] sm:$0xf]
        %v1988 = vld [vmem:[%s1947 + $0xf0] sm:$0xff]
        %v1989 = vld [vmem:[%s1947 + $0xf8] sm:$0xf]
        %v1990 = vld [vmem:[%s1947 + $0xfc] sm:$0xff]
        %v1991 = vld [vmem:[%s1947 + $0x104] sm:$0xf]
        %v1992 = vld [vmem:[%s1947 + $0x108] sm:$0xff]
        %v1993 = vld [vmem:[%s1947 + $0x110] sm:$0xf]
        %v1994 = vld [vmem:[%s1947 + $0x114] sm:$0xff]
        %v1995 = vld [vmem:[%s1947 + $0x11c] sm:$0xf]
        %vm1996 = vsmask.f32 6400
        %v1997 = vrot.slane %v651, 1
        %v1998 = vrot.slane %v653, 2
        %v1999 = vor.u32 %v1997, %v1998
        %v2000 = vrot.slane %v674, 1
        %v2001 = vrot.slane %v658, 2
        %v2002 = vor.u32 %v2000, %v2001
        %v2003 = vsel %vm1996, %v1999, %v2002
        %v2004 = vrot.slane %v663, 1
        %v2005 = vrot.slane %v665, 2
        %v2006 = vor.u32 %v2004, %v2005
        %v2007 = vrot.slane %v682, 1
        %v2008 = vrot.slane %v670, 2
        %v2009 = vor.u32 %v2007, %v2008
        %v2010 = vsel %vm1996, %v2006, %v2009
        %v2011 = vrot.slane %v690, 1
        %v2012 = vrot.slane %v678, 2
        %v2013 = vor.u32 %v2011, %v2012
        %v2014 = vsel %vm1996, %v2002, %v2013
        %v2015 = vrot.slane %v698, 1
        %v2016 = vrot.slane %v686, 2
        %v2017 = vor.u32 %v2015, %v2016
        %v2018 = vsel %vm1996, %v2009, %v2017
        %v2019 = vrot.slane %v706, 1
        %v2020 = vrot.slane %v694, 2
        %v2021 = vor.u32 %v2019, %v2020
        %v2022 = vsel %vm1996, %v2013, %v2021
        %v2023 = vrot.slane %v709, 1
        %v2024 = vrot.slane %v702, 2
        %v2025 = vor.u32 %v2023, %v2024
        %v2026 = vsel %vm1996, %v2017, %v2025
        %v2079 = vunpack.c.l.b16 %v1948
        %v2080 = vunpack.c.h.b16 %v1948
        %v2081 = vunpack.c.l.b16 %v1949
        %v2082 = vunpack.c.l.b16 %v1950
        %v2083 = vunpack.c.h.b16 %v1950
        %v2084 = vunpack.c.l.b16 %v1951
        %v2085 = vunpack.c.l.b16 %v1952
        %v2086 = vunpack.c.h.b16 %v1952
        %v2087 = vunpack.c.l.b16 %v1953
        %v2088 = vunpack.c.l.b16 %v1954
        %v2089 = vunpack.c.h.b16 %v1954
        %v2090 = vunpack.c.l.b16 %v1955
        %v2091 = vunpack.c.l.b16 %v1956
        %v2092 = vunpack.c.h.b16 %v1956
        %v2093 = vunpack.c.l.b16 %v1957
        %v2094 = vunpack.c.l.b16 %v1958
        %v2095 = vunpack.c.h.b16 %v1958
        %v2096 = vunpack.c.l.b16 %v1959
        %v2097 = vunpack.c.l.b16 %v1960
        %v2098 = vunpack.c.h.b16 %v1960
        %v2099 = vunpack.c.l.b16 %v1961
        %v2100 = vunpack.c.l.b16 %v1962
        %v2101 = vunpack.c.h.b16 %v1962
        %v2102 = vunpack.c.l.b16 %v1963
        %v2103 = vunpack.c.l.b16 %v1964
        %v2104 = vunpack.c.h.b16 %v1964
        %v2105 = vunpack.c.l.b16 %v1965
        %v2106 = vunpack.c.l.b16 %v1966
        %v2107 = vunpack.c.h.b16 %v1966
        %v2108 = vunpack.c.l.b16 %v1967
        %v2109 = vunpack.c.l.b16 %v1968
        %v2110 = vunpack.c.h.b16 %v1968
        %v2111 = vunpack.c.l.b16 %v1969
        %v2112 = vunpack.c.l.b16 %v1970
        %v2113 = vunpack.c.h.b16 %v1970
        %v2114 = vunpack.c.l.b16 %v1971
        %v2115 = vunpack.c.l.b16 %v1972
        %v2116 = vunpack.c.h.b16 %v1972
        %v2117 = vunpack.c.l.b16 %v1973
        %v2118 = vunpack.c.l.b16 %v1974
        %v2119 = vunpack.c.h.b16 %v1974
        %v2120 = vunpack.c.l.b16 %v1975
        %v2121 = vunpack.c.l.b16 %v1976
        %v2122 = vunpack.c.h.b16 %v1976
        %v2123 = vunpack.c.l.b16 %v1977
        %v2124 = vunpack.c.l.b16 %v1978
        %v2125 = vunpack.c.h.b16 %v1978
        %v2126 = vunpack.c.l.b16 %v1979
        %v2127 = vunpack.c.l.b16 %v1980
        %v2128 = vunpack.c.h.b16 %v1980
        %v2129 = vunpack.c.l.b16 %v1981
        %v2130 = vunpack.c.l.b16 %v1982
        %v2131 = vunpack.c.h.b16 %v1982
        %v2132 = vunpack.c.l.b16 %v1983
        %v2133 = vunpack.c.l.b16 %v1984
        %v2134 = vunpack.c.h.b16 %v1984
        %v2135 = vunpack.c.l.b16 %v1985
        %v2136 = vunpack.c.l.b16 %v1986
        %v2137 = vunpack.c.h.b16 %v1986
        %v2138 = vunpack.c.l.b16 %v1987
        %v2139 = vunpack.c.l.b16 %v1988
        %v2140 = vunpack.c.h.b16 %v1988
        %v2141 = vunpack.c.l.b16 %v1989
        %v2142 = vunpack.c.l.b16 %v1990
        %v2143 = vunpack.c.h.b16 %v1990
        %v2144 = vunpack.c.l.b16 %v1991
        %v2145 = vunpack.c.l.b16 %v1992
        %v2146 = vunpack.c.h.b16 %v1992
        %v2147 = vunpack.c.l.b16 %v1993
        %v2148 = vunpack.c.l.b16 %v1994
        %v2149 = vunpack.c.h.b16 %v1994
        %v2150 = vunpack.c.l.b16 %v1995
        %v2151 = vpack.c.b16 %v2082, %v2079
        %v2152 = vpack.c.b16 %v2083, %v2080
        %v2153 = vpack.c.b16 %v2084, %v2081
        %v2154 = vpack.c.b16 %v2088, %v2085
        %v2155 = vpack.c.b16 %v2089, %v2086
        %v2156 = vpack.c.b16 %v2090, %v2087
        %v2157 = vpack.c.b16 %v2094, %v2091
        %v2158 = vpack.c.b16 %v2095, %v2092
        %v2159 = vpack.c.b16 %v2096, %v2093
        %v2160 = vpack.c.b16 %v2100, %v2097
        %v2161 = vpack.c.b16 %v2101, %v2098
        %v2162 = vpack.c.b16 %v2102, %v2099
        %v2163 = vpack.c.b16 %v2106, %v2103
        %v2164 = vpack.c.b16 %v2107, %v2104
        %v2165 = vpack.c.b16 %v2108, %v2105
        %v2166 = vpack.c.b16 %v2112, %v2109
        %v2167 = vpack.c.b16 %v2113, %v2110
        %v2168 = vpack.c.b16 %v2114, %v2111
        %v2169 = vpack.c.b16 %v2118, %v2115
        %v2170 = vpack.c.b16 %v2119, %v2116
        %v2171 = vpack.c.b16 %v2120, %v2117
        %v2172 = vpack.c.b16 %v2124, %v2121
        %v2173 = vpack.c.b16 %v2125, %v2122
        %v2174 = vpack.c.b16 %v2126, %v2123
        %v2175 = vpack.c.b16 %v2130, %v2127
        %v2176 = vpack.c.b16 %v2131, %v2128
        %v2177 = vpack.c.b16 %v2132, %v2129
        %v2178 = vpack.c.b16 %v2136, %v2133
        %v2179 = vpack.c.b16 %v2137, %v2134
        %v2180 = vpack.c.b16 %v2138, %v2135
        %v2181 = vpack.c.b16 %v2142, %v2139
        %v2182 = vpack.c.b16 %v2143, %v2140
        %v2183 = vpack.c.b16 %v2144, %v2141
        %v2184 = vpack.c.b16 %v2148, %v2145
        %v2185 = vpack.c.b16 %v2149, %v2146
        %v2186 = vpack.c.b16 %v2150, %v2147
        %v2224 = vsel %vm908, %v2010, 0
        %v2227 = vsel %vm908, %v2018, 0
        %v2230 = vsel %vm908, %v2026, 0
        %v2233 = vsel %vm908, %v2025, 0
        %2235 = vmatpush.bf16.msra.mxu0 %v2172
        %2236 = vmatpush.bf16.msra.mxu0 %v2169
        %2237 = vmatpush.bf16.msra.mxu0 %v2166
        %2238 = vmatpush.bf16.msra.mxu0 %v2163
        %2239 = vmatpush.bf16.msra.mxu0 %v2160
        %2240 = vmatpush.bf16.msra.mxu0 %v2157
        %2241 = vmatpush.bf16.msra.mxu0 %v2154
        %2242 = vmatpush.bf16.msra.mxu0 %v2151
        %2243 = vmatmul.bf16.gmra.mxu0 %v2003
        %v2244 = vpop.f32.mrf.mxu0
        %v2245 = vadd.f32 0.0, %v2244
        %v2246 = vpop.f32.mrf.mxu0
        %v2247 = vadd.f32 0.0, %v2246
        %2248 = vmatmul.bf16.gmra.mxu0 %v2014
        %v2249 = vpop.f32.mrf.mxu0
        %v2250 = vadd.f32 0.0, %v2249
        %v2251 = vpop.f32.mrf.mxu0
        %v2252 = vadd.f32 0.0, %v2251
        %2253 = vmatmul.bf16.gmra.mxu0 %v2022
        %v2254 = vpop.f32.mrf.mxu0
        %v2255 = vadd.f32 0.0, %v2254
        %v2256 = vpop.f32.mrf.mxu0
        %v2257 = vadd.f32 0.0, %v2256
        %2258 = vmatmul.bf16.gmra.mxu0 %v2021
        %v2259 = vpop.f32.mrf.mxu0
        %v2260 = vadd.f32 0.0, %v2259
        %v2261 = vpop.f32.mrf.mxu0
        %v2262 = vadd.f32 0.0, %v2261
        %2263 = vdwg.mxu0
        %2264 = vmatpush.bf16.msra.mxu0 0
        %2265 = vmatpush.bf16.msra.mxu0 0
        %2266 = vmatpush.bf16.msra.mxu0 0
        %2267 = vmatpush.bf16.msra.mxu0 0
        %2268 = vmatpush.bf16.msra.mxu0 %v2184
        %2269 = vmatpush.bf16.msra.mxu0 %v2181
        %2270 = vmatpush.bf16.msra.mxu0 %v2178
        %2271 = vmatpush.bf16.msra.mxu0 %v2175
        %2272 = vmatmul.bf16.gmra.mxu0 %v2224
        %v2273 = vpop.f32.mrf.mxu0
        %v2274 = vadd.f32 %v2245, %v2273
        %v2275 = vpop.f32.mrf.mxu0
        %v2276 = vadd.f32 %v2247, %v2275
        %2277 = vmatmul.bf16.gmra.mxu0 %v2227
        %v2278 = vpop.f32.mrf.mxu0
        %v2279 = vadd.f32 %v2250, %v2278
        %v2280 = vpop.f32.mrf.mxu0
        %v2281 = vadd.f32 %v2252, %v2280
        %2282 = vmatmul.bf16.gmra.mxu0 %v2230
        %v2283 = vpop.f32.mrf.mxu0
        %v2284 = vadd.f32 %v2255, %v2283
        %v2285 = vpop.f32.mrf.mxu0
        %v2286 = vadd.f32 %v2257, %v2285
        %2287 = vmatmul.bf16.gmra.mxu0 %v2233
        %v2288 = vpop.f32.mrf.mxu0
        %v2289 = vadd.f32 %v2260, %v2288
        %v2290 = vpop.f32.mrf.mxu0
        %v2291 = vadd.f32 %v2262, %v2290
        %2292 = vdwg.mxu0
        %2293 = vmatpush.bf16.msra.mxu0 %v2173
        %2294 = vmatpush.bf16.msra.mxu0 %v2170
        %2295 = vmatpush.bf16.msra.mxu0 %v2167
        %2296 = vmatpush.bf16.msra.mxu0 %v2164
        %2297 = vmatpush.bf16.msra.mxu0 %v2161
        %2298 = vmatpush.bf16.msra.mxu0 %v2158
        %2299 = vmatpush.bf16.msra.mxu0 %v2155
        %2300 = vmatpush.bf16.msra.mxu0 %v2152
        %2301 = vmatmul.bf16.gmra.mxu0 %v2003
        %v2302 = vpop.f32.mrf.mxu0
        %v2303 = vadd.f32 0.0, %v2302
        %v2304 = vpop.f32.mrf.mxu0
        %v2305 = vadd.f32 0.0, %v2304
        %2306 = vmatmul.bf16.gmra.mxu0 %v2014
        %v2307 = vpop.f32.mrf.mxu0
        %v2308 = vadd.f32 0.0, %v2307
        %v2309 = vpop.f32.mrf.mxu0
        %v2310 = vadd.f32 0.0, %v2309
        %2311 = vmatmul.bf16.gmra.mxu0 %v2022
        %v2312 = vpop.f32.mrf.mxu0
        %v2313 = vadd.f32 0.0, %v2312
        %v2314 = vpop.f32.mrf.mxu0
        %v2315 = vadd.f32 0.0, %v2314
        %2316 = vmatmul.bf16.gmra.mxu0 %v2021
        %v2317 = vpop.f32.mrf.mxu0
        %v2318 = vadd.f32 0.0, %v2317
        %v2319 = vpop.f32.mrf.mxu0
        %v2320 = vadd.f32 0.0, %v2319
        %2321 = vdwg.mxu0
        %2322 = vmatpush.bf16.msra.mxu0 0
        %2323 = vmatpush.bf16.msra.mxu0 0
        %2324 = vmatpush.bf16.msra.mxu0 0
        %2325 = vmatpush.bf16.msra.mxu0 0
        %2326 = vmatpush.bf16.msra.mxu0 %v2185
        %2327 = vmatpush.bf16.msra.mxu0 %v2182
        %2328 = vmatpush.bf16.msra.mxu0 %v2179
        %2329 = vmatpush.bf16.msra.mxu0 %v2176
        %2330 = vmatmul.bf16.gmra.mxu0 %v2224
        %v2331 = vpop.f32.mrf.mxu0
        %v2332 = vadd.f32 %v2303, %v2331
        %v2333 = vpop.f32.mrf.mxu0
        %v2334 = vadd.f32 %v2305, %v2333
        %2335 = vmatmul.bf16.gmra.mxu0 %v2227
        %v2336 = vpop.f32.mrf.mxu0
        %v2337 = vadd.f32 %v2308, %v2336
        %v2338 = vpop.f32.mrf.mxu0
        %v2339 = vadd.f32 %v2310, %v2338
        %2340 = vmatmul.bf16.gmra.mxu0 %v2230
        %v2341 = vpop.f32.mrf.mxu0
        %v2342 = vadd.f32 %v2313, %v2341
        %v2343 = vpop.f32.mrf.mxu0
        %v2344 = vadd.f32 %v2315, %v2343
        %2345 = vmatmul.bf16.gmra.mxu0 %v2233
        %v2346 = vpop.f32.mrf.mxu0
        %v2347 = vadd.f32 %v2318, %v2346
        %v2348 = vpop.f32.mrf.mxu0
        %v2349 = vadd.f32 %v2320, %v2348
        %2350 = vdwg.mxu0
        %2351 = vmatpush.bf16.msra.mxu0 %v2174
        %2352 = vmatpush.bf16.msra.mxu0 %v2171
        %2353 = vmatpush.bf16.msra.mxu0 %v2168
        %2354 = vmatpush.bf16.msra.mxu0 %v2165
        %2355 = vmatpush.bf16.msra.mxu0 %v2162
        %2356 = vmatpush.bf16.msra.mxu0 %v2159
        %2357 = vmatpush.bf16.msra.mxu0 %v2156
        %2358 = vmatpush.bf16.msra.mxu0 %v2153
        %2359 = vmatmul.bf16.gmra.mxu0 %v2003
        %v2360 = vpop.f32.mrf.mxu0
        %v2361 = vadd.f32 0.0, %v2360
        %v2362 = vpop.f32.mrf.mxu0
        %v2363 = vadd.f32 0.0, %v2362
        %2364 = vmatmul.bf16.gmra.mxu0 %v2014
        %v2365 = vpop.f32.mrf.mxu0
        %v2366 = vadd.f32 0.0, %v2365
        %v2367 = vpop.f32.mrf.mxu0
        %v2368 = vadd.f32 0.0, %v2367
        %2369 = vmatmul.bf16.gmra.mxu0 %v2022
        %v2370 = vpop.f32.mrf.mxu0
        %v2371 = vadd.f32 0.0, %v2370
        %v2372 = vpop.f32.mrf.mxu0
        %v2373 = vadd.f32 0.0, %v2372
        %2374 = vmatmul.bf16.gmra.mxu0 %v2021
        %v2375 = vpop.f32.mrf.mxu0
        %v2376 = vadd.f32 0.0, %v2375
        %v2377 = vpop.f32.mrf.mxu0
        %v2378 = vadd.f32 0.0, %v2377
        %2379 = vdwg.mxu0
        %2380 = vmatpush.bf16.msra.mxu0 0
        %2381 = vmatpush.bf16.msra.mxu0 0
        %2382 = vmatpush.bf16.msra.mxu0 0
        %2383 = vmatpush.bf16.msra.mxu0 0
        %2384 = vmatpush.bf16.msra.mxu0 %v2186
        %2385 = vmatpush.bf16.msra.mxu0 %v2183
        %2386 = vmatpush.bf16.msra.mxu0 %v2180
        %2387 = vmatpush.bf16.msra.mxu0 %v2177
        %2388 = vmatmul.bf16.gmra.mxu0 %v2224
        %v2389 = vpop.f32.mrf.mxu0
        %v2390 = vadd.f32 %v2361, %v2389
        %v2391 = vpop.f32.mrf.mxu0
        %v2392 = vadd.f32 %v2363, %v2391
        %2393 = vmatmul.bf16.gmra.mxu0 %v2227
        %v2394 = vpop.f32.mrf.mxu0
        %v2395 = vadd.f32 %v2366, %v2394
        %v2396 = vpop.f32.mrf.mxu0
        %v2397 = vadd.f32 %v2368, %v2396
        %2398 = vmatmul.bf16.gmra.mxu0 %v2230
        %v2399 = vpop.f32.mrf.mxu0
        %v2400 = vadd.f32 %v2371, %v2399
        %v2401 = vpop.f32.mrf.mxu0
        %v2402 = vadd.f32 %v2373, %v2401
        %2403 = vmatmul.bf16.gmra.mxu0 %v2233
        %v2404 = vpop.f32.mrf.mxu0
        %v2405 = vadd.f32 %v2376, %v2404
        %v2406 = vpop.f32.mrf.mxu0
        %v2407 = vadd.f32 %v2378, %v2406
        %2408 = vdwg.mxu0
        %v2409 = vadd.f32 %v1923, %v2274
        %v2410 = vadd.f32 %v1924, %v2332
        %v2411 = vadd.f32 %v1925, %v2390
        %v2412 = vadd.f32 %v1926, %v2276
        %v2413 = vadd.f32 %v1927, %v2334
        %v2414 = vadd.f32 %v1928, %v2392
        %v2415 = vadd.f32 %v1929, %v2279
        %v2416 = vadd.f32 %v1930, %v2337
        %v2417 = vadd.f32 %v1931, %v2395
        %v2418 = vadd.f32 %v1932, %v2281
        %v2419 = vadd.f32 %v1933, %v2339
        %v2420 = vadd.f32 %v1934, %v2397
        %v2421 = vadd.f32 %v1935, %v2284
        %v2422 = vadd.f32 %v1936, %v2342
        %v2423 = vadd.f32 %v1937, %v2400
        %v2424 = vadd.f32 %v1938, %v2286
        %v2425 = vadd.f32 %v1939, %v2344
        %v2426 = vadd.f32 %v1940, %v2402
        %v2427 = vadd.f32 %v1941, %v2289
        %v2428 = vadd.f32 %v1942, %v2347
        %v2429 = vadd.f32 %v1943, %v2405
        %v2430 = vadd.f32 %v1944, %v2291
        %v2431 = vadd.f32 %v1945, %v2349
        %v2432 = vadd.f32 %v1946, %v2407
        %s2433 = scalar_lea.vmem %s1, 1152
        %v2434 = vld [vmem:[%s2433] sm:$0xff]
        %v2435 = vld [vmem:[%s2433 + $0x8] sm:$0xf]
        %v2436 = vld [vmem:[%s2433 + $0xc] sm:$0xff]
        %v2437 = vld [vmem:[%s2433 + $0x14] sm:$0xf]
        %v2438 = vld [vmem:[%s2433 + $0x18] sm:$0xff]
        %v2439 = vld [vmem:[%s2433 + $0x20] sm:$0xf]
        %v2440 = vld [vmem:[%s2433 + $0x24] sm:$0xff]
        %v2441 = vld [vmem:[%s2433 + $0x2c] sm:$0xf]
        %v2442 = vld [vmem:[%s2433 + $0x30] sm:$0xff]
        %v2443 = vld [vmem:[%s2433 + $0x38] sm:$0xf]
        %v2444 = vld [vmem:[%s2433 + $0x3c] sm:$0xff]
        %v2445 = vld [vmem:[%s2433 + $0x44] sm:$0xf]
        %v2446 = vld [vmem:[%s2433 + $0x48] sm:$0xff]
        %v2447 = vld [vmem:[%s2433 + $0x50] sm:$0xf]
        %v2448 = vld [vmem:[%s2433 + $0x54] sm:$0xff]
        %v2449 = vld [vmem:[%s2433 + $0x5c] sm:$0xf]
        %v2450 = vld [vmem:[%s2433 + $0x60] sm:$0xff]
        %v2451 = vld [vmem:[%s2433 + $0x68] sm:$0xf]
        %v2452 = vld [vmem:[%s2433 + $0x6c] sm:$0xff]
        %v2453 = vld [vmem:[%s2433 + $0x74] sm:$0xf]
        %v2454 = vld [vmem:[%s2433 + $0x78] sm:$0xff]
        %v2455 = vld [vmem:[%s2433 + $0x80] sm:$0xf]
        %v2456 = vld [vmem:[%s2433 + $0x84] sm:$0xff]
        %v2457 = vld [vmem:[%s2433 + $0x8c] sm:$0xf]
        %v2458 = vld [vmem:[%s2433 + $0x90] sm:$0xff]
        %v2459 = vld [vmem:[%s2433 + $0x98] sm:$0xf]
        %v2460 = vld [vmem:[%s2433 + $0x9c] sm:$0xff]
        %v2461 = vld [vmem:[%s2433 + $0xa4] sm:$0xf]
        %v2462 = vld [vmem:[%s2433 + $0xa8] sm:$0xff]
        %v2463 = vld [vmem:[%s2433 + $0xb0] sm:$0xf]
        %v2464 = vld [vmem:[%s2433 + $0xb4] sm:$0xff]
        %v2465 = vld [vmem:[%s2433 + $0xbc] sm:$0xf]
        %v2466 = vld [vmem:[%s2433 + $0xc0] sm:$0xff]
        %v2467 = vld [vmem:[%s2433 + $0xc8] sm:$0xf]
        %v2468 = vld [vmem:[%s2433 + $0xcc] sm:$0xff]
        %v2469 = vld [vmem:[%s2433 + $0xd4] sm:$0xf]
        %v2470 = vld [vmem:[%s2433 + $0xd8] sm:$0xff]
        %v2471 = vld [vmem:[%s2433 + $0xe0] sm:$0xf]
        %v2472 = vld [vmem:[%s2433 + $0xe4] sm:$0xff]
        %v2473 = vld [vmem:[%s2433 + $0xec] sm:$0xf]
        %v2474 = vld [vmem:[%s2433 + $0xf0] sm:$0xff]
        %v2475 = vld [vmem:[%s2433 + $0xf8] sm:$0xf]
        %v2476 = vld [vmem:[%s2433 + $0xfc] sm:$0xff]
        %v2477 = vld [vmem:[%s2433 + $0x104] sm:$0xf]
        %v2478 = vld [vmem:[%s2433 + $0x108] sm:$0xff]
        %v2479 = vld [vmem:[%s2433 + $0x110] sm:$0xf]
        %v2480 = vld [vmem:[%s2433 + $0x114] sm:$0xff]
        %v2481 = vld [vmem:[%s2433 + $0x11c] sm:$0xf]
        %vm2482 = vcmask 1045504
        %v2483 = vrot.slane %v544, 2
        %v2484 = vrot.slane %v546, 2
        %v2485 = vsel %vm2482, %v2483, %v2484
        %v2486 = vrot.slane %v545, 2
        %v2487 = vrot.slane %v547, 2
        %v2488 = vsel %vm2482, %v2486, %v2487
        %v2489 = vrot.slane %v548, 2
        %v2490 = vsel %vm2482, %v2484, %v2489
        %v2491 = vrot.slane %v549, 2
        %v2492 = vsel %vm2482, %v2487, %v2491
        %v2493 = vrot.slane %v550, 2
        %v2494 = vsel %vm2482, %v2489, %v2493
        %v2495 = vrot.slane %v551, 2
        %v2496 = vsel %vm2482, %v2491, %v2495
        %v2549 = vunpack.c.l.b16 %v2434
        %v2550 = vunpack.c.h.b16 %v2434
        %v2551 = vunpack.c.l.b16 %v2435
        %v2552 = vunpack.c.l.b16 %v2436
        %v2553 = vunpack.c.h.b16 %v2436
        %v2554 = vunpack.c.l.b16 %v2437
        %v2555 = vunpack.c.l.b16 %v2438
        %v2556 = vunpack.c.h.b16 %v2438
        %v2557 = vunpack.c.l.b16 %v2439
        %v2558 = vunpack.c.l.b16 %v2440
        %v2559 = vunpack.c.h.b16 %v2440
        %v2560 = vunpack.c.l.b16 %v2441
        %v2561 = vunpack.c.l.b16 %v2442
        %v2562 = vunpack.c.h.b16 %v2442
        %v2563 = vunpack.c.l.b16 %v2443
        %v2564 = vunpack.c.l.b16 %v2444
        %v2565 = vunpack.c.h.b16 %v2444
        %v2566 = vunpack.c.l.b16 %v2445
        %v2567 = vunpack.c.l.b16 %v2446
        %v2568 = vunpack.c.h.b16 %v2446
        %v2569 = vunpack.c.l.b16 %v2447
        %v2570 = vunpack.c.l.b16 %v2448
        %v2571 = vunpack.c.h.b16 %v2448
        %v2572 = vunpack.c.l.b16 %v2449
        %v2573 = vunpack.c.l.b16 %v2450
        %v2574 = vunpack.c.h.b16 %v2450
        %v2575 = vunpack.c.l.b16 %v2451
        %v2576 = vunpack.c.l.b16 %v2452
        %v2577 = vunpack.c.h.b16 %v2452
        %v2578 = vunpack.c.l.b16 %v2453
        %v2579 = vunpack.c.l.b16 %v2454
        %v2580 = vunpack.c.h.b16 %v2454
        %v2581 = vunpack.c.l.b16 %v2455
        %v2582 = vunpack.c.l.b16 %v2456
        %v2583 = vunpack.c.h.b16 %v2456
        %v2584 = vunpack.c.l.b16 %v2457
        %v2585 = vunpack.c.l.b16 %v2458
        %v2586 = vunpack.c.h.b16 %v2458
        %v2587 = vunpack.c.l.b16 %v2459
        %v2588 = vunpack.c.l.b16 %v2460
        %v2589 = vunpack.c.h.b16 %v2460
        %v2590 = vunpack.c.l.b16 %v2461
        %v2591 = vunpack.c.l.b16 %v2462
        %v2592 = vunpack.c.h.b16 %v2462
        %v2593 = vunpack.c.l.b16 %v2463
        %v2594 = vunpack.c.l.b16 %v2464
        %v2595 = vunpack.c.h.b16 %v2464
        %v2596 = vunpack.c.l.b16 %v2465
        %v2597 = vunpack.c.l.b16 %v2466
        %v2598 = vunpack.c.h.b16 %v2466
        %v2599 = vunpack.c.l.b16 %v2467
        %v2600 = vunpack.c.l.b16 %v2468
        %v2601 = vunpack.c.h.b16 %v2468
        %v2602 = vunpack.c.l.b16 %v2469
        %v2603 = vunpack.c.l.b16 %v2470
        %v2604 = vunpack.c.h.b16 %v2470
        %v2605 = vunpack.c.l.b16 %v2471
        %v2606 = vunpack.c.l.b16 %v2472
        %v2607 = vunpack.c.h.b16 %v2472
        %v2608 = vunpack.c.l.b16 %v2473
        %v2609 = vunpack.c.l.b16 %v2474
        %v2610 = vunpack.c.h.b16 %v2474
        %v2611 = vunpack.c.l.b16 %v2475
        %v2612 = vunpack.c.l.b16 %v2476
        %v2613 = vunpack.c.h.b16 %v2476
        %v2614 = vunpack.c.l.b16 %v2477
        %v2615 = vunpack.c.l.b16 %v2478
        %v2616 = vunpack.c.h.b16 %v2478
        %v2617 = vunpack.c.l.b16 %v2479
        %v2618 = vunpack.c.l.b16 %v2480
        %v2619 = vunpack.c.h.b16 %v2480
        %v2620 = vunpack.c.l.b16 %v2481
        %v2621 = vpack.c.b16 %v2552, %v2549
        %v2622 = vpack.c.b16 %v2553, %v2550
        %v2623 = vpack.c.b16 %v2554, %v2551
        %v2624 = vpack.c.b16 %v2558, %v2555
        %v2625 = vpack.c.b16 %v2559, %v2556
        %v2626 = vpack.c.b16 %v2560, %v2557
        %v2627 = vpack.c.b16 %v2564, %v2561
        %v2628 = vpack.c.b16 %v2565, %v2562
        %v2629 = vpack.c.b16 %v2566, %v2563
        %v2630 = vpack.c.b16 %v2570, %v2567
        %v2631 = vpack.c.b16 %v2571, %v2568
        %v2632 = vpack.c.b16 %v2572, %v2569
        %v2633 = vpack.c.b16 %v2576, %v2573
        %v2634 = vpack.c.b16 %v2577, %v2574
        %v2635 = vpack.c.b16 %v2578, %v2575
        %v2636 = vpack.c.b16 %v2582, %v2579
        %v2637 = vpack.c.b16 %v2583, %v2580
        %v2638 = vpack.c.b16 %v2584, %v2581
        %v2639 = vpack.c.b16 %v2588, %v2585
        %v2640 = vpack.c.b16 %v2589, %v2586
        %v2641 = vpack.c.b16 %v2590, %v2587
        %v2642 = vpack.c.b16 %v2594, %v2591
        %v2643 = vpack.c.b16 %v2595, %v2592
        %v2644 = vpack.c.b16 %v2596, %v2593
        %v2645 = vpack.c.b16 %v2600, %v2597
        %v2646 = vpack.c.b16 %v2601, %v2598
        %v2647 = vpack.c.b16 %v2602, %v2599
        %v2648 = vpack.c.b16 %v2606, %v2603
        %v2649 = vpack.c.b16 %v2607, %v2604
        %v2650 = vpack.c.b16 %v2608, %v2605
        %v2651 = vpack.c.b16 %v2612, %v2609
        %v2652 = vpack.c.b16 %v2613, %v2610
        %v2653 = vpack.c.b16 %v2614, %v2611
        %v2654 = vpack.c.b16 %v2618, %v2615
        %v2655 = vpack.c.b16 %v2619, %v2616
        %v2656 = vpack.c.b16 %v2620, %v2617
        %v2694 = vsel %vm908, %v2488, 0
        %v2697 = vsel %vm908, %v2492, 0
        %v2700 = vsel %vm908, %v2496, 0
        %v2703 = vsel %vm908, %v2495, 0
        %2705 = vmatpush.bf16.msra.mxu0 %v2642
        %2706 = vmatpush.bf16.msra.mxu0 %v2639
        %2707 = vmatpush.bf16.msra.mxu0 %v2636
        %2708 = vmatpush.bf16.msra.mxu0 %v2633
        %2709 = vmatpush.bf16.msra.mxu0 %v2630
        %2710 = vmatpush.bf16.msra.mxu0 %v2627
        %2711 = vmatpush.bf16.msra.mxu0 %v2624
        %2712 = vmatpush.bf16.msra.mxu0 %v2621
        %2713 = vmatmul.bf16.gmra.mxu0 %v2485
        %v2714 = vpop.f32.mrf.mxu0
        %v2715 = vadd.f32 0.0, %v2714
        %v2716 = vpop.f32.mrf.mxu0
        %v2717 = vadd.f32 0.0, %v2716
        %2718 = vmatmul.bf16.gmra.mxu0 %v2490
        %v2719 = vpop.f32.mrf.mxu0
        %v2720 = vadd.f32 0.0, %v2719
        %v2721 = vpop.f32.mrf.mxu0
        %v2722 = vadd.f32 0.0, %v2721
        %2723 = vmatmul.bf16.gmra.mxu0 %v2494
        %v2724 = vpop.f32.mrf.mxu0
        %v2725 = vadd.f32 0.0, %v2724
        %v2726 = vpop.f32.mrf.mxu0
        %v2727 = vadd.f32 0.0, %v2726
        %2728 = vmatmul.bf16.gmra.mxu0 %v2493
        %v2729 = vpop.f32.mrf.mxu0
        %v2730 = vadd.f32 0.0, %v2729
        %v2731 = vpop.f32.mrf.mxu0
        %v2732 = vadd.f32 0.0, %v2731
        %2733 = vdwg.mxu0
        %2734 = vmatpush.bf16.msra.mxu0 0
        %2735 = vmatpush.bf16.msra.mxu0 0
        %2736 = vmatpush.bf16.msra.mxu0 0
        %2737 = vmatpush.bf16.msra.mxu0 0
        %2738 = vmatpush.bf16.msra.mxu0 %v2654
        %2739 = vmatpush.bf16.msra.mxu0 %v2651
        %2740 = vmatpush.bf16.msra.mxu0 %v2648
        %2741 = vmatpush.bf16.msra.mxu0 %v2645
        %2742 = vmatmul.bf16.gmra.mxu0 %v2694
        %v2743 = vpop.f32.mrf.mxu0
        %v2744 = vadd.f32 %v2715, %v2743
        %v2745 = vpop.f32.mrf.mxu0
        %v2746 = vadd.f32 %v2717, %v2745
        %2747 = vmatmul.bf16.gmra.mxu0 %v2697
        %v2748 = vpop.f32.mrf.mxu0
        %v2749 = vadd.f32 %v2720, %v2748
        %v2750 = vpop.f32.mrf.mxu0
        %v2751 = vadd.f32 %v2722, %v2750
        %2752 = vmatmul.bf16.gmra.mxu0 %v2700
        %v2753 = vpop.f32.mrf.mxu0
        %v2754 = vadd.f32 %v2725, %v2753
        %v2755 = vpop.f32.mrf.mxu0
        %v2756 = vadd.f32 %v2727, %v2755
        %2757 = vmatmul.bf16.gmra.mxu0 %v2703
        %v2758 = vpop.f32.mrf.mxu0
        %v2759 = vadd.f32 %v2730, %v2758
        %v2760 = vpop.f32.mrf.mxu0
        %v2761 = vadd.f32 %v2732, %v2760
        %2762 = vdwg.mxu0
        %2763 = vmatpush.bf16.msra.mxu0 %v2643
        %2764 = vmatpush.bf16.msra.mxu0 %v2640
        %2765 = vmatpush.bf16.msra.mxu0 %v2637
        %2766 = vmatpush.bf16.msra.mxu0 %v2634
        %2767 = vmatpush.bf16.msra.mxu0 %v2631
        %2768 = vmatpush.bf16.msra.mxu0 %v2628
        %2769 = vmatpush.bf16.msra.mxu0 %v2625
        %2770 = vmatpush.bf16.msra.mxu0 %v2622
        %2771 = vmatmul.bf16.gmra.mxu0 %v2485
        %v2772 = vpop.f32.mrf.mxu0
        %v2773 = vadd.f32 0.0, %v2772
        %v2774 = vpop.f32.mrf.mxu0
        %v2775 = vadd.f32 0.0, %v2774
        %2776 = vmatmul.bf16.gmra.mxu0 %v2490
        %v2777 = vpop.f32.mrf.mxu0
        %v2778 = vadd.f32 0.0, %v2777
        %v2779 = vpop.f32.mrf.mxu0
        %v2780 = vadd.f32 0.0, %v2779
        %2781 = vmatmul.bf16.gmra.mxu0 %v2494
        %v2782 = vpop.f32.mrf.mxu0
        %v2783 = vadd.f32 0.0, %v2782
        %v2784 = vpop.f32.mrf.mxu0
        %v2785 = vadd.f32 0.0, %v2784
        %2786 = vmatmul.bf16.gmra.mxu0 %v2493
        %v2787 = vpop.f32.mrf.mxu0
        %v2788 = vadd.f32 0.0, %v2787
        %v2789 = vpop.f32.mrf.mxu0
        %v2790 = vadd.f32 0.0, %v2789
        %2791 = vdwg.mxu0
        %2792 = vmatpush.bf16.msra.mxu0 0
        %2793 = vmatpush.bf16.msra.mxu0 0
        %2794 = vmatpush.bf16.msra.mxu0 0
        %2795 = vmatpush.bf16.msra.mxu0 0
        %2796 = vmatpush.bf16.msra.mxu0 %v2655
        %2797 = vmatpush.bf16.msra.mxu0 %v2652
        %2798 = vmatpush.bf16.msra.mxu0 %v2649
        %2799 = vmatpush.bf16.msra.mxu0 %v2646
        %2800 = vmatmul.bf16.gmra.mxu0 %v2694
        %v2801 = vpop.f32.mrf.mxu0
        %v2802 = vadd.f32 %v2773, %v2801
        %v2803 = vpop.f32.mrf.mxu0
        %v2804 = vadd.f32 %v2775, %v2803
        %2805 = vmatmul.bf16.gmra.mxu0 %v2697
        %v2806 = vpop.f32.mrf.mxu0
        %v2807 = vadd.f32 %v2778, %v2806
        %v2808 = vpop.f32.mrf.mxu0
        %v2809 = vadd.f32 %v2780, %v2808
        %2810 = vmatmul.bf16.gmra.mxu0 %v2700
        %v2811 = vpop.f32.mrf.mxu0
        %v2812 = vadd.f32 %v2783, %v2811
        %v2813 = vpop.f32.mrf.mxu0
        %v2814 = vadd.f32 %v2785, %v2813
        %2815 = vmatmul.bf16.gmra.mxu0 %v2703
        %v2816 = vpop.f32.mrf.mxu0
        %v2817 = vadd.f32 %v2788, %v2816
        %v2818 = vpop.f32.mrf.mxu0
        %v2819 = vadd.f32 %v2790, %v2818
        %2820 = vdwg.mxu0
        %2821 = vmatpush.bf16.msra.mxu0 %v2644
        %2822 = vmatpush.bf16.msra.mxu0 %v2641
        %2823 = vmatpush.bf16.msra.mxu0 %v2638
        %2824 = vmatpush.bf16.msra.mxu0 %v2635
        %2825 = vmatpush.bf16.msra.mxu0 %v2632
        %2826 = vmatpush.bf16.msra.mxu0 %v2629
        %2827 = vmatpush.bf16.msra.mxu0 %v2626
        %2828 = vmatpush.bf16.msra.mxu0 %v2623
        %2829 = vmatmul.bf16.gmra.mxu0 %v2485
        %v2830 = vpop.f32.mrf.mxu0
        %v2831 = vadd.f32 0.0, %v2830
        %v2832 = vpop.f32.mrf.mxu0
        %v2833 = vadd.f32 0.0, %v2832
        %2834 = vmatmul.bf16.gmra.mxu0 %v2490
        %v2835 = vpop.f32.mrf.mxu0
        %v2836 = vadd.f32 0.0, %v2835
        %v2837 = vpop.f32.mrf.mxu0
        %v2838 = vadd.f32 0.0, %v2837
        %2839 = vmatmul.bf16.gmra.mxu0 %v2494
        %v2840 = vpop.f32.mrf.mxu0
        %v2841 = vadd.f32 0.0, %v2840
        %v2842 = vpop.f32.mrf.mxu0
        %v2843 = vadd.f32 0.0, %v2842
        %2844 = vmatmul.bf16.gmra.mxu0 %v2493
        %v2845 = vpop.f32.mrf.mxu0
        %v2846 = vadd.f32 0.0, %v2845
        %v2847 = vpop.f32.mrf.mxu0
        %v2848 = vadd.f32 0.0, %v2847
        %2849 = vdwg.mxu0
        %2850 = vmatpush.bf16.msra.mxu0 0
        %2851 = vmatpush.bf16.msra.mxu0 0
        %2852 = vmatpush.bf16.msra.mxu0 0
        %2853 = vmatpush.bf16.msra.mxu0 0
        %2854 = vmatpush.bf16.msra.mxu0 %v2656
        %2855 = vmatpush.bf16.msra.mxu0 %v2653
        %2856 = vmatpush.bf16.msra.mxu0 %v2650
        %2857 = vmatpush.bf16.msra.mxu0 %v2647
        %2858 = vmatmul.bf16.gmra.mxu0 %v2694
        %v2859 = vpop.f32.mrf.mxu0
        %v2860 = vadd.f32 %v2831, %v2859
        %v2861 = vpop.f32.mrf.mxu0
        %v2862 = vadd.f32 %v2833, %v2861
        %2863 = vmatmul.bf16.gmra.mxu0 %v2697
        %v2864 = vpop.f32.mrf.mxu0
        %v2865 = vadd.f32 %v2836, %v2864
        %v2866 = vpop.f32.mrf.mxu0
        %v2867 = vadd.f32 %v2838, %v2866
        %2868 = vmatmul.bf16.gmra.mxu0 %v2700
        %v2869 = vpop.f32.mrf.mxu0
        %v2870 = vadd.f32 %v2841, %v2869
        %v2871 = vpop.f32.mrf.mxu0
        %v2872 = vadd.f32 %v2843, %v2871
        %2873 = vmatmul.bf16.gmra.mxu0 %v2703
        %v2874 = vpop.f32.mrf.mxu0
        %v2875 = vadd.f32 %v2846, %v2874
        %v2876 = vpop.f32.mrf.mxu0
        %v2877 = vadd.f32 %v2848, %v2876
        %2878 = vdwg.mxu0
        %v2879 = vadd.f32 %v2409, %v2744
        %v2880 = vadd.f32 %v2410, %v2802
        %v2881 = vadd.f32 %v2411, %v2860
        %v2882 = vadd.f32 %v2412, %v2746
        %v2883 = vadd.f32 %v2413, %v2804
        %v2884 = vadd.f32 %v2414, %v2862
        %v2885 = vadd.f32 %v2415, %v2749
        %v2886 = vadd.f32 %v2416, %v2807
        %v2887 = vadd.f32 %v2417, %v2865
        %v2888 = vadd.f32 %v2418, %v2751
        %v2889 = vadd.f32 %v2419, %v2809
        %v2890 = vadd.f32 %v2420, %v2867
        %v2891 = vadd.f32 %v2421, %v2754
        %v2892 = vadd.f32 %v2422, %v2812
        %v2893 = vadd.f32 %v2423, %v2870
        %v2894 = vadd.f32 %v2424, %v2756
        %v2895 = vadd.f32 %v2425, %v2814
        %v2896 = vadd.f32 %v2426, %v2872
        %v2897 = vadd.f32 %v2427, %v2759
        %v2898 = vadd.f32 %v2428, %v2817
        %v2899 = vadd.f32 %v2429, %v2875
        %v2900 = vadd.f32 %v2430, %v2761
        %v2901 = vadd.f32 %v2431, %v2819
        %v2902 = vadd.f32 %v2432, %v2877
        %v2904 = vperm.slane %v543, 0
        %v2905 = vperm.slane %v543, 1
        %v2906 = vperm.slane %v543, 2
        %v2910 = vadd.f32 %v2879, %v2904
        %v2911 = vadd.f32 %v2880, %v2905
        %v2912 = vadd.f32 %v2881, %v2906
        %v2913 = vadd.f32 %v2882, %v2904
        %v2914 = vadd.f32 %v2883, %v2905
        %v2915 = vadd.f32 %v2884, %v2906
        %v2916 = vadd.f32 %v2885, %v2904
        %v2917 = vadd.f32 %v2886, %v2905
        %v2918 = vadd.f32 %v2887, %v2906
        %v2919 = vadd.f32 %v2888, %v2904
        %v2920 = vadd.f32 %v2889, %v2905
        %v2921 = vadd.f32 %v2890, %v2906
        %v2922 = vadd.f32 %v2891, %v2904
        %v2923 = vadd.f32 %v2892, %v2905
        %v2924 = vadd.f32 %v2893, %v2906
        %v2925 = vadd.f32 %v2894, %v2904
        %v2926 = vadd.f32 %v2895, %v2905
        %v2927 = vadd.f32 %v2896, %v2906
        %v2928 = vadd.f32 %v2897, %v2904
        %v2929 = vadd.f32 %v2898, %v2905
        %v2930 = vadd.f32 %v2899, %v2906
        %v2931 = vadd.f32 %v2900, %v2904
        %v2932 = vadd.f32 %v2901, %v2905
        %v2933 = vadd.f32 %v2902, %v2906
        %v2934 = vmax.f32 %v2910, 0.0
        %v2935 = vmax.f32 %v2911, 0.0
        %v2936 = vmax.f32 %v2912, 0.0
        %v2937 = vmax.f32 %v2913, 0.0
        %v2938 = vmax.f32 %v2914, 0.0
        %v2939 = vmax.f32 %v2915, 0.0
        %v2940 = vmax.f32 %v2916, 0.0
        %v2941 = vmax.f32 %v2917, 0.0
        %v2942 = vmax.f32 %v2918, 0.0
        %v2943 = vmax.f32 %v2919, 0.0
        %v2944 = vmax.f32 %v2920, 0.0
        %v2945 = vmax.f32 %v2921, 0.0
        %v2946 = vmax.f32 %v2922, 0.0
        %v2947 = vmax.f32 %v2923, 0.0
        %v2948 = vmax.f32 %v2924, 0.0
        %v2949 = vmax.f32 %v2925, 0.0
        %v2950 = vmax.f32 %v2926, 0.0
        %v2951 = vmax.f32 %v2927, 0.0
        %v2952 = vmax.f32 %v2928, 0.0
        %v2953 = vmax.f32 %v2929, 0.0
        %v2954 = vmax.f32 %v2930, 0.0
        %v2955 = vmax.f32 %v2931, 0.0
        %v2956 = vmax.f32 %v2932, 0.0
        %v2957 = vmax.f32 %v2933, 0.0
        %v2958 = vpack.c.bf16 %v2937, %v2934
        %v2959 = vpack.c.bf16 %v2938, %v2935
        %v2960 = vpack.c.bf16 %v2939, %v2936
        %v2961 = vpack.c.bf16 %v2943, %v2940
        %v2962 = vpack.c.bf16 %v2944, %v2941
        %v2963 = vpack.c.bf16 %v2945, %v2942
        %v2964 = vpack.c.bf16 %v2949, %v2946
        %v2965 = vpack.c.bf16 %v2950, %v2947
        %v2966 = vpack.c.bf16 %v2951, %v2948
        %v2967 = vpack.c.bf16 %v2955, %v2952
        %v2968 = vpack.c.bf16 %v2956, %v2953
        %v2969 = vpack.c.bf16 %v2957, %v2954
        %v2970 = vld [vmem:[%s3] sm:$0xf]
        %v2971 = vld [vmem:[%s3 + $0x4] sm:$0xf]
        %v2972 = vld [vmem:[%s3 + $0x8] sm:$0xf]
        %v2973 = vld [vmem:[%s3 + $0xc] sm:$0x7]
        %v2978 = vunpack.c.l.b16 %v2970
        %v2979 = vunpack.c.l.b16 %v2971
        %v2980 = vunpack.c.l.b16 %v2972
        %v2981 = vunpack.c.l.b16 %v2973
        %v2982 = vpack.c.b16 %v2979, %v2978
        %v2983 = vpack.c.b16 %v2981, %v2980
        %vm2984 = vcmask 490496
        %v2986 = vsel %vm2984, %v2982, 0
        %v2989 = vsel %vm2984, %v2983, 0
        %vm2991 = vcmask 1045504
        %v2993 = vsel %vm2991, %v2967, 0
        %v2996 = vsel %vm2991, %v2968, 0
        %v2999 = vsel %vm2991, %v2969, 0
        %3001 = vmatpush.bf16.msra.mxu0 0
        %3002 = vmatpush.bf16.msra.mxu0 0
        %3003 = vmatpush.bf16.msra.mxu0 0
        %3004 = vmatpush.bf16.msra.mxu0 0
        %3005 = vmatpush.bf16.msra.mxu0 %v2993
        %3006 = vmatpush.bf16.msra.mxu0 %v2964
        %3007 = vmatpush.bf16.msra.mxu0 %v2961
        %3008 = vmatpush.bf16.msra.mxu0 %v2958
        %3009 = vmatmul.bf16.gmra.mxu0 %v2986
        %v3010 = vpop.f32.mrf.mxu0
        %v3011 = vadd.f32 0.0, %v3010
        %v3012 = vpop.f32.mrf.mxu0
        %v3013 = vadd.f32 0.0, %v3012
        %3014 = vmatmul.bf16.gmra.mxu0 %v2989
        %v3015 = vpop.f32.mrf.mxu0
        %v3016 = vadd.f32 0.0, %v3015
        %v3017 = vpop.f32.mrf.mxu0
        %v3018 = vadd.f32 0.0, %v3017
        %3019 = vdwg.mxu0
        %3020 = vmatpush.bf16.msra.mxu0 0
        %3021 = vmatpush.bf16.msra.mxu0 0
        %3022 = vmatpush.bf16.msra.mxu0 0
        %3023 = vmatpush.bf16.msra.mxu0 0
        %3024 = vmatpush.bf16.msra.mxu0 %v2996
        %3025 = vmatpush.bf16.msra.mxu0 %v2965
        %3026 = vmatpush.bf16.msra.mxu0 %v2962
        %3027 = vmatpush.bf16.msra.mxu0 %v2959
        %3028 = vmatmul.bf16.gmra.mxu0 %v2986
        %v3029 = vpop.f32.mrf.mxu0
        %v3030 = vadd.f32 0.0, %v3029
        %v3031 = vpop.f32.mrf.mxu0
        %v3032 = vadd.f32 0.0, %v3031
        %3033 = vmatmul.bf16.gmra.mxu0 %v2989
        %v3034 = vpop.f32.mrf.mxu0
        %v3035 = vadd.f32 0.0, %v3034
        %v3036 = vpop.f32.mrf.mxu0
        %v3037 = vadd.f32 0.0, %v3036
        %3038 = vdwg.mxu0
        %3039 = vmatpush.bf16.msra.mxu0 0
        %3040 = vmatpush.bf16.msra.mxu0 0
        %3041 = vmatpush.bf16.msra.mxu0 0
        %3042 = vmatpush.bf16.msra.mxu0 0
        %3043 = vmatpush.bf16.msra.mxu0 %v2999
        %3044 = vmatpush.bf16.msra.mxu0 %v2966
        %3045 = vmatpush.bf16.msra.mxu0 %v2963
        %3046 = vmatpush.bf16.msra.mxu0 %v2960
        %3047 = vmatmul.bf16.gmra.mxu0 %v2986
        %v3048 = vpop.f32.mrf.mxu0
        %v3049 = vadd.f32 0.0, %v3048
        %v3050 = vpop.f32.mrf.mxu0
        %v3051 = vadd.f32 0.0, %v3050
        %3052 = vmatmul.bf16.gmra.mxu0 %v2989
        %v3053 = vpop.f32.mrf.mxu0
        %v3054 = vadd.f32 0.0, %v3053
        %v3055 = vpop.f32.mrf.mxu0
        %v3056 = vadd.f32 0.0, %v3055
        %3057 = vdwg.mxu0
        %s3058 = scalar_lea.vmem %s3, 16
        %v3059 = vld [vmem:[%s3058] sm:$0xf]
        %v3060 = vld [vmem:[%s3058 + $0x4] sm:$0xf]
        %v3061 = vld [vmem:[%s3058 + $0x8] sm:$0xf]
        %v3062 = vld [vmem:[%s3058 + $0xc] sm:$0x7]
        %v3067 = vunpack.c.l.b16 %v3059
        %v3068 = vunpack.c.l.b16 %v3060
        %v3069 = vunpack.c.l.b16 %v3061
        %v3070 = vunpack.c.l.b16 %v3062
        %v3071 = vpack.c.b16 %v3068, %v3067
        %v3072 = vpack.c.b16 %v3070, %v3069
        %v3074 = vsel %vm2984, %v3071, 0
        %v3077 = vsel %vm2984, %v3072, 0
        %3079 = vmatpush.bf16.msra.mxu0 0
        %3080 = vmatpush.bf16.msra.mxu0 0
        %3081 = vmatpush.bf16.msra.mxu0 0
        %3082 = vmatpush.bf16.msra.mxu0 0
        %3083 = vmatpush.bf16.msra.mxu0 %v2993
        %3084 = vmatpush.bf16.msra.mxu0 %v2964
        %3085 = vmatpush.bf16.msra.mxu0 %v2961
        %3086 = vmatpush.bf16.msra.mxu0 %v2958
        %3087 = vmatmul.bf16.gmra.mxu0 %v3074
        %v3088 = vpop.f32.mrf.mxu0
        %v3089 = vadd.f32 0.0, %v3088
        %v3090 = vpop.f32.mrf.mxu0
        %v3091 = vadd.f32 0.0, %v3090
        %3092 = vmatmul.bf16.gmra.mxu0 %v3077
        %v3093 = vpop.f32.mrf.mxu0
        %v3094 = vadd.f32 0.0, %v3093
        %v3095 = vpop.f32.mrf.mxu0
        %v3096 = vadd.f32 0.0, %v3095
        %3097 = vdwg.mxu0
        %3098 = vmatpush.bf16.msra.mxu0 0
        %3099 = vmatpush.bf16.msra.mxu0 0
        %3100 = vmatpush.bf16.msra.mxu0 0
        %3101 = vmatpush.bf16.msra.mxu0 0
        %3102 = vmatpush.bf16.msra.mxu0 %v2996
        %3103 = vmatpush.bf16.msra.mxu0 %v2965
        %3104 = vmatpush.bf16.msra.mxu0 %v2962
        %3105 = vmatpush.bf16.msra.mxu0 %v2959
        %3106 = vmatmul.bf16.gmra.mxu0 %v3074
        %v3107 = vpop.f32.mrf.mxu0
        %v3108 = vadd.f32 0.0, %v3107
        %v3109 = vpop.f32.mrf.mxu0
        %v3110 = vadd.f32 0.0, %v3109
        %3111 = vmatmul.bf16.gmra.mxu0 %v3077
        %v3112 = vpop.f32.mrf.mxu0
        %v3113 = vadd.f32 0.0, %v3112
        %v3114 = vpop.f32.mrf.mxu0
        %v3115 = vadd.f32 0.0, %v3114
        %3116 = vdwg.mxu0
        %3117 = vmatpush.bf16.msra.mxu0 0
        %3118 = vmatpush.bf16.msra.mxu0 0
        %3119 = vmatpush.bf16.msra.mxu0 0
        %3120 = vmatpush.bf16.msra.mxu0 0
        %3121 = vmatpush.bf16.msra.mxu0 %v2999
        %3122 = vmatpush.bf16.msra.mxu0 %v2966
        %3123 = vmatpush.bf16.msra.mxu0 %v2963
        %3124 = vmatpush.bf16.msra.mxu0 %v2960
        %3125 = vmatmul.bf16.gmra.mxu0 %v3074
        %v3126 = vpop.f32.mrf.mxu0
        %v3127 = vadd.f32 0.0, %v3126
        %v3128 = vpop.f32.mrf.mxu0
        %v3129 = vadd.f32 0.0, %v3128
        %3130 = vmatmul.bf16.gmra.mxu0 %v3077
        %v3131 = vpop.f32.mrf.mxu0
        %v3132 = vadd.f32 0.0, %v3131
        %v3133 = vpop.f32.mrf.mxu0
        %v3134 = vadd.f32 0.0, %v3133
        %3135 = vdwg.mxu0
        %v3136 = vmax.f32 %v3011, %v3089
        %v3137 = vmax.f32 %v3030, %v3108
        %v3138 = vmax.f32 %v3049, %v3127
        %v3139 = vmax.f32 %v3013, %v3091
        %v3140 = vmax.f32 %v3032, %v3110
        %v3141 = vmax.f32 %v3051, %v3129
        %v3142 = vmax.f32 %v3016, %v3094
        %v3143 = vmax.f32 %v3035, %v3113
        %v3144 = vmax.f32 %v3054, %v3132
        %v3145 = vmax.f32 %v3018, %v3096
        %v3146 = vmax.f32 %v3037, %v3115
        %v3147 = vmax.f32 %v3056, %v3134
        %v3148 = vpack.c.bf16 %v3139, %v3136
        %v3149 = vpack.c.bf16 %v3140, %v3137
        %v3150 = vpack.c.bf16 %v3141, %v3138
        %v3151 = vpack.c.bf16 %v3145, %v3142
        %v3152 = vpack.c.bf16 %v3146, %v3143
        %v3153 = vpack.c.bf16 %v3147, %v3144
        %v3154 = vld [vmem:[%s4] sm:$0xff]
        %v3155 = vld [vmem:[%s4 + $0x8] sm:$0xff]
        %v3156 = vld [vmem:[%s4 + $0x10] sm:$0xff]
        %v3157 = vld [vmem:[%s4 + $0x18] sm:$0xff]
        %v3158 = vld [vmem:[%s4 + $0x20] sm:$0xff]
        %v3159 = vld [vmem:[%s4 + $0x28] sm:$0xff]
        %v3160 = vld [vmem:[%s4 + $0x30] sm:$0xff]
        %v3161 = vld [vmem:[%s4 + $0x38] sm:$0xff]
        %v3162 = vld [vmem:[%s4 + $0x40] sm:$0xff]
        %v3163 = vld [vmem:[%s4 + $0x48] sm:$0xff]
        %v3164 = vld [vmem:[%s4 + $0x50] sm:$0xff]
        %v3165 = vld [vmem:[%s4 + $0x58] sm:$0xff]
        %v3166 = vld [vmem:[%s4 + $0x60] sm:$0xff]
        %v3167 = vld [vmem:[%s4 + $0x68] sm:$0xff]
        %v3168 = vld [vmem:[%s4 + $0x70] sm:$0xff]
        %v3169 = vld [vmem:[%s4 + $0x78] sm:$0xff]
        %v3170 = vld [vmem:[%s4 + $0x80] sm:$0xff]
        %v3171 = vld [vmem:[%s4 + $0x88] sm:$0xff]
        %v3172 = vld [vmem:[%s4 + $0x90] sm:$0xff]
        %v3173 = vld [vmem:[%s4 + $0x98] sm:$0xff]
        %v3174 = vld [vmem:[%s4 + $0xa0] sm:$0xff]
        %v3175 = vld [vmem:[%s4 + $0xa8] sm:$0xff]
        %v3176 = vld [vmem:[%s4 + $0xb0] sm:$0xff]
        %v3177 = vld [vmem:[%s4 + $0xb8] sm:$0xff]
        %v3178 = vld [vmem:[%s4 + $0xc0] sm:$0xff]
        %v3179 = vld [vmem:[%s4 + $0xc8] sm:$0xff]
        %v3180 = vld [vmem:[%s4 + $0xd0] sm:$0xff]
        %v3181 = vld [vmem:[%s4 + $0xd8] sm:$0xff]
        %v3182 = vld [vmem:[%s4 + $0xe0] sm:$0xff]
        %v3183 = vld [vmem:[%s4 + $0xe8] sm:$0xff]
        %v3184 = vld [vmem:[%s4 + $0xf0] sm:$0xff]
        %v3185 = vld [vmem:[%s4 + $0xf8] sm:$0xff]
        %v3186 = vld [vmem:[%s4 + $0x100] sm:$0xff]
        %v3187 = vld [vmem:[%s4 + $0x108] sm:$0xff]
        %v3188 = vld [vmem:[%s4 + $0x110] sm:$0xff]
        %v3189 = vld [vmem:[%s4 + $0x118] sm:$0xff]
        %v3190 = vld [vmem:[%s4 + $0x120] sm:$0xff]
        %v3191 = vld [vmem:[%s4 + $0x128] sm:$0xff]
        %v3192 = vld [vmem:[%s4 + $0x130] sm:$0xff]
        %v3193 = vld [vmem:[%s4 + $0x138] sm:$0xff]
        %v3194 = vld [vmem:[%s4 + $0x140] sm:$0xff]
        %v3195 = vld [vmem:[%s4 + $0x148] sm:$0xff]
        %v3196 = vld [vmem:[%s4 + $0x150] sm:$0xff]
        %v3197 = vld [vmem:[%s4 + $0x158] sm:$0xff]
        %v3198 = vld [vmem:[%s4 + $0x160] sm:$0xff]
        %v3244 = vunpack.c.l.b16 %v3154
        %v3245 = vunpack.c.h.b16 %v3154
        %v3246 = vunpack.c.l.b16 %v3155
        %v3247 = vunpack.c.h.b16 %v3155
        %v3248 = vunpack.c.l.b16 %v3156
        %v3249 = vunpack.c.h.b16 %v3156
        %v3250 = vunpack.c.l.b16 %v3157
        %v3251 = vunpack.c.h.b16 %v3157
        %v3252 = vunpack.c.l.b16 %v3158
        %v3253 = vunpack.c.h.b16 %v3158
        %v3254 = vunpack.c.l.b16 %v3159
        %v3255 = vunpack.c.h.b16 %v3159
        %v3256 = vunpack.c.l.b16 %v3160
        %v3257 = vunpack.c.h.b16 %v3160
        %v3258 = vunpack.c.l.b16 %v3161
        %v3259 = vunpack.c.h.b16 %v3161
        %v3260 = vunpack.c.l.b16 %v3162
        %v3261 = vunpack.c.h.b16 %v3162
        %v3262 = vunpack.c.l.b16 %v3163
        %v3263 = vunpack.c.h.b16 %v3163
        %v3264 = vunpack.c.l.b16 %v3164
        %v3265 = vunpack.c.h.b16 %v3164
        %v3266 = vunpack.c.l.b16 %v3165
        %v3267 = vunpack.c.h.b16 %v3165
        %v3268 = vunpack.c.l.b16 %v3166
        %v3269 = vunpack.c.h.b16 %v3166
        %v3270 = vunpack.c.l.b16 %v3167
        %v3271 = vunpack.c.h.b16 %v3167
        %v3272 = vunpack.c.l.b16 %v3168
        %v3273 = vunpack.c.h.b16 %v3168
        %v3274 = vunpack.c.l.b16 %v3169
        %v3275 = vunpack.c.h.b16 %v3169
        %v3276 = vunpack.c.l.b16 %v3170
        %v3277 = vunpack.c.h.b16 %v3170
        %v3278 = vunpack.c.l.b16 %v3171
        %v3279 = vunpack.c.h.b16 %v3171
        %v3280 = vunpack.c.l.b16 %v3172
        %v3281 = vunpack.c.h.b16 %v3172
        %v3282 = vunpack.c.l.b16 %v3173
        %v3283 = vunpack.c.h.b16 %v3173
        %v3284 = vunpack.c.l.b16 %v3174
        %v3285 = vunpack.c.h.b16 %v3174
        %v3286 = vunpack.c.l.b16 %v3175
        %v3287 = vunpack.c.h.b16 %v3175
        %v3288 = vunpack.c.l.b16 %v3176
        %v3289 = vunpack.c.h.b16 %v3176
        %v3290 = vunpack.c.l.b16 %v3177
        %v3291 = vunpack.c.h.b16 %v3177
        %v3292 = vunpack.c.l.b16 %v3178
        %v3293 = vunpack.c.h.b16 %v3178
        %v3294 = vunpack.c.l.b16 %v3179
        %v3295 = vunpack.c.h.b16 %v3179
        %v3296 = vunpack.c.l.b16 %v3180
        %v3297 = vunpack.c.h.b16 %v3180
        %v3298 = vunpack.c.l.b16 %v3181
        %v3299 = vunpack.c.h.b16 %v3181
        %v3300 = vunpack.c.l.b16 %v3182
        %v3301 = vunpack.c.h.b16 %v3182
        %v3302 = vunpack.c.l.b16 %v3183
        %v3303 = vunpack.c.h.b16 %v3183
        %v3304 = vunpack.c.l.b16 %v3184
        %v3305 = vunpack.c.h.b16 %v3184
        %v3306 = vunpack.c.l.b16 %v3185
        %v3307 = vunpack.c.h.b16 %v3185
        %v3308 = vunpack.c.l.b16 %v3186
        %v3309 = vunpack.c.h.b16 %v3186
        %v3310 = vunpack.c.l.b16 %v3187
        %v3311 = vunpack.c.h.b16 %v3187
        %v3312 = vunpack.c.l.b16 %v3188
        %v3313 = vunpack.c.h.b16 %v3188
        %v3314 = vunpack.c.l.b16 %v3189
        %v3315 = vunpack.c.h.b16 %v3189
        %v3316 = vunpack.c.l.b16 %v3190
        %v3317 = vunpack.c.h.b16 %v3190
        %v3318 = vunpack.c.l.b16 %v3191
        %v3319 = vunpack.c.h.b16 %v3191
        %v3320 = vunpack.c.l.b16 %v3192
        %v3321 = vunpack.c.h.b16 %v3192
        %v3322 = vunpack.c.l.b16 %v3193
        %v3323 = vunpack.c.h.b16 %v3193
        %v3324 = vunpack.c.l.b16 %v3194
        %v3325 = vunpack.c.h.b16 %v3194
        %v3326 = vunpack.c.l.b16 %v3195
        %v3327 = vunpack.c.h.b16 %v3195
        %v3328 = vunpack.c.l.b16 %v3196
        %v3329 = vunpack.c.h.b16 %v3196
        %v3330 = vunpack.c.l.b16 %v3197
        %v3331 = vunpack.c.h.b16 %v3197
        %v3332 = vunpack.c.l.b16 %v3198
        %v3333 = vunpack.c.h.b16 %v3198
        %v3334 = vpack.c.b16 %v3246, %v3244
        %v3335 = vpack.c.b16 %v3247, %v3245
        %v3336 = vpack.c.b16 %v3250, %v3248
        %v3337 = vpack.c.b16 %v3251, %v3249
        %v3338 = vpack.c.b16 %v3254, %v3252
        %v3339 = vpack.c.b16 %v3255, %v3253
        %v3340 = vpack.c.b16 %v3258, %v3256
        %v3341 = vpack.c.b16 %v3259, %v3257
        %v3342 = vpack.c.b16 %v3262, %v3260
        %v3343 = vpack.c.b16 %v3263, %v3261
        %v3344 = vpack.c.b16 %v3266, %v3264
        %v3345 = vpack.c.b16 %v3267, %v3265
        %v3346 = vpack.c.b16 %v3270, %v3268
        %v3347 = vpack.c.b16 %v3271, %v3269
        %v3348 = vpack.c.b16 %v3274, %v3272
        %v3349 = vpack.c.b16 %v3275, %v3273
        %v3350 = vpack.c.b16 %v3278, %v3276
        %v3351 = vpack.c.b16 %v3279, %v3277
        %v3352 = vpack.c.b16 %v3282, %v3280
        %v3353 = vpack.c.b16 %v3283, %v3281
        %v3354 = vpack.c.b16 %v3286, %v3284
        %v3355 = vpack.c.b16 %v3287, %v3285
        %v3356 = vpack.c.b16 %v3290, %v3288
        %v3357 = vpack.c.b16 %v3291, %v3289
        %v3358 = vpack.c.b16 %v3294, %v3292
        %v3359 = vpack.c.b16 %v3295, %v3293
        %v3360 = vpack.c.b16 %v3298, %v3296
        %v3361 = vpack.c.b16 %v3299, %v3297
        %v3362 = vpack.c.b16 %v3302, %v3300
        %v3363 = vpack.c.b16 %v3303, %v3301
        %v3364 = vpack.c.b16 %v3306, %v3304
        %v3365 = vpack.c.b16 %v3307, %v3305
        %v3366 = vpack.c.b16 %v3310, %v3308
        %v3367 = vpack.c.b16 %v3311, %v3309
        %v3368 = vpack.c.b16 %v3314, %v3312
        %v3369 = vpack.c.b16 %v3315, %v3313
        %v3370 = vpack.c.b16 %v3318, %v3316
        %v3371 = vpack.c.b16 %v3319, %v3317
        %v3372 = vpack.c.b16 %v3322, %v3320
        %v3373 = vpack.c.b16 %v3323, %v3321
        %v3374 = vpack.c.b16 %v3326, %v3324
        %v3375 = vpack.c.b16 %v3327, %v3325
        %v3376 = vpack.c.b16 %v3330, %v3328
        %v3377 = vpack.c.b16 %v3331, %v3329
        %v3378 = vpack.c.b16 %v3332, %v3332
        %v3379 = vpack.c.b16 %v3333, %v3333
        %vm3424 = vcmask 850944
        %v3426 = vsel %vm3424, %v3150, 0
        %v3429 = vsel %vm3424, %v3153, 0
        %vm3431 = vcmask 1043456
        %v3433 = vsel %vm3431, %v3378, 0
        %v3436 = vsel %vm3431, %v3379, 0
        %3438 = vmatpush.bf16.msra.mxu0 %v3348
        %3439 = vmatpush.bf16.msra.mxu0 %v3346
        %3440 = vmatpush.bf16.msra.mxu0 %v3344
        %3441 = vmatpush.bf16.msra.mxu0 %v3342
        %3442 = vmatpush.bf16.msra.mxu0 %v3340
        %3443 = vmatpush.bf16.msra.mxu0 %v3338
        %3444 = vmatpush.bf16.msra.mxu0 %v3336
        %3445 = vmatpush.bf16.msra.mxu0 %v3334
        %3446 = vmatmul.bf16.gmra.mxu0 %v3148
        %v3447 = vpop.f32.mrf.mxu0
        %v3448 = vadd.f32 0.0, %v3447
        %v3449 = vpop.f32.mrf.mxu0
        %v3450 = vadd.f32 0.0, %v3449
        %3451 = vmatmul.bf16.gmra.mxu0 %v3151
        %v3452 = vpop.f32.mrf.mxu0
        %v3453 = vadd.f32 0.0, %v3452
        %v3454 = vpop.f32.mrf.mxu0
        %v3455 = vadd.f32 0.0, %v3454
        %3456 = vdwg.mxu0
        %3457 = vmatpush.bf16.msra.mxu0 %v3364
        %3458 = vmatpush.bf16.msra.mxu0 %v3362
        %3459 = vmatpush.bf16.msra.mxu0 %v3360
        %3460 = vmatpush.bf16.msra.mxu0 %v3358
        %3461 = vmatpush.bf16.msra.mxu0 %v3356
        %3462 = vmatpush.bf16.msra.mxu0 %v3354
        %3463 = vmatpush.bf16.msra.mxu0 %v3352
        %3464 = vmatpush.bf16.msra.mxu0 %v3350
        %3465 = vmatmul.bf16.gmra.mxu0 %v3149
        %v3466 = vpop.f32.mrf.mxu0
        %v3467 = vadd.f32 %v3448, %v3466
        %v3468 = vpop.f32.mrf.mxu0
        %v3469 = vadd.f32 %v3450, %v3468
        %3470 = vmatmul.bf16.gmra.mxu0 %v3152
        %v3471 = vpop.f32.mrf.mxu0
        %v3472 = vadd.f32 %v3453, %v3471
        %v3473 = vpop.f32.mrf.mxu0
        %v3474 = vadd.f32 %v3455, %v3473
        %3475 = vdwg.mxu0
        %3476 = vmatpush.bf16.msra.mxu0 0
        %3477 = vmatpush.bf16.msra.mxu0 %v3433
        %3478 = vmatpush.bf16.msra.mxu0 %v3376
        %3479 = vmatpush.bf16.msra.mxu0 %v3374
        %3480 = vmatpush.bf16.msra.mxu0 %v3372
        %3481 = vmatpush.bf16.msra.mxu0 %v3370
        %3482 = vmatpush.bf16.msra.mxu0 %v3368
        %3483 = vmatpush.bf16.msra.mxu0 %v3366
        %3484 = vmatmul.bf16.gmra.mxu0 %v3426
        %v3485 = vpop.f32.mrf.mxu0
        %v3486 = vadd.f32 %v3467, %v3485
        %v3487 = vpop.f32.mrf.mxu0
        %v3488 = vadd.f32 %v3469, %v3487
        %3489 = vmatmul.bf16.gmra.mxu0 %v3429
        %v3490 = vpop.f32.mrf.mxu0
        %v3491 = vadd.f32 %v3472, %v3490
        %v3492 = vpop.f32.mrf.mxu0
        %v3493 = vadd.f32 %v3474, %v3492
        %3494 = vdwg.mxu0
        %3495 = vmatpush.bf16.msra.mxu0 %v3349
        %3496 = vmatpush.bf16.msra.mxu0 %v3347
        %3497 = vmatpush.bf16.msra.mxu0 %v3345
        %3498 = vmatpush.bf16.msra.mxu0 %v3343
        %3499 = vmatpush.bf16.msra.mxu0 %v3341
        %3500 = vmatpush.bf16.msra.mxu0 %v3339
        %3501 = vmatpush.bf16.msra.mxu0 %v3337
        %3502 = vmatpush.bf16.msra.mxu0 %v3335
        %3503 = vmatmul.bf16.gmra.mxu0 %v3148
        %v3504 = vpop.f32.mrf.mxu0
        %v3505 = vadd.f32 0.0, %v3504
        %v3506 = vpop.f32.mrf.mxu0
        %v3507 = vadd.f32 0.0, %v3506
        %3508 = vmatmul.bf16.gmra.mxu0 %v3151
        %v3509 = vpop.f32.mrf.mxu0
        %v3510 = vadd.f32 0.0, %v3509
        %v3511 = vpop.f32.mrf.mxu0
        %v3512 = vadd.f32 0.0, %v3511
        %3513 = vdwg.mxu0
        %3514 = vmatpush.bf16.msra.mxu0 %v3365
        %3515 = vmatpush.bf16.msra.mxu0 %v3363
        %3516 = vmatpush.bf16.msra.mxu0 %v3361
        %3517 = vmatpush.bf16.msra.mxu0 %v3359
        %3518 = vmatpush.bf16.msra.mxu0 %v3357
        %3519 = vmatpush.bf16.msra.mxu0 %v3355
        %3520 = vmatpush.bf16.msra.mxu0 %v3353
        %3521 = vmatpush.bf16.msra.mxu0 %v3351
        %3522 = vmatmul.bf16.gmra.mxu0 %v3149
        %v3523 = vpop.f32.mrf.mxu0
        %v3524 = vadd.f32 %v3505, %v3523
        %v3525 = vpop.f32.mrf.mxu0
        %v3526 = vadd.f32 %v3507, %v3525
        %3527 = vmatmul.bf16.gmra.mxu0 %v3152
        %v3528 = vpop.f32.mrf.mxu0
        %v3529 = vadd.f32 %v3510, %v3528
        %v3530 = vpop.f32.mrf.mxu0
        %v3531 = vadd.f32 %v3512, %v3530
        %3532 = vdwg.mxu0
        %3533 = vmatpush.bf16.msra.mxu0 0
        %3534 = vmatpush.bf16.msra.mxu0 %v3436
        %3535 = vmatpush.bf16.msra.mxu0 %v3377
        %3536 = vmatpush.bf16.msra.mxu0 %v3375
        %3537 = vmatpush.bf16.msra.mxu0 %v3373
        %3538 = vmatpush.bf16.msra.mxu0 %v3371
        %3539 = vmatpush.bf16.msra.mxu0 %v3369
        %3540 = vmatpush.bf16.msra.mxu0 %v3367
        %3541 = vmatmul.bf16.gmra.mxu0 %v3426
        %v3542 = vpop.f32.mrf.mxu0
        %v3543 = vadd.f32 %v3524, %v3542
        %v3544 = vpop.f32.mrf.mxu0
        %v3545 = vadd.f32 %v3526, %v3544
        %3546 = vmatmul.bf16.gmra.mxu0 %v3429
        %v3547 = vpop.f32.mrf.mxu0
        %v3548 = vadd.f32 %v3529, %v3547
        %v3549 = vpop.f32.mrf.mxu0
        %v3550 = vadd.f32 %v3531, %v3549
        %3551 = vdwg.mxu0
        %s3552 = scalar_lea.vmem %s4, 360
        %v3553 = vld [vmem:[%s3552] sm:$0xff]
        %v3554 = vld [vmem:[%s3552 + $0x8] sm:$0xff]
        %v3555 = vld [vmem:[%s3552 + $0x10] sm:$0xff]
        %v3556 = vld [vmem:[%s3552 + $0x18] sm:$0xff]
        %v3557 = vld [vmem:[%s3552 + $0x20] sm:$0xff]
        %v3558 = vld [vmem:[%s3552 + $0x28] sm:$0xff]
        %v3559 = vld [vmem:[%s3552 + $0x30] sm:$0xff]
        %v3560 = vld [vmem:[%s3552 + $0x38] sm:$0xff]
        %v3561 = vld [vmem:[%s3552 + $0x40] sm:$0xff]
        %v3562 = vld [vmem:[%s3552 + $0x48] sm:$0xff]
        %v3563 = vld [vmem:[%s3552 + $0x50] sm:$0xff]
        %v3564 = vld [vmem:[%s3552 + $0x58] sm:$0xff]
        %v3565 = vld [vmem:[%s3552 + $0x60] sm:$0xff]
        %v3566 = vld [vmem:[%s3552 + $0x68] sm:$0xff]
        %v3567 = vld [vmem:[%s3552 + $0x70] sm:$0xff]
        %v3568 = vld [vmem:[%s3552 + $0x78] sm:$0xff]
        %v3569 = vld [vmem:[%s3552 + $0x80] sm:$0xff]
        %v3570 = vld [vmem:[%s3552 + $0x88] sm:$0xff]
        %v3571 = vld [vmem:[%s3552 + $0x90] sm:$0xff]
        %v3572 = vld [vmem:[%s3552 + $0x98] sm:$0xff]
        %v3573 = vld [vmem:[%s3552 + $0xa0] sm:$0xff]
        %v3574 = vld [vmem:[%s3552 + $0xa8] sm:$0xff]
        %v3575 = vld [vmem:[%s3552 + $0xb0] sm:$0xff]
        %v3576 = vld [vmem:[%s3552 + $0xb8] sm:$0xff]
        %v3577 = vld [vmem:[%s3552 + $0xc0] sm:$0xff]
        %v3578 = vld [vmem:[%s3552 + $0xc8] sm:$0xff]
        %v3579 = vld [vmem:[%s3552 + $0xd0] sm:$0xff]
        %v3580 = vld [vmem:[%s3552 + $0xd8] sm:$0xff]
        %v3581 = vld [vmem:[%s3552 + $0xe0] sm:$0xff]
        %v3582 = vld [vmem:[%s3552 + $0xe8] sm:$0xff]
        %v3583 = vld [vmem:[%s3552 + $0xf0] sm:$0xff]
        %v3584 = vld [vmem:[%s3552 + $0xf8] sm:$0xff]
        %v3585 = vld [vmem:[%s3552 + $0x100] sm:$0xff]
        %v3586 = vld [vmem:[%s3552 + $0x108] sm:$0xff]
        %v3587 = vld [vmem:[%s3552 + $0x110] sm:$0xff]
        %v3588 = vld [vmem:[%s3552 + $0x118] sm:$0xff]
        %v3589 = vld [vmem:[%s3552 + $0x120] sm:$0xff]
        %v3590 = vld [vmem:[%s3552 + $0x128] sm:$0xff]
        %v3591 = vld [vmem:[%s3552 + $0x130] sm:$0xff]
        %v3592 = vld [vmem:[%s3552 + $0x138] sm:$0xff]
        %v3593 = vld [vmem:[%s3552 + $0x140] sm:$0xff]
        %v3594 = vld [vmem:[%s3552 + $0x148] sm:$0xff]
        %v3595 = vld [vmem:[%s3552 + $0x150] sm:$0xff]
        %v3596 = vld [vmem:[%s3552 + $0x158] sm:$0xff]
        %v3597 = vld [vmem:[%s3552 + $0x160] sm:$0xff]
        %v3643 = vunpack.c.l.b16 %v3553
        %v3644 = vunpack.c.h.b16 %v3553
        %v3645 = vunpack.c.l.b16 %v3554
        %v3646 = vunpack.c.h.b16 %v3554
        %v3647 = vunpack.c.l.b16 %v3555
        %v3648 = vunpack.c.h.b16 %v3555
        %v3649 = vunpack.c.l.b16 %v3556
        %v3650 = vunpack.c.h.b16 %v3556
        %v3651 = vunpack.c.l.b16 %v3557
        %v3652 = vunpack.c.h.b16 %v3557
        %v3653 = vunpack.c.l.b16 %v3558
        %v3654 = vunpack.c.h.b16 %v3558
        %v3655 = vunpack.c.l.b16 %v3559
        %v3656 = vunpack.c.h.b16 %v3559
        %v3657 = vunpack.c.l.b16 %v3560
        %v3658 = vunpack.c.h.b16 %v3560
        %v3659 = vunpack.c.l.b16 %v3561
        %v3660 = vunpack.c.h.b16 %v3561
        %v3661 = vunpack.c.l.b16 %v3562
        %v3662 = vunpack.c.h.b16 %v3562
        %v3663 = vunpack.c.l.b16 %v3563
        %v3664 = vunpack.c.h.b16 %v3563
        %v3665 = vunpack.c.l.b16 %v3564
        %v3666 = vunpack.c.h.b16 %v3564
        %v3667 = vunpack.c.l.b16 %v3565
        %v3668 = vunpack.c.h.b16 %v3565
        %v3669 = vunpack.c.l.b16 %v3566
        %v3670 = vunpack.c.h.b16 %v3566
        %v3671 = vunpack.c.l.b16 %v3567
        %v3672 = vunpack.c.h.b16 %v3567
        %v3673 = vunpack.c.l.b16 %v3568
        %v3674 = vunpack.c.h.b16 %v3568
        %v3675 = vunpack.c.l.b16 %v3569
        %v3676 = vunpack.c.h.b16 %v3569
        %v3677 = vunpack.c.l.b16 %v3570
        %v3678 = vunpack.c.h.b16 %v3570
        %v3679 = vunpack.c.l.b16 %v3571
        %v3680 = vunpack.c.h.b16 %v3571
        %v3681 = vunpack.c.l.b16 %v3572
        %v3682 = vunpack.c.h.b16 %v3572
        %v3683 = vunpack.c.l.b16 %v3573
        %v3684 = vunpack.c.h.b16 %v3573
        %v3685 = vunpack.c.l.b16 %v3574
        %v3686 = vunpack.c.h.b16 %v3574
        %v3687 = vunpack.c.l.b16 %v3575
        %v3688 = vunpack.c.h.b16 %v3575
        %v3689 = vunpack.c.l.b16 %v3576
        %v3690 = vunpack.c.h.b16 %v3576
        %v3691 = vunpack.c.l.b16 %v3577
        %v3692 = vunpack.c.h.b16 %v3577
        %v3693 = vunpack.c.l.b16 %v3578
        %v3694 = vunpack.c.h.b16 %v3578
        %v3695 = vunpack.c.l.b16 %v3579
        %v3696 = vunpack.c.h.b16 %v3579
        %v3697 = vunpack.c.l.b16 %v3580
        %v3698 = vunpack.c.h.b16 %v3580
        %v3699 = vunpack.c.l.b16 %v3581
        %v3700 = vunpack.c.h.b16 %v3581
        %v3701 = vunpack.c.l.b16 %v3582
        %v3702 = vunpack.c.h.b16 %v3582
        %v3703 = vunpack.c.l.b16 %v3583
        %v3704 = vunpack.c.h.b16 %v3583
        %v3705 = vunpack.c.l.b16 %v3584
        %v3706 = vunpack.c.h.b16 %v3584
        %v3707 = vunpack.c.l.b16 %v3585
        %v3708 = vunpack.c.h.b16 %v3585
        %v3709 = vunpack.c.l.b16 %v3586
        %v3710 = vunpack.c.h.b16 %v3586
        %v3711 = vunpack.c.l.b16 %v3587
        %v3712 = vunpack.c.h.b16 %v3587
        %v3713 = vunpack.c.l.b16 %v3588
        %v3714 = vunpack.c.h.b16 %v3588
        %v3715 = vunpack.c.l.b16 %v3589
        %v3716 = vunpack.c.h.b16 %v3589
        %v3717 = vunpack.c.l.b16 %v3590
        %v3718 = vunpack.c.h.b16 %v3590
        %v3719 = vunpack.c.l.b16 %v3591
        %v3720 = vunpack.c.h.b16 %v3591
        %v3721 = vunpack.c.l.b16 %v3592
        %v3722 = vunpack.c.h.b16 %v3592
        %v3723 = vunpack.c.l.b16 %v3593
        %v3724 = vunpack.c.h.b16 %v3593
        %v3725 = vunpack.c.l.b16 %v3594
        %v3726 = vunpack.c.h.b16 %v3594
        %v3727 = vunpack.c.l.b16 %v3595
        %v3728 = vunpack.c.h.b16 %v3595
        %v3729 = vunpack.c.l.b16 %v3596
        %v3730 = vunpack.c.h.b16 %v3596
        %v3731 = vunpack.c.l.b16 %v3597
        %v3732 = vunpack.c.h.b16 %v3597
        %v3733 = vpack.c.b16 %v3645, %v3643
        %v3734 = vpack.c.b16 %v3646, %v3644
        %v3735 = vpack.c.b16 %v3649, %v3647
        %v3736 = vpack.c.b16 %v3650, %v3648
        %v3737 = vpack.c.b16 %v3653, %v3651
        %v3738 = vpack.c.b16 %v3654, %v3652
        %v3739 = vpack.c.b16 %v3657, %v3655
        %v3740 = vpack.c.b16 %v3658, %v3656
        %v3741 = vpack.c.b16 %v3661, %v3659
        %v3742 = vpack.c.b16 %v3662, %v3660
        %v3743 = vpack.c.b16 %v3665, %v3663
        %v3744 = vpack.c.b16 %v3666, %v3664
        %v3745 = vpack.c.b16 %v3669, %v3667
        %v3746 = vpack.c.b16 %v3670, %v3668
        %v3747 = vpack.c.b16 %v3673, %v3671
        %v3748 = vpack.c.b16 %v3674, %v3672
        %v3749 = vpack.c.b16 %v3677, %v3675
        %v3750 = vpack.c.b16 %v3678, %v3676
        %v3751 = vpack.c.b16 %v3681, %v3679
        %v3752 = vpack.c.b16 %v3682, %v3680
        %v3753 = vpack.c.b16 %v3685, %v3683
        %v3754 = vpack.c.b16 %v3686, %v3684
        %v3755 = vpack.c.b16 %v3689, %v3687
        %v3756 = vpack.c.b16 %v3690, %v3688
        %v3757 = vpack.c.b16 %v3693, %v3691
        %v3758 = vpack.c.b16 %v3694, %v3692
        %v3759 = vpack.c.b16 %v3697, %v3695
        %v3760 = vpack.c.b16 %v3698, %v3696
        %v3761 = vpack.c.b16 %v3701, %v3699
        %v3762 = vpack.c.b16 %v3702, %v3700
        %v3763 = vpack.c.b16 %v3705, %v3703
        %v3764 = vpack.c.b16 %v3706, %v3704
        %v3765 = vpack.c.b16 %v3709, %v3707
        %v3766 = vpack.c.b16 %v3710, %v3708
        %v3767 = vpack.c.b16 %v3713, %v3711
        %v3768 = vpack.c.b16 %v3714, %v3712
        %v3769 = vpack.c.b16 %v3717, %v3715
        %v3770 = vpack.c.b16 %v3718, %v3716
        %v3771 = vpack.c.b16 %v3721, %v3719
        %v3772 = vpack.c.b16 %v3722, %v3720
        %v3773 = vpack.c.b16 %v3725, %v3723
        %v3774 = vpack.c.b16 %v3726, %v3724
        %v3775 = vpack.c.b16 %v3729, %v3727
        %v3776 = vpack.c.b16 %v3730, %v3728
        %v3777 = vpack.c.b16 %v3731, %v3731
        %v3778 = vpack.c.b16 %v3732, %v3732
        %v3824 = vsel %vm3431, %v3777, 0
        %v3827 = vsel %vm3431, %v3778, 0
        %3829 = vmatpush.bf16.msra.mxu0 %v3747
        %3830 = vmatpush.bf16.msra.mxu0 %v3745
        %3831 = vmatpush.bf16.msra.mxu0 %v3743
        %3832 = vmatpush.bf16.msra.mxu0 %v3741
        %3833 = vmatpush.bf16.msra.mxu0 %v3739
        %3834 = vmatpush.bf16.msra.mxu0 %v3737
        %3835 = vmatpush.bf16.msra.mxu0 %v3735
        %3836 = vmatpush.bf16.msra.mxu0 %v3733
        %3837 = vmatmul.bf16.gmra.mxu0 %v3148
        %v3838 = vpop.f32.mrf.mxu0
        %v3839 = vadd.f32 0.0, %v3838
        %v3840 = vpop.f32.mrf.mxu0
        %v3841 = vadd.f32 0.0, %v3840
        %3842 = vmatmul.bf16.gmra.mxu0 %v3151
        %v3843 = vpop.f32.mrf.mxu0
        %v3844 = vadd.f32 0.0, %v3843
        %v3845 = vpop.f32.mrf.mxu0
        %v3846 = vadd.f32 0.0, %v3845
        %3847 = vdwg.mxu0
        %3848 = vmatpush.bf16.msra.mxu0 %v3763
        %3849 = vmatpush.bf16.msra.mxu0 %v3761
        %3850 = vmatpush.bf16.msra.mxu0 %v3759
        %3851 = vmatpush.bf16.msra.mxu0 %v3757
        %3852 = vmatpush.bf16.msra.mxu0 %v3755
        %3853 = vmatpush.bf16.msra.mxu0 %v3753
        %3854 = vmatpush.bf16.msra.mxu0 %v3751
        %3855 = vmatpush.bf16.msra.mxu0 %v3749
        %3856 = vmatmul.bf16.gmra.mxu0 %v3149
        %v3857 = vpop.f32.mrf.mxu0
        %v3858 = vadd.f32 %v3839, %v3857
        %v3859 = vpop.f32.mrf.mxu0
        %v3860 = vadd.f32 %v3841, %v3859
        %3861 = vmatmul.bf16.gmra.mxu0 %v3152
        %v3862 = vpop.f32.mrf.mxu0
        %v3863 = vadd.f32 %v3844, %v3862
        %v3864 = vpop.f32.mrf.mxu0
        %v3865 = vadd.f32 %v3846, %v3864
        %3866 = vdwg.mxu0
        %3867 = vmatpush.bf16.msra.mxu0 0
        %3868 = vmatpush.bf16.msra.mxu0 %v3824
        %3869 = vmatpush.bf16.msra.mxu0 %v3775
        %3870 = vmatpush.bf16.msra.mxu0 %v3773
        %3871 = vmatpush.bf16.msra.mxu0 %v3771
        %3872 = vmatpush.bf16.msra.mxu0 %v3769
        %3873 = vmatpush.bf16.msra.mxu0 %v3767
        %3874 = vmatpush.bf16.msra.mxu0 %v3765
        %3875 = vmatmul.bf16.gmra.mxu0 %v3426
        %v3876 = vpop.f32.mrf.mxu0
        %v3877 = vadd.f32 %v3858, %v3876
        %v3878 = vpop.f32.mrf.mxu0
        %v3879 = vadd.f32 %v3860, %v3878
        %3880 = vmatmul.bf16.gmra.mxu0 %v3429
        %v3881 = vpop.f32.mrf.mxu0
        %v3882 = vadd.f32 %v3863, %v3881
        %v3883 = vpop.f32.mrf.mxu0
        %v3884 = vadd.f32 %v3865, %v3883
        %3885 = vdwg.mxu0
        %3886 = vmatpush.bf16.msra.mxu0 %v3748
        %3887 = vmatpush.bf16.msra.mxu0 %v3746
        %3888 = vmatpush.bf16.msra.mxu0 %v3744
        %3889 = vmatpush.bf16.msra.mxu0 %v3742
        %3890 = vmatpush.bf16.msra.mxu0 %v3740
        %3891 = vmatpush.bf16.msra.mxu0 %v3738
        %3892 = vmatpush.bf16.msra.mxu0 %v3736
        %3893 = vmatpush.bf16.msra.mxu0 %v3734
        %3894 = vmatmul.bf16.gmra.mxu0 %v3148
        %v3895 = vpop.f32.mrf.mxu0
        %v3896 = vadd.f32 0.0, %v3895
        %v3897 = vpop.f32.mrf.mxu0
        %v3898 = vadd.f32 0.0, %v3897
        %3899 = vmatmul.bf16.gmra.mxu0 %v3151
        %v3900 = vpop.f32.mrf.mxu0
        %v3901 = vadd.f32 0.0, %v3900
        %v3902 = vpop.f32.mrf.mxu0
        %v3903 = vadd.f32 0.0, %v3902
        %3904 = vdwg.mxu0
        %3905 = vmatpush.bf16.msra.mxu0 %v3764
        %3906 = vmatpush.bf16.msra.mxu0 %v3762
        %3907 = vmatpush.bf16.msra.mxu0 %v3760
        %3908 = vmatpush.bf16.msra.mxu0 %v3758
        %3909 = vmatpush.bf16.msra.mxu0 %v3756
        %3910 = vmatpush.bf16.msra.mxu0 %v3754
        %3911 = vmatpush.bf16.msra.mxu0 %v3752
        %3912 = vmatpush.bf16.msra.mxu0 %v3750
        %3913 = vmatmul.bf16.gmra.mxu0 %v3149
        %v3914 = vpop.f32.mrf.mxu0
        %v3915 = vadd.f32 %v3896, %v3914
        %v3916 = vpop.f32.mrf.mxu0
        %v3917 = vadd.f32 %v3898, %v3916
        %3918 = vmatmul.bf16.gmra.mxu0 %v3152
        %v3919 = vpop.f32.mrf.mxu0
        %v3920 = vadd.f32 %v3901, %v3919
        %v3921 = vpop.f32.mrf.mxu0
        %v3922 = vadd.f32 %v3903, %v3921
        %3923 = vdwg.mxu0
        %3924 = vmatpush.bf16.msra.mxu0 0
        %3925 = vmatpush.bf16.msra.mxu0 %v3827
        %3926 = vmatpush.bf16.msra.mxu0 %v3776
        %3927 = vmatpush.bf16.msra.mxu0 %v3774
        %3928 = vmatpush.bf16.msra.mxu0 %v3772
        %3929 = vmatpush.bf16.msra.mxu0 %v3770
        %3930 = vmatpush.bf16.msra.mxu0 %v3768
        %3931 = vmatpush.bf16.msra.mxu0 %v3766
        %3932 = vmatmul.bf16.gmra.mxu0 %v3426
        %v3933 = vpop.f32.mrf.mxu0
        %v3934 = vadd.f32 %v3915, %v3933
        %v3935 = vpop.f32.mrf.mxu0
        %v3936 = vadd.f32 %v3917, %v3935
        %3937 = vmatmul.bf16.gmra.mxu0 %v3429
        %v3938 = vpop.f32.mrf.mxu0
        %v3939 = vadd.f32 %v3920, %v3938
        %v3940 = vpop.f32.mrf.mxu0
        %v3941 = vadd.f32 %v3922, %v3940
        %3942 = vdwg.mxu0
        %v3943 = vmax.f32 %v3486, %v3877
        %v3944 = vmax.f32 %v3543, %v3934
        %v3945 = vmax.f32 %v3488, %v3879
        %v3946 = vmax.f32 %v3545, %v3936
        %v3947 = vmax.f32 %v3491, %v3882
        %v3948 = vmax.f32 %v3548, %v3939
        %v3949 = vmax.f32 %v3493, %v3884
        %v3950 = vmax.f32 %v3550, %v3941
        %v3951 = vld [vmem:[%s6] sm:$0xf]
        %v3952 = vpack.c.bf16 %v3945, %v3943
        %v3953 = vpack.c.bf16 %v3946, %v3944
        %v3954 = vpack.c.bf16 %v3949, %v3947
        %v3955 = vpack.c.bf16 %v3950, %v3948
        %v3956 = vld [vmem:[%s5] sm:$0xff]
        %v3957 = vld [vmem:[%s5 + $0x8] sm:$0xff]
        %v3958 = vld [vmem:[%s5 + $0x10] sm:$0xff]
        %v3959 = vld [vmem:[%s5 + $0x18] sm:$0xff]
        %v3960 = vld [vmem:[%s5 + $0x20] sm:$0xff]
        %v3961 = vld [vmem:[%s5 + $0x28] sm:$0xff]
        %v3962 = vld [vmem:[%s5 + $0x30] sm:$0xff]
        %v3963 = vld [vmem:[%s5 + $0x38] sm:$0xff]
        %v3964 = vld [vmem:[%s5 + $0x40] sm:$0xff]
        %v3965 = vld [vmem:[%s5 + $0x48] sm:$0xff]
        %v3966 = vld [vmem:[%s5 + $0x50] sm:$0xff]
        %v3967 = vld [vmem:[%s5 + $0x58] sm:$0xff]
        %v3968 = vld [vmem:[%s5 + $0x60] sm:$0xff]
        %v3969 = vld [vmem:[%s5 + $0x68] sm:$0xff]
        %v3970 = vld [vmem:[%s5 + $0x70] sm:$0xff]
        %v3971 = vld [vmem:[%s5 + $0x78] sm:$0xff]
        %v3972 = vld [vmem:[%s5 + $0x80] sm:$0xff]
        %v3973 = vld [vmem:[%s5 + $0x88] sm:$0xff]
        %v3974 = vld [vmem:[%s5 + $0x90] sm:$0xff]
        %v3975 = vld [vmem:[%s5 + $0x98] sm:$0xff]
        %v3976 = vld [vmem:[%s5 + $0xa0] sm:$0xff]
        %v3977 = vld [vmem:[%s5 + $0xa8] sm:$0xff]
        %v3978 = vld [vmem:[%s5 + $0xb0] sm:$0xff]
        %v3979 = vld [vmem:[%s5 + $0xb8] sm:$0xff]
        %v3980 = vld [vmem:[%s5 + $0xc0] sm:$0xff]
        %v3981 = vld [vmem:[%s5 + $0xc8] sm:$0xff]
        %v3982 = vld [vmem:[%s5 + $0xd0] sm:$0xff]
        %v3983 = vld [vmem:[%s5 + $0xd8] sm:$0xff]
        %v3984 = vld [vmem:[%s5 + $0xe0] sm:$0xff]
        %v3985 = vld [vmem:[%s5 + $0xe8] sm:$0xff]
        %v3986 = vld [vmem:[%s5 + $0xf0] sm:$0xff]
        %v3987 = vld [vmem:[%s5 + $0xf8] sm:$0xff]
        %v3988 = vld [vmem:[%s5 + $0x100] sm:$0xff]
        %v3989 = vld [vmem:[%s5 + $0x108] sm:$0xff]
        %v3990 = vld [vmem:[%s5 + $0x110] sm:$0xff]
        %v3991 = vld [vmem:[%s5 + $0x118] sm:$0xff]
        %v3992 = vld [vmem:[%s5 + $0x120] sm:$0xff]
        %v3993 = vld [vmem:[%s5 + $0x128] sm:$0xff]
        %v3994 = vld [vmem:[%s5 + $0x130] sm:$0xff]
        %v3995 = vld [vmem:[%s5 + $0x138] sm:$0xff]
        %v3996 = vld [vmem:[%s5 + $0x140] sm:$0xff]
        %v3997 = vld [vmem:[%s5 + $0x148] sm:$0xff]
        %v3998 = vld [vmem:[%s5 + $0x150] sm:$0xff]
        %v3999 = vld [vmem:[%s5 + $0x158] sm:$0xff]
        %v4000 = vld [vmem:[%s5 + $0x160] sm:$0x33]
        %v4001 = vld [vmem:[%s5 + $0x168] sm:$0x33]
        %s4002 = scalar_lea.vmem %s5, 368
        %v4003 = vld [vmem:[%s4002] sm:$0xff]
        %v4004 = vld [vmem:[%s4002 + $0x8] sm:$0xff]
        %v4005 = vld [vmem:[%s4002 + $0x10] sm:$0xff]
        %v4006 = vld [vmem:[%s4002 + $0x18] sm:$0xff]
        %v4007 = vld [vmem:[%s4002 + $0x20] sm:$0xff]
        %v4008 = vld [vmem:[%s4002 + $0x28] sm:$0xff]
        %v4009 = vld [vmem:[%s4002 + $0x30] sm:$0xff]
        %v4010 = vld [vmem:[%s4002 + $0x38] sm:$0xff]
        %v4011 = vld [vmem:[%s4002 + $0x40] sm:$0xff]
        %v4012 = vld [vmem:[%s4002 + $0x48] sm:$0xff]
        %v4013 = vld [vmem:[%s4002 + $0x50] sm:$0xff]
        %v4014 = vld [vmem:[%s4002 + $0x58] sm:$0xff]
        %v4015 = vld [vmem:[%s4002 + $0x60] sm:$0xff]
        %v4016 = vld [vmem:[%s4002 + $0x68] sm:$0xff]
        %v4017 = vld [vmem:[%s4002 + $0x70] sm:$0xff]
        %v4018 = vld [vmem:[%s4002 + $0x78] sm:$0xff]
        %v4019 = vld [vmem:[%s4002 + $0x80] sm:$0xff]
        %v4020 = vld [vmem:[%s4002 + $0x88] sm:$0xff]
        %v4021 = vld [vmem:[%s4002 + $0x90] sm:$0xff]
        %v4022 = vld [vmem:[%s4002 + $0x98] sm:$0xff]
        %v4023 = vld [vmem:[%s4002 + $0xa0] sm:$0xff]
        %v4024 = vld [vmem:[%s4002 + $0xa8] sm:$0xff]
        %v4025 = vld [vmem:[%s4002 + $0xb0] sm:$0xff]
        %v4026 = vld [vmem:[%s4002 + $0xb8] sm:$0xff]
        %v4027 = vld [vmem:[%s4002 + $0xc0] sm:$0xff]
        %v4028 = vld [vmem:[%s4002 + $0xc8] sm:$0xff]
        %v4029 = vld [vmem:[%s4002 + $0xd0] sm:$0xff]
        %v4030 = vld [vmem:[%s4002 + $0xd8] sm:$0xff]
        %v4031 = vld [vmem:[%s4002 + $0xe0] sm:$0xff]
        %v4032 = vld [vmem:[%s4002 + $0xe8] sm:$0xff]
        %v4033 = vld [vmem:[%s4002 + $0xf0] sm:$0xff]
        %v4034 = vld [vmem:[%s4002 + $0xf8] sm:$0xff]
        %v4035 = vld [vmem:[%s4002 + $0x100] sm:$0xff]
        %v4036 = vld [vmem:[%s4002 + $0x108] sm:$0xff]
        %v4037 = vld [vmem:[%s4002 + $0x110] sm:$0xff]
        %v4038 = vld [vmem:[%s4002 + $0x118] sm:$0xff]
        %v4039 = vld [vmem:[%s4002 + $0x120] sm:$0xff]
        %v4040 = vld [vmem:[%s4002 + $0x128] sm:$0xff]
        %v4041 = vld [vmem:[%s4002 + $0x130] sm:$0xff]
        %v4042 = vld [vmem:[%s4002 + $0x138] sm:$0xff]
        %v4043 = vld [vmem:[%s4002 + $0x140] sm:$0xff]
        %v4044 = vld [vmem:[%s4002 + $0x148] sm:$0xff]
        %v4045 = vld [vmem:[%s4002 + $0x150] sm:$0xff]
        %v4046 = vld [vmem:[%s4002 + $0x158] sm:$0xff]
        %v4047 = vld [vmem:[%s4002 + $0x160] sm:$0x33]
        %v4048 = vld [vmem:[%s4002 + $0x168] sm:$0x33]
        %v4050 = vshrl.u32 %v3952, 16
        %v4052 = vshll.u32 %v3952, 16
        %v4054 = vrot.slane %v4052, 1
        %v4055 = vor.u32 %v4050, %v4054
        %v4057 = vshll.u32 %v3954, 16
        %v4059 = vrot.slane %v4057, 1
        %v4060 = vsel %vm649, %v4055, %v4059
        %v4062 = vshrl.u32 %v3953, 16
        %v4064 = vshll.u32 %v3953, 16
        %v4066 = vrot.slane %v4064, 1
        %v4067 = vor.u32 %v4062, %v4066
        %v4069 = vshll.u32 %v3955, 16
        %v4071 = vrot.slane %v4069, 1
        %v4072 = vsel %vm649, %v4067, %v4071
        %v4073 = vshrl.u32 %v3954, 16
        %v4075 = vor.u32 %v4073, %v4059
        %v4076 = vshrl.u32 %v3955, 16
        %v4078 = vor.u32 %v4076, %v4071
        %v4127 = vunpack.c.l.b16 %v4003
        %v4128 = vunpack.c.h.b16 %v4003
        %v4129 = vunpack.c.l.b16 %v4004
        %v4130 = vunpack.c.h.b16 %v4004
        %v4131 = vunpack.c.l.b16 %v4005
        %v4132 = vunpack.c.h.b16 %v4005
        %v4133 = vunpack.c.l.b16 %v4006
        %v4134 = vunpack.c.h.b16 %v4006
        %v4135 = vunpack.c.l.b16 %v4007
        %v4136 = vunpack.c.h.b16 %v4007
        %v4137 = vunpack.c.l.b16 %v4008
        %v4138 = vunpack.c.h.b16 %v4008
        %v4139 = vunpack.c.l.b16 %v4009
        %v4140 = vunpack.c.h.b16 %v4009
        %v4141 = vunpack.c.l.b16 %v4010
        %v4142 = vunpack.c.h.b16 %v4010
        %v4143 = vunpack.c.l.b16 %v4011
        %v4144 = vunpack.c.h.b16 %v4011
        %v4145 = vunpack.c.l.b16 %v4012
        %v4146 = vunpack.c.h.b16 %v4012
        %v4147 = vunpack.c.l.b16 %v4013
        %v4148 = vunpack.c.h.b16 %v4013
        %v4149 = vunpack.c.l.b16 %v4014
        %v4150 = vunpack.c.h.b16 %v4014
        %v4151 = vunpack.c.l.b16 %v4015
        %v4152 = vunpack.c.h.b16 %v4015
        %v4153 = vunpack.c.l.b16 %v4016
        %v4154 = vunpack.c.h.b16 %v4016
        %v4155 = vunpack.c.l.b16 %v4017
        %v4156 = vunpack.c.h.b16 %v4017
        %v4157 = vunpack.c.l.b16 %v4018
        %v4158 = vunpack.c.h.b16 %v4018
        %v4159 = vunpack.c.l.b16 %v4019
        %v4160 = vunpack.c.h.b16 %v4019
        %v4161 = vunpack.c.l.b16 %v4020
        %v4162 = vunpack.c.h.b16 %v4020
        %v4163 = vunpack.c.l.b16 %v4021
        %v4164 = vunpack.c.h.b16 %v4021
        %v4165 = vunpack.c.l.b16 %v4022
        %v4166 = vunpack.c.h.b16 %v4022
        %v4167 = vunpack.c.l.b16 %v4023
        %v4168 = vunpack.c.h.b16 %v4023
        %v4169 = vunpack.c.l.b16 %v4024
        %v4170 = vunpack.c.h.b16 %v4024
        %v4171 = vunpack.c.l.b16 %v4025
        %v4172 = vunpack.c.h.b16 %v4025
        %v4173 = vunpack.c.l.b16 %v4026
        %v4174 = vunpack.c.h.b16 %v4026
        %v4175 = vunpack.c.l.b16 %v4027
        %v4176 = vunpack.c.h.b16 %v4027
        %v4177 = vunpack.c.l.b16 %v4028
        %v4178 = vunpack.c.h.b16 %v4028
        %v4179 = vunpack.c.l.b16 %v4029
        %v4180 = vunpack.c.h.b16 %v4029
        %v4181 = vunpack.c.l.b16 %v4030
        %v4182 = vunpack.c.h.b16 %v4030
        %v4183 = vunpack.c.l.b16 %v4031
        %v4184 = vunpack.c.h.b16 %v4031
        %v4185 = vunpack.c.l.b16 %v4032
        %v4186 = vunpack.c.h.b16 %v4032
        %v4187 = vunpack.c.l.b16 %v4033
        %v4188 = vunpack.c.h.b16 %v4033
        %v4189 = vunpack.c.l.b16 %v4034
        %v4190 = vunpack.c.h.b16 %v4034
        %v4191 = vunpack.c.l.b16 %v4035
        %v4192 = vunpack.c.h.b16 %v4035
        %v4193 = vunpack.c.l.b16 %v4036
        %v4194 = vunpack.c.h.b16 %v4036
        %v4195 = vunpack.c.l.b16 %v4037
        %v4196 = vunpack.c.h.b16 %v4037
        %v4197 = vunpack.c.l.b16 %v4038
        %v4198 = vunpack.c.h.b16 %v4038
        %v4199 = vunpack.c.l.b16 %v4039
        %v4200 = vunpack.c.h.b16 %v4039
        %v4201 = vunpack.c.l.b16 %v4040
        %v4202 = vunpack.c.h.b16 %v4040
        %v4203 = vunpack.c.l.b16 %v4041
        %v4204 = vunpack.c.h.b16 %v4041
        %v4205 = vunpack.c.l.b16 %v4042
        %v4206 = vunpack.c.h.b16 %v4042
        %v4207 = vunpack.c.l.b16 %v4043
        %v4208 = vunpack.c.h.b16 %v4043
        %v4209 = vunpack.c.l.b16 %v4044
        %v4210 = vunpack.c.h.b16 %v4044
        %v4211 = vunpack.c.l.b16 %v4045
        %v4212 = vunpack.c.h.b16 %v4045
        %v4213 = vunpack.c.l.b16 %v4046
        %v4214 = vunpack.c.h.b16 %v4046
        %v4215 = vunpack.c.l.b16 %v4047
        %v4216 = vunpack.c.h.b16 %v4047
        %v4217 = vunpack.c.l.b16 %v4048
        %v4218 = vunpack.c.h.b16 %v4048
        %v4219 = vpack.c.b16 %v4131, %v4127
        %v4220 = vpack.c.b16 %v4132, %v4128
        %v4221 = vpack.c.b16 %v4133, %v4129
        %v4222 = vpack.c.b16 %v4134, %v4130
        %v4223 = vpack.c.b16 %v4139, %v4135
        %v4224 = vpack.c.b16 %v4140, %v4136
        %v4225 = vpack.c.b16 %v4141, %v4137
        %v4226 = vpack.c.b16 %v4142, %v4138
        %v4227 = vpack.c.b16 %v4147, %v4143
        %v4228 = vpack.c.b16 %v4148, %v4144
        %v4229 = vpack.c.b16 %v4149, %v4145
        %v4230 = vpack.c.b16 %v4150, %v4146
        %v4231 = vpack.c.b16 %v4155, %v4151
        %v4232 = vpack.c.b16 %v4156, %v4152
        %v4233 = vpack.c.b16 %v4157, %v4153
        %v4234 = vpack.c.b16 %v4158, %v4154
        %v4235 = vpack.c.b16 %v4163, %v4159
        %v4236 = vpack.c.b16 %v4164, %v4160
        %v4237 = vpack.c.b16 %v4165, %v4161
        %v4238 = vpack.c.b16 %v4166, %v4162
        %v4239 = vpack.c.b16 %v4171, %v4167
        %v4240 = vpack.c.b16 %v4172, %v4168
        %v4241 = vpack.c.b16 %v4173, %v4169
        %v4242 = vpack.c.b16 %v4174, %v4170
        %v4243 = vpack.c.b16 %v4179, %v4175
        %v4244 = vpack.c.b16 %v4180, %v4176
        %v4245 = vpack.c.b16 %v4181, %v4177
        %v4246 = vpack.c.b16 %v4182, %v4178
        %v4247 = vpack.c.b16 %v4187, %v4183
        %v4248 = vpack.c.b16 %v4188, %v4184
        %v4249 = vpack.c.b16 %v4189, %v4185
        %v4250 = vpack.c.b16 %v4190, %v4186
        %v4251 = vpack.c.b16 %v4195, %v4191
        %v4252 = vpack.c.b16 %v4196, %v4192
        %v4253 = vpack.c.b16 %v4197, %v4193
        %v4254 = vpack.c.b16 %v4198, %v4194
        %v4255 = vpack.c.b16 %v4203, %v4199
        %v4256 = vpack.c.b16 %v4204, %v4200
        %v4257 = vpack.c.b16 %v4205, %v4201
        %v4258 = vpack.c.b16 %v4206, %v4202
        %v4259 = vpack.c.b16 %v4211, %v4207
        %v4260 = vpack.c.b16 %v4212, %v4208
        %v4261 = vpack.c.b16 %v4213, %v4209
        %v4262 = vpack.c.b16 %v4214, %v4210
        %v4263 = vpack.c.b16 %v4215, %v4215
        %v4264 = vpack.c.b16 %v4216, %v4216
        %v4265 = vpack.c.b16 %v4217, %v4217
        %v4266 = vpack.c.b16 %v4218, %v4218
        %vm4311 = vcmask 424960
        %v4313 = vsel %vm4311, %v4072, 0
        %v4316 = vsel %vm4311, %v4078, 0
        %vm4318 = vcmask 1041408
        %v4320 = vsel %vm4318, %v4263, 0
        %v4323 = vsel %vm4318, %v4264, 0
        %v4326 = vsel %vm4318, %v4265, 0
        %v4329 = vsel %vm4318, %v4266, 0
        %4331 = vmatpush.bf16.msra.mxu0 %v4247
        %4332 = vmatpush.bf16.msra.mxu0 %v4243
        %4333 = vmatpush.bf16.msra.mxu0 %v4239
        %4334 = vmatpush.bf16.msra.mxu0 %v4235
        %4335 = vmatpush.bf16.msra.mxu0 %v4231
        %4336 = vmatpush.bf16.msra.mxu0 %v4227
        %4337 = vmatpush.bf16.msra.mxu0 %v4223
        %4338 = vmatpush.bf16.msra.mxu0 %v4219
        %4339 = vmatmul.bf16.gmra.mxu0 %v4060
        %v4340 = vpop.f32.mrf.mxu0
        %v4341 = vadd.f32 0.0, %v4340
        %v4342 = vpop.f32.mrf.mxu0
        %v4343 = vadd.f32 0.0, %v4342
        %4344 = vmatmul.bf16.gmra.mxu0 %v4075
        %v4345 = vpop.f32.mrf.mxu0
        %v4346 = vadd.f32 0.0, %v4345
        %v4347 = vpop.f32.mrf.mxu0
        %v4348 = vadd.f32 0.0, %v4347
        %4349 = vdwg.mxu0
        %4350 = vmatpush.bf16.msra.mxu0 0
        %4351 = vmatpush.bf16.msra.mxu0 0
        %4352 = vmatpush.bf16.msra.mxu0 0
        %4353 = vmatpush.bf16.msra.mxu0 0
        %4354 = vmatpush.bf16.msra.mxu0 %v4320
        %4355 = vmatpush.bf16.msra.mxu0 %v4259
        %4356 = vmatpush.bf16.msra.mxu0 %v4255
        %4357 = vmatpush.bf16.msra.mxu0 %v4251
        %4358 = vmatmul.bf16.gmra.mxu0 %v4313
        %v4359 = vpop.f32.mrf.mxu0
        %v4360 = vadd.f32 %v4341, %v4359
        %v4361 = vpop.f32.mrf.mxu0
        %v4362 = vadd.f32 %v4343, %v4361
        %4363 = vmatmul.bf16.gmra.mxu0 %v4316
        %v4364 = vpop.f32.mrf.mxu0
        %v4365 = vadd.f32 %v4346, %v4364
        %v4366 = vpop.f32.mrf.mxu0
        %v4367 = vadd.f32 %v4348, %v4366
        %4368 = vdwg.mxu0
        %4369 = vmatpush.bf16.msra.mxu0 %v4248
        %4370 = vmatpush.bf16.msra.mxu0 %v4244
        %4371 = vmatpush.bf16.msra.mxu0 %v4240
        %4372 = vmatpush.bf16.msra.mxu0 %v4236
        %4373 = vmatpush.bf16.msra.mxu0 %v4232
        %4374 = vmatpush.bf16.msra.mxu0 %v4228
        %4375 = vmatpush.bf16.msra.mxu0 %v4224
        %4376 = vmatpush.bf16.msra.mxu0 %v4220
        %4377 = vmatmul.bf16.gmra.mxu0 %v4060
        %v4378 = vpop.f32.mrf.mxu0
        %v4379 = vadd.f32 0.0, %v4378
        %v4380 = vpop.f32.mrf.mxu0
        %v4381 = vadd.f32 0.0, %v4380
        %4382 = vmatmul.bf16.gmra.mxu0 %v4075
        %v4383 = vpop.f32.mrf.mxu0
        %v4384 = vadd.f32 0.0, %v4383
        %v4385 = vpop.f32.mrf.mxu0
        %v4386 = vadd.f32 0.0, %v4385
        %4387 = vdwg.mxu0
        %4388 = vmatpush.bf16.msra.mxu0 0
        %4389 = vmatpush.bf16.msra.mxu0 0
        %4390 = vmatpush.bf16.msra.mxu0 0
        %4391 = vmatpush.bf16.msra.mxu0 0
        %4392 = vmatpush.bf16.msra.mxu0 %v4323
        %4393 = vmatpush.bf16.msra.mxu0 %v4260
        %4394 = vmatpush.bf16.msra.mxu0 %v4256
        %4395 = vmatpush.bf16.msra.mxu0 %v4252
        %4396 = vmatmul.bf16.gmra.mxu0 %v4313
        %v4397 = vpop.f32.mrf.mxu0
        %v4398 = vadd.f32 %v4379, %v4397
        %v4399 = vpop.f32.mrf.mxu0
        %v4400 = vadd.f32 %v4381, %v4399
        %4401 = vmatmul.bf16.gmra.mxu0 %v4316
        %v4402 = vpop.f32.mrf.mxu0
        %v4403 = vadd.f32 %v4384, %v4402
        %v4404 = vpop.f32.mrf.mxu0
        %v4405 = vadd.f32 %v4386, %v4404
        %4406 = vdwg.mxu0
        %4407 = vmatpush.bf16.msra.mxu0 %v4249
        %4408 = vmatpush.bf16.msra.mxu0 %v4245
        %4409 = vmatpush.bf16.msra.mxu0 %v4241
        %4410 = vmatpush.bf16.msra.mxu0 %v4237
        %4411 = vmatpush.bf16.msra.mxu0 %v4233
        %4412 = vmatpush.bf16.msra.mxu0 %v4229
        %4413 = vmatpush.bf16.msra.mxu0 %v4225
        %4414 = vmatpush.bf16.msra.mxu0 %v4221
        %4415 = vmatmul.bf16.gmra.mxu0 %v4060
        %v4416 = vpop.f32.mrf.mxu0
        %v4417 = vadd.f32 0.0, %v4416
        %v4418 = vpop.f32.mrf.mxu0
        %v4419 = vadd.f32 0.0, %v4418
        %4420 = vmatmul.bf16.gmra.mxu0 %v4075
        %v4421 = vpop.f32.mrf.mxu0
        %v4422 = vadd.f32 0.0, %v4421
        %v4423 = vpop.f32.mrf.mxu0
        %v4424 = vadd.f32 0.0, %v4423
        %4425 = vdwg.mxu0
        %4426 = vmatpush.bf16.msra.mxu0 0
        %4427 = vmatpush.bf16.msra.mxu0 0
        %4428 = vmatpush.bf16.msra.mxu0 0
        %4429 = vmatpush.bf16.msra.mxu0 0
        %4430 = vmatpush.bf16.msra.mxu0 %v4326
        %4431 = vmatpush.bf16.msra.mxu0 %v4261
        %4432 = vmatpush.bf16.msra.mxu0 %v4257
        %4433 = vmatpush.bf16.msra.mxu0 %v4253
        %4434 = vmatmul.bf16.gmra.mxu0 %v4313
        %v4435 = vpop.f32.mrf.mxu0
        %v4436 = vadd.f32 %v4417, %v4435
        %v4437 = vpop.f32.mrf.mxu0
        %v4438 = vadd.f32 %v4419, %v4437
        %4439 = vmatmul.bf16.gmra.mxu0 %v4316
        %v4440 = vpop.f32.mrf.mxu0
        %v4441 = vadd.f32 %v4422, %v4440
        %v4442 = vpop.f32.mrf.mxu0
        %v4443 = vadd.f32 %v4424, %v4442
        %4444 = vdwg.mxu0
        %4445 = vmatpush.bf16.msra.mxu0 %v4250
        %4446 = vmatpush.bf16.msra.mxu0 %v4246
        %4447 = vmatpush.bf16.msra.mxu0 %v4242
        %4448 = vmatpush.bf16.msra.mxu0 %v4238
        %4449 = vmatpush.bf16.msra.mxu0 %v4234
        %4450 = vmatpush.bf16.msra.mxu0 %v4230
        %4451 = vmatpush.bf16.msra.mxu0 %v4226
        %4452 = vmatpush.bf16.msra.mxu0 %v4222
        %4453 = vmatmul.bf16.gmra.mxu0 %v4060
        %v4454 = vpop.f32.mrf.mxu0
        %v4455 = vadd.f32 0.0, %v4454
        %v4456 = vpop.f32.mrf.mxu0
        %v4457 = vadd.f32 0.0, %v4456
        %4458 = vmatmul.bf16.gmra.mxu0 %v4075
        %v4459 = vpop.f32.mrf.mxu0
        %v4460 = vadd.f32 0.0, %v4459
        %v4461 = vpop.f32.mrf.mxu0
        %v4462 = vadd.f32 0.0, %v4461
        %4463 = vdwg.mxu0
        %4464 = vmatpush.bf16.msra.mxu0 0
        %4465 = vmatpush.bf16.msra.mxu0 0
        %4466 = vmatpush.bf16.msra.mxu0 0
        %4467 = vmatpush.bf16.msra.mxu0 0
        %4468 = vmatpush.bf16.msra.mxu0 %v4329
        %4469 = vmatpush.bf16.msra.mxu0 %v4262
        %4470 = vmatpush.bf16.msra.mxu0 %v4258
        %4471 = vmatpush.bf16.msra.mxu0 %v4254
        %4472 = vmatmul.bf16.gmra.mxu0 %v4313
        %v4473 = vpop.f32.mrf.mxu0
        %v4474 = vadd.f32 %v4455, %v4473
        %v4475 = vpop.f32.mrf.mxu0
        %v4476 = vadd.f32 %v4457, %v4475
        %4477 = vmatmul.bf16.gmra.mxu0 %v4316
        %v4478 = vpop.f32.mrf.mxu0
        %v4479 = vadd.f32 %v4460, %v4478
        %v4480 = vpop.f32.mrf.mxu0
        %v4481 = vadd.f32 %v4462, %v4480
        %4482 = vdwg.mxu0
        %v4529 = vunpack.c.l.b16 %v3956
        %v4530 = vunpack.c.h.b16 %v3956
        %v4531 = vunpack.c.l.b16 %v3957
        %v4532 = vunpack.c.h.b16 %v3957
        %v4533 = vunpack.c.l.b16 %v3958
        %v4534 = vunpack.c.h.b16 %v3958
        %v4535 = vunpack.c.l.b16 %v3959
        %v4536 = vunpack.c.h.b16 %v3959
        %v4537 = vunpack.c.l.b16 %v3960
        %v4538 = vunpack.c.h.b16 %v3960
        %v4539 = vunpack.c.l.b16 %v3961
        %v4540 = vunpack.c.h.b16 %v3961
        %v4541 = vunpack.c.l.b16 %v3962
        %v4542 = vunpack.c.h.b16 %v3962
        %v4543 = vunpack.c.l.b16 %v3963
        %v4544 = vunpack.c.h.b16 %v3963
        %v4545 = vunpack.c.l.b16 %v3964
        %v4546 = vunpack.c.h.b16 %v3964
        %v4547 = vunpack.c.l.b16 %v3965
        %v4548 = vunpack.c.h.b16 %v3965
        %v4549 = vunpack.c.l.b16 %v3966
        %v4550 = vunpack.c.h.b16 %v3966
        %v4551 = vunpack.c.l.b16 %v3967
        %v4552 = vunpack.c.h.b16 %v3967
        %v4553 = vunpack.c.l.b16 %v3968
        %v4554 = vunpack.c.h.b16 %v3968
        %v4555 = vunpack.c.l.b16 %v3969
        %v4556 = vunpack.c.h.b16 %v3969
        %v4557 = vunpack.c.l.b16 %v3970
        %v4558 = vunpack.c.h.b16 %v3970
        %v4559 = vunpack.c.l.b16 %v3971
        %v4560 = vunpack.c.h.b16 %v3971
        %v4561 = vunpack.c.l.b16 %v3972
        %v4562 = vunpack.c.h.b16 %v3972
        %v4563 = vunpack.c.l.b16 %v3973
        %v4564 = vunpack.c.h.b16 %v3973
        %v4565 = vunpack.c.l.b16 %v3974
        %v4566 = vunpack.c.h.b16 %v3974
        %v4567 = vunpack.c.l.b16 %v3975
        %v4568 = vunpack.c.h.b16 %v3975
        %v4569 = vunpack.c.l.b16 %v3976
        %v4570 = vunpack.c.h.b16 %v3976
        %v4571 = vunpack.c.l.b16 %v3977
        %v4572 = vunpack.c.h.b16 %v3977
        %v4573 = vunpack.c.l.b16 %v3978
        %v4574 = vunpack.c.h.b16 %v3978
        %v4575 = vunpack.c.l.b16 %v3979
        %v4576 = vunpack.c.h.b16 %v3979
        %v4577 = vunpack.c.l.b16 %v3980
        %v4578 = vunpack.c.h.b16 %v3980
        %v4579 = vunpack.c.l.b16 %v3981
        %v4580 = vunpack.c.h.b16 %v3981
        %v4581 = vunpack.c.l.b16 %v3982
        %v4582 = vunpack.c.h.b16 %v3982
        %v4583 = vunpack.c.l.b16 %v3983
        %v4584 = vunpack.c.h.b16 %v3983
        %v4585 = vunpack.c.l.b16 %v3984
        %v4586 = vunpack.c.h.b16 %v3984
        %v4587 = vunpack.c.l.b16 %v3985
        %v4588 = vunpack.c.h.b16 %v3985
        %v4589 = vunpack.c.l.b16 %v3986
        %v4590 = vunpack.c.h.b16 %v3986
        %v4591 = vunpack.c.l.b16 %v3987
        %v4592 = vunpack.c.h.b16 %v3987
        %v4593 = vunpack.c.l.b16 %v3988
        %v4594 = vunpack.c.h.b16 %v3988
        %v4595 = vunpack.c.l.b16 %v3989
        %v4596 = vunpack.c.h.b16 %v3989
        %v4597 = vunpack.c.l.b16 %v3990
        %v4598 = vunpack.c.h.b16 %v3990
        %v4599 = vunpack.c.l.b16 %v3991
        %v4600 = vunpack.c.h.b16 %v3991
        %v4601 = vunpack.c.l.b16 %v3992
        %v4602 = vunpack.c.h.b16 %v3992
        %v4603 = vunpack.c.l.b16 %v3993
        %v4604 = vunpack.c.h.b16 %v3993
        %v4605 = vunpack.c.l.b16 %v3994
        %v4606 = vunpack.c.h.b16 %v3994
        %v4607 = vunpack.c.l.b16 %v3995
        %v4608 = vunpack.c.h.b16 %v3995
        %v4609 = vunpack.c.l.b16 %v3996
        %v4610 = vunpack.c.h.b16 %v3996
        %v4611 = vunpack.c.l.b16 %v3997
        %v4612 = vunpack.c.h.b16 %v3997
        %v4613 = vunpack.c.l.b16 %v3998
        %v4614 = vunpack.c.h.b16 %v3998
        %v4615 = vunpack.c.l.b16 %v3999
        %v4616 = vunpack.c.h.b16 %v3999
        %v4617 = vunpack.c.l.b16 %v4000
        %v4618 = vunpack.c.h.b16 %v4000
        %v4619 = vunpack.c.l.b16 %v4001
        %v4620 = vunpack.c.h.b16 %v4001
        %v4621 = vpack.c.b16 %v4533, %v4529
        %v4622 = vpack.c.b16 %v4534, %v4530
        %v4623 = vpack.c.b16 %v4535, %v4531
        %v4624 = vpack.c.b16 %v4536, %v4532
        %v4625 = vpack.c.b16 %v4541, %v4537
        %v4626 = vpack.c.b16 %v4542, %v4538
        %v4627 = vpack.c.b16 %v4543, %v4539
        %v4628 = vpack.c.b16 %v4544, %v4540
        %v4629 = vpack.c.b16 %v4549, %v4545
        %v4630 = vpack.c.b16 %v4550, %v4546
        %v4631 = vpack.c.b16 %v4551, %v4547
        %v4632 = vpack.c.b16 %v4552, %v4548
        %v4633 = vpack.c.b16 %v4557, %v4553
        %v4634 = vpack.c.b16 %v4558, %v4554
        %v4635 = vpack.c.b16 %v4559, %v4555
        %v4636 = vpack.c.b16 %v4560, %v4556
        %v4637 = vpack.c.b16 %v4565, %v4561
        %v4638 = vpack.c.b16 %v4566, %v4562
        %v4639 = vpack.c.b16 %v4567, %v4563
        %v4640 = vpack.c.b16 %v4568, %v4564
        %v4641 = vpack.c.b16 %v4573, %v4569
        %v4642 = vpack.c.b16 %v4574, %v4570
        %v4643 = vpack.c.b16 %v4575, %v4571
        %v4644 = vpack.c.b16 %v4576, %v4572
        %v4645 = vpack.c.b16 %v4581, %v4577
        %v4646 = vpack.c.b16 %v4582, %v4578
        %v4647 = vpack.c.b16 %v4583, %v4579
        %v4648 = vpack.c.b16 %v4584, %v4580
        %v4649 = vpack.c.b16 %v4589, %v4585
        %v4650 = vpack.c.b16 %v4590, %v4586
        %v4651 = vpack.c.b16 %v4591, %v4587
        %v4652 = vpack.c.b16 %v4592, %v4588
        %v4653 = vpack.c.b16 %v4597, %v4593
        %v4654 = vpack.c.b16 %v4598, %v4594
        %v4655 = vpack.c.b16 %v4599, %v4595
        %v4656 = vpack.c.b16 %v4600, %v4596
        %v4657 = vpack.c.b16 %v4605, %v4601
        %v4658 = vpack.c.b16 %v4606, %v4602
        %v4659 = vpack.c.b16 %v4607, %v4603
        %v4660 = vpack.c.b16 %v4608, %v4604
        %v4661 = vpack.c.b16 %v4613, %v4609
        %v4662 = vpack.c.b16 %v4614, %v4610
        %v4663 = vpack.c.b16 %v4615, %v4611
        %v4664 = vpack.c.b16 %v4616, %v4612
        %v4665 = vpack.c.b16 %v4617, %v4617
        %v4666 = vpack.c.b16 %v4618, %v4618
        %v4667 = vpack.c.b16 %v4619, %v4619
        %v4668 = vpack.c.b16 %v4620, %v4620
        %v4713 = vsel %vm4311, %v3953, 0
        %v4715 = vsel %vm4311, %v3955, 0
        %v4718 = vsel %vm4318, %v4665, 0
        %v4721 = vsel %vm4318, %v4666, 0
        %v4724 = vsel %vm4318, %v4667, 0
        %v4727 = vsel %vm4318, %v4668, 0
        %4729 = vmatpush.bf16.msra.mxu0 %v4649
        %4730 = vmatpush.bf16.msra.mxu0 %v4645
        %4731 = vmatpush.bf16.msra.mxu0 %v4641
        %4732 = vmatpush.bf16.msra.mxu0 %v4637
        %4733 = vmatpush.bf16.msra.mxu0 %v4633
        %4734 = vmatpush.bf16.msra.mxu0 %v4629
        %4735 = vmatpush.bf16.msra.mxu0 %v4625
        %4736 = vmatpush.bf16.msra.mxu0 %v4621
        %4737 = vmatmul.bf16.gmra.mxu0 %v3952
        %v4738 = vpop.f32.mrf.mxu0
        %v4739 = vadd.f32 %v4360, %v4738
        %v4740 = vpop.f32.mrf.mxu0
        %v4741 = vadd.f32 %v4362, %v4740
        %4742 = vmatmul.bf16.gmra.mxu0 %v3954
        %v4743 = vpop.f32.mrf.mxu0
        %v4744 = vadd.f32 %v4365, %v4743
        %v4745 = vpop.f32.mrf.mxu0
        %v4746 = vadd.f32 %v4367, %v4745
        %4747 = vdwg.mxu0
        %4748 = vmatpush.bf16.msra.mxu0 0
        %4749 = vmatpush.bf16.msra.mxu0 0
        %4750 = vmatpush.bf16.msra.mxu0 0
        %4751 = vmatpush.bf16.msra.mxu0 0
        %4752 = vmatpush.bf16.msra.mxu0 %v4718
        %4753 = vmatpush.bf16.msra.mxu0 %v4661
        %4754 = vmatpush.bf16.msra.mxu0 %v4657
        %4755 = vmatpush.bf16.msra.mxu0 %v4653
        %4756 = vmatmul.bf16.gmra.mxu0 %v4713
        %v4757 = vpop.f32.mrf.mxu0
        %v4758 = vadd.f32 %v4739, %v4757
        %v4759 = vpop.f32.mrf.mxu0
        %v4760 = vadd.f32 %v4741, %v4759
        %4761 = vmatmul.bf16.gmra.mxu0 %v4715
        %v4762 = vpop.f32.mrf.mxu0
        %v4763 = vadd.f32 %v4744, %v4762
        %v4764 = vpop.f32.mrf.mxu0
        %v4765 = vadd.f32 %v4746, %v4764
        %4766 = vdwg.mxu0
        %4767 = vmatpush.bf16.msra.mxu0 %v4650
        %4768 = vmatpush.bf16.msra.mxu0 %v4646
        %4769 = vmatpush.bf16.msra.mxu0 %v4642
        %4770 = vmatpush.bf16.msra.mxu0 %v4638
        %4771 = vmatpush.bf16.msra.mxu0 %v4634
        %4772 = vmatpush.bf16.msra.mxu0 %v4630
        %4773 = vmatpush.bf16.msra.mxu0 %v4626
        %4774 = vmatpush.bf16.msra.mxu0 %v4622
        %4775 = vmatmul.bf16.gmra.mxu0 %v3952
        %v4776 = vpop.f32.mrf.mxu0
        %v4777 = vadd.f32 %v4398, %v4776
        %v4778 = vpop.f32.mrf.mxu0
        %v4779 = vadd.f32 %v4400, %v4778
        %4780 = vmatmul.bf16.gmra.mxu0 %v3954
        %v4781 = vpop.f32.mrf.mxu0
        %v4782 = vadd.f32 %v4403, %v4781
        %v4783 = vpop.f32.mrf.mxu0
        %v4784 = vadd.f32 %v4405, %v4783
        %4785 = vdwg.mxu0
        %4786 = vmatpush.bf16.msra.mxu0 0
        %4787 = vmatpush.bf16.msra.mxu0 0
        %4788 = vmatpush.bf16.msra.mxu0 0
        %4789 = vmatpush.bf16.msra.mxu0 0
        %4790 = vmatpush.bf16.msra.mxu0 %v4721
        %4791 = vmatpush.bf16.msra.mxu0 %v4662
        %4792 = vmatpush.bf16.msra.mxu0 %v4658
        %4793 = vmatpush.bf16.msra.mxu0 %v4654
        %4794 = vmatmul.bf16.gmra.mxu0 %v4713
        %v4795 = vpop.f32.mrf.mxu0
        %v4796 = vadd.f32 %v4777, %v4795
        %v4797 = vpop.f32.mrf.mxu0
        %v4798 = vadd.f32 %v4779, %v4797
        %4799 = vmatmul.bf16.gmra.mxu0 %v4715
        %v4800 = vpop.f32.mrf.mxu0
        %v4801 = vadd.f32 %v4782, %v4800
        %v4802 = vpop.f32.mrf.mxu0
        %v4803 = vadd.f32 %v4784, %v4802
        %4804 = vdwg.mxu0
        %4805 = vmatpush.bf16.msra.mxu0 %v4651
        %4806 = vmatpush.bf16.msra.mxu0 %v4647
        %4807 = vmatpush.bf16.msra.mxu0 %v4643
        %4808 = vmatpush.bf16.msra.mxu0 %v4639
        %4809 = vmatpush.bf16.msra.mxu0 %v4635
        %4810 = vmatpush.bf16.msra.mxu0 %v4631
        %4811 = vmatpush.bf16.msra.mxu0 %v4627
        %4812 = vmatpush.bf16.msra.mxu0 %v4623
        %4813 = vmatmul.bf16.gmra.mxu0 %v3952
        %v4814 = vpop.f32.mrf.mxu0
        %v4815 = vadd.f32 %v4436, %v4814
        %v4816 = vpop.f32.mrf.mxu0
        %v4817 = vadd.f32 %v4438, %v4816
        %4818 = vmatmul.bf16.gmra.mxu0 %v3954
        %v4819 = vpop.f32.mrf.mxu0
        %v4820 = vadd.f32 %v4441, %v4819
        %v4821 = vpop.f32.mrf.mxu0
        %v4822 = vadd.f32 %v4443, %v4821
        %4823 = vdwg.mxu0
        %4824 = vmatpush.bf16.msra.mxu0 0
        %4825 = vmatpush.bf16.msra.mxu0 0
        %4826 = vmatpush.bf16.msra.mxu0 0
        %4827 = vmatpush.bf16.msra.mxu0 0
        %4828 = vmatpush.bf16.msra.mxu0 %v4724
        %4829 = vmatpush.bf16.msra.mxu0 %v4663
        %4830 = vmatpush.bf16.msra.mxu0 %v4659
        %4831 = vmatpush.bf16.msra.mxu0 %v4655
        %4832 = vmatmul.bf16.gmra.mxu0 %v4713
        %v4833 = vpop.f32.mrf.mxu0
        %v4834 = vadd.f32 %v4815, %v4833
        %v4835 = vpop.f32.mrf.mxu0
        %v4836 = vadd.f32 %v4817, %v4835
        %4837 = vmatmul.bf16.gmra.mxu0 %v4715
        %v4838 = vpop.f32.mrf.mxu0
        %v4839 = vadd.f32 %v4820, %v4838
        %v4840 = vpop.f32.mrf.mxu0
        %v4841 = vadd.f32 %v4822, %v4840
        %4842 = vdwg.mxu0
        %4843 = vmatpush.bf16.msra.mxu0 %v4652
        %4844 = vmatpush.bf16.msra.mxu0 %v4648
        %4845 = vmatpush.bf16.msra.mxu0 %v4644
        %4846 = vmatpush.bf16.msra.mxu0 %v4640
        %4847 = vmatpush.bf16.msra.mxu0 %v4636
        %4848 = vmatpush.bf16.msra.mxu0 %v4632
        %4849 = vmatpush.bf16.msra.mxu0 %v4628
        %4850 = vmatpush.bf16.msra.mxu0 %v4624
        %4851 = vmatmul.bf16.gmra.mxu0 %v3952
        %v4852 = vpop.f32.mrf.mxu0
        %v4853 = vadd.f32 %v4474, %v4852
        %v4854 = vpop.f32.mrf.mxu0
        %v4855 = vadd.f32 %v4476, %v4854
        %4856 = vmatmul.bf16.gmra.mxu0 %v3954
        %v4857 = vpop.f32.mrf.mxu0
        %v4858 = vadd.f32 %v4479, %v4857
        %v4859 = vpop.f32.mrf.mxu0
        %v4860 = vadd.f32 %v4481, %v4859
        %4861 = vdwg.mxu0
        %4862 = vmatpush.bf16.msra.mxu0 0
        %4863 = vmatpush.bf16.msra.mxu0 0
        %4864 = vmatpush.bf16.msra.mxu0 0
        %4865 = vmatpush.bf16.msra.mxu0 0
        %4866 = vmatpush.bf16.msra.mxu0 %v4727
        %4867 = vmatpush.bf16.msra.mxu0 %v4664
        %4868 = vmatpush.bf16.msra.mxu0 %v4660
        %4869 = vmatpush.bf16.msra.mxu0 %v4656
        %4870 = vmatmul.bf16.gmra.mxu0 %v4713
        %v4871 = vpop.f32.mrf.mxu0
        %v4872 = vadd.f32 %v4853, %v4871
        %v4873 = vpop.f32.mrf.mxu0
        %v4874 = vadd.f32 %v4855, %v4873
        %4875 = vmatmul.bf16.gmra.mxu0 %v4715
        %v4876 = vpop.f32.mrf.mxu0
        %v4877 = vadd.f32 %v4858, %v4876
        %v4878 = vpop.f32.mrf.mxu0
        %v4879 = vadd.f32 %v4860, %v4878
        %4880 = vdwg.mxu0
        %s4881 = scalar_lea.vmem %s5, 736
        %v4882 = vld [vmem:[%s4881] sm:$0xff]
        %v4883 = vld [vmem:[%s4881 + $0x8] sm:$0xff]
        %v4884 = vld [vmem:[%s4881 + $0x10] sm:$0xff]
        %v4885 = vld [vmem:[%s4881 + $0x18] sm:$0xff]
        %v4886 = vld [vmem:[%s4881 + $0x20] sm:$0xff]
        %v4887 = vld [vmem:[%s4881 + $0x28] sm:$0xff]
        %v4888 = vld [vmem:[%s4881 + $0x30] sm:$0xff]
        %v4889 = vld [vmem:[%s4881 + $0x38] sm:$0xff]
        %v4890 = vld [vmem:[%s4881 + $0x40] sm:$0xff]
        %v4891 = vld [vmem:[%s4881 + $0x48] sm:$0xff]
        %v4892 = vld [vmem:[%s4881 + $0x50] sm:$0xff]
        %v4893 = vld [vmem:[%s4881 + $0x58] sm:$0xff]
        %v4894 = vld [vmem:[%s4881 + $0x60] sm:$0xff]
        %v4895 = vld [vmem:[%s4881 + $0x68] sm:$0xff]
        %v4896 = vld [vmem:[%s4881 + $0x70] sm:$0xff]
        %v4897 = vld [vmem:[%s4881 + $0x78] sm:$0xff]
        %v4898 = vld [vmem:[%s4881 + $0x80] sm:$0xff]
        %v4899 = vld [vmem:[%s4881 + $0x88] sm:$0xff]
        %v4900 = vld [vmem:[%s4881 + $0x90] sm:$0xff]
        %v4901 = vld [vmem:[%s4881 + $0x98] sm:$0xff]
        %v4902 = vld [vmem:[%s4881 + $0xa0] sm:$0xff]
        %v4903 = vld [vmem:[%s4881 + $0xa8] sm:$0xff]
        %v4904 = vld [vmem:[%s4881 + $0xb0] sm:$0xff]
        %v4905 = vld [vmem:[%s4881 + $0xb8] sm:$0xff]
        %v4906 = vld [vmem:[%s4881 + $0xc0] sm:$0xff]
        %v4907 = vld [vmem:[%s4881 + $0xc8] sm:$0xff]
        %v4908 = vld [vmem:[%s4881 + $0xd0] sm:$0xff]
        %v4909 = vld [vmem:[%s4881 + $0xd8] sm:$0xff]
        %v4910 = vld [vmem:[%s4881 + $0xe0] sm:$0xff]
        %v4911 = vld [vmem:[%s4881 + $0xe8] sm:$0xff]
        %v4912 = vld [vmem:[%s4881 + $0xf0] sm:$0xff]
        %v4913 = vld [vmem:[%s4881 + $0xf8] sm:$0xff]
        %v4914 = vld [vmem:[%s4881 + $0x100] sm:$0xff]
        %v4915 = vld [vmem:[%s4881 + $0x108] sm:$0xff]
        %v4916 = vld [vmem:[%s4881 + $0x110] sm:$0xff]
        %v4917 = vld [vmem:[%s4881 + $0x118] sm:$0xff]
        %v4918 = vld [vmem:[%s4881 + $0x120] sm:$0xff]
        %v4919 = vld [vmem:[%s4881 + $0x128] sm:$0xff]
        %v4920 = vld [vmem:[%s4881 + $0x130] sm:$0xff]
        %v4921 = vld [vmem:[%s4881 + $0x138] sm:$0xff]
        %v4922 = vld [vmem:[%s4881 + $0x140] sm:$0xff]
        %v4923 = vld [vmem:[%s4881 + $0x148] sm:$0xff]
        %v4924 = vld [vmem:[%s4881 + $0x150] sm:$0xff]
        %v4925 = vld [vmem:[%s4881 + $0x158] sm:$0xff]
        %v4926 = vld [vmem:[%s4881 + $0x160] sm:$0x33]
        %v4927 = vld [vmem:[%s4881 + $0x168] sm:$0x33]
        %v4932 = vrot.slane %v3952, 1
        %v4933 = vrot.slane %v3954, 1
        %v4934 = vsel %vm1526, %v4932, %v4933
        %v4935 = vrot.slane %v3953, 1
        %v4936 = vrot.slane %v3955, 1
        %v4937 = vsel %vm1526, %v4935, %v4936
        %v4986 = vunpack.c.l.b16 %v4882
        %v4987 = vunpack.c.h.b16 %v4882
        %v4988 = vunpack.c.l.b16 %v4883
        %v4989 = vunpack.c.h.b16 %v4883
        %v4990 = vunpack.c.l.b16 %v4884
        %v4991 = vunpack.c.h.b16 %v4884
        %v4992 = vunpack.c.l.b16 %v4885
        %v4993 = vunpack.c.h.b16 %v4885
        %v4994 = vunpack.c.l.b16 %v4886
        %v4995 = vunpack.c.h.b16 %v4886
        %v4996 = vunpack.c.l.b16 %v4887
        %v4997 = vunpack.c.h.b16 %v4887
        %v4998 = vunpack.c.l.b16 %v4888
        %v4999 = vunpack.c.h.b16 %v4888
        %v5000 = vunpack.c.l.b16 %v4889
        %v5001 = vunpack.c.h.b16 %v4889
        %v5002 = vunpack.c.l.b16 %v4890
        %v5003 = vunpack.c.h.b16 %v4890
        %v5004 = vunpack.c.l.b16 %v4891
        %v5005 = vunpack.c.h.b16 %v4891
        %v5006 = vunpack.c.l.b16 %v4892
        %v5007 = vunpack.c.h.b16 %v4892
        %v5008 = vunpack.c.l.b16 %v4893
        %v5009 = vunpack.c.h.b16 %v4893
        %v5010 = vunpack.c.l.b16 %v4894
        %v5011 = vunpack.c.h.b16 %v4894
        %v5012 = vunpack.c.l.b16 %v4895
        %v5013 = vunpack.c.h.b16 %v4895
        %v5014 = vunpack.c.l.b16 %v4896
        %v5015 = vunpack.c.h.b16 %v4896
        %v5016 = vunpack.c.l.b16 %v4897
        %v5017 = vunpack.c.h.b16 %v4897
        %v5018 = vunpack.c.l.b16 %v4898
        %v5019 = vunpack.c.h.b16 %v4898
        %v5020 = vunpack.c.l.b16 %v4899
        %v5021 = vunpack.c.h.b16 %v4899
        %v5022 = vunpack.c.l.b16 %v4900
        %v5023 = vunpack.c.h.b16 %v4900
        %v5024 = vunpack.c.l.b16 %v4901
        %v5025 = vunpack.c.h.b16 %v4901
        %v5026 = vunpack.c.l.b16 %v4902
        %v5027 = vunpack.c.h.b16 %v4902
        %v5028 = vunpack.c.l.b16 %v4903
        %v5029 = vunpack.c.h.b16 %v4903
        %v5030 = vunpack.c.l.b16 %v4904
        %v5031 = vunpack.c.h.b16 %v4904
        %v5032 = vunpack.c.l.b16 %v4905
        %v5033 = vunpack.c.h.b16 %v4905
        %v5034 = vunpack.c.l.b16 %v4906
        %v5035 = vunpack.c.h.b16 %v4906
        %v5036 = vunpack.c.l.b16 %v4907
        %v5037 = vunpack.c.h.b16 %v4907
        %v5038 = vunpack.c.l.b16 %v4908
        %v5039 = vunpack.c.h.b16 %v4908
        %v5040 = vunpack.c.l.b16 %v4909
        %v5041 = vunpack.c.h.b16 %v4909
        %v5042 = vunpack.c.l.b16 %v4910
        %v5043 = vunpack.c.h.b16 %v4910
        %v5044 = vunpack.c.l.b16 %v4911
        %v5045 = vunpack.c.h.b16 %v4911
        %v5046 = vunpack.c.l.b16 %v4912
        %v5047 = vunpack.c.h.b16 %v4912
        %v5048 = vunpack.c.l.b16 %v4913
        %v5049 = vunpack.c.h.b16 %v4913
        %v5050 = vunpack.c.l.b16 %v4914
        %v5051 = vunpack.c.h.b16 %v4914
        %v5052 = vunpack.c.l.b16 %v4915
        %v5053 = vunpack.c.h.b16 %v4915
        %v5054 = vunpack.c.l.b16 %v4916
        %v5055 = vunpack.c.h.b16 %v4916
        %v5056 = vunpack.c.l.b16 %v4917
        %v5057 = vunpack.c.h.b16 %v4917
        %v5058 = vunpack.c.l.b16 %v4918
        %v5059 = vunpack.c.h.b16 %v4918
        %v5060 = vunpack.c.l.b16 %v4919
        %v5061 = vunpack.c.h.b16 %v4919
        %v5062 = vunpack.c.l.b16 %v4920
        %v5063 = vunpack.c.h.b16 %v4920
        %v5064 = vunpack.c.l.b16 %v4921
        %v5065 = vunpack.c.h.b16 %v4921
        %v5066 = vunpack.c.l.b16 %v4922
        %v5067 = vunpack.c.h.b16 %v4922
        %v5068 = vunpack.c.l.b16 %v4923
        %v5069 = vunpack.c.h.b16 %v4923
        %v5070 = vunpack.c.l.b16 %v4924
        %v5071 = vunpack.c.h.b16 %v4924
        %v5072 = vunpack.c.l.b16 %v4925
        %v5073 = vunpack.c.h.b16 %v4925
        %v5074 = vunpack.c.l.b16 %v4926
        %v5075 = vunpack.c.h.b16 %v4926
        %v5076 = vunpack.c.l.b16 %v4927
        %v5077 = vunpack.c.h.b16 %v4927
        %v5078 = vpack.c.b16 %v4990, %v4986
        %v5079 = vpack.c.b16 %v4991, %v4987
        %v5080 = vpack.c.b16 %v4992, %v4988
        %v5081 = vpack.c.b16 %v4993, %v4989
        %v5082 = vpack.c.b16 %v4998, %v4994
        %v5083 = vpack.c.b16 %v4999, %v4995
        %v5084 = vpack.c.b16 %v5000, %v4996
        %v5085 = vpack.c.b16 %v5001, %v4997
        %v5086 = vpack.c.b16 %v5006, %v5002
        %v5087 = vpack.c.b16 %v5007, %v5003
        %v5088 = vpack.c.b16 %v5008, %v5004
        %v5089 = vpack.c.b16 %v5009, %v5005
        %v5090 = vpack.c.b16 %v5014, %v5010
        %v5091 = vpack.c.b16 %v5015, %v5011
        %v5092 = vpack.c.b16 %v5016, %v5012
        %v5093 = vpack.c.b16 %v5017, %v5013
        %v5094 = vpack.c.b16 %v5022, %v5018
        %v5095 = vpack.c.b16 %v5023, %v5019
        %v5096 = vpack.c.b16 %v5024, %v5020
        %v5097 = vpack.c.b16 %v5025, %v5021
        %v5098 = vpack.c.b16 %v5030, %v5026
        %v5099 = vpack.c.b16 %v5031, %v5027
        %v5100 = vpack.c.b16 %v5032, %v5028
        %v5101 = vpack.c.b16 %v5033, %v5029
        %v5102 = vpack.c.b16 %v5038, %v5034
        %v5103 = vpack.c.b16 %v5039, %v5035
        %v5104 = vpack.c.b16 %v5040, %v5036
        %v5105 = vpack.c.b16 %v5041, %v5037
        %v5106 = vpack.c.b16 %v5046, %v5042
        %v5107 = vpack.c.b16 %v5047, %v5043
        %v5108 = vpack.c.b16 %v5048, %v5044
        %v5109 = vpack.c.b16 %v5049, %v5045
        %v5110 = vpack.c.b16 %v5054, %v5050
        %v5111 = vpack.c.b16 %v5055, %v5051
        %v5112 = vpack.c.b16 %v5056, %v5052
        %v5113 = vpack.c.b16 %v5057, %v5053
        %v5114 = vpack.c.b16 %v5062, %v5058
        %v5115 = vpack.c.b16 %v5063, %v5059
        %v5116 = vpack.c.b16 %v5064, %v5060
        %v5117 = vpack.c.b16 %v5065, %v5061
        %v5118 = vpack.c.b16 %v5070, %v5066
        %v5119 = vpack.c.b16 %v5071, %v5067
        %v5120 = vpack.c.b16 %v5072, %v5068
        %v5121 = vpack.c.b16 %v5073, %v5069
        %v5122 = vpack.c.b16 %v5074, %v5074
        %v5123 = vpack.c.b16 %v5075, %v5075
        %v5124 = vpack.c.b16 %v5076, %v5076
        %v5125 = vpack.c.b16 %v5077, %v5077
        %v5171 = vsel %vm4311, %v4937, 0
        %v5174 = vsel %vm4311, %v4936, 0
        %v5177 = vsel %vm4318, %v5122, 0
        %v5180 = vsel %vm4318, %v5123, 0
        %v5183 = vsel %vm4318, %v5124, 0
        %v5186 = vsel %vm4318, %v5125, 0
        %5188 = vmatpush.bf16.msra.mxu0 %v5106
        %5189 = vmatpush.bf16.msra.mxu0 %v5102
        %5190 = vmatpush.bf16.msra.mxu0 %v5098
        %5191 = vmatpush.bf16.msra.mxu0 %v5094
        %5192 = vmatpush.bf16.msra.mxu0 %v5090
        %5193 = vmatpush.bf16.msra.mxu0 %v5086
        %5194 = vmatpush.bf16.msra.mxu0 %v5082
        %5195 = vmatpush.bf16.msra.mxu0 %v5078
        %5196 = vmatmul.bf16.gmra.mxu0 %v4934
        %v5197 = vpop.f32.mrf.mxu0
        %v5198 = vadd.f32 0.0, %v5197
        %v5199 = vpop.f32.mrf.mxu0
        %v5200 = vadd.f32 0.0, %v5199
        %5201 = vmatmul.bf16.gmra.mxu0 %v4933
        %v5202 = vpop.f32.mrf.mxu0
        %v5203 = vadd.f32 0.0, %v5202
        %v5204 = vpop.f32.mrf.mxu0
        %v5205 = vadd.f32 0.0, %v5204
        %5206 = vdwg.mxu0
        %5207 = vmatpush.bf16.msra.mxu0 0
        %5208 = vmatpush.bf16.msra.mxu0 0
        %5209 = vmatpush.bf16.msra.mxu0 0
        %5210 = vmatpush.bf16.msra.mxu0 0
        %5211 = vmatpush.bf16.msra.mxu0 %v5177
        %5212 = vmatpush.bf16.msra.mxu0 %v5118
        %5213 = vmatpush.bf16.msra.mxu0 %v5114
        %5214 = vmatpush.bf16.msra.mxu0 %v5110
        %5215 = vmatmul.bf16.gmra.mxu0 %v5171
        %v5216 = vpop.f32.mrf.mxu0
        %v5217 = vadd.f32 %v5198, %v5216
        %v5218 = vpop.f32.mrf.mxu0
        %v5219 = vadd.f32 %v5200, %v5218
        %5220 = vmatmul.bf16.gmra.mxu0 %v5174
        %v5221 = vpop.f32.mrf.mxu0
        %v5222 = vadd.f32 %v5203, %v5221
        %v5223 = vpop.f32.mrf.mxu0
        %v5224 = vadd.f32 %v5205, %v5223
        %5225 = vdwg.mxu0
        %5226 = vmatpush.bf16.msra.mxu0 %v5107
        %5227 = vmatpush.bf16.msra.mxu0 %v5103
        %5228 = vmatpush.bf16.msra.mxu0 %v5099
        %5229 = vmatpush.bf16.msra.mxu0 %v5095
        %5230 = vmatpush.bf16.msra.mxu0 %v5091
        %5231 = vmatpush.bf16.msra.mxu0 %v5087
        %5232 = vmatpush.bf16.msra.mxu0 %v5083
        %5233 = vmatpush.bf16.msra.mxu0 %v5079
        %5234 = vmatmul.bf16.gmra.mxu0 %v4934
        %v5235 = vpop.f32.mrf.mxu0
        %v5236 = vadd.f32 0.0, %v5235
        %v5237 = vpop.f32.mrf.mxu0
        %v5238 = vadd.f32 0.0, %v5237
        %5239 = vmatmul.bf16.gmra.mxu0 %v4933
        %v5240 = vpop.f32.mrf.mxu0
        %v5241 = vadd.f32 0.0, %v5240
        %v5242 = vpop.f32.mrf.mxu0
        %v5243 = vadd.f32 0.0, %v5242
        %5244 = vdwg.mxu0
        %5245 = vmatpush.bf16.msra.mxu0 0
        %5246 = vmatpush.bf16.msra.mxu0 0
        %5247 = vmatpush.bf16.msra.mxu0 0
        %5248 = vmatpush.bf16.msra.mxu0 0
        %5249 = vmatpush.bf16.msra.mxu0 %v5180
        %5250 = vmatpush.bf16.msra.mxu0 %v5119
        %5251 = vmatpush.bf16.msra.mxu0 %v5115
        %5252 = vmatpush.bf16.msra.mxu0 %v5111
        %5253 = vmatmul.bf16.gmra.mxu0 %v5171
        %v5254 = vpop.f32.mrf.mxu0
        %v5255 = vadd.f32 %v5236, %v5254
        %v5256 = vpop.f32.mrf.mxu0
        %v5257 = vadd.f32 %v5238, %v5256
        %5258 = vmatmul.bf16.gmra.mxu0 %v5174
        %v5259 = vpop.f32.mrf.mxu0
        %v5260 = vadd.f32 %v5241, %v5259
        %v5261 = vpop.f32.mrf.mxu0
        %v5262 = vadd.f32 %v5243, %v5261
        %5263 = vdwg.mxu0
        %5264 = vmatpush.bf16.msra.mxu0 %v5108
        %5265 = vmatpush.bf16.msra.mxu0 %v5104
        %5266 = vmatpush.bf16.msra.mxu0 %v5100
        %5267 = vmatpush.bf16.msra.mxu0 %v5096
        %5268 = vmatpush.bf16.msra.mxu0 %v5092
        %5269 = vmatpush.bf16.msra.mxu0 %v5088
        %5270 = vmatpush.bf16.msra.mxu0 %v5084
        %5271 = vmatpush.bf16.msra.mxu0 %v5080
        %5272 = vmatmul.bf16.gmra.mxu0 %v4934
        %v5273 = vpop.f32.mrf.mxu0
        %v5274 = vadd.f32 0.0, %v5273
        %v5275 = vpop.f32.mrf.mxu0
        %v5276 = vadd.f32 0.0, %v5275
        %5277 = vmatmul.bf16.gmra.mxu0 %v4933
        %v5278 = vpop.f32.mrf.mxu0
        %v5279 = vadd.f32 0.0, %v5278
        %v5280 = vpop.f32.mrf.mxu0
        %v5281 = vadd.f32 0.0, %v5280
        %5282 = vdwg.mxu0
        %5283 = vmatpush.bf16.msra.mxu0 0
        %5284 = vmatpush.bf16.msra.mxu0 0
        %5285 = vmatpush.bf16.msra.mxu0 0
        %5286 = vmatpush.bf16.msra.mxu0 0
        %5287 = vmatpush.bf16.msra.mxu0 %v5183
        %5288 = vmatpush.bf16.msra.mxu0 %v5120
        %5289 = vmatpush.bf16.msra.mxu0 %v5116
        %5290 = vmatpush.bf16.msra.mxu0 %v5112
        %5291 = vmatmul.bf16.gmra.mxu0 %v5171
        %v5292 = vpop.f32.mrf.mxu0
        %v5293 = vadd.f32 %v5274, %v5292
        %v5294 = vpop.f32.mrf.mxu0
        %v5295 = vadd.f32 %v5276, %v5294
        %5296 = vmatmul.bf16.gmra.mxu0 %v5174
        %v5297 = vpop.f32.mrf.mxu0
        %v5298 = vadd.f32 %v5279, %v5297
        %v5299 = vpop.f32.mrf.mxu0
        %v5300 = vadd.f32 %v5281, %v5299
        %5301 = vdwg.mxu0
        %5302 = vmatpush.bf16.msra.mxu0 %v5109
        %5303 = vmatpush.bf16.msra.mxu0 %v5105
        %5304 = vmatpush.bf16.msra.mxu0 %v5101
        %5305 = vmatpush.bf16.msra.mxu0 %v5097
        %5306 = vmatpush.bf16.msra.mxu0 %v5093
        %5307 = vmatpush.bf16.msra.mxu0 %v5089
        %5308 = vmatpush.bf16.msra.mxu0 %v5085
        %5309 = vmatpush.bf16.msra.mxu0 %v5081
        %5310 = vmatmul.bf16.gmra.mxu0 %v4934
        %v5311 = vpop.f32.mrf.mxu0
        %v5312 = vadd.f32 0.0, %v5311
        %v5313 = vpop.f32.mrf.mxu0
        %v5314 = vadd.f32 0.0, %v5313
        %5315 = vmatmul.bf16.gmra.mxu0 %v4933
        %v5316 = vpop.f32.mrf.mxu0
        %v5317 = vadd.f32 0.0, %v5316
        %v5318 = vpop.f32.mrf.mxu0
        %v5319 = vadd.f32 0.0, %v5318
        %5320 = vdwg.mxu0
        %5321 = vmatpush.bf16.msra.mxu0 0
        %5322 = vmatpush.bf16.msra.mxu0 0
        %5323 = vmatpush.bf16.msra.mxu0 0
        %5324 = vmatpush.bf16.msra.mxu0 0
        %5325 = vmatpush.bf16.msra.mxu0 %v5186
        %5326 = vmatpush.bf16.msra.mxu0 %v5121
        %5327 = vmatpush.bf16.msra.mxu0 %v5117
        %5328 = vmatpush.bf16.msra.mxu0 %v5113
        %5329 = vmatmul.bf16.gmra.mxu0 %v5171
        %v5330 = vpop.f32.mrf.mxu0
        %v5331 = vadd.f32 %v5312, %v5330
        %v5332 = vpop.f32.mrf.mxu0
        %v5333 = vadd.f32 %v5314, %v5332
        %5334 = vmatmul.bf16.gmra.mxu0 %v5174
        %v5335 = vpop.f32.mrf.mxu0
        %v5336 = vadd.f32 %v5317, %v5335
        %v5337 = vpop.f32.mrf.mxu0
        %v5338 = vadd.f32 %v5319, %v5337
        %5339 = vdwg.mxu0
        %v5340 = vadd.f32 %v4758, %v5217
        %v5341 = vadd.f32 %v4796, %v5255
        %v5342 = vadd.f32 %v4834, %v5293
        %v5343 = vadd.f32 %v4872, %v5331
        %v5344 = vadd.f32 %v4760, %v5219
        %v5345 = vadd.f32 %v4798, %v5257
        %v5346 = vadd.f32 %v4836, %v5295
        %v5347 = vadd.f32 %v4874, %v5333
        %v5348 = vadd.f32 %v4763, %v5222
        %v5349 = vadd.f32 %v4801, %v5260
        %v5350 = vadd.f32 %v4839, %v5298
        %v5351 = vadd.f32 %v4877, %v5336
        %v5352 = vadd.f32 %v4765, %v5224
        %v5353 = vadd.f32 %v4803, %v5262
        %v5354 = vadd.f32 %v4841, %v5300
        %v5355 = vadd.f32 %v4879, %v5338
        %s5356 = scalar_lea.vmem %s5, 1104
        %v5357 = vld [vmem:[%s5356] sm:$0xff]
        %v5358 = vld [vmem:[%s5356 + $0x8] sm:$0xff]
        %v5359 = vld [vmem:[%s5356 + $0x10] sm:$0xff]
        %v5360 = vld [vmem:[%s5356 + $0x18] sm:$0xff]
        %v5361 = vld [vmem:[%s5356 + $0x20] sm:$0xff]
        %v5362 = vld [vmem:[%s5356 + $0x28] sm:$0xff]
        %v5363 = vld [vmem:[%s5356 + $0x30] sm:$0xff]
        %v5364 = vld [vmem:[%s5356 + $0x38] sm:$0xff]
        %v5365 = vld [vmem:[%s5356 + $0x40] sm:$0xff]
        %v5366 = vld [vmem:[%s5356 + $0x48] sm:$0xff]
        %v5367 = vld [vmem:[%s5356 + $0x50] sm:$0xff]
        %v5368 = vld [vmem:[%s5356 + $0x58] sm:$0xff]
        %v5369 = vld [vmem:[%s5356 + $0x60] sm:$0xff]
        %v5370 = vld [vmem:[%s5356 + $0x68] sm:$0xff]
        %v5371 = vld [vmem:[%s5356 + $0x70] sm:$0xff]
        %v5372 = vld [vmem:[%s5356 + $0x78] sm:$0xff]
        %v5373 = vld [vmem:[%s5356 + $0x80] sm:$0xff]
        %v5374 = vld [vmem:[%s5356 + $0x88] sm:$0xff]
        %v5375 = vld [vmem:[%s5356 + $0x90] sm:$0xff]
        %v5376 = vld [vmem:[%s5356 + $0x98] sm:$0xff]
        %v5377 = vld [vmem:[%s5356 + $0xa0] sm:$0xff]
        %v5378 = vld [vmem:[%s5356 + $0xa8] sm:$0xff]
        %v5379 = vld [vmem:[%s5356 + $0xb0] sm:$0xff]
        %v5380 = vld [vmem:[%s5356 + $0xb8] sm:$0xff]
        %v5381 = vld [vmem:[%s5356 + $0xc0] sm:$0xff]
        %v5382 = vld [vmem:[%s5356 + $0xc8] sm:$0xff]
        %v5383 = vld [vmem:[%s5356 + $0xd0] sm:$0xff]
        %v5384 = vld [vmem:[%s5356 + $0xd8] sm:$0xff]
        %v5385 = vld [vmem:[%s5356 + $0xe0] sm:$0xff]
        %v5386 = vld [vmem:[%s5356 + $0xe8] sm:$0xff]
        %v5387 = vld [vmem:[%s5356 + $0xf0] sm:$0xff]
        %v5388 = vld [vmem:[%s5356 + $0xf8] sm:$0xff]
        %v5389 = vld [vmem:[%s5356 + $0x100] sm:$0xff]
        %v5390 = vld [vmem:[%s5356 + $0x108] sm:$0xff]
        %v5391 = vld [vmem:[%s5356 + $0x110] sm:$0xff]
        %v5392 = vld [vmem:[%s5356 + $0x118] sm:$0xff]
        %v5393 = vld [vmem:[%s5356 + $0x120] sm:$0xff]
        %v5394 = vld [vmem:[%s5356 + $0x128] sm:$0xff]
        %v5395 = vld [vmem:[%s5356 + $0x130] sm:$0xff]
        %v5396 = vld [vmem:[%s5356 + $0x138] sm:$0xff]
        %v5397 = vld [vmem:[%s5356 + $0x140] sm:$0xff]
        %v5398 = vld [vmem:[%s5356 + $0x148] sm:$0xff]
        %v5399 = vld [vmem:[%s5356 + $0x150] sm:$0xff]
        %v5400 = vld [vmem:[%s5356 + $0x158] sm:$0xff]
        %v5401 = vld [vmem:[%s5356 + $0x160] sm:$0x33]
        %v5402 = vld [vmem:[%s5356 + $0x168] sm:$0x33]
        %v5403 = vrot.slane %v4050, 1
        %v5404 = vrot.slane %v4052, 2
        %v5405 = vor.u32 %v5403, %v5404
        %v5406 = vrot.slane %v4073, 1
        %v5407 = vrot.slane %v4057, 2
        %v5408 = vor.u32 %v5406, %v5407
        %v5409 = vsel %vm1996, %v5405, %v5408
        %v5410 = vrot.slane %v4062, 1
        %v5411 = vrot.slane %v4064, 2
        %v5412 = vor.u32 %v5410, %v5411
        %v5413 = vrot.slane %v4076, 1
        %v5414 = vrot.slane %v4069, 2
        %v5415 = vor.u32 %v5413, %v5414
        %v5416 = vsel %vm1996, %v5412, %v5415
        %v5465 = vunpack.c.l.b16 %v5357
        %v5466 = vunpack.c.h.b16 %v5357
        %v5467 = vunpack.c.l.b16 %v5358
        %v5468 = vunpack.c.h.b16 %v5358
        %v5469 = vunpack.c.l.b16 %v5359
        %v5470 = vunpack.c.h.b16 %v5359
        %v5471 = vunpack.c.l.b16 %v5360
        %v5472 = vunpack.c.h.b16 %v5360
        %v5473 = vunpack.c.l.b16 %v5361
        %v5474 = vunpack.c.h.b16 %v5361
        %v5475 = vunpack.c.l.b16 %v5362
        %v5476 = vunpack.c.h.b16 %v5362
        %v5477 = vunpack.c.l.b16 %v5363
        %v5478 = vunpack.c.h.b16 %v5363
        %v5479 = vunpack.c.l.b16 %v5364
        %v5480 = vunpack.c.h.b16 %v5364
        %v5481 = vunpack.c.l.b16 %v5365
        %v5482 = vunpack.c.h.b16 %v5365
        %v5483 = vunpack.c.l.b16 %v5366
        %v5484 = vunpack.c.h.b16 %v5366
        %v5485 = vunpack.c.l.b16 %v5367
        %v5486 = vunpack.c.h.b16 %v5367
        %v5487 = vunpack.c.l.b16 %v5368
        %v5488 = vunpack.c.h.b16 %v5368
        %v5489 = vunpack.c.l.b16 %v5369
        %v5490 = vunpack.c.h.b16 %v5369
        %v5491 = vunpack.c.l.b16 %v5370
        %v5492 = vunpack.c.h.b16 %v5370
        %v5493 = vunpack.c.l.b16 %v5371
        %v5494 = vunpack.c.h.b16 %v5371
        %v5495 = vunpack.c.l.b16 %v5372
        %v5496 = vunpack.c.h.b16 %v5372
        %v5497 = vunpack.c.l.b16 %v5373
        %v5498 = vunpack.c.h.b16 %v5373
        %v5499 = vunpack.c.l.b16 %v5374
        %v5500 = vunpack.c.h.b16 %v5374
        %v5501 = vunpack.c.l.b16 %v5375
        %v5502 = vunpack.c.h.b16 %v5375
        %v5503 = vunpack.c.l.b16 %v5376
        %v5504 = vunpack.c.h.b16 %v5376
        %v5505 = vunpack.c.l.b16 %v5377
        %v5506 = vunpack.c.h.b16 %v5377
        %v5507 = vunpack.c.l.b16 %v5378
        %v5508 = vunpack.c.h.b16 %v5378
        %v5509 = vunpack.c.l.b16 %v5379
        %v5510 = vunpack.c.h.b16 %v5379
        %v5511 = vunpack.c.l.b16 %v5380
        %v5512 = vunpack.c.h.b16 %v5380
        %v5513 = vunpack.c.l.b16 %v5381
        %v5514 = vunpack.c.h.b16 %v5381
        %v5515 = vunpack.c.l.b16 %v5382
        %v5516 = vunpack.c.h.b16 %v5382
        %v5517 = vunpack.c.l.b16 %v5383
        %v5518 = vunpack.c.h.b16 %v5383
        %v5519 = vunpack.c.l.b16 %v5384
        %v5520 = vunpack.c.h.b16 %v5384
        %v5521 = vunpack.c.l.b16 %v5385
        %v5522 = vunpack.c.h.b16 %v5385
        %v5523 = vunpack.c.l.b16 %v5386
        %v5524 = vunpack.c.h.b16 %v5386
        %v5525 = vunpack.c.l.b16 %v5387
        %v5526 = vunpack.c.h.b16 %v5387
        %v5527 = vunpack.c.l.b16 %v5388
        %v5528 = vunpack.c.h.b16 %v5388
        %v5529 = vunpack.c.l.b16 %v5389
        %v5530 = vunpack.c.h.b16 %v5389
        %v5531 = vunpack.c.l.b16 %v5390
        %v5532 = vunpack.c.h.b16 %v5390
        %v5533 = vunpack.c.l.b16 %v5391
        %v5534 = vunpack.c.h.b16 %v5391
        %v5535 = vunpack.c.l.b16 %v5392
        %v5536 = vunpack.c.h.b16 %v5392
        %v5537 = vunpack.c.l.b16 %v5393
        %v5538 = vunpack.c.h.b16 %v5393
        %v5539 = vunpack.c.l.b16 %v5394
        %v5540 = vunpack.c.h.b16 %v5394
        %v5541 = vunpack.c.l.b16 %v5395
        %v5542 = vunpack.c.h.b16 %v5395
        %v5543 = vunpack.c.l.b16 %v5396
        %v5544 = vunpack.c.h.b16 %v5396
        %v5545 = vunpack.c.l.b16 %v5397
        %v5546 = vunpack.c.h.b16 %v5397
        %v5547 = vunpack.c.l.b16 %v5398
        %v5548 = vunpack.c.h.b16 %v5398
        %v5549 = vunpack.c.l.b16 %v5399
        %v5550 = vunpack.c.h.b16 %v5399
        %v5551 = vunpack.c.l.b16 %v5400
        %v5552 = vunpack.c.h.b16 %v5400
        %v5553 = vunpack.c.l.b16 %v5401
        %v5554 = vunpack.c.h.b16 %v5401
        %v5555 = vunpack.c.l.b16 %v5402
        %v5556 = vunpack.c.h.b16 %v5402
        %v5557 = vpack.c.b16 %v5469, %v5465
        %v5558 = vpack.c.b16 %v5470, %v5466
        %v5559 = vpack.c.b16 %v5471, %v5467
        %v5560 = vpack.c.b16 %v5472, %v5468
        %v5561 = vpack.c.b16 %v5477, %v5473
        %v5562 = vpack.c.b16 %v5478, %v5474
        %v5563 = vpack.c.b16 %v5479, %v5475
        %v5564 = vpack.c.b16 %v5480, %v5476
        %v5565 = vpack.c.b16 %v5485, %v5481
        %v5566 = vpack.c.b16 %v5486, %v5482
        %v5567 = vpack.c.b16 %v5487, %v5483
        %v5568 = vpack.c.b16 %v5488, %v5484
        %v5569 = vpack.c.b16 %v5493, %v5489
        %v5570 = vpack.c.b16 %v5494, %v5490
        %v5571 = vpack.c.b16 %v5495, %v5491
        %v5572 = vpack.c.b16 %v5496, %v5492
        %v5573 = vpack.c.b16 %v5501, %v5497
        %v5574 = vpack.c.b16 %v5502, %v5498
        %v5575 = vpack.c.b16 %v5503, %v5499
        %v5576 = vpack.c.b16 %v5504, %v5500
        %v5577 = vpack.c.b16 %v5509, %v5505
        %v5578 = vpack.c.b16 %v5510, %v5506
        %v5579 = vpack.c.b16 %v5511, %v5507
        %v5580 = vpack.c.b16 %v5512, %v5508
        %v5581 = vpack.c.b16 %v5517, %v5513
        %v5582 = vpack.c.b16 %v5518, %v5514
        %v5583 = vpack.c.b16 %v5519, %v5515
        %v5584 = vpack.c.b16 %v5520, %v5516
        %v5585 = vpack.c.b16 %v5525, %v5521
        %v5586 = vpack.c.b16 %v5526, %v5522
        %v5587 = vpack.c.b16 %v5527, %v5523
        %v5588 = vpack.c.b16 %v5528, %v5524
        %v5589 = vpack.c.b16 %v5533, %v5529
        %v5590 = vpack.c.b16 %v5534, %v5530
        %v5591 = vpack.c.b16 %v5535, %v5531
        %v5592 = vpack.c.b16 %v5536, %v5532
        %v5593 = vpack.c.b16 %v5541, %v5537
        %v5594 = vpack.c.b16 %v5542, %v5538
        %v5595 = vpack.c.b16 %v5543, %v5539
        %v5596 = vpack.c.b16 %v5544, %v5540
        %v5597 = vpack.c.b16 %v5549, %v5545
        %v5598 = vpack.c.b16 %v5550, %v5546
        %v5599 = vpack.c.b16 %v5551, %v5547
        %v5600 = vpack.c.b16 %v5552, %v5548
        %v5601 = vpack.c.b16 %v5553, %v5553
        %v5602 = vpack.c.b16 %v5554, %v5554
        %v5603 = vpack.c.b16 %v5555, %v5555
        %v5604 = vpack.c.b16 %v5556, %v5556
        %v5650 = vsel %vm4311, %v5416, 0
        %v5653 = vsel %vm4311, %v5415, 0
        %v5656 = vsel %vm4318, %v5601, 0
        %v5659 = vsel %vm4318, %v5602, 0
        %v5662 = vsel %vm4318, %v5603, 0
        %v5665 = vsel %vm4318, %v5604, 0
        %5667 = vmatpush.bf16.msra.mxu0 %v5585
        %5668 = vmatpush.bf16.msra.mxu0 %v5581
        %5669 = vmatpush.bf16.msra.mxu0 %v5577
        %5670 = vmatpush.bf16.msra.mxu0 %v5573
        %5671 = vmatpush.bf16.msra.mxu0 %v5569
        %5672 = vmatpush.bf16.msra.mxu0 %v5565
        %5673 = vmatpush.bf16.msra.mxu0 %v5561
        %5674 = vmatpush.bf16.msra.mxu0 %v5557
        %5675 = vmatmul.bf16.gmra.mxu0 %v5409
        %v5676 = vpop.f32.mrf.mxu0
        %v5677 = vadd.f32 0.0, %v5676
        %v5678 = vpop.f32.mrf.mxu0
        %v5679 = vadd.f32 0.0, %v5678
        %5680 = vmatmul.bf16.gmra.mxu0 %v5408
        %v5681 = vpop.f32.mrf.mxu0
        %v5682 = vadd.f32 0.0, %v5681
        %v5683 = vpop.f32.mrf.mxu0
        %v5684 = vadd.f32 0.0, %v5683
        %5685 = vdwg.mxu0
        %5686 = vmatpush.bf16.msra.mxu0 0
        %5687 = vmatpush.bf16.msra.mxu0 0
        %5688 = vmatpush.bf16.msra.mxu0 0
        %5689 = vmatpush.bf16.msra.mxu0 0
        %5690 = vmatpush.bf16.msra.mxu0 %v5656
        %5691 = vmatpush.bf16.msra.mxu0 %v5597
        %5692 = vmatpush.bf16.msra.mxu0 %v5593
        %5693 = vmatpush.bf16.msra.mxu0 %v5589
        %5694 = vmatmul.bf16.gmra.mxu0 %v5650
        %v5695 = vpop.f32.mrf.mxu0
        %v5696 = vadd.f32 %v5677, %v5695
        %v5697 = vpop.f32.mrf.mxu0
        %v5698 = vadd.f32 %v5679, %v5697
        %5699 = vmatmul.bf16.gmra.mxu0 %v5653
        %v5700 = vpop.f32.mrf.mxu0
        %v5701 = vadd.f32 %v5682, %v5700
        %v5702 = vpop.f32.mrf.mxu0
        %v5703 = vadd.f32 %v5684, %v5702
        %5704 = vdwg.mxu0
        %5705 = vmatpush.bf16.msra.mxu0 %v5586
        %5706 = vmatpush.bf16.msra.mxu0 %v5582
        %5707 = vmatpush.bf16.msra.mxu0 %v5578
        %5708 = vmatpush.bf16.msra.mxu0 %v5574
        %5709 = vmatpush.bf16.msra.mxu0 %v5570
        %5710 = vmatpush.bf16.msra.mxu0 %v5566
        %5711 = vmatpush.bf16.msra.mxu0 %v5562
        %5712 = vmatpush.bf16.msra.mxu0 %v5558
        %5713 = vmatmul.bf16.gmra.mxu0 %v5409
        %v5714 = vpop.f32.mrf.mxu0
        %v5715 = vadd.f32 0.0, %v5714
        %v5716 = vpop.f32.mrf.mxu0
        %v5717 = vadd.f32 0.0, %v5716
        %5718 = vmatmul.bf16.gmra.mxu0 %v5408
        %v5719 = vpop.f32.mrf.mxu0
        %v5720 = vadd.f32 0.0, %v5719
        %v5721 = vpop.f32.mrf.mxu0
        %v5722 = vadd.f32 0.0, %v5721
        %5723 = vdwg.mxu0
        %5724 = vmatpush.bf16.msra.mxu0 0
        %5725 = vmatpush.bf16.msra.mxu0 0
        %5726 = vmatpush.bf16.msra.mxu0 0
        %5727 = vmatpush.bf16.msra.mxu0 0
        %5728 = vmatpush.bf16.msra.mxu0 %v5659
        %5729 = vmatpush.bf16.msra.mxu0 %v5598
        %5730 = vmatpush.bf16.msra.mxu0 %v5594
        %5731 = vmatpush.bf16.msra.mxu0 %v5590
        %5732 = vmatmul.bf16.gmra.mxu0 %v5650
        %v5733 = vpop.f32.mrf.mxu0
        %v5734 = vadd.f32 %v5715, %v5733
        %v5735 = vpop.f32.mrf.mxu0
        %v5736 = vadd.f32 %v5717, %v5735
        %5737 = vmatmul.bf16.gmra.mxu0 %v5653
        %v5738 = vpop.f32.mrf.mxu0
        %v5739 = vadd.f32 %v5720, %v5738
        %v5740 = vpop.f32.mrf.mxu0
        %v5741 = vadd.f32 %v5722, %v5740
        %5742 = vdwg.mxu0
        %5743 = vmatpush.bf16.msra.mxu0 %v5587
        %5744 = vmatpush.bf16.msra.mxu0 %v5583
        %5745 = vmatpush.bf16.msra.mxu0 %v5579
        %5746 = vmatpush.bf16.msra.mxu0 %v5575
        %5747 = vmatpush.bf16.msra.mxu0 %v5571
        %5748 = vmatpush.bf16.msra.mxu0 %v5567
        %5749 = vmatpush.bf16.msra.mxu0 %v5563
        %5750 = vmatpush.bf16.msra.mxu0 %v5559
        %5751 = vmatmul.bf16.gmra.mxu0 %v5409
        %v5752 = vpop.f32.mrf.mxu0
        %v5753 = vadd.f32 0.0, %v5752
        %v5754 = vpop.f32.mrf.mxu0
        %v5755 = vadd.f32 0.0, %v5754
        %5756 = vmatmul.bf16.gmra.mxu0 %v5408
        %v5757 = vpop.f32.mrf.mxu0
        %v5758 = vadd.f32 0.0, %v5757
        %v5759 = vpop.f32.mrf.mxu0
        %v5760 = vadd.f32 0.0, %v5759
        %5761 = vdwg.mxu0
        %5762 = vmatpush.bf16.msra.mxu0 0
        %5763 = vmatpush.bf16.msra.mxu0 0
        %5764 = vmatpush.bf16.msra.mxu0 0
        %5765 = vmatpush.bf16.msra.mxu0 0
        %5766 = vmatpush.bf16.msra.mxu0 %v5662
        %5767 = vmatpush.bf16.msra.mxu0 %v5599
        %5768 = vmatpush.bf16.msra.mxu0 %v5595
        %5769 = vmatpush.bf16.msra.mxu0 %v5591
        %5770 = vmatmul.bf16.gmra.mxu0 %v5650
        %v5771 = vpop.f32.mrf.mxu0
        %v5772 = vadd.f32 %v5753, %v5771
        %v5773 = vpop.f32.mrf.mxu0
        %v5774 = vadd.f32 %v5755, %v5773
        %5775 = vmatmul.bf16.gmra.mxu0 %v5653
        %v5776 = vpop.f32.mrf.mxu0
        %v5777 = vadd.f32 %v5758, %v5776
        %v5778 = vpop.f32.mrf.mxu0
        %v5779 = vadd.f32 %v5760, %v5778
        %5780 = vdwg.mxu0
        %5781 = vmatpush.bf16.msra.mxu0 %v5588
        %5782 = vmatpush.bf16.msra.mxu0 %v5584
        %5783 = vmatpush.bf16.msra.mxu0 %v5580
        %5784 = vmatpush.bf16.msra.mxu0 %v5576
        %5785 = vmatpush.bf16.msra.mxu0 %v5572
        %5786 = vmatpush.bf16.msra.mxu0 %v5568
        %5787 = vmatpush.bf16.msra.mxu0 %v5564
        %5788 = vmatpush.bf16.msra.mxu0 %v5560
        %5789 = vmatmul.bf16.gmra.mxu0 %v5409
        %v5790 = vpop.f32.mrf.mxu0
        %v5791 = vadd.f32 0.0, %v5790
        %v5792 = vpop.f32.mrf.mxu0
        %v5793 = vadd.f32 0.0, %v5792
        %5794 = vmatmul.bf16.gmra.mxu0 %v5408
        %v5795 = vpop.f32.mrf.mxu0
        %v5796 = vadd.f32 0.0, %v5795
        %v5797 = vpop.f32.mrf.mxu0
        %v5798 = vadd.f32 0.0, %v5797
        %5799 = vdwg.mxu0
        %5800 = vmatpush.bf16.msra.mxu0 0
        %5801 = vmatpush.bf16.msra.mxu0 0
        %5802 = vmatpush.bf16.msra.mxu0 0
        %5803 = vmatpush.bf16.msra.mxu0 0
        %5804 = vmatpush.bf16.msra.mxu0 %v5665
        %5805 = vmatpush.bf16.msra.mxu0 %v5600
        %5806 = vmatpush.bf16.msra.mxu0 %v5596
        %5807 = vmatpush.bf16.msra.mxu0 %v5592
        %5808 = vmatmul.bf16.gmra.mxu0 %v5650
        %v5809 = vpop.f32.mrf.mxu0
        %v5810 = vadd.f32 %v5791, %v5809
        %v5811 = vpop.f32.mrf.mxu0
        %v5812 = vadd.f32 %v5793, %v5811
        %5813 = vmatmul.bf16.gmra.mxu0 %v5653
        %v5814 = vpop.f32.mrf.mxu0
        %v5815 = vadd.f32 %v5796, %v5814
        %v5816 = vpop.f32.mrf.mxu0
        %v5817 = vadd.f32 %v5798, %v5816
        %5818 = vdwg.mxu0
        %v5819 = vadd.f32 %v5340, %v5696
        %v5820 = vadd.f32 %v5341, %v5734
        %v5821 = vadd.f32 %v5342, %v5772
        %v5822 = vadd.f32 %v5343, %v5810
        %v5823 = vadd.f32 %v5344, %v5698
        %v5824 = vadd.f32 %v5345, %v5736
        %v5825 = vadd.f32 %v5346, %v5774
        %v5826 = vadd.f32 %v5347, %v5812
        %v5827 = vadd.f32 %v5348, %v5701
        %v5828 = vadd.f32 %v5349, %v5739
        %v5829 = vadd.f32 %v5350, %v5777
        %v5830 = vadd.f32 %v5351, %v5815
        %v5831 = vadd.f32 %v5352, %v5703
        %v5832 = vadd.f32 %v5353, %v5741
        %v5833 = vadd.f32 %v5354, %v5779
        %v5834 = vadd.f32 %v5355, %v5817
        %s5835 = scalar_lea.vmem %s5, 1472
        %v5836 = vld [vmem:[%s5835] sm:$0xff]
        %v5837 = vld [vmem:[%s5835 + $0x8] sm:$0xff]
        %v5838 = vld [vmem:[%s5835 + $0x10] sm:$0xff]
        %v5839 = vld [vmem:[%s5835 + $0x18] sm:$0xff]
        %v5840 = vld [vmem:[%s5835 + $0x20] sm:$0xff]
        %v5841 = vld [vmem:[%s5835 + $0x28] sm:$0xff]
        %v5842 = vld [vmem:[%s5835 + $0x30] sm:$0xff]
        %v5843 = vld [vmem:[%s5835 + $0x38] sm:$0xff]
        %v5844 = vld [vmem:[%s5835 + $0x40] sm:$0xff]
        %v5845 = vld [vmem:[%s5835 + $0x48] sm:$0xff]
        %v5846 = vld [vmem:[%s5835 + $0x50] sm:$0xff]
        %v5847 = vld [vmem:[%s5835 + $0x58] sm:$0xff]
        %v5848 = vld [vmem:[%s5835 + $0x60] sm:$0xff]
        %v5849 = vld [vmem:[%s5835 + $0x68] sm:$0xff]
        %v5850 = vld [vmem:[%s5835 + $0x70] sm:$0xff]
        %v5851 = vld [vmem:[%s5835 + $0x78] sm:$0xff]
        %v5852 = vld [vmem:[%s5835 + $0x80] sm:$0xff]
        %v5853 = vld [vmem:[%s5835 + $0x88] sm:$0xff]
        %v5854 = vld [vmem:[%s5835 + $0x90] sm:$0xff]
        %v5855 = vld [vmem:[%s5835 + $0x98] sm:$0xff]
        %v5856 = vld [vmem:[%s5835 + $0xa0] sm:$0xff]
        %v5857 = vld [vmem:[%s5835 + $0xa8] sm:$0xff]
        %v5858 = vld [vmem:[%s5835 + $0xb0] sm:$0xff]
        %v5859 = vld [vmem:[%s5835 + $0xb8] sm:$0xff]
        %v5860 = vld [vmem:[%s5835 + $0xc0] sm:$0xff]
        %v5861 = vld [vmem:[%s5835 + $0xc8] sm:$0xff]
        %v5862 = vld [vmem:[%s5835 + $0xd0] sm:$0xff]
        %v5863 = vld [vmem:[%s5835 + $0xd8] sm:$0xff]
        %v5864 = vld [vmem:[%s5835 + $0xe0] sm:$0xff]
        %v5865 = vld [vmem:[%s5835 + $0xe8] sm:$0xff]
        %v5866 = vld [vmem:[%s5835 + $0xf0] sm:$0xff]
        %v5867 = vld [vmem:[%s5835 + $0xf8] sm:$0xff]
        %v5868 = vld [vmem:[%s5835 + $0x100] sm:$0xff]
        %v5869 = vld [vmem:[%s5835 + $0x108] sm:$0xff]
        %v5870 = vld [vmem:[%s5835 + $0x110] sm:$0xff]
        %v5871 = vld [vmem:[%s5835 + $0x118] sm:$0xff]
        %v5872 = vld [vmem:[%s5835 + $0x120] sm:$0xff]
        %v5873 = vld [vmem:[%s5835 + $0x128] sm:$0xff]
        %v5874 = vld [vmem:[%s5835 + $0x130] sm:$0xff]
        %v5875 = vld [vmem:[%s5835 + $0x138] sm:$0xff]
        %v5876 = vld [vmem:[%s5835 + $0x140] sm:$0xff]
        %v5877 = vld [vmem:[%s5835 + $0x148] sm:$0xff]
        %v5878 = vld [vmem:[%s5835 + $0x150] sm:$0xff]
        %v5879 = vld [vmem:[%s5835 + $0x158] sm:$0xff]
        %v5880 = vld [vmem:[%s5835 + $0x160] sm:$0x33]
        %v5881 = vld [vmem:[%s5835 + $0x168] sm:$0x33]
        %v5882 = vrot.slane %v3952, 2
        %v5883 = vrot.slane %v3954, 2
        %v5884 = vsel %vm2482, %v5882, %v5883
        %v5885 = vrot.slane %v3953, 2
        %v5886 = vrot.slane %v3955, 2
        %v5887 = vsel %vm2482, %v5885, %v5886
        %v5936 = vunpack.c.l.b16 %v5836
        %v5937 = vunpack.c.h.b16 %v5836
        %v5938 = vunpack.c.l.b16 %v5837
        %v5939 = vunpack.c.h.b16 %v5837
        %v5940 = vunpack.c.l.b16 %v5838
        %v5941 = vunpack.c.h.b16 %v5838
        %v5942 = vunpack.c.l.b16 %v5839
        %v5943 = vunpack.c.h.b16 %v5839
        %v5944 = vunpack.c.l.b16 %v5840
        %v5945 = vunpack.c.h.b16 %v5840
        %v5946 = vunpack.c.l.b16 %v5841
        %v5947 = vunpack.c.h.b16 %v5841
        %v5948 = vunpack.c.l.b16 %v5842
        %v5949 = vunpack.c.h.b16 %v5842
        %v5950 = vunpack.c.l.b16 %v5843
        %v5951 = vunpack.c.h.b16 %v5843
        %v5952 = vunpack.c.l.b16 %v5844
        %v5953 = vunpack.c.h.b16 %v5844
        %v5954 = vunpack.c.l.b16 %v5845
        %v5955 = vunpack.c.h.b16 %v5845
        %v5956 = vunpack.c.l.b16 %v5846
        %v5957 = vunpack.c.h.b16 %v5846
        %v5958 = vunpack.c.l.b16 %v5847
        %v5959 = vunpack.c.h.b16 %v5847
        %v5960 = vunpack.c.l.b16 %v5848
        %v5961 = vunpack.c.h.b16 %v5848
        %v5962 = vunpack.c.l.b16 %v5849
        %v5963 = vunpack.c.h.b16 %v5849
        %v5964 = vunpack.c.l.b16 %v5850
        %v5965 = vunpack.c.h.b16 %v5850
        %v5966 = vunpack.c.l.b16 %v5851
        %v5967 = vunpack.c.h.b16 %v5851
        %v5968 = vunpack.c.l.b16 %v5852
        %v5969 = vunpack.c.h.b16 %v5852
        %v5970 = vunpack.c.l.b16 %v5853
        %v5971 = vunpack.c.h.b16 %v5853
        %v5972 = vunpack.c.l.b16 %v5854
        %v5973 = vunpack.c.h.b16 %v5854
        %v5974 = vunpack.c.l.b16 %v5855
        %v5975 = vunpack.c.h.b16 %v5855
        %v5976 = vunpack.c.l.b16 %v5856
        %v5977 = vunpack.c.h.b16 %v5856
        %v5978 = vunpack.c.l.b16 %v5857
        %v5979 = vunpack.c.h.b16 %v5857
        %v5980 = vunpack.c.l.b16 %v5858
        %v5981 = vunpack.c.h.b16 %v5858
        %v5982 = vunpack.c.l.b16 %v5859
        %v5983 = vunpack.c.h.b16 %v5859
        %v5984 = vunpack.c.l.b16 %v5860
        %v5985 = vunpack.c.h.b16 %v5860
        %v5986 = vunpack.c.l.b16 %v5861
        %v5987 = vunpack.c.h.b16 %v5861
        %v5988 = vunpack.c.l.b16 %v5862
        %v5989 = vunpack.c.h.b16 %v5862
        %v5990 = vunpack.c.l.b16 %v5863
        %v5991 = vunpack.c.h.b16 %v5863
        %v5992 = vunpack.c.l.b16 %v5864
        %v5993 = vunpack.c.h.b16 %v5864
        %v5994 = vunpack.c.l.b16 %v5865
        %v5995 = vunpack.c.h.b16 %v5865
        %v5996 = vunpack.c.l.b16 %v5866
        %v5997 = vunpack.c.h.b16 %v5866
        %v5998 = vunpack.c.l.b16 %v5867
        %v5999 = vunpack.c.h.b16 %v5867
        %v6000 = vunpack.c.l.b16 %v5868
        %v6001 = vunpack.c.h.b16 %v5868
        %v6002 = vunpack.c.l.b16 %v5869
        %v6003 = vunpack.c.h.b16 %v5869
        %v6004 = vunpack.c.l.b16 %v5870
        %v6005 = vunpack.c.h.b16 %v5870
        %v6006 = vunpack.c.l.b16 %v5871
        %v6007 = vunpack.c.h.b16 %v5871
        %v6008 = vunpack.c.l.b16 %v5872
        %v6009 = vunpack.c.h.b16 %v5872
        %v6010 = vunpack.c.l.b16 %v5873
        %v6011 = vunpack.c.h.b16 %v5873
        %v6012 = vunpack.c.l.b16 %v5874
        %v6013 = vunpack.c.h.b16 %v5874
        %v6014 = vunpack.c.l.b16 %v5875
        %v6015 = vunpack.c.h.b16 %v5875
        %v6016 = vunpack.c.l.b16 %v5876
        %v6017 = vunpack.c.h.b16 %v5876
        %v6018 = vunpack.c.l.b16 %v5877
        %v6019 = vunpack.c.h.b16 %v5877
        %v6020 = vunpack.c.l.b16 %v5878
        %v6021 = vunpack.c.h.b16 %v5878
        %v6022 = vunpack.c.l.b16 %v5879
        %v6023 = vunpack.c.h.b16 %v5879
        %v6024 = vunpack.c.l.b16 %v5880
        %v6025 = vunpack.c.h.b16 %v5880
        %v6026 = vunpack.c.l.b16 %v5881
        %v6027 = vunpack.c.h.b16 %v5881
        %v6028 = vpack.c.b16 %v5940, %v5936
        %v6029 = vpack.c.b16 %v5941, %v5937
        %v6030 = vpack.c.b16 %v5942, %v5938
        %v6031 = vpack.c.b16 %v5943, %v5939
        %v6032 = vpack.c.b16 %v5948, %v5944
        %v6033 = vpack.c.b16 %v5949, %v5945
        %v6034 = vpack.c.b16 %v5950, %v5946
        %v6035 = vpack.c.b16 %v5951, %v5947
        %v6036 = vpack.c.b16 %v5956, %v5952
        %v6037 = vpack.c.b16 %v5957, %v5953
        %v6038 = vpack.c.b16 %v5958, %v5954
        %v6039 = vpack.c.b16 %v5959, %v5955
        %v6040 = vpack.c.b16 %v5964, %v5960
        %v6041 = vpack.c.b16 %v5965, %v5961
        %v6042 = vpack.c.b16 %v5966, %v5962
        %v6043 = vpack.c.b16 %v5967, %v5963
        %v6044 = vpack.c.b16 %v5972, %v5968
        %v6045 = vpack.c.b16 %v5973, %v5969
        %v6046 = vpack.c.b16 %v5974, %v5970
        %v6047 = vpack.c.b16 %v5975, %v5971
        %v6048 = vpack.c.b16 %v5980, %v5976
        %v6049 = vpack.c.b16 %v5981, %v5977
        %v6050 = vpack.c.b16 %v5982, %v5978
        %v6051 = vpack.c.b16 %v5983, %v5979
        %v6052 = vpack.c.b16 %v5988, %v5984
        %v6053 = vpack.c.b16 %v5989, %v5985
        %v6054 = vpack.c.b16 %v5990, %v5986
        %v6055 = vpack.c.b16 %v5991, %v5987
        %v6056 = vpack.c.b16 %v5996, %v5992
        %v6057 = vpack.c.b16 %v5997, %v5993
        %v6058 = vpack.c.b16 %v5998, %v5994
        %v6059 = vpack.c.b16 %v5999, %v5995
        %v6060 = vpack.c.b16 %v6004, %v6000
        %v6061 = vpack.c.b16 %v6005, %v6001
        %v6062 = vpack.c.b16 %v6006, %v6002
        %v6063 = vpack.c.b16 %v6007, %v6003
        %v6064 = vpack.c.b16 %v6012, %v6008
        %v6065 = vpack.c.b16 %v6013, %v6009
        %v6066 = vpack.c.b16 %v6014, %v6010
        %v6067 = vpack.c.b16 %v6015, %v6011
        %v6068 = vpack.c.b16 %v6020, %v6016
        %v6069 = vpack.c.b16 %v6021, %v6017
        %v6070 = vpack.c.b16 %v6022, %v6018
        %v6071 = vpack.c.b16 %v6023, %v6019
        %v6072 = vpack.c.b16 %v6024, %v6024
        %v6073 = vpack.c.b16 %v6025, %v6025
        %v6074 = vpack.c.b16 %v6026, %v6026
        %v6075 = vpack.c.b16 %v6027, %v6027
        %v6121 = vsel %vm4311, %v5887, 0
        %v6124 = vsel %vm4311, %v5886, 0
        %v6127 = vsel %vm4318, %v6072, 0
        %v6130 = vsel %vm4318, %v6073, 0
        %v6133 = vsel %vm4318, %v6074, 0
        %v6136 = vsel %vm4318, %v6075, 0
        %6138 = vmatpush.bf16.msra.mxu0 %v6056
        %6139 = vmatpush.bf16.msra.mxu0 %v6052
        %6140 = vmatpush.bf16.msra.mxu0 %v6048
        %6141 = vmatpush.bf16.msra.mxu0 %v6044
        %6142 = vmatpush.bf16.msra.mxu0 %v6040
        %6143 = vmatpush.bf16.msra.mxu0 %v6036
        %6144 = vmatpush.bf16.msra.mxu0 %v6032
        %6145 = vmatpush.bf16.msra.mxu0 %v6028
        %6146 = vmatmul.bf16.gmra.mxu0 %v5884
        %v6147 = vpop.f32.mrf.mxu0
        %v6148 = vadd.f32 0.0, %v6147
        %v6149 = vpop.f32.mrf.mxu0
        %v6150 = vadd.f32 0.0, %v6149
        %6151 = vmatmul.bf16.gmra.mxu0 %v5883
        %v6152 = vpop.f32.mrf.mxu0
        %v6153 = vadd.f32 0.0, %v6152
        %v6154 = vpop.f32.mrf.mxu0
        %v6155 = vadd.f32 0.0, %v6154
        %6156 = vdwg.mxu0
        %6157 = vmatpush.bf16.msra.mxu0 0
        %6158 = vmatpush.bf16.msra.mxu0 0
        %6159 = vmatpush.bf16.msra.mxu0 0
        %6160 = vmatpush.bf16.msra.mxu0 0
        %6161 = vmatpush.bf16.msra.mxu0 %v6127
        %6162 = vmatpush.bf16.msra.mxu0 %v6068
        %6163 = vmatpush.bf16.msra.mxu0 %v6064
        %6164 = vmatpush.bf16.msra.mxu0 %v6060
        %6165 = vmatmul.bf16.gmra.mxu0 %v6121
        %v6166 = vpop.f32.mrf.mxu0
        %v6167 = vadd.f32 %v6148, %v6166
        %v6168 = vpop.f32.mrf.mxu0
        %v6169 = vadd.f32 %v6150, %v6168
        %6170 = vmatmul.bf16.gmra.mxu0 %v6124
        %v6171 = vpop.f32.mrf.mxu0
        %v6172 = vadd.f32 %v6153, %v6171
        %v6173 = vpop.f32.mrf.mxu0
        %v6174 = vadd.f32 %v6155, %v6173
        %6175 = vdwg.mxu0
        %6176 = vmatpush.bf16.msra.mxu0 %v6057
        %6177 = vmatpush.bf16.msra.mxu0 %v6053
        %6178 = vmatpush.bf16.msra.mxu0 %v6049
        %6179 = vmatpush.bf16.msra.mxu0 %v6045
        %6180 = vmatpush.bf16.msra.mxu0 %v6041
        %6181 = vmatpush.bf16.msra.mxu0 %v6037
        %6182 = vmatpush.bf16.msra.mxu0 %v6033
        %6183 = vmatpush.bf16.msra.mxu0 %v6029
        %6184 = vmatmul.bf16.gmra.mxu0 %v5884
        %v6185 = vpop.f32.mrf.mxu0
        %v6186 = vadd.f32 0.0, %v6185
        %v6187 = vpop.f32.mrf.mxu0
        %v6188 = vadd.f32 0.0, %v6187
        %6189 = vmatmul.bf16.gmra.mxu0 %v5883
        %v6190 = vpop.f32.mrf.mxu0
        %v6191 = vadd.f32 0.0, %v6190
        %v6192 = vpop.f32.mrf.mxu0
        %v6193 = vadd.f32 0.0, %v6192
        %6194 = vdwg.mxu0
        %6195 = vmatpush.bf16.msra.mxu0 0
        %6196 = vmatpush.bf16.msra.mxu0 0
        %6197 = vmatpush.bf16.msra.mxu0 0
        %6198 = vmatpush.bf16.msra.mxu0 0
        %6199 = vmatpush.bf16.msra.mxu0 %v6130
        %6200 = vmatpush.bf16.msra.mxu0 %v6069
        %6201 = vmatpush.bf16.msra.mxu0 %v6065
        %6202 = vmatpush.bf16.msra.mxu0 %v6061
        %6203 = vmatmul.bf16.gmra.mxu0 %v6121
        %v6204 = vpop.f32.mrf.mxu0
        %v6205 = vadd.f32 %v6186, %v6204
        %v6206 = vpop.f32.mrf.mxu0
        %v6207 = vadd.f32 %v6188, %v6206
        %6208 = vmatmul.bf16.gmra.mxu0 %v6124
        %v6209 = vpop.f32.mrf.mxu0
        %v6210 = vadd.f32 %v6191, %v6209
        %v6211 = vpop.f32.mrf.mxu0
        %v6212 = vadd.f32 %v6193, %v6211
        %6213 = vdwg.mxu0
        %6214 = vmatpush.bf16.msra.mxu0 %v6058
        %6215 = vmatpush.bf16.msra.mxu0 %v6054
        %6216 = vmatpush.bf16.msra.mxu0 %v6050
        %6217 = vmatpush.bf16.msra.mxu0 %v6046
        %6218 = vmatpush.bf16.msra.mxu0 %v6042
        %6219 = vmatpush.bf16.msra.mxu0 %v6038
        %6220 = vmatpush.bf16.msra.mxu0 %v6034
        %6221 = vmatpush.bf16.msra.mxu0 %v6030
        %6222 = vmatmul.bf16.gmra.mxu0 %v5884
        %v6223 = vpop.f32.mrf.mxu0
        %v6224 = vadd.f32 0.0, %v6223
        %v6225 = vpop.f32.mrf.mxu0
        %v6226 = vadd.f32 0.0, %v6225
        %6227 = vmatmul.bf16.gmra.mxu0 %v5883
        %v6228 = vpop.f32.mrf.mxu0
        %v6229 = vadd.f32 0.0, %v6228
        %v6230 = vpop.f32.mrf.mxu0
        %v6231 = vadd.f32 0.0, %v6230
        %6232 = vdwg.mxu0
        %6233 = vmatpush.bf16.msra.mxu0 0
        %6234 = vmatpush.bf16.msra.mxu0 0
        %6235 = vmatpush.bf16.msra.mxu0 0
        %6236 = vmatpush.bf16.msra.mxu0 0
        %6237 = vmatpush.bf16.msra.mxu0 %v6133
        %6238 = vmatpush.bf16.msra.mxu0 %v6070
        %6239 = vmatpush.bf16.msra.mxu0 %v6066
        %6240 = vmatpush.bf16.msra.mxu0 %v6062
        %6241 = vmatmul.bf16.gmra.mxu0 %v6121
        %v6242 = vpop.f32.mrf.mxu0
        %v6243 = vadd.f32 %v6224, %v6242
        %v6244 = vpop.f32.mrf.mxu0
        %v6245 = vadd.f32 %v6226, %v6244
        %6246 = vmatmul.bf16.gmra.mxu0 %v6124
        %v6247 = vpop.f32.mrf.mxu0
        %v6248 = vadd.f32 %v6229, %v6247
        %v6249 = vpop.f32.mrf.mxu0
        %v6250 = vadd.f32 %v6231, %v6249
        %6251 = vdwg.mxu0
        %6252 = vmatpush.bf16.msra.mxu0 %v6059
        %6253 = vmatpush.bf16.msra.mxu0 %v6055
        %6254 = vmatpush.bf16.msra.mxu0 %v6051
        %6255 = vmatpush.bf16.msra.mxu0 %v6047
        %6256 = vmatpush.bf16.msra.mxu0 %v6043
        %6257 = vmatpush.bf16.msra.mxu0 %v6039
        %6258 = vmatpush.bf16.msra.mxu0 %v6035
        %6259 = vmatpush.bf16.msra.mxu0 %v6031
        %6260 = vmatmul.bf16.gmra.mxu0 %v5884
        %v6261 = vpop.f32.mrf.mxu0
        %v6262 = vadd.f32 0.0, %v6261
        %v6263 = vpop.f32.mrf.mxu0
        %v6264 = vadd.f32 0.0, %v6263
        %6265 = vmatmul.bf16.gmra.mxu0 %v5883
        %v6266 = vpop.f32.mrf.mxu0
        %v6267 = vadd.f32 0.0, %v6266
        %v6268 = vpop.f32.mrf.mxu0
        %v6269 = vadd.f32 0.0, %v6268
        %6270 = vdwg.mxu0
        %6271 = vmatpush.bf16.msra.mxu0 0
        %6272 = vmatpush.bf16.msra.mxu0 0
        %6273 = vmatpush.bf16.msra.mxu0 0
        %6274 = vmatpush.bf16.msra.mxu0 0
        %6275 = vmatpush.bf16.msra.mxu0 %v6136
        %6276 = vmatpush.bf16.msra.mxu0 %v6071
        %6277 = vmatpush.bf16.msra.mxu0 %v6067
        %6278 = vmatpush.bf16.msra.mxu0 %v6063
        %6279 = vmatmul.bf16.gmra.mxu0 %v6121
        %v6280 = vpop.f32.mrf.mxu0
        %v6281 = vadd.f32 %v6262, %v6280
        %v6282 = vpop.f32.mrf.mxu0
        %v6283 = vadd.f32 %v6264, %v6282
        %6284 = vmatmul.bf16.gmra.mxu0 %v6124
        %v6285 = vpop.f32.mrf.mxu0
        %v6286 = vadd.f32 %v6267, %v6285
        %v6287 = vpop.f32.mrf.mxu0
        %v6288 = vadd.f32 %v6269, %v6287
        %6289 = vdwg.mxu0
        %v6290 = vadd.f32 %v5819, %v6167
        %v6291 = vadd.f32 %v5820, %v6205
        %v6292 = vadd.f32 %v5821, %v6243
        %v6293 = vadd.f32 %v5822, %v6281
        %v6294 = vadd.f32 %v5823, %v6169
        %v6295 = vadd.f32 %v5824, %v6207
        %v6296 = vadd.f32 %v5825, %v6245
        %v6297 = vadd.f32 %v5826, %v6283
        %v6298 = vadd.f32 %v5827, %v6172
        %v6299 = vadd.f32 %v5828, %v6210
        %v6300 = vadd.f32 %v5829, %v6248
        %v6301 = vadd.f32 %v5830, %v6286
        %v6302 = vadd.f32 %v5831, %v6174
        %v6303 = vadd.f32 %v5832, %v6212
        %v6304 = vadd.f32 %v5833, %v6250
        %v6305 = vadd.f32 %v5834, %v6288
        %v6307 = vperm.slane %v3951, 0
        %v6308 = vperm.slane %v3951, 1
        %v6309 = vperm.slane %v3951, 2
        %v6310 = vperm.slane %v3951, 3
        %v6315 = vadd.f32 %v6290, %v6307
        %v6316 = vadd.f32 %v6291, %v6308
        %v6317 = vadd.f32 %v6292, %v6309
        %v6318 = vadd.f32 %v6293, %v6310
        %v6319 = vadd.f32 %v6294, %v6307
        %v6320 = vadd.f32 %v6295, %v6308
        %v6321 = vadd.f32 %v6296, %v6309
        %v6322 = vadd.f32 %v6297, %v6310
        %v6323 = vadd.f32 %v6298, %v6307
        %v6324 = vadd.f32 %v6299, %v6308
        %v6325 = vadd.f32 %v6300, %v6309
        %v6326 = vadd.f32 %v6301, %v6310
        %v6327 = vadd.f32 %v6302, %v6307
        %v6328 = vadd.f32 %v6303, %v6308
        %v6329 = vadd.f32 %v6304, %v6309
        %v6330 = vadd.f32 %v6305, %v6310
        %v6331 = vmax.f32 %v6315, 0.0
        %v6332 = vmax.f32 %v6316, 0.0
        %v6333 = vmax.f32 %v6317, 0.0
        %v6334 = vmax.f32 %v6318, 0.0
        %v6335 = vmax.f32 %v6319, 0.0
        %v6336 = vmax.f32 %v6320, 0.0
        %v6337 = vmax.f32 %v6321, 0.0
        %v6338 = vmax.f32 %v6322, 0.0
        %v6339 = vmax.f32 %v6323, 0.0
        %v6340 = vmax.f32 %v6324, 0.0
        %v6341 = vmax.f32 %v6325, 0.0
        %v6342 = vmax.f32 %v6326, 0.0
        %v6343 = vmax.f32 %v6327, 0.0
        %v6344 = vmax.f32 %v6328, 0.0
        %v6345 = vmax.f32 %v6329, 0.0
        %v6346 = vmax.f32 %v6330, 0.0
        %v6347 = vpack.c.bf16 %v6335, %v6331
        %v6348 = vpack.c.bf16 %v6336, %v6332
        %v6349 = vpack.c.bf16 %v6337, %v6333
        %v6350 = vpack.c.bf16 %v6338, %v6334
        %v6351 = vpack.c.bf16 %v6343, %v6339
        %v6352 = vpack.c.bf16 %v6344, %v6340
        %v6353 = vpack.c.bf16 %v6345, %v6341
        %v6354 = vpack.c.bf16 %v6346, %v6342
        %v6355 = vld [vmem:[%s7] sm:$0xf]
        %v6356 = vld [vmem:[%s7 + $0x4] sm:$0x7]
        %v6359 = vunpack.c.l.b16 %v6355
        %v6360 = vunpack.c.l.b16 %v6356
        %v6361 = vpack.c.b16 %v6360, %v6359
        %vm6362 = vcmask 211968
        %v6364 = vsel %vm6362, %v6361, 0
        %vm6366 = vcmask 1044480
        %v6368 = vsel %vm6366, %v6351, 0
        %v6371 = vsel %vm6366, %v6352, 0
        %v6374 = vsel %vm6366, %v6353, 0
        %v6377 = vsel %vm6366, %v6354, 0
        %6379 = vmatpush.bf16.msra.mxu0 0
        %6380 = vmatpush.bf16.msra.mxu0 0
        %6381 = vmatpush.bf16.msra.mxu0 0
        %6382 = vmatpush.bf16.msra.mxu0 0
        %6383 = vmatpush.bf16.msra.mxu0 0
        %6384 = vmatpush.bf16.msra.mxu0 0
        %6385 = vmatpush.bf16.msra.mxu0 %v6368
        %6386 = vmatpush.bf16.msra.mxu0 %v6347
        %6387 = vmatmul.bf16.gmra.mxu0 %v6364
        %v6388 = vpop.f32.mrf.mxu0
        %v6389 = vadd.f32 0.0, %v6388
        %v6390 = vpop.f32.mrf.mxu0
        %v6391 = vadd.f32 0.0, %v6390
        %6392 = vdwg.mxu0
        %6393 = vmatpush.bf16.msra.mxu0 0
        %6394 = vmatpush.bf16.msra.mxu0 0
        %6395 = vmatpush.bf16.msra.mxu0 0
        %6396 = vmatpush.bf16.msra.mxu0 0
        %6397 = vmatpush.bf16.msra.mxu0 0
        %6398 = vmatpush.bf16.msra.mxu0 0
        %6399 = vmatpush.bf16.msra.mxu0 %v6371
        %6400 = vmatpush.bf16.msra.mxu0 %v6348
        %6401 = vmatmul.bf16.gmra.mxu0 %v6364
        %v6402 = vpop.f32.mrf.mxu0
        %v6403 = vadd.f32 0.0, %v6402
        %v6404 = vpop.f32.mrf.mxu0
        %v6405 = vadd.f32 0.0, %v6404
        %6406 = vdwg.mxu0
        %6407 = vmatpush.bf16.msra.mxu0 0
        %6408 = vmatpush.bf16.msra.mxu0 0
        %6409 = vmatpush.bf16.msra.mxu0 0
        %6410 = vmatpush.bf16.msra.mxu0 0
        %6411 = vmatpush.bf16.msra.mxu0 0
        %6412 = vmatpush.bf16.msra.mxu0 0
        %6413 = vmatpush.bf16.msra.mxu0 %v6374
        %6414 = vmatpush.bf16.msra.mxu0 %v6349
        %6415 = vmatmul.bf16.gmra.mxu0 %v6364
        %v6416 = vpop.f32.mrf.mxu0
        %v6417 = vadd.f32 0.0, %v6416
        %v6418 = vpop.f32.mrf.mxu0
        %v6419 = vadd.f32 0.0, %v6418
        %6420 = vdwg.mxu0
        %6421 = vmatpush.bf16.msra.mxu0 0
        %6422 = vmatpush.bf16.msra.mxu0 0
        %6423 = vmatpush.bf16.msra.mxu0 0
        %6424 = vmatpush.bf16.msra.mxu0 0
        %6425 = vmatpush.bf16.msra.mxu0 0
        %6426 = vmatpush.bf16.msra.mxu0 0
        %6427 = vmatpush.bf16.msra.mxu0 %v6377
        %6428 = vmatpush.bf16.msra.mxu0 %v6350
        %6429 = vmatmul.bf16.gmra.mxu0 %v6364
        %v6430 = vpop.f32.mrf.mxu0
        %v6431 = vadd.f32 0.0, %v6430
        %v6432 = vpop.f32.mrf.mxu0
        %v6433 = vadd.f32 0.0, %v6432
        %6434 = vdwg.mxu0
        %s6435 = scalar_lea.vmem %s7, 8
        %v6436 = vld [vmem:[%s6435] sm:$0xf]
        %v6437 = vld [vmem:[%s6435 + $0x4] sm:$0x7]
        %v6440 = vunpack.c.l.b16 %v6436
        %v6441 = vunpack.c.l.b16 %v6437
        %v6442 = vpack.c.b16 %v6441, %v6440
        %v6444 = vsel %vm6362, %v6442, 0
        %6446 = vmatpush.bf16.msra.mxu0 0
        %6447 = vmatpush.bf16.msra.mxu0 0
        %6448 = vmatpush.bf16.msra.mxu0 0
        %6449 = vmatpush.bf16.msra.mxu0 0
        %6450 = vmatpush.bf16.msra.mxu0 0
        %6451 = vmatpush.bf16.msra.mxu0 0
        %6452 = vmatpush.bf16.msra.mxu0 %v6368
        %6453 = vmatpush.bf16.msra.mxu0 %v6347
        %6454 = vmatmul.bf16.gmra.mxu0 %v6444
        %v6455 = vpop.f32.mrf.mxu0
        %v6456 = vadd.f32 0.0, %v6455
        %v6457 = vpop.f32.mrf.mxu0
        %v6458 = vadd.f32 0.0, %v6457
        %6459 = vdwg.mxu0
        %6460 = vmatpush.bf16.msra.mxu0 0
        %6461 = vmatpush.bf16.msra.mxu0 0
        %6462 = vmatpush.bf16.msra.mxu0 0
        %6463 = vmatpush.bf16.msra.mxu0 0
        %6464 = vmatpush.bf16.msra.mxu0 0
        %6465 = vmatpush.bf16.msra.mxu0 0
        %6466 = vmatpush.bf16.msra.mxu0 %v6371
        %6467 = vmatpush.bf16.msra.mxu0 %v6348
        %6468 = vmatmul.bf16.gmra.mxu0 %v6444
        %v6469 = vpop.f32.mrf.mxu0
        %v6470 = vadd.f32 0.0, %v6469
        %v6471 = vpop.f32.mrf.mxu0
        %v6472 = vadd.f32 0.0, %v6471
        %6473 = vdwg.mxu0
        %6474 = vmatpush.bf16.msra.mxu0 0
        %6475 = vmatpush.bf16.msra.mxu0 0
        %6476 = vmatpush.bf16.msra.mxu0 0
        %6477 = vmatpush.bf16.msra.mxu0 0
        %6478 = vmatpush.bf16.msra.mxu0 0
        %6479 = vmatpush.bf16.msra.mxu0 0
        %6480 = vmatpush.bf16.msra.mxu0 %v6374
        %6481 = vmatpush.bf16.msra.mxu0 %v6349
        %6482 = vmatmul.bf16.gmra.mxu0 %v6444
        %v6483 = vpop.f32.mrf.mxu0
        %v6484 = vadd.f32 0.0, %v6483
        %v6485 = vpop.f32.mrf.mxu0
        %v6486 = vadd.f32 0.0, %v6485
        %6487 = vdwg.mxu0
        %6488 = vmatpush.bf16.msra.mxu0 0
        %6489 = vmatpush.bf16.msra.mxu0 0
        %6490 = vmatpush.bf16.msra.mxu0 0
        %6491 = vmatpush.bf16.msra.mxu0 0
        %6492 = vmatpush.bf16.msra.mxu0 0
        %6493 = vmatpush.bf16.msra.mxu0 0
        %6494 = vmatpush.bf16.msra.mxu0 %v6377
        %6495 = vmatpush.bf16.msra.mxu0 %v6350
        %6496 = vmatmul.bf16.gmra.mxu0 %v6444
        %v6497 = vpop.f32.mrf.mxu0
        %v6498 = vadd.f32 0.0, %v6497
        %v6499 = vpop.f32.mrf.mxu0
        %v6500 = vadd.f32 0.0, %v6499
        %6501 = vdwg.mxu0
        %v6502 = vmax.f32 %v6389, %v6456
        %v6503 = vmax.f32 %v6403, %v6470
        %v6504 = vmax.f32 %v6417, %v6484
        %v6505 = vmax.f32 %v6431, %v6498
        %v6506 = vmax.f32 %v6391, %v6458
        %v6507 = vmax.f32 %v6405, %v6472
        %v6508 = vmax.f32 %v6419, %v6486
        %v6509 = vmax.f32 %v6433, %v6500
        %v6510 = vpack.c.bf16 %v6506, %v6502
        %v6511 = vpack.c.bf16 %v6507, %v6503
        %v6512 = vpack.c.bf16 %v6508, %v6504
        %v6513 = vpack.c.bf16 %v6509, %v6505
        %v6514 = vld [vmem:[#allocation2] sm:$0xff]
        %v6515 = vld [vmem:[#allocation2 + $0x8] sm:$0xff]
        %v6516 = vld [vmem:[#allocation2 + $0x10] sm:$0xff]
        %v6517 = vld [vmem:[#allocation2 + $0x18] sm:$0xff]
        %v6518 = vld [vmem:[#allocation2 + $0x20] sm:$0xff]
        %v6519 = vld [vmem:[#allocation2 + $0x28] sm:$0xff]
        %v6520 = vld [vmem:[#allocation2 + $0x30] sm:$0xff]
        %v6521 = vld [vmem:[#allocation2 + $0x38] sm:$0xff]
        %v6522 = vld [vmem:[#allocation2 + $0x40] sm:$0xff]
        %v6523 = vld [vmem:[#allocation2 + $0x48] sm:$0xff]
        %v6524 = vld [vmem:[#allocation2 + $0x50] sm:$0xff]
        %v6525 = vld [vmem:[#allocation2 + $0x58] sm:$0xff]
        %v6526 = vld [vmem:[#allocation2 + $0x60] sm:$0xff]
        %v6527 = vld [vmem:[#allocation2 + $0x68] sm:$0xff]
        %v6528 = vld [vmem:[#allocation2 + $0x70] sm:$0xff]
        %v6529 = vld [vmem:[#allocation2 + $0x78] sm:$0xff]
        %v6530 = vld [vmem:[#allocation2 + $0x80] sm:$0xff]
        %v6531 = vld [vmem:[#allocation2 + $0x88] sm:$0xff]
        %v6532 = vld [vmem:[#allocation2 + $0x90] sm:$0xff]
        %v6533 = vld [vmem:[#allocation2 + $0x98] sm:$0xff]
        %v6534 = vld [vmem:[#allocation2 + $0xa0] sm:$0xff]
        %v6535 = vld [vmem:[#allocation2 + $0xa8] sm:$0xff]
        %v6536 = vld [vmem:[#allocation2 + $0xb0] sm:$0xff]
        %v6537 = vld [vmem:[#allocation2 + $0xb8] sm:$0xff]
        %v6538 = vld [vmem:[#allocation2 + $0xc0] sm:$0xff]
        %v6539 = vld [vmem:[#allocation2 + $0xc8] sm:$0xff]
        %v6540 = vld [vmem:[#allocation2 + $0xd0] sm:$0xff]
        %v6541 = vld [vmem:[#allocation2 + $0xd8] sm:$0xff]
        %v6542 = vld [vmem:[#allocation2 + $0xe0] sm:$0xff]
        %v6543 = vld [vmem:[#allocation2 + $0xe8] sm:$0xff]
        %v6544 = vld [vmem:[#allocation2 + $0xf0] sm:$0xff]
        %v6545 = vld [vmem:[#allocation2 + $0xf8] sm:$0xff]
        %v6546 = vld [vmem:[#allocation2 + $0x100] sm:$0xff]
        %v6547 = vld [vmem:[#allocation2 + $0x108] sm:$0xff]
        %v6548 = vld [vmem:[#allocation2 + $0x110] sm:$0xff]
        %v6549 = vld [vmem:[#allocation2 + $0x118] sm:$0xff]
        %v6550 = vld [vmem:[#allocation2 + $0x120] sm:$0xff]
        %v6551 = vld [vmem:[#allocation2 + $0x128] sm:$0xff]
        %v6552 = vld [vmem:[#allocation2 + $0x130] sm:$0xff]
        %v6553 = vld [vmem:[#allocation2 + $0x138] sm:$0xff]
        %v6554 = vld [vmem:[#allocation2 + $0x140] sm:$0xff]
        %v6555 = vld [vmem:[#allocation2 + $0x148] sm:$0xff]
        %v6556 = vld [vmem:[#allocation2 + $0x150] sm:$0xff]
        %v6557 = vld [vmem:[#allocation2 + $0x158] sm:$0xff]
        %v6558 = vld [vmem:[#allocation2 + $0x160] sm:$0xff]
        %v6559 = vld [vmem:[#allocation2 + $0x168] sm:$0xff]
        %v6560 = vld [vmem:[#allocation2 + $0x170] sm:$0xff]
        %v6561 = vld [vmem:[#allocation2 + $0x178] sm:$0xff]
        %v6562 = vld [vmem:[#allocation2 + $0x180] sm:$0xff]
        %v6563 = vld [vmem:[#allocation2 + $0x188] sm:$0xff]
        %v6564 = vld [vmem:[#allocation2 + $0x190] sm:$0xff]
        %v6565 = vld [vmem:[#allocation2 + $0x198] sm:$0xff]
        %v6618 = vunpack.c.l.b16 %v6514
        %v6619 = vunpack.c.h.b16 %v6514
        %v6620 = vunpack.c.l.b16 %v6515
        %v6621 = vunpack.c.h.b16 %v6515
        %v6622 = vunpack.c.l.b16 %v6516
        %v6623 = vunpack.c.h.b16 %v6516
        %v6624 = vunpack.c.l.b16 %v6517
        %v6625 = vunpack.c.h.b16 %v6517
        %v6626 = vunpack.c.l.b16 %v6518
        %v6627 = vunpack.c.h.b16 %v6518
        %v6628 = vunpack.c.l.b16 %v6519
        %v6629 = vunpack.c.h.b16 %v6519
        %v6630 = vunpack.c.l.b16 %v6520
        %v6631 = vunpack.c.h.b16 %v6520
        %v6632 = vunpack.c.l.b16 %v6521
        %v6633 = vunpack.c.h.b16 %v6521
        %v6634 = vunpack.c.l.b16 %v6522
        %v6635 = vunpack.c.h.b16 %v6522
        %v6636 = vunpack.c.l.b16 %v6523
        %v6637 = vunpack.c.h.b16 %v6523
        %v6638 = vunpack.c.l.b16 %v6524
        %v6639 = vunpack.c.h.b16 %v6524
        %v6640 = vunpack.c.l.b16 %v6525
        %v6641 = vunpack.c.h.b16 %v6525
        %v6642 = vunpack.c.l.b16 %v6526
        %v6643 = vunpack.c.h.b16 %v6526
        %v6644 = vunpack.c.l.b16 %v6527
        %v6645 = vunpack.c.h.b16 %v6527
        %v6646 = vunpack.c.l.b16 %v6528
        %v6647 = vunpack.c.h.b16 %v6528
        %v6648 = vunpack.c.l.b16 %v6529
        %v6649 = vunpack.c.h.b16 %v6529
        %v6650 = vunpack.c.l.b16 %v6530
        %v6651 = vunpack.c.h.b16 %v6530
        %v6652 = vunpack.c.l.b16 %v6531
        %v6653 = vunpack.c.h.b16 %v6531
        %v6654 = vunpack.c.l.b16 %v6532
        %v6655 = vunpack.c.h.b16 %v6532
        %v6656 = vunpack.c.l.b16 %v6533
        %v6657 = vunpack.c.h.b16 %v6533
        %v6658 = vunpack.c.l.b16 %v6534
        %v6659 = vunpack.c.h.b16 %v6534
        %v6660 = vunpack.c.l.b16 %v6535
        %v6661 = vunpack.c.h.b16 %v6535
        %v6662 = vunpack.c.l.b16 %v6536
        %v6663 = vunpack.c.h.b16 %v6536
        %v6664 = vunpack.c.l.b16 %v6537
        %v6665 = vunpack.c.h.b16 %v6537
        %v6666 = vunpack.c.l.b16 %v6538
        %v6667 = vunpack.c.h.b16 %v6538
        %v6668 = vunpack.c.l.b16 %v6539
        %v6669 = vunpack.c.h.b16 %v6539
        %v6670 = vunpack.c.l.b16 %v6540
        %v6671 = vunpack.c.h.b16 %v6540
        %v6672 = vunpack.c.l.b16 %v6541
        %v6673 = vunpack.c.h.b16 %v6541
        %v6674 = vunpack.c.l.b16 %v6542
        %v6675 = vunpack.c.h.b16 %v6542
        %v6676 = vunpack.c.l.b16 %v6543
        %v6677 = vunpack.c.h.b16 %v6543
        %v6678 = vunpack.c.l.b16 %v6544
        %v6679 = vunpack.c.h.b16 %v6544
        %v6680 = vunpack.c.l.b16 %v6545
        %v6681 = vunpack.c.h.b16 %v6545
        %v6682 = vunpack.c.l.b16 %v6546
        %v6683 = vunpack.c.h.b16 %v6546
        %v6684 = vunpack.c.l.b16 %v6547
        %v6685 = vunpack.c.h.b16 %v6547
        %v6686 = vunpack.c.l.b16 %v6548
        %v6687 = vunpack.c.h.b16 %v6548
        %v6688 = vunpack.c.l.b16 %v6549
        %v6689 = vunpack.c.h.b16 %v6549
        %v6690 = vunpack.c.l.b16 %v6550
        %v6691 = vunpack.c.h.b16 %v6550
        %v6692 = vunpack.c.l.b16 %v6551
        %v6693 = vunpack.c.h.b16 %v6551
        %v6694 = vunpack.c.l.b16 %v6552
        %v6695 = vunpack.c.h.b16 %v6552
        %v6696 = vunpack.c.l.b16 %v6553
        %v6697 = vunpack.c.h.b16 %v6553
        %v6698 = vunpack.c.l.b16 %v6554
        %v6699 = vunpack.c.h.b16 %v6554
        %v6700 = vunpack.c.l.b16 %v6555
        %v6701 = vunpack.c.h.b16 %v6555
        %v6702 = vunpack.c.l.b16 %v6556
        %v6703 = vunpack.c.h.b16 %v6556
        %v6704 = vunpack.c.l.b16 %v6557
        %v6705 = vunpack.c.h.b16 %v6557
        %v6706 = vunpack.c.l.b16 %v6558
        %v6707 = vunpack.c.h.b16 %v6558
        %v6708 = vunpack.c.l.b16 %v6559
        %v6709 = vunpack.c.h.b16 %v6559
        %v6710 = vunpack.c.l.b16 %v6560
        %v6711 = vunpack.c.h.b16 %v6560
        %v6712 = vunpack.c.l.b16 %v6561
        %v6713 = vunpack.c.h.b16 %v6561
        %v6714 = vunpack.c.l.b16 %v6562
        %v6715 = vunpack.c.h.b16 %v6562
        %v6716 = vunpack.c.l.b16 %v6563
        %v6717 = vunpack.c.h.b16 %v6563
        %v6718 = vunpack.c.l.b16 %v6564
        %v6719 = vunpack.c.h.b16 %v6564
        %v6720 = vunpack.c.l.b16 %v6565
        %v6721 = vunpack.c.h.b16 %v6565
        %v6722 = vpack.c.b16 %v6620, %v6618
        %v6723 = vpack.c.b16 %v6621, %v6619
        %v6724 = vpack.c.b16 %v6624, %v6622
        %v6725 = vpack.c.b16 %v6625, %v6623
        %v6726 = vpack.c.b16 %v6628, %v6626
        %v6727 = vpack.c.b16 %v6629, %v6627
        %v6728 = vpack.c.b16 %v6632, %v6630
        %v6729 = vpack.c.b16 %v6633, %v6631
        %v6730 = vpack.c.b16 %v6636, %v6634
        %v6731 = vpack.c.b16 %v6637, %v6635
        %v6732 = vpack.c.b16 %v6640, %v6638
        %v6733 = vpack.c.b16 %v6641, %v6639
        %v6734 = vpack.c.b16 %v6644, %v6642
        %v6735 = vpack.c.b16 %v6645, %v6643
        %v6736 = vpack.c.b16 %v6648, %v6646
        %v6737 = vpack.c.b16 %v6649, %v6647
        %v6738 = vpack.c.b16 %v6652, %v6650
        %v6739 = vpack.c.b16 %v6653, %v6651
        %v6740 = vpack.c.b16 %v6656, %v6654
        %v6741 = vpack.c.b16 %v6657, %v6655
        %v6742 = vpack.c.b16 %v6660, %v6658
        %v6743 = vpack.c.b16 %v6661, %v6659
        %v6744 = vpack.c.b16 %v6664, %v6662
        %v6745 = vpack.c.b16 %v6665, %v6663
        %v6746 = vpack.c.b16 %v6668, %v6666
        %v6747 = vpack.c.b16 %v6669, %v6667
        %v6748 = vpack.c.b16 %v6672, %v6670
        %v6749 = vpack.c.b16 %v6673, %v6671
        %v6750 = vpack.c.b16 %v6676, %v6674
        %v6751 = vpack.c.b16 %v6677, %v6675
        %v6752 = vpack.c.b16 %v6680, %v6678
        %v6753 = vpack.c.b16 %v6681, %v6679
        %v6754 = vpack.c.b16 %v6684, %v6682
        %v6755 = vpack.c.b16 %v6685, %v6683
        %v6756 = vpack.c.b16 %v6688, %v6686
        %v6757 = vpack.c.b16 %v6689, %v6687
        %v6758 = vpack.c.b16 %v6692, %v6690
        %v6759 = vpack.c.b16 %v6693, %v6691
        %v6760 = vpack.c.b16 %v6696, %v6694
        %v6761 = vpack.c.b16 %v6697, %v6695
        %v6762 = vpack.c.b16 %v6700, %v6698
        %v6763 = vpack.c.b16 %v6701, %v6699
        %v6764 = vpack.c.b16 %v6704, %v6702
        %v6765 = vpack.c.b16 %v6705, %v6703
        %v6766 = vpack.c.b16 %v6708, %v6706
        %v6767 = vpack.c.b16 %v6709, %v6707
        %v6768 = vpack.c.b16 %v6712, %v6710
        %v6769 = vpack.c.b16 %v6713, %v6711
        %v6770 = vpack.c.b16 %v6716, %v6714
        %v6771 = vpack.c.b16 %v6717, %v6715
        %v6772 = vpack.c.b16 %v6720, %v6718
        %v6773 = vpack.c.b16 %v6721, %v6719
        %vm6826 = vcmask 261120
        %v6828 = vsel %vm6826, %v6513, 0
        %6830 = vmatpush.bf16.msra.mxu0 %v6736
        %6831 = vmatpush.bf16.msra.mxu0 %v6734
        %6832 = vmatpush.bf16.msra.mxu0 %v6732
        %6833 = vmatpush.bf16.msra.mxu0 %v6730
        %6834 = vmatpush.bf16.msra.mxu0 %v6728
        %6835 = vmatpush.bf16.msra.mxu0 %v6726
        %6836 = vmatpush.bf16.msra.mxu0 %v6724
        %6837 = vmatpush.bf16.msra.mxu0 %v6722
        %6838 = vmatmul.bf16.gmra.mxu0 %v6510
        %v6839 = vpop.f32.mrf.mxu0
        %v6840 = vadd.f32 0.0, %v6839
        %v6841 = vpop.f32.mrf.mxu0
        %v6842 = vadd.f32 0.0, %v6841
        %6843 = vdwg.mxu0
        %6844 = vmatpush.bf16.msra.mxu0 %v6752
        %6845 = vmatpush.bf16.msra.mxu0 %v6750
        %6846 = vmatpush.bf16.msra.mxu0 %v6748
        %6847 = vmatpush.bf16.msra.mxu0 %v6746
        %6848 = vmatpush.bf16.msra.mxu0 %v6744
        %6849 = vmatpush.bf16.msra.mxu0 %v6742
        %6850 = vmatpush.bf16.msra.mxu0 %v6740
        %6851 = vmatpush.bf16.msra.mxu0 %v6738
        %6852 = vmatmul.bf16.gmra.mxu0 %v6511
        %v6853 = vpop.f32.mrf.mxu0
        %v6854 = vadd.f32 %v6840, %v6853
        %v6855 = vpop.f32.mrf.mxu0
        %v6856 = vadd.f32 %v6842, %v6855
        %6857 = vdwg.mxu0
        %6858 = vmatpush.bf16.msra.mxu0 %v6768
        %6859 = vmatpush.bf16.msra.mxu0 %v6766
        %6860 = vmatpush.bf16.msra.mxu0 %v6764
        %6861 = vmatpush.bf16.msra.mxu0 %v6762
        %6862 = vmatpush.bf16.msra.mxu0 %v6760
        %6863 = vmatpush.bf16.msra.mxu0 %v6758
        %6864 = vmatpush.bf16.msra.mxu0 %v6756
        %6865 = vmatpush.bf16.msra.mxu0 %v6754
        %6866 = vmatmul.bf16.gmra.mxu0 %v6512
        %v6867 = vpop.f32.mrf.mxu0
        %v6868 = vadd.f32 %v6854, %v6867
        %v6869 = vpop.f32.mrf.mxu0
        %v6870 = vadd.f32 %v6856, %v6869
        %6871 = vdwg.mxu0
        %6872 = vmatpush.bf16.msra.mxu0 0
        %6873 = vmatpush.bf16.msra.mxu0 0
        %6874 = vmatpush.bf16.msra.mxu0 0
        %6875 = vmatpush.bf16.msra.mxu0 0
        %6876 = vmatpush.bf16.msra.mxu0 0
        %6877 = vmatpush.bf16.msra.mxu0 0
        %6878 = vmatpush.bf16.msra.mxu0 %v6772
        %6879 = vmatpush.bf16.msra.mxu0 %v6770
        %6880 = vmatmul.bf16.gmra.mxu0 %v6828
        %v6881 = vpop.f32.mrf.mxu0
        %v6882 = vadd.f32 %v6868, %v6881
        %v6883 = vpop.f32.mrf.mxu0
        %v6884 = vadd.f32 %v6870, %v6883
        %6885 = vdwg.mxu0
        %6886 = vmatpush.bf16.msra.mxu0 %v6737
        %6887 = vmatpush.bf16.msra.mxu0 %v6735
        %6888 = vmatpush.bf16.msra.mxu0 %v6733
        %6889 = vmatpush.bf16.msra.mxu0 %v6731
        %6890 = vmatpush.bf16.msra.mxu0 %v6729
        %6891 = vmatpush.bf16.msra.mxu0 %v6727
        %6892 = vmatpush.bf16.msra.mxu0 %v6725
        %6893 = vmatpush.bf16.msra.mxu0 %v6723
        %6894 = vmatmul.bf16.gmra.mxu0 %v6510
        %v6895 = vpop.f32.mrf.mxu0
        %v6896 = vadd.f32 0.0, %v6895
        %v6897 = vpop.f32.mrf.mxu0
        %v6898 = vadd.f32 0.0, %v6897
        %6899 = vdwg.mxu0
        %6900 = vmatpush.bf16.msra.mxu0 %v6753
        %6901 = vmatpush.bf16.msra.mxu0 %v6751
        %6902 = vmatpush.bf16.msra.mxu0 %v6749
        %6903 = vmatpush.bf16.msra.mxu0 %v6747
        %6904 = vmatpush.bf16.msra.mxu0 %v6745
        %6905 = vmatpush.bf16.msra.mxu0 %v6743
        %6906 = vmatpush.bf16.msra.mxu0 %v6741
        %6907 = vmatpush.bf16.msra.mxu0 %v6739
        %6908 = vmatmul.bf16.gmra.mxu0 %v6511
        %v6909 = vpop.f32.mrf.mxu0
        %v6910 = vadd.f32 %v6896, %v6909
        %v6911 = vpop.f32.mrf.mxu0
        %v6912 = vadd.f32 %v6898, %v6911
        %6913 = vdwg.mxu0
        %6914 = vmatpush.bf16.msra.mxu0 %v6769
        %6915 = vmatpush.bf16.msra.mxu0 %v6767
        %6916 = vmatpush.bf16.msra.mxu0 %v6765
        %6917 = vmatpush.bf16.msra.mxu0 %v6763
        %6918 = vmatpush.bf16.msra.mxu0 %v6761
        %6919 = vmatpush.bf16.msra.mxu0 %v6759
        %6920 = vmatpush.bf16.msra.mxu0 %v6757
        %6921 = vmatpush.bf16.msra.mxu0 %v6755
        %6922 = vmatmul.bf16.gmra.mxu0 %v6512
        %v6923 = vpop.f32.mrf.mxu0
        %v6924 = vadd.f32 %v6910, %v6923
        %v6925 = vpop.f32.mrf.mxu0
        %v6926 = vadd.f32 %v6912, %v6925
        %6927 = vdwg.mxu0
        %6928 = vmatpush.bf16.msra.mxu0 0
        %6929 = vmatpush.bf16.msra.mxu0 0
        %6930 = vmatpush.bf16.msra.mxu0 0
        %6931 = vmatpush.bf16.msra.mxu0 0
        %6932 = vmatpush.bf16.msra.mxu0 0
        %6933 = vmatpush.bf16.msra.mxu0 0
        %6934 = vmatpush.bf16.msra.mxu0 %v6773
        %6935 = vmatpush.bf16.msra.mxu0 %v6771
        %6936 = vmatmul.bf16.gmra.mxu0 %v6828
        %v6937 = vpop.f32.mrf.mxu0
        %v6938 = vadd.f32 %v6924, %v6937
        %v6939 = vpop.f32.mrf.mxu0
        %v6940 = vadd.f32 %v6926, %v6939
        %6941 = vdwg.mxu0
        %s6942 = scalar_lea.vmem [#allocation2], 416
        %v6943 = vld [vmem:[%s6942] sm:$0xff]
        %v6944 = vld [vmem:[%s6942 + $0x8] sm:$0xff]
        %v6945 = vld [vmem:[%s6942 + $0x10] sm:$0xff]
        %v6946 = vld [vmem:[%s6942 + $0x18] sm:$0xff]
        %v6947 = vld [vmem:[%s6942 + $0x20] sm:$0xff]
        %v6948 = vld [vmem:[%s6942 + $0x28] sm:$0xff]
        %v6949 = vld [vmem:[%s6942 + $0x30] sm:$0xff]
        %v6950 = vld [vmem:[%s6942 + $0x38] sm:$0xff]
        %v6951 = vld [vmem:[%s6942 + $0x40] sm:$0xff]
        %v6952 = vld [vmem:[%s6942 + $0x48] sm:$0xff]
        %v6953 = vld [vmem:[%s6942 + $0x50] sm:$0xff]
        %v6954 = vld [vmem:[%s6942 + $0x58] sm:$0xff]
        %v6955 = vld [vmem:[%s6942 + $0x60] sm:$0xff]
        %v6956 = vld [vmem:[%s6942 + $0x68] sm:$0xff]
        %v6957 = vld [vmem:[%s6942 + $0x70] sm:$0xff]
        %v6958 = vld [vmem:[%s6942 + $0x78] sm:$0xff]
        %v6959 = vld [vmem:[%s6942 + $0x80] sm:$0xff]
        %v6960 = vld [vmem:[%s6942 + $0x88] sm:$0xff]
        %v6961 = vld [vmem:[%s6942 + $0x90] sm:$0xff]
        %v6962 = vld [vmem:[%s6942 + $0x98] sm:$0xff]
        %v6963 = vld [vmem:[%s6942 + $0xa0] sm:$0xff]
        %v6964 = vld [vmem:[%s6942 + $0xa8] sm:$0xff]
        %v6965 = vld [vmem:[%s6942 + $0xb0] sm:$0xff]
        %v6966 = vld [vmem:[%s6942 + $0xb8] sm:$0xff]
        %v6967 = vld [vmem:[%s6942 + $0xc0] sm:$0xff]
        %v6968 = vld [vmem:[%s6942 + $0xc8] sm:$0xff]
        %v6969 = vld [vmem:[%s6942 + $0xd0] sm:$0xff]
        %v6970 = vld [vmem:[%s6942 + $0xd8] sm:$0xff]
        %v6971 = vld [vmem:[%s6942 + $0xe0] sm:$0xff]
        %v6972 = vld [vmem:[%s6942 + $0xe8] sm:$0xff]
        %v6973 = vld [vmem:[%s6942 + $0xf0] sm:$0xff]
        %v6974 = vld [vmem:[%s6942 + $0xf8] sm:$0xff]
        %v6975 = vld [vmem:[%s6942 + $0x100] sm:$0xff]
        %v6976 = vld [vmem:[%s6942 + $0x108] sm:$0xff]
        %v6977 = vld [vmem:[%s6942 + $0x110] sm:$0xff]
        %v6978 = vld [vmem:[%s6942 + $0x118] sm:$0xff]
        %v6979 = vld [vmem:[%s6942 + $0x120] sm:$0xff]
        %v6980 = vld [vmem:[%s6942 + $0x128] sm:$0xff]
        %v6981 = vld [vmem:[%s6942 + $0x130] sm:$0xff]
        %v6982 = vld [vmem:[%s6942 + $0x138] sm:$0xff]
        %v6983 = vld [vmem:[%s6942 + $0x140] sm:$0xff]
        %v6984 = vld [vmem:[%s6942 + $0x148] sm:$0xff]
        %v6985 = vld [vmem:[%s6942 + $0x150] sm:$0xff]
        %v6986 = vld [vmem:[%s6942 + $0x158] sm:$0xff]
        %v6987 = vld [vmem:[%s6942 + $0x160] sm:$0xff]
        %v6988 = vld [vmem:[%s6942 + $0x168] sm:$0xff]
        %v6989 = vld [vmem:[%s6942 + $0x170] sm:$0xff]
        %v6990 = vld [vmem:[%s6942 + $0x178] sm:$0xff]
        %v6991 = vld [vmem:[%s6942 + $0x180] sm:$0xff]
        %v6992 = vld [vmem:[%s6942 + $0x188] sm:$0xff]
        %v6993 = vld [vmem:[%s6942 + $0x190] sm:$0xff]
        %v6994 = vld [vmem:[%s6942 + $0x198] sm:$0xff]
        %v7047 = vunpack.c.l.b16 %v6943
        %v7048 = vunpack.c.h.b16 %v6943
        %v7049 = vunpack.c.l.b16 %v6944
        %v7050 = vunpack.c.h.b16 %v6944
        %v7051 = vunpack.c.l.b16 %v6945
        %v7052 = vunpack.c.h.b16 %v6945
        %v7053 = vunpack.c.l.b16 %v6946
        %v7054 = vunpack.c.h.b16 %v6946
        %v7055 = vunpack.c.l.b16 %v6947
        %v7056 = vunpack.c.h.b16 %v6947
        %v7057 = vunpack.c.l.b16 %v6948
        %v7058 = vunpack.c.h.b16 %v6948
        %v7059 = vunpack.c.l.b16 %v6949
        %v7060 = vunpack.c.h.b16 %v6949
        %v7061 = vunpack.c.l.b16 %v6950
        %v7062 = vunpack.c.h.b16 %v6950
        %v7063 = vunpack.c.l.b16 %v6951
        %v7064 = vunpack.c.h.b16 %v6951
        %v7065 = vunpack.c.l.b16 %v6952
        %v7066 = vunpack.c.h.b16 %v6952
        %v7067 = vunpack.c.l.b16 %v6953
        %v7068 = vunpack.c.h.b16 %v6953
        %v7069 = vunpack.c.l.b16 %v6954
        %v7070 = vunpack.c.h.b16 %v6954
        %v7071 = vunpack.c.l.b16 %v6955
        %v7072 = vunpack.c.h.b16 %v6955
        %v7073 = vunpack.c.l.b16 %v6956
        %v7074 = vunpack.c.h.b16 %v6956
        %v7075 = vunpack.c.l.b16 %v6957
        %v7076 = vunpack.c.h.b16 %v6957
        %v7077 = vunpack.c.l.b16 %v6958
        %v7078 = vunpack.c.h.b16 %v6958
        %v7079 = vunpack.c.l.b16 %v6959
        %v7080 = vunpack.c.h.b16 %v6959
        %v7081 = vunpack.c.l.b16 %v6960
        %v7082 = vunpack.c.h.b16 %v6960
        %v7083 = vunpack.c.l.b16 %v6961
        %v7084 = vunpack.c.h.b16 %v6961
        %v7085 = vunpack.c.l.b16 %v6962
        %v7086 = vunpack.c.h.b16 %v6962
        %v7087 = vunpack.c.l.b16 %v6963
        %v7088 = vunpack.c.h.b16 %v6963
        %v7089 = vunpack.c.l.b16 %v6964
        %v7090 = vunpack.c.h.b16 %v6964
        %v7091 = vunpack.c.l.b16 %v6965
        %v7092 = vunpack.c.h.b16 %v6965
        %v7093 = vunpack.c.l.b16 %v6966
        %v7094 = vunpack.c.h.b16 %v6966
        %v7095 = vunpack.c.l.b16 %v6967
        %v7096 = vunpack.c.h.b16 %v6967
        %v7097 = vunpack.c.l.b16 %v6968
        %v7098 = vunpack.c.h.b16 %v6968
        %v7099 = vunpack.c.l.b16 %v6969
        %v7100 = vunpack.c.h.b16 %v6969
        %v7101 = vunpack.c.l.b16 %v6970
        %v7102 = vunpack.c.h.b16 %v6970
        %v7103 = vunpack.c.l.b16 %v6971
        %v7104 = vunpack.c.h.b16 %v6971
        %v7105 = vunpack.c.l.b16 %v6972
        %v7106 = vunpack.c.h.b16 %v6972
        %v7107 = vunpack.c.l.b16 %v6973
        %v7108 = vunpack.c.h.b16 %v6973
        %v7109 = vunpack.c.l.b16 %v6974
        %v7110 = vunpack.c.h.b16 %v6974
        %v7111 = vunpack.c.l.b16 %v6975
        %v7112 = vunpack.c.h.b16 %v6975
        %v7113 = vunpack.c.l.b16 %v6976
        %v7114 = vunpack.c.h.b16 %v6976
        %v7115 = vunpack.c.l.b16 %v6977
        %v7116 = vunpack.c.h.b16 %v6977
        %v7117 = vunpack.c.l.b16 %v6978
        %v7118 = vunpack.c.h.b16 %v6978
        %v7119 = vunpack.c.l.b16 %v6979
        %v7120 = vunpack.c.h.b16 %v6979
        %v7121 = vunpack.c.l.b16 %v6980
        %v7122 = vunpack.c.h.b16 %v6980
        %v7123 = vunpack.c.l.b16 %v6981
        %v7124 = vunpack.c.h.b16 %v6981
        %v7125 = vunpack.c.l.b16 %v6982
        %v7126 = vunpack.c.h.b16 %v6982
        %v7127 = vunpack.c.l.b16 %v6983
        %v7128 = vunpack.c.h.b16 %v6983
        %v7129 = vunpack.c.l.b16 %v6984
        %v7130 = vunpack.c.h.b16 %v6984
        %v7131 = vunpack.c.l.b16 %v6985
        %v7132 = vunpack.c.h.b16 %v6985
        %v7133 = vunpack.c.l.b16 %v6986
        %v7134 = vunpack.c.h.b16 %v6986
        %v7135 = vunpack.c.l.b16 %v6987
        %v7136 = vunpack.c.h.b16 %v6987
        %v7137 = vunpack.c.l.b16 %v6988
        %v7138 = vunpack.c.h.b16 %v6988
        %v7139 = vunpack.c.l.b16 %v6989
        %v7140 = vunpack.c.h.b16 %v6989
        %v7141 = vunpack.c.l.b16 %v6990
        %v7142 = vunpack.c.h.b16 %v6990
        %v7143 = vunpack.c.l.b16 %v6991
        %v7144 = vunpack.c.h.b16 %v6991
        %v7145 = vunpack.c.l.b16 %v6992
        %v7146 = vunpack.c.h.b16 %v6992
        %v7147 = vunpack.c.l.b16 %v6993
        %v7148 = vunpack.c.h.b16 %v6993
        %v7149 = vunpack.c.l.b16 %v6994
        %v7150 = vunpack.c.h.b16 %v6994
        %v7151 = vpack.c.b16 %v7049, %v7047
        %v7152 = vpack.c.b16 %v7050, %v7048
        %v7153 = vpack.c.b16 %v7053, %v7051
        %v7154 = vpack.c.b16 %v7054, %v7052
        %v7155 = vpack.c.b16 %v7057, %v7055
        %v7156 = vpack.c.b16 %v7058, %v7056
        %v7157 = vpack.c.b16 %v7061, %v7059
        %v7158 = vpack.c.b16 %v7062, %v7060
        %v7159 = vpack.c.b16 %v7065, %v7063
        %v7160 = vpack.c.b16 %v7066, %v7064
        %v7161 = vpack.c.b16 %v7069, %v7067
        %v7162 = vpack.c.b16 %v7070, %v7068
        %v7163 = vpack.c.b16 %v7073, %v7071
        %v7164 = vpack.c.b16 %v7074, %v7072
        %v7165 = vpack.c.b16 %v7077, %v7075
        %v7166 = vpack.c.b16 %v7078, %v7076
        %v7167 = vpack.c.b16 %v7081, %v7079
        %v7168 = vpack.c.b16 %v7082, %v7080
        %v7169 = vpack.c.b16 %v7085, %v7083
        %v7170 = vpack.c.b16 %v7086, %v7084
        %v7171 = vpack.c.b16 %v7089, %v7087
        %v7172 = vpack.c.b16 %v7090, %v7088
        %v7173 = vpack.c.b16 %v7093, %v7091
        %v7174 = vpack.c.b16 %v7094, %v7092
        %v7175 = vpack.c.b16 %v7097, %v7095
        %v7176 = vpack.c.b16 %v7098, %v7096
        %v7177 = vpack.c.b16 %v7101, %v7099
        %v7178 = vpack.c.b16 %v7102, %v7100
        %v7179 = vpack.c.b16 %v7105, %v7103
        %v7180 = vpack.c.b16 %v7106, %v7104
        %v7181 = vpack.c.b16 %v7109, %v7107
        %v7182 = vpack.c.b16 %v7110, %v7108
        %v7183 = vpack.c.b16 %v7113, %v7111
        %v7184 = vpack.c.b16 %v7114, %v7112
        %v7185 = vpack.c.b16 %v7117, %v7115
        %v7186 = vpack.c.b16 %v7118, %v7116
        %v7187 = vpack.c.b16 %v7121, %v7119
        %v7188 = vpack.c.b16 %v7122, %v7120
        %v7189 = vpack.c.b16 %v7125, %v7123
        %v7190 = vpack.c.b16 %v7126, %v7124
        %v7191 = vpack.c.b16 %v7129, %v7127
        %v7192 = vpack.c.b16 %v7130, %v7128
        %v7193 = vpack.c.b16 %v7133, %v7131
        %v7194 = vpack.c.b16 %v7134, %v7132
        %v7195 = vpack.c.b16 %v7137, %v7135
        %v7196 = vpack.c.b16 %v7138, %v7136
        %v7197 = vpack.c.b16 %v7141, %v7139
        %v7198 = vpack.c.b16 %v7142, %v7140
        %v7199 = vpack.c.b16 %v7145, %v7143
        %v7200 = vpack.c.b16 %v7146, %v7144
        %v7201 = vpack.c.b16 %v7149, %v7147
        %v7202 = vpack.c.b16 %v7150, %v7148
        %7255 = vmatpush.bf16.msra.mxu0 %v7165
        %7256 = vmatpush.bf16.msra.mxu0 %v7163
        %7257 = vmatpush.bf16.msra.mxu0 %v7161
        %7258 = vmatpush.bf16.msra.mxu0 %v7159
        %7259 = vmatpush.bf16.msra.mxu0 %v7157
        %7260 = vmatpush.bf16.msra.mxu0 %v7155
        %7261 = vmatpush.bf16.msra.mxu0 %v7153
        %7262 = vmatpush.bf16.msra.mxu0 %v7151
        %7263 = vmatmul.bf16.gmra.mxu0 %v6510
        %v7264 = vpop.f32.mrf.mxu0
        %v7265 = vadd.f32 0.0, %v7264
        %v7266 = vpop.f32.mrf.mxu0
        %v7267 = vadd.f32 0.0, %v7266
        %7268 = vdwg.mxu0
        %7269 = vmatpush.bf16.msra.mxu0 %v7181
        %7270 = vmatpush.bf16.msra.mxu0 %v7179
        %7271 = vmatpush.bf16.msra.mxu0 %v7177
        %7272 = vmatpush.bf16.msra.mxu0 %v7175
        %7273 = vmatpush.bf16.msra.mxu0 %v7173
        %7274 = vmatpush.bf16.msra.mxu0 %v7171
        %7275 = vmatpush.bf16.msra.mxu0 %v7169
        %7276 = vmatpush.bf16.msra.mxu0 %v7167
        %7277 = vmatmul.bf16.gmra.mxu0 %v6511
        %v7278 = vpop.f32.mrf.mxu0
        %v7279 = vadd.f32 %v7265, %v7278
        %v7280 = vpop.f32.mrf.mxu0
        %v7281 = vadd.f32 %v7267, %v7280
        %7282 = vdwg.mxu0
        %7283 = vmatpush.bf16.msra.mxu0 %v7197
        %7284 = vmatpush.bf16.msra.mxu0 %v7195
        %7285 = vmatpush.bf16.msra.mxu0 %v7193
        %7286 = vmatpush.bf16.msra.mxu0 %v7191
        %7287 = vmatpush.bf16.msra.mxu0 %v7189
        %7288 = vmatpush.bf16.msra.mxu0 %v7187
        %7289 = vmatpush.bf16.msra.mxu0 %v7185
        %7290 = vmatpush.bf16.msra.mxu0 %v7183
        %7291 = vmatmul.bf16.gmra.mxu0 %v6512
        %v7292 = vpop.f32.mrf.mxu0
        %v7293 = vadd.f32 %v7279, %v7292
        %v7294 = vpop.f32.mrf.mxu0
        %v7295 = vadd.f32 %v7281, %v7294
        %7296 = vdwg.mxu0
        %7297 = vmatpush.bf16.msra.mxu0 0
        %7298 = vmatpush.bf16.msra.mxu0 0
        %7299 = vmatpush.bf16.msra.mxu0 0
        %7300 = vmatpush.bf16.msra.mxu0 0
        %7301 = vmatpush.bf16.msra.mxu0 0
        %7302 = vmatpush.bf16.msra.mxu0 0
        %7303 = vmatpush.bf16.msra.mxu0 %v7201
        %7304 = vmatpush.bf16.msra.mxu0 %v7199
        %7305 = vmatmul.bf16.gmra.mxu0 %v6828
        %v7306 = vpop.f32.mrf.mxu0
        %v7307 = vadd.f32 %v7293, %v7306
        %v7308 = vpop.f32.mrf.mxu0
        %v7309 = vadd.f32 %v7295, %v7308
        %7310 = vdwg.mxu0
        %7311 = vmatpush.bf16.msra.mxu0 %v7166
        %7312 = vmatpush.bf16.msra.mxu0 %v7164
        %7313 = vmatpush.bf16.msra.mxu0 %v7162
        %7314 = vmatpush.bf16.msra.mxu0 %v7160
        %7315 = vmatpush.bf16.msra.mxu0 %v7158
        %7316 = vmatpush.bf16.msra.mxu0 %v7156
        %7317 = vmatpush.bf16.msra.mxu0 %v7154
        %7318 = vmatpush.bf16.msra.mxu0 %v7152
        %7319 = vmatmul.bf16.gmra.mxu0 %v6510
        %v7320 = vpop.f32.mrf.mxu0
        %v7321 = vadd.f32 0.0, %v7320
        %v7322 = vpop.f32.mrf.mxu0
        %v7323 = vadd.f32 0.0, %v7322
        %7324 = vdwg.mxu0
        %7325 = vmatpush.bf16.msra.mxu0 %v7182
        %7326 = vmatpush.bf16.msra.mxu0 %v7180
        %7327 = vmatpush.bf16.msra.mxu0 %v7178
        %7328 = vmatpush.bf16.msra.mxu0 %v7176
        %7329 = vmatpush.bf16.msra.mxu0 %v7174
        %7330 = vmatpush.bf16.msra.mxu0 %v7172
        %7331 = vmatpush.bf16.msra.mxu0 %v7170
        %7332 = vmatpush.bf16.msra.mxu0 %v7168
        %7333 = vmatmul.bf16.gmra.mxu0 %v6511
        %v7334 = vpop.f32.mrf.mxu0
        %v7335 = vadd.f32 %v7321, %v7334
        %v7336 = vpop.f32.mrf.mxu0
        %v7337 = vadd.f32 %v7323, %v7336
        %7338 = vdwg.mxu0
        %7339 = vmatpush.bf16.msra.mxu0 %v7198
        %7340 = vmatpush.bf16.msra.mxu0 %v7196
        %7341 = vmatpush.bf16.msra.mxu0 %v7194
        %7342 = vmatpush.bf16.msra.mxu0 %v7192
        %7343 = vmatpush.bf16.msra.mxu0 %v7190
        %7344 = vmatpush.bf16.msra.mxu0 %v7188
        %7345 = vmatpush.bf16.msra.mxu0 %v7186
        %7346 = vmatpush.bf16.msra.mxu0 %v7184
        %7347 = vmatmul.bf16.gmra.mxu0 %v6512
        %v7348 = vpop.f32.mrf.mxu0
        %v7349 = vadd.f32 %v7335, %v7348
        %v7350 = vpop.f32.mrf.mxu0
        %v7351 = vadd.f32 %v7337, %v7350
        %7352 = vdwg.mxu0
        %7353 = vmatpush.bf16.msra.mxu0 0
        %7354 = vmatpush.bf16.msra.mxu0 0
        %7355 = vmatpush.bf16.msra.mxu0 0
        %7356 = vmatpush.bf16.msra.mxu0 0
        %7357 = vmatpush.bf16.msra.mxu0 0
        %7358 = vmatpush.bf16.msra.mxu0 0
        %7359 = vmatpush.bf16.msra.mxu0 %v7202
        %7360 = vmatpush.bf16.msra.mxu0 %v7200
        %7361 = vmatmul.bf16.gmra.mxu0 %v6828
        %v7362 = vpop.f32.mrf.mxu0
        %v7363 = vadd.f32 %v7349, %v7362
        %v7364 = vpop.f32.mrf.mxu0
        %v7365 = vadd.f32 %v7351, %v7364
        %7366 = vdwg.mxu0
        %v7367 = vmax.f32 %v6882, %v7307
        %v7368 = vmax.f32 %v6938, %v7363
        %v7369 = vmax.f32 %v6884, %v7309
        %v7370 = vmax.f32 %v6940, %v7365
        %v7371 = vld [vmem:[%s10] sm:$0x1]
        %v7372 = vpack.c.bf16 %v7367, %v7367
        %v7373 = vpack.c.bf16 %v7368, %v7368
        %v7374 = vld [vmem:[#allocation5] sm:$0xf]
        %v7375 = vld [vmem:[#allocation5 + $0x4] sm:$0xf]
        %v7376 = vld [vmem:[#allocation5 + $0x8] sm:$0xf]
        %v7377 = vld [vmem:[#allocation5 + $0xc] sm:$0xf]
        %v7378 = vld [vmem:[#allocation5 + $0x10] sm:$0xf]
        %v7379 = vld [vmem:[#allocation5 + $0x14] sm:$0xf]
        %v7380 = vld [vmem:[#allocation5 + $0x18] sm:$0xf]
        %v7381 = vld [vmem:[#allocation5 + $0x1c] sm:$0xf]
        %v7382 = vld [vmem:[#allocation5 + $0x20] sm:$0xf]
        %v7383 = vld [vmem:[#allocation5 + $0x24] sm:$0xf]
        %v7384 = vld [vmem:[#allocation5 + $0x28] sm:$0xf]
        %v7385 = vld [vmem:[#allocation5 + $0x2c] sm:$0xf]
        %v7386 = vld [vmem:[#allocation5 + $0x30] sm:$0xf]
        %v7387 = vld [vmem:[#allocation5 + $0x34] sm:$0xf]
        %v7388 = vld [vmem:[#allocation5 + $0x38] sm:$0xf]
        %v7389 = vld [vmem:[#allocation5 + $0x3c] sm:$0xf]
        %v7390 = vld [vmem:[#allocation5 + $0x40] sm:$0xf]
        %v7391 = vld [vmem:[#allocation5 + $0x44] sm:$0xf]
        %v7392 = vld [vmem:[#allocation5 + $0x48] sm:$0xf]
        %v7393 = vld [vmem:[#allocation5 + $0x4c] sm:$0xf]
        %v7394 = vld [vmem:[#allocation5 + $0x50] sm:$0xf]
        %v7395 = vld [vmem:[#allocation5 + $0x54] sm:$0xf]
        %v7396 = vld [vmem:[#allocation5 + $0x58] sm:$0xf]
        %v7397 = vld [vmem:[#allocation5 + $0x5c] sm:$0xf]
        %v7398 = vld [vmem:[#allocation5 + $0x60] sm:$0xf]
        %v7399 = vld [vmem:[#allocation5 + $0x64] sm:$0xf]
        %v7426 = vunpack.c.l.b16 %v7374
        %v7427 = vunpack.c.l.b16 %v7375
        %v7428 = vunpack.c.l.b16 %v7376
        %v7429 = vunpack.c.l.b16 %v7377
        %v7430 = vunpack.c.l.b16 %v7378
        %v7431 = vunpack.c.l.b16 %v7379
        %v7432 = vunpack.c.l.b16 %v7380
        %v7433 = vunpack.c.l.b16 %v7381
        %v7434 = vunpack.c.l.b16 %v7382
        %v7435 = vunpack.c.l.b16 %v7383
        %v7436 = vunpack.c.l.b16 %v7384
        %v7437 = vunpack.c.l.b16 %v7385
        %v7438 = vunpack.c.l.b16 %v7386
        %v7439 = vunpack.c.l.b16 %v7387
        %v7440 = vunpack.c.l.b16 %v7388
        %v7441 = vunpack.c.l.b16 %v7389
        %v7442 = vunpack.c.l.b16 %v7390
        %v7443 = vunpack.c.l.b16 %v7391
        %v7444 = vunpack.c.l.b16 %v7392
        %v7445 = vunpack.c.l.b16 %v7393
        %v7446 = vunpack.c.l.b16 %v7394
        %v7447 = vunpack.c.l.b16 %v7395
        %v7448 = vunpack.c.l.b16 %v7396
        %v7449 = vunpack.c.l.b16 %v7397
        %v7450 = vunpack.c.l.b16 %v7398
        %v7451 = vunpack.c.l.b16 %v7399
        %v7452 = vpack.c.b16 %v7427, %v7426
        %v7453 = vpack.c.b16 %v7429, %v7428
        %v7454 = vpack.c.b16 %v7431, %v7430
        %v7455 = vpack.c.b16 %v7433, %v7432
        %v7456 = vpack.c.b16 %v7435, %v7434
        %v7457 = vpack.c.b16 %v7437, %v7436
        %v7458 = vpack.c.b16 %v7439, %v7438
        %v7459 = vpack.c.b16 %v7441, %v7440
        %v7460 = vpack.c.b16 %v7443, %v7442
        %v7461 = vpack.c.b16 %v7445, %v7444
        %v7462 = vpack.c.b16 %v7447, %v7446
        %v7463 = vpack.c.b16 %v7449, %v7448
        %v7464 = vpack.c.b16 %v7451, %v7450
        %vm7478 = vcmask 654336
        %v7480 = vsel %vm7478, %v7373, 0
        %7482 = vmatpush.bf16.msra.mxu0 %v7459
        %7483 = vmatpush.bf16.msra.mxu0 %v7458
        %7484 = vmatpush.bf16.msra.mxu0 %v7457
        %7485 = vmatpush.bf16.msra.mxu0 %v7456
        %7486 = vmatpush.bf16.msra.mxu0 %v7455
        %7487 = vmatpush.bf16.msra.mxu0 %v7454
        %7488 = vmatpush.bf16.msra.mxu0 %v7453
        %7489 = vmatpush.bf16.msra.mxu0 %v7452
        %7490 = vmatmul.bf16.gmra.mxu0 %v7372
        %v7491 = vpop.f32.mrf.mxu0
        %v7492 = vadd.f32 0.0, %v7491
        %v7493 = vpop.f32.mrf.mxu0
        %7494 = vdwg.mxu0
        %7495 = vmatpush.bf16.msra.mxu0 0
        %7496 = vmatpush.bf16.msra.mxu0 0
        %7497 = vmatpush.bf16.msra.mxu0 0
        %7498 = vmatpush.bf16.msra.mxu0 %v7464
        %7499 = vmatpush.bf16.msra.mxu0 %v7463
        %7500 = vmatpush.bf16.msra.mxu0 %v7462
        %7501 = vmatpush.bf16.msra.mxu0 %v7461
        %7502 = vmatpush.bf16.msra.mxu0 %v7460
        %7503 = vmatmul.bf16.gmra.mxu0 %v7480
        %v7504 = vpop.f32.mrf.mxu0
        %v7505 = vadd.f32 %v7492, %v7504
        %v7506 = vpop.f32.mrf.mxu0
        %7507 = vdwg.mxu0
        %v7508 = vadd.f32 %v7371, %v7505
        %s7509 = scalar_lea.vmem [#allocation5], 104
        %v7510 = vld [vmem:[%s7509] sm:$0xf]
        %v7511 = vld [vmem:[%s7509 + $0x4] sm:$0xf]
        %v7512 = vld [vmem:[%s7509 + $0x8] sm:$0xf]
        %v7513 = vld [vmem:[%s7509 + $0xc] sm:$0xf]
        %v7514 = vld [vmem:[%s7509 + $0x10] sm:$0xf]
        %v7515 = vld [vmem:[%s7509 + $0x14] sm:$0xf]
        %v7516 = vld [vmem:[%s7509 + $0x18] sm:$0xf]
        %v7517 = vld [vmem:[%s7509 + $0x1c] sm:$0xf]
        %v7518 = vld [vmem:[%s7509 + $0x20] sm:$0xf]
        %v7519 = vld [vmem:[%s7509 + $0x24] sm:$0xf]
        %v7520 = vld [vmem:[%s7509 + $0x28] sm:$0xf]
        %v7521 = vld [vmem:[%s7509 + $0x2c] sm:$0xf]
        %v7522 = vld [vmem:[%s7509 + $0x30] sm:$0xf]
        %v7523 = vld [vmem:[%s7509 + $0x34] sm:$0xf]
        %v7524 = vld [vmem:[%s7509 + $0x38] sm:$0xf]
        %v7525 = vld [vmem:[%s7509 + $0x3c] sm:$0xf]
        %v7526 = vld [vmem:[%s7509 + $0x40] sm:$0xf]
        %v7527 = vld [vmem:[%s7509 + $0x44] sm:$0xf]
        %v7528 = vld [vmem:[%s7509 + $0x48] sm:$0xf]
        %v7529 = vld [vmem:[%s7509 + $0x4c] sm:$0xf]
        %v7530 = vld [vmem:[%s7509 + $0x50] sm:$0xf]
        %v7531 = vld [vmem:[%s7509 + $0x54] sm:$0xf]
        %v7532 = vld [vmem:[%s7509 + $0x58] sm:$0xf]
        %v7533 = vld [vmem:[%s7509 + $0x5c] sm:$0xf]
        %v7534 = vld [vmem:[%s7509 + $0x60] sm:$0xf]
        %v7535 = vld [vmem:[%s7509 + $0x64] sm:$0xf]
        %v7537 = vshrl.u32 %v7372, 16
        %v7539 = vshrl.u32 %v7373, 16
        %v7568 = vunpack.c.l.b16 %v7510
        %v7569 = vunpack.c.l.b16 %v7511
        %v7570 = vunpack.c.l.b16 %v7512
        %v7571 = vunpack.c.l.b16 %v7513
        %v7572 = vunpack.c.l.b16 %v7514
        %v7573 = vunpack.c.l.b16 %v7515
        %v7574 = vunpack.c.l.b16 %v7516
        %v7575 = vunpack.c.l.b16 %v7517
        %v7576 = vunpack.c.l.b16 %v7518
        %v7577 = vunpack.c.l.b16 %v7519
        %v7578 = vunpack.c.l.b16 %v7520
        %v7579 = vunpack.c.l.b16 %v7521
        %v7580 = vunpack.c.l.b16 %v7522
        %v7581 = vunpack.c.l.b16 %v7523
        %v7582 = vunpack.c.l.b16 %v7524
        %v7583 = vunpack.c.l.b16 %v7525
        %v7584 = vunpack.c.l.b16 %v7526
        %v7585 = vunpack.c.l.b16 %v7527
        %v7586 = vunpack.c.l.b16 %v7528
        %v7587 = vunpack.c.l.b16 %v7529
        %v7588 = vunpack.c.l.b16 %v7530
        %v7589 = vunpack.c.l.b16 %v7531
        %v7590 = vunpack.c.l.b16 %v7532
        %v7591 = vunpack.c.l.b16 %v7533
        %v7592 = vunpack.c.l.b16 %v7534
        %v7593 = vunpack.c.l.b16 %v7535
        %v7594 = vpack.c.b16 %v7569, %v7568
        %v7595 = vpack.c.b16 %v7571, %v7570
        %v7596 = vpack.c.b16 %v7573, %v7572
        %v7597 = vpack.c.b16 %v7575, %v7574
        %v7598 = vpack.c.b16 %v7577, %v7576
        %v7599 = vpack.c.b16 %v7579, %v7578
        %v7600 = vpack.c.b16 %v7581, %v7580
        %v7601 = vpack.c.b16 %v7583, %v7582
        %v7602 = vpack.c.b16 %v7585, %v7584
        %v7603 = vpack.c.b16 %v7587, %v7586
        %v7604 = vpack.c.b16 %v7589, %v7588
        %v7605 = vpack.c.b16 %v7591, %v7590
        %v7606 = vpack.c.b16 %v7593, %v7592
        %v7621 = vsel %vm7478, %v7539, 0
        %7623 = vmatpush.bf16.msra.mxu0 %v7601
        %7624 = vmatpush.bf16.msra.mxu0 %v7600
        %7625 = vmatpush.bf16.msra.mxu0 %v7599
        %7626 = vmatpush.bf16.msra.mxu0 %v7598
        %7627 = vmatpush.bf16.msra.mxu0 %v7597
        %7628 = vmatpush.bf16.msra.mxu0 %v7596
        %7629 = vmatpush.bf16.msra.mxu0 %v7595
        %7630 = vmatpush.bf16.msra.mxu0 %v7594
        %7631 = vmatmul.bf16.gmra.mxu0 %v7537
        %v7632 = vpop.f32.mrf.mxu0
        %v7633 = vadd.f32 0.0, %v7632
        %v7634 = vpop.f32.mrf.mxu0
        %7635 = vdwg.mxu0
        %7636 = vmatpush.bf16.msra.mxu0 0
        %7637 = vmatpush.bf16.msra.mxu0 0
        %7638 = vmatpush.bf16.msra.mxu0 0
        %7639 = vmatpush.bf16.msra.mxu0 %v7606
        %7640 = vmatpush.bf16.msra.mxu0 %v7605
        %7641 = vmatpush.bf16.msra.mxu0 %v7604
        %7642 = vmatpush.bf16.msra.mxu0 %v7603
        %7643 = vmatpush.bf16.msra.mxu0 %v7602
        %7644 = vmatmul.bf16.gmra.mxu0 %v7621
        %v7645 = vpop.f32.mrf.mxu0
        %v7646 = vadd.f32 %v7633, %v7645
        %v7647 = vpop.f32.mrf.mxu0
        %7648 = vdwg.mxu0
        %v7649 = vadd.f32 %v7508, %v7646
        %s7650 = scalar_lea.vmem [#allocation5], 208
        %v7651 = vld [vmem:[%s7650] sm:$0xf]
        %v7652 = vld [vmem:[%s7650 + $0x4] sm:$0xf]
        %v7653 = vld [vmem:[%s7650 + $0x8] sm:$0xf]
        %v7654 = vld [vmem:[%s7650 + $0xc] sm:$0xf]
        %v7655 = vld [vmem:[%s7650 + $0x10] sm:$0xf]
        %v7656 = vld [vmem:[%s7650 + $0x14] sm:$0xf]
        %v7657 = vld [vmem:[%s7650 + $0x18] sm:$0xf]
        %v7658 = vld [vmem:[%s7650 + $0x1c] sm:$0xf]
        %v7659 = vld [vmem:[%s7650 + $0x20] sm:$0xf]
        %v7660 = vld [vmem:[%s7650 + $0x24] sm:$0xf]
        %v7661 = vld [vmem:[%s7650 + $0x28] sm:$0xf]
        %v7662 = vld [vmem:[%s7650 + $0x2c] sm:$0xf]
        %v7663 = vld [vmem:[%s7650 + $0x30] sm:$0xf]
        %v7664 = vld [vmem:[%s7650 + $0x34] sm:$0xf]
        %v7665 = vld [vmem:[%s7650 + $0x38] sm:$0xf]
        %v7666 = vld [vmem:[%s7650 + $0x3c] sm:$0xf]
        %v7667 = vld [vmem:[%s7650 + $0x40] sm:$0xf]
        %v7668 = vld [vmem:[%s7650 + $0x44] sm:$0xf]
        %v7669 = vld [vmem:[%s7650 + $0x48] sm:$0xf]
        %v7670 = vld [vmem:[%s7650 + $0x4c] sm:$0xf]
        %v7671 = vld [vmem:[%s7650 + $0x50] sm:$0xf]
        %v7672 = vld [vmem:[%s7650 + $0x54] sm:$0xf]
        %v7673 = vld [vmem:[%s7650 + $0x58] sm:$0xf]
        %v7674 = vld [vmem:[%s7650 + $0x5c] sm:$0xf]
        %v7675 = vld [vmem:[%s7650 + $0x60] sm:$0xf]
        %v7676 = vld [vmem:[%s7650 + $0x64] sm:$0xf]
        %v7679 = vrot.slane %v7372, 1
        %v7680 = vrot.slane %v7373, 1
        %v7708 = vunpack.c.l.b16 %v7651
        %v7709 = vunpack.c.l.b16 %v7652
        %v7710 = vunpack.c.l.b16 %v7653
        %v7711 = vunpack.c.l.b16 %v7654
        %v7712 = vunpack.c.l.b16 %v7655
        %v7713 = vunpack.c.l.b16 %v7656
        %v7714 = vunpack.c.l.b16 %v7657
        %v7715 = vunpack.c.l.b16 %v7658
        %v7716 = vunpack.c.l.b16 %v7659
        %v7717 = vunpack.c.l.b16 %v7660
        %v7718 = vunpack.c.l.b16 %v7661
        %v7719 = vunpack.c.l.b16 %v7662
        %v7720 = vunpack.c.l.b16 %v7663
        %v7721 = vunpack.c.l.b16 %v7664
        %v7722 = vunpack.c.l.b16 %v7665
        %v7723 = vunpack.c.l.b16 %v7666
        %v7724 = vunpack.c.l.b16 %v7667
        %v7725 = vunpack.c.l.b16 %v7668
        %v7726 = vunpack.c.l.b16 %v7669
        %v7727 = vunpack.c.l.b16 %v7670
        %v7728 = vunpack.c.l.b16 %v7671
        %v7729 = vunpack.c.l.b16 %v7672
        %v7730 = vunpack.c.l.b16 %v7673
        %v7731 = vunpack.c.l.b16 %v7674
        %v7732 = vunpack.c.l.b16 %v7675
        %v7733 = vunpack.c.l.b16 %v7676
        %v7734 = vpack.c.b16 %v7709, %v7708
        %v7735 = vpack.c.b16 %v7711, %v7710
        %v7736 = vpack.c.b16 %v7713, %v7712
        %v7737 = vpack.c.b16 %v7715, %v7714
        %v7738 = vpack.c.b16 %v7717, %v7716
        %v7739 = vpack.c.b16 %v7719, %v7718
        %v7740 = vpack.c.b16 %v7721, %v7720
        %v7741 = vpack.c.b16 %v7723, %v7722
        %v7742 = vpack.c.b16 %v7725, %v7724
        %v7743 = vpack.c.b16 %v7727, %v7726
        %v7744 = vpack.c.b16 %v7729, %v7728
        %v7745 = vpack.c.b16 %v7731, %v7730
        %v7746 = vpack.c.b16 %v7733, %v7732
        %v7761 = vsel %vm7478, %v7680, 0
        %7763 = vmatpush.bf16.msra.mxu0 %v7741
        %7764 = vmatpush.bf16.msra.mxu0 %v7740
        %7765 = vmatpush.bf16.msra.mxu0 %v7739
        %7766 = vmatpush.bf16.msra.mxu0 %v7738
        %7767 = vmatpush.bf16.msra.mxu0 %v7737
        %7768 = vmatpush.bf16.msra.mxu0 %v7736
        %7769 = vmatpush.bf16.msra.mxu0 %v7735
        %7770 = vmatpush.bf16.msra.mxu0 %v7734
        %7771 = vmatmul.bf16.gmra.mxu0 %v7679
        %v7772 = vpop.f32.mrf.mxu0
        %v7773 = vadd.f32 0.0, %v7772
        %v7774 = vpop.f32.mrf.mxu0
        %7775 = vdwg.mxu0
        %7776 = vmatpush.bf16.msra.mxu0 0
        %7777 = vmatpush.bf16.msra.mxu0 0
        %7778 = vmatpush.bf16.msra.mxu0 0
        %7779 = vmatpush.bf16.msra.mxu0 %v7746
        %7780 = vmatpush.bf16.msra.mxu0 %v7745
        %7781 = vmatpush.bf16.msra.mxu0 %v7744
        %7782 = vmatpush.bf16.msra.mxu0 %v7743
        %7783 = vmatpush.bf16.msra.mxu0 %v7742
        %7784 = vmatmul.bf16.gmra.mxu0 %v7761
        %v7785 = vpop.f32.mrf.mxu0
        %v7786 = vadd.f32 %v7773, %v7785
        %v7787 = vpop.f32.mrf.mxu0
        %7788 = vdwg.mxu0
        %v7789 = vadd.f32 %v7649, %v7786
        %s7790 = scalar_lea.vmem [#allocation5], 312
        %v7791 = vld [vmem:[%s7790] sm:$0xf]
        %v7792 = vld [vmem:[%s7790 + $0x4] sm:$0xf]
        %v7793 = vld [vmem:[%s7790 + $0x8] sm:$0xf]
        %v7794 = vld [vmem:[%s7790 + $0xc] sm:$0xf]
        %v7795 = vld [vmem:[%s7790 + $0x10] sm:$0xf]
        %v7796 = vld [vmem:[%s7790 + $0x14] sm:$0xf]
        %v7797 = vld [vmem:[%s7790 + $0x18] sm:$0xf]
        %v7798 = vld [vmem:[%s7790 + $0x1c] sm:$0xf]
        %v7799 = vld [vmem:[%s7790 + $0x20] sm:$0xf]
        %v7800 = vld [vmem:[%s7790 + $0x24] sm:$0xf]
        %v7801 = vld [vmem:[%s7790 + $0x28] sm:$0xf]
        %v7802 = vld [vmem:[%s7790 + $0x2c] sm:$0xf]
        %v7803 = vld [vmem:[%s7790 + $0x30] sm:$0xf]
        %v7804 = vld [vmem:[%s7790 + $0x34] sm:$0xf]
        %v7805 = vld [vmem:[%s7790 + $0x38] sm:$0xf]
        %v7806 = vld [vmem:[%s7790 + $0x3c] sm:$0xf]
        %v7807 = vld [vmem:[%s7790 + $0x40] sm:$0xf]
        %v7808 = vld [vmem:[%s7790 + $0x44] sm:$0xf]
        %v7809 = vld [vmem:[%s7790 + $0x48] sm:$0xf]
        %v7810 = vld [vmem:[%s7790 + $0x4c] sm:$0xf]
        %v7811 = vld [vmem:[%s7790 + $0x50] sm:$0xf]
        %v7812 = vld [vmem:[%s7790 + $0x54] sm:$0xf]
        %v7813 = vld [vmem:[%s7790 + $0x58] sm:$0xf]
        %v7814 = vld [vmem:[%s7790 + $0x5c] sm:$0xf]
        %v7815 = vld [vmem:[%s7790 + $0x60] sm:$0xf]
        %v7816 = vld [vmem:[%s7790 + $0x64] sm:$0xf]
        %v7817 = vrot.slane %v7537, 1
        %v7818 = vrot.slane %v7539, 1
        %v7846 = vunpack.c.l.b16 %v7791
        %v7847 = vunpack.c.l.b16 %v7792
        %v7848 = vunpack.c.l.b16 %v7793
        %v7849 = vunpack.c.l.b16 %v7794
        %v7850 = vunpack.c.l.b16 %v7795
        %v7851 = vunpack.c.l.b16 %v7796
        %v7852 = vunpack.c.l.b16 %v7797
        %v7853 = vunpack.c.l.b16 %v7798
        %v7854 = vunpack.c.l.b16 %v7799
        %v7855 = vunpack.c.l.b16 %v7800
        %v7856 = vunpack.c.l.b16 %v7801
        %v7857 = vunpack.c.l.b16 %v7802
        %v7858 = vunpack.c.l.b16 %v7803
        %v7859 = vunpack.c.l.b16 %v7804
        %v7860 = vunpack.c.l.b16 %v7805
        %v7861 = vunpack.c.l.b16 %v7806
        %v7862 = vunpack.c.l.b16 %v7807
        %v7863 = vunpack.c.l.b16 %v7808
        %v7864 = vunpack.c.l.b16 %v7809
        %v7865 = vunpack.c.l.b16 %v7810
        %v7866 = vunpack.c.l.b16 %v7811
        %v7867 = vunpack.c.l.b16 %v7812
        %v7868 = vunpack.c.l.b16 %v7813
        %v7869 = vunpack.c.l.b16 %v7814
        %v7870 = vunpack.c.l.b16 %v7815
        %v7871 = vunpack.c.l.b16 %v7816
        %v7872 = vpack.c.b16 %v7847, %v7846
        %v7873 = vpack.c.b16 %v7849, %v7848
        %v7874 = vpack.c.b16 %v7851, %v7850
        %v7875 = vpack.c.b16 %v7853, %v7852
        %v7876 = vpack.c.b16 %v7855, %v7854
        %v7877 = vpack.c.b16 %v7857, %v7856
        %v7878 = vpack.c.b16 %v7859, %v7858
        %v7879 = vpack.c.b16 %v7861, %v7860
        %v7880 = vpack.c.b16 %v7863, %v7862
        %v7881 = vpack.c.b16 %v7865, %v7864
        %v7882 = vpack.c.b16 %v7867, %v7866
        %v7883 = vpack.c.b16 %v7869, %v7868
        %v7884 = vpack.c.b16 %v7871, %v7870
        %v7899 = vsel %vm7478, %v7818, 0
        %7901 = vmatpush.bf16.msra.mxu0 %v7879
        %7902 = vmatpush.bf16.msra.mxu0 %v7878
        %7903 = vmatpush.bf16.msra.mxu0 %v7877
        %7904 = vmatpush.bf16.msra.mxu0 %v7876
        %7905 = vmatpush.bf16.msra.mxu0 %v7875
        %7906 = vmatpush.bf16.msra.mxu0 %v7874
        %7907 = vmatpush.bf16.msra.mxu0 %v7873
        %7908 = vmatpush.bf16.msra.mxu0 %v7872
        %7909 = vmatmul.bf16.gmra.mxu0 %v7817
        %v7910 = vpop.f32.mrf.mxu0
        %v7911 = vadd.f32 0.0, %v7910
        %v7912 = vpop.f32.mrf.mxu0
        %7913 = vdwg.mxu0
        %7914 = vmatpush.bf16.msra.mxu0 0
        %7915 = vmatpush.bf16.msra.mxu0 0
        %7916 = vmatpush.bf16.msra.mxu0 0
        %7917 = vmatpush.bf16.msra.mxu0 %v7884
        %7918 = vmatpush.bf16.msra.mxu0 %v7883
        %7919 = vmatpush.bf16.msra.mxu0 %v7882
        %7920 = vmatpush.bf16.msra.mxu0 %v7881
        %7921 = vmatpush.bf16.msra.mxu0 %v7880
        %7922 = vmatmul.bf16.gmra.mxu0 %v7899
        %v7923 = vpop.f32.mrf.mxu0
        %v7924 = vadd.f32 %v7911, %v7923
        %v7925 = vpop.f32.mrf.mxu0
        %7926 = vdwg.mxu0
        %v7927 = vadd.f32 %v7789, %v7924
        %s7928 = scalar_lea.vmem [#allocation5], 416
        %v7929 = vld [vmem:[%s7928] sm:$0xf]
        %v7930 = vld [vmem:[%s7928 + $0x4] sm:$0xf]
        %v7931 = vld [vmem:[%s7928 + $0x8] sm:$0xf]
        %v7932 = vld [vmem:[%s7928 + $0xc] sm:$0xf]
        %v7933 = vld [vmem:[%s7928 + $0x10] sm:$0xf]
        %v7934 = vld [vmem:[%s7928 + $0x14] sm:$0xf]
        %v7935 = vld [vmem:[%s7928 + $0x18] sm:$0xf]
        %v7936 = vld [vmem:[%s7928 + $0x1c] sm:$0xf]
        %v7937 = vld [vmem:[%s7928 + $0x20] sm:$0xf]
        %v7938 = vld [vmem:[%s7928 + $0x24] sm:$0xf]
        %v7939 = vld [vmem:[%s7928 + $0x28] sm:$0xf]
        %v7940 = vld [vmem:[%s7928 + $0x2c] sm:$0xf]
        %v7941 = vld [vmem:[%s7928 + $0x30] sm:$0xf]
        %v7942 = vld [vmem:[%s7928 + $0x34] sm:$0xf]
        %v7943 = vld [vmem:[%s7928 + $0x38] sm:$0xf]
        %v7944 = vld [vmem:[%s7928 + $0x3c] sm:$0xf]
        %v7945 = vld [vmem:[%s7928 + $0x40] sm:$0xf]
        %v7946 = vld [vmem:[%s7928 + $0x44] sm:$0xf]
        %v7947 = vld [vmem:[%s7928 + $0x48] sm:$0xf]
        %v7948 = vld [vmem:[%s7928 + $0x4c] sm:$0xf]
        %v7949 = vld [vmem:[%s7928 + $0x50] sm:$0xf]
        %v7950 = vld [vmem:[%s7928 + $0x54] sm:$0xf]
        %v7951 = vld [vmem:[%s7928 + $0x58] sm:$0xf]
        %v7952 = vld [vmem:[%s7928 + $0x5c] sm:$0xf]
        %v7953 = vld [vmem:[%s7928 + $0x60] sm:$0xf]
        %v7954 = vld [vmem:[%s7928 + $0x64] sm:$0xf]
        %v7955 = vrot.slane %v7372, 2
        %v7956 = vrot.slane %v7373, 2
        %v7984 = vunpack.c.l.b16 %v7929
        %v7985 = vunpack.c.l.b16 %v7930
        %v7986 = vunpack.c.l.b16 %v7931
        %v7987 = vunpack.c.l.b16 %v7932
        %v7988 = vunpack.c.l.b16 %v7933
        %v7989 = vunpack.c.l.b16 %v7934
        %v7990 = vunpack.c.l.b16 %v7935
        %v7991 = vunpack.c.l.b16 %v7936
        %v7992 = vunpack.c.l.b16 %v7937
        %v7993 = vunpack.c.l.b16 %v7938
        %v7994 = vunpack.c.l.b16 %v7939
        %v7995 = vunpack.c.l.b16 %v7940
        %v7996 = vunpack.c.l.b16 %v7941
        %v7997 = vunpack.c.l.b16 %v7942
        %v7998 = vunpack.c.l.b16 %v7943
        %v7999 = vunpack.c.l.b16 %v7944
        %v8000 = vunpack.c.l.b16 %v7945
        %v8001 = vunpack.c.l.b16 %v7946
        %v8002 = vunpack.c.l.b16 %v7947
        %v8003 = vunpack.c.l.b16 %v7948
        %v8004 = vunpack.c.l.b16 %v7949
        %v8005 = vunpack.c.l.b16 %v7950
        %v8006 = vunpack.c.l.b16 %v7951
        %v8007 = vunpack.c.l.b16 %v7952
        %v8008 = vunpack.c.l.b16 %v7953
        %v8009 = vunpack.c.l.b16 %v7954
        %v8010 = vpack.c.b16 %v7985, %v7984
        %v8011 = vpack.c.b16 %v7987, %v7986
        %v8012 = vpack.c.b16 %v7989, %v7988
        %v8013 = vpack.c.b16 %v7991, %v7990
        %v8014 = vpack.c.b16 %v7993, %v7992
        %v8015 = vpack.c.b16 %v7995, %v7994
        %v8016 = vpack.c.b16 %v7997, %v7996
        %v8017 = vpack.c.b16 %v7999, %v7998
        %v8018 = vpack.c.b16 %v8001, %v8000
        %v8019 = vpack.c.b16 %v8003, %v8002
        %v8020 = vpack.c.b16 %v8005, %v8004
        %v8021 = vpack.c.b16 %v8007, %v8006
        %v8022 = vpack.c.b16 %v8009, %v8008
        %v8037 = vsel %vm7478, %v7956, 0
        %8039 = vmatpush.bf16.msra.mxu0 %v8017
        %8040 = vmatpush.bf16.msra.mxu0 %v8016
        %8041 = vmatpush.bf16.msra.mxu0 %v8015
        %8042 = vmatpush.bf16.msra.mxu0 %v8014
        %8043 = vmatpush.bf16.msra.mxu0 %v8013
        %8044 = vmatpush.bf16.msra.mxu0 %v8012
        %8045 = vmatpush.bf16.msra.mxu0 %v8011
        %8046 = vmatpush.bf16.msra.mxu0 %v8010
        %8047 = vmatmul.bf16.gmra.mxu0 %v7955
        %v8048 = vpop.f32.mrf.mxu0
        %v8049 = vadd.f32 0.0, %v8048
        %v8050 = vpop.f32.mrf.mxu0
        %8051 = vdwg.mxu0
        %8052 = vmatpush.bf16.msra.mxu0 0
        %8053 = vmatpush.bf16.msra.mxu0 0
        %8054 = vmatpush.bf16.msra.mxu0 0
        %8055 = vmatpush.bf16.msra.mxu0 %v8022
        %8056 = vmatpush.bf16.msra.mxu0 %v8021
        %8057 = vmatpush.bf16.msra.mxu0 %v8020
        %8058 = vmatpush.bf16.msra.mxu0 %v8019
        %8059 = vmatpush.bf16.msra.mxu0 %v8018
        %8060 = vmatmul.bf16.gmra.mxu0 %v8037
        %v8061 = vpop.f32.mrf.mxu0
        %v8062 = vadd.f32 %v8049, %v8061
        %v8063 = vpop.f32.mrf.mxu0
        %8064 = vdwg.mxu0
        %v8065 = vadd.f32 %v7927, %v8062
        %s8066 = scalar_lea.vmem [#allocation5], 520
        %v8067 = vld [vmem:[%s8066] sm:$0xf]
        %v8068 = vld [vmem:[%s8066 + $0x4] sm:$0xf]
        %v8069 = vld [vmem:[%s8066 + $0x8] sm:$0xf]
        %v8070 = vld [vmem:[%s8066 + $0xc] sm:$0xf]
        %v8071 = vld [vmem:[%s8066 + $0x10] sm:$0xf]
        %v8072 = vld [vmem:[%s8066 + $0x14] sm:$0xf]
        %v8073 = vld [vmem:[%s8066 + $0x18] sm:$0xf]
        %v8074 = vld [vmem:[%s8066 + $0x1c] sm:$0xf]
        %v8075 = vld [vmem:[%s8066 + $0x20] sm:$0xf]
        %v8076 = vld [vmem:[%s8066 + $0x24] sm:$0xf]
        %v8077 = vld [vmem:[%s8066 + $0x28] sm:$0xf]
        %v8078 = vld [vmem:[%s8066 + $0x2c] sm:$0xf]
        %v8079 = vld [vmem:[%s8066 + $0x30] sm:$0xf]
        %v8080 = vld [vmem:[%s8066 + $0x34] sm:$0xf]
        %v8081 = vld [vmem:[%s8066 + $0x38] sm:$0xf]
        %v8082 = vld [vmem:[%s8066 + $0x3c] sm:$0xf]
        %v8083 = vld [vmem:[%s8066 + $0x40] sm:$0xf]
        %v8084 = vld [vmem:[%s8066 + $0x44] sm:$0xf]
        %v8085 = vld [vmem:[%s8066 + $0x48] sm:$0xf]
        %v8086 = vld [vmem:[%s8066 + $0x4c] sm:$0xf]
        %v8087 = vld [vmem:[%s8066 + $0x50] sm:$0xf]
        %v8088 = vld [vmem:[%s8066 + $0x54] sm:$0xf]
        %v8089 = vld [vmem:[%s8066 + $0x58] sm:$0xf]
        %v8090 = vld [vmem:[%s8066 + $0x5c] sm:$0xf]
        %v8091 = vld [vmem:[%s8066 + $0x60] sm:$0xf]
        %v8092 = vld [vmem:[%s8066 + $0x64] sm:$0xf]
        %v8093 = vrot.slane %v7537, 2
        %v8094 = vrot.slane %v7539, 2
        %v8122 = vunpack.c.l.b16 %v8067
        %v8123 = vunpack.c.l.b16 %v8068
        %v8124 = vunpack.c.l.b16 %v8069
        %v8125 = vunpack.c.l.b16 %v8070
        %v8126 = vunpack.c.l.b16 %v8071
        %v8127 = vunpack.c.l.b16 %v8072
        %v8128 = vunpack.c.l.b16 %v8073
        %v8129 = vunpack.c.l.b16 %v8074
        %v8130 = vunpack.c.l.b16 %v8075
        %v8131 = vunpack.c.l.b16 %v8076
        %v8132 = vunpack.c.l.b16 %v8077
        %v8133 = vunpack.c.l.b16 %v8078
        %v8134 = vunpack.c.l.b16 %v8079
        %v8135 = vunpack.c.l.b16 %v8080
        %v8136 = vunpack.c.l.b16 %v8081
        %v8137 = vunpack.c.l.b16 %v8082
        %v8138 = vunpack.c.l.b16 %v8083
        %v8139 = vunpack.c.l.b16 %v8084
        %v8140 = vunpack.c.l.b16 %v8085
        %v8141 = vunpack.c.l.b16 %v8086
        %v8142 = vunpack.c.l.b16 %v8087
        %v8143 = vunpack.c.l.b16 %v8088
        %v8144 = vunpack.c.l.b16 %v8089
        %v8145 = vunpack.c.l.b16 %v8090
        %v8146 = vunpack.c.l.b16 %v8091
        %v8147 = vunpack.c.l.b16 %v8092
        %v8148 = vpack.c.b16 %v8123, %v8122
        %v8149 = vpack.c.b16 %v8125, %v8124
        %v8150 = vpack.c.b16 %v8127, %v8126
        %v8151 = vpack.c.b16 %v8129, %v8128
        %v8152 = vpack.c.b16 %v8131, %v8130
        %v8153 = vpack.c.b16 %v8133, %v8132
        %v8154 = vpack.c.b16 %v8135, %v8134
        %v8155 = vpack.c.b16 %v8137, %v8136
        %v8156 = vpack.c.b16 %v8139, %v8138
        %v8157 = vpack.c.b16 %v8141, %v8140
        %v8158 = vpack.c.b16 %v8143, %v8142
        %v8159 = vpack.c.b16 %v8145, %v8144
        %v8160 = vpack.c.b16 %v8147, %v8146
        %v8175 = vsel %vm7478, %v8094, 0
        %8177 = vmatpush.bf16.msra.mxu0 %v8155
        %8178 = vmatpush.bf16.msra.mxu0 %v8154
        %8179 = vmatpush.bf16.msra.mxu0 %v8153
        %8180 = vmatpush.bf16.msra.mxu0 %v8152
        %8181 = vmatpush.bf16.msra.mxu0 %v8151
        %8182 = vmatpush.bf16.msra.mxu0 %v8150
        %8183 = vmatpush.bf16.msra.mxu0 %v8149
        %8184 = vmatpush.bf16.msra.mxu0 %v8148
        %8185 = vmatmul.bf16.gmra.mxu0 %v8093
        %v8186 = vpop.f32.mrf.mxu0
        %v8187 = vadd.f32 0.0, %v8186
        %v8188 = vpop.f32.mrf.mxu0
        %8189 = vdwg.mxu0
        %8190 = vmatpush.bf16.msra.mxu0 0
        %8191 = vmatpush.bf16.msra.mxu0 0
        %8192 = vmatpush.bf16.msra.mxu0 0
        %8193 = vmatpush.bf16.msra.mxu0 %v8160
        %8194 = vmatpush.bf16.msra.mxu0 %v8159
        %8195 = vmatpush.bf16.msra.mxu0 %v8158
        %8196 = vmatpush.bf16.msra.mxu0 %v8157
        %8197 = vmatpush.bf16.msra.mxu0 %v8156
        %8198 = vmatmul.bf16.gmra.mxu0 %v8175
        %v8199 = vpop.f32.mrf.mxu0
        %v8200 = vadd.f32 %v8187, %v8199
        %v8201 = vpop.f32.mrf.mxu0
        %8202 = vdwg.mxu0
        %v8203 = vadd.f32 %v8065, %v8200
        %s8204 = scalar_lea.vmem [#allocation5], 624
        %v8205 = vld [vmem:[%s8204] sm:$0xf]
        %v8206 = vld [vmem:[%s8204 + $0x4] sm:$0xf]
        %v8207 = vld [vmem:[%s8204 + $0x8] sm:$0xf]
        %v8208 = vld [vmem:[%s8204 + $0xc] sm:$0xf]
        %v8209 = vld [vmem:[%s8204 + $0x10] sm:$0xf]
        %v8210 = vld [vmem:[%s8204 + $0x14] sm:$0xf]
        %v8211 = vld [vmem:[%s8204 + $0x18] sm:$0xf]
        %v8212 = vld [vmem:[%s8204 + $0x1c] sm:$0xf]
        %v8213 = vld [vmem:[%s8204 + $0x20] sm:$0xf]
        %v8214 = vld [vmem:[%s8204 + $0x24] sm:$0xf]
        %v8215 = vld [vmem:[%s8204 + $0x28] sm:$0xf]
        %v8216 = vld [vmem:[%s8204 + $0x2c] sm:$0xf]
        %v8217 = vld [vmem:[%s8204 + $0x30] sm:$0xf]
        %v8218 = vld [vmem:[%s8204 + $0x34] sm:$0xf]
        %v8219 = vld [vmem:[%s8204 + $0x38] sm:$0xf]
        %v8220 = vld [vmem:[%s8204 + $0x3c] sm:$0xf]
        %v8221 = vld [vmem:[%s8204 + $0x40] sm:$0xf]
        %v8222 = vld [vmem:[%s8204 + $0x44] sm:$0xf]
        %v8223 = vld [vmem:[%s8204 + $0x48] sm:$0xf]
        %v8224 = vld [vmem:[%s8204 + $0x4c] sm:$0xf]
        %v8225 = vld [vmem:[%s8204 + $0x50] sm:$0xf]
        %v8226 = vld [vmem:[%s8204 + $0x54] sm:$0xf]
        %v8227 = vld [vmem:[%s8204 + $0x58] sm:$0xf]
        %v8228 = vld [vmem:[%s8204 + $0x5c] sm:$0xf]
        %v8229 = vld [vmem:[%s8204 + $0x60] sm:$0xf]
        %v8230 = vld [vmem:[%s8204 + $0x64] sm:$0xf]
        %v8231 = vrot.slane %v7372, 3
        %v8232 = vrot.slane %v7373, 3
        %v8260 = vunpack.c.l.b16 %v8205
        %v8261 = vunpack.c.l.b16 %v8206
        %v8262 = vunpack.c.l.b16 %v8207
        %v8263 = vunpack.c.l.b16 %v8208
        %v8264 = vunpack.c.l.b16 %v8209
        %v8265 = vunpack.c.l.b16 %v8210
        %v8266 = vunpack.c.l.b16 %v8211
        %v8267 = vunpack.c.l.b16 %v8212
        %v8268 = vunpack.c.l.b16 %v8213
        %v8269 = vunpack.c.l.b16 %v8214
        %v8270 = vunpack.c.l.b16 %v8215
        %v8271 = vunpack.c.l.b16 %v8216
        %v8272 = vunpack.c.l.b16 %v8217
        %v8273 = vunpack.c.l.b16 %v8218
        %v8274 = vunpack.c.l.b16 %v8219
        %v8275 = vunpack.c.l.b16 %v8220
        %v8276 = vunpack.c.l.b16 %v8221
        %v8277 = vunpack.c.l.b16 %v8222
        %v8278 = vunpack.c.l.b16 %v8223
        %v8279 = vunpack.c.l.b16 %v8224
        %v8280 = vunpack.c.l.b16 %v8225
        %v8281 = vunpack.c.l.b16 %v8226
        %v8282 = vunpack.c.l.b16 %v8227
        %v8283 = vunpack.c.l.b16 %v8228
        %v8284 = vunpack.c.l.b16 %v8229
        %v8285 = vunpack.c.l.b16 %v8230
        %v8286 = vpack.c.b16 %v8261, %v8260
        %v8287 = vpack.c.b16 %v8263, %v8262
        %v8288 = vpack.c.b16 %v8265, %v8264
        %v8289 = vpack.c.b16 %v8267, %v8266
        %v8290 = vpack.c.b16 %v8269, %v8268
        %v8291 = vpack.c.b16 %v8271, %v8270
        %v8292 = vpack.c.b16 %v8273, %v8272
        %v8293 = vpack.c.b16 %v8275, %v8274
        %v8294 = vpack.c.b16 %v8277, %v8276
        %v8295 = vpack.c.b16 %v8279, %v8278
        %v8296 = vpack.c.b16 %v8281, %v8280
        %v8297 = vpack.c.b16 %v8283, %v8282
        %v8298 = vpack.c.b16 %v8285, %v8284
        %v8313 = vsel %vm7478, %v8232, 0
        %8315 = vmatpush.bf16.msra.mxu0 %v8293
        %8316 = vmatpush.bf16.msra.mxu0 %v8292
        %8317 = vmatpush.bf16.msra.mxu0 %v8291
        %8318 = vmatpush.bf16.msra.mxu0 %v8290
        %8319 = vmatpush.bf16.msra.mxu0 %v8289
        %8320 = vmatpush.bf16.msra.mxu0 %v8288
        %8321 = vmatpush.bf16.msra.mxu0 %v8287
        %8322 = vmatpush.bf16.msra.mxu0 %v8286
        %8323 = vmatmul.bf16.gmra.mxu0 %v8231
        %v8324 = vpop.f32.mrf.mxu0
        %v8325 = vadd.f32 0.0, %v8324
        %v8326 = vpop.f32.mrf.mxu0
        %8327 = vdwg.mxu0
        %8328 = vmatpush.bf16.msra.mxu0 0
        %8329 = vmatpush.bf16.msra.mxu0 0
        %8330 = vmatpush.bf16.msra.mxu0 0
        %8331 = vmatpush.bf16.msra.mxu0 %v8298
        %8332 = vmatpush.bf16.msra.mxu0 %v8297
        %8333 = vmatpush.bf16.msra.mxu0 %v8296
        %8334 = vmatpush.bf16.msra.mxu0 %v8295
        %8335 = vmatpush.bf16.msra.mxu0 %v8294
        %8336 = vmatmul.bf16.gmra.mxu0 %v8313
        %v8337 = vpop.f32.mrf.mxu0
        %v8338 = vadd.f32 %v8325, %v8337
        %v8339 = vpop.f32.mrf.mxu0
        %8340 = vdwg.mxu0
        %v8341 = vadd.f32 %v8203, %v8338
        %s8342 = scalar_lea.vmem [#allocation5], 728
        %v8343 = vld [vmem:[%s8342] sm:$0xf]
        %v8344 = vld [vmem:[%s8342 + $0x4] sm:$0xf]
        %v8345 = vld [vmem:[%s8342 + $0x8] sm:$0xf]
        %v8346 = vld [vmem:[%s8342 + $0xc] sm:$0xf]
        %v8347 = vld [vmem:[%s8342 + $0x10] sm:$0xf]
        %v8348 = vld [vmem:[%s8342 + $0x14] sm:$0xf]
        %v8349 = vld [vmem:[%s8342 + $0x18] sm:$0xf]
        %v8350 = vld [vmem:[%s8342 + $0x1c] sm:$0xf]
        %v8351 = vld [vmem:[%s8342 + $0x20] sm:$0xf]
        %v8352 = vld [vmem:[%s8342 + $0x24] sm:$0xf]
        %v8353 = vld [vmem:[%s8342 + $0x28] sm:$0xf]
        %v8354 = vld [vmem:[%s8342 + $0x2c] sm:$0xf]
        %v8355 = vld [vmem:[%s8342 + $0x30] sm:$0xf]
        %v8356 = vld [vmem:[%s8342 + $0x34] sm:$0xf]
        %v8357 = vld [vmem:[%s8342 + $0x38] sm:$0xf]
        %v8358 = vld [vmem:[%s8342 + $0x3c] sm:$0xf]
        %v8359 = vld [vmem:[%s8342 + $0x40] sm:$0xf]
        %v8360 = vld [vmem:[%s8342 + $0x44] sm:$0xf]
        %v8361 = vld [vmem:[%s8342 + $0x48] sm:$0xf]
        %v8362 = vld [vmem:[%s8342 + $0x4c] sm:$0xf]
        %v8363 = vld [vmem:[%s8342 + $0x50] sm:$0xf]
        %v8364 = vld [vmem:[%s8342 + $0x54] sm:$0xf]
        %v8365 = vld [vmem:[%s8342 + $0x58] sm:$0xf]
        %v8366 = vld [vmem:[%s8342 + $0x5c] sm:$0xf]
        %v8367 = vld [vmem:[%s8342 + $0x60] sm:$0xf]
        %v8368 = vld [vmem:[%s8342 + $0x64] sm:$0xf]
        %v8369 = vrot.slane %v7537, 3
        %v8370 = vrot.slane %v7539, 3
        %v8398 = vunpack.c.l.b16 %v8343
        %v8399 = vunpack.c.l.b16 %v8344
        %v8400 = vunpack.c.l.b16 %v8345
        %v8401 = vunpack.c.l.b16 %v8346
        %v8402 = vunpack.c.l.b16 %v8347
        %v8403 = vunpack.c.l.b16 %v8348
        %v8404 = vunpack.c.l.b16 %v8349
        %v8405 = vunpack.c.l.b16 %v8350
        %v8406 = vunpack.c.l.b16 %v8351
        %v8407 = vunpack.c.l.b16 %v8352
        %v8408 = vunpack.c.l.b16 %v8353
        %v8409 = vunpack.c.l.b16 %v8354
        %v8410 = vunpack.c.l.b16 %v8355
        %v8411 = vunpack.c.l.b16 %v8356
        %v8412 = vunpack.c.l.b16 %v8357
        %v8413 = vunpack.c.l.b16 %v8358
        %v8414 = vunpack.c.l.b16 %v8359
        %v8415 = vunpack.c.l.b16 %v8360
        %v8416 = vunpack.c.l.b16 %v8361
        %v8417 = vunpack.c.l.b16 %v8362
        %v8418 = vunpack.c.l.b16 %v8363
        %v8419 = vunpack.c.l.b16 %v8364
        %v8420 = vunpack.c.l.b16 %v8365
        %v8421 = vunpack.c.l.b16 %v8366
        %v8422 = vunpack.c.l.b16 %v8367
        %v8423 = vunpack.c.l.b16 %v8368
        %v8424 = vpack.c.b16 %v8399, %v8398
        %v8425 = vpack.c.b16 %v8401, %v8400
        %v8426 = vpack.c.b16 %v8403, %v8402
        %v8427 = vpack.c.b16 %v8405, %v8404
        %v8428 = vpack.c.b16 %v8407, %v8406
        %v8429 = vpack.c.b16 %v8409, %v8408
        %v8430 = vpack.c.b16 %v8411, %v8410
        %v8431 = vpack.c.b16 %v8413, %v8412
        %v8432 = vpack.c.b16 %v8415, %v8414
        %v8433 = vpack.c.b16 %v8417, %v8416
        %v8434 = vpack.c.b16 %v8419, %v8418
        %v8435 = vpack.c.b16 %v8421, %v8420
        %v8436 = vpack.c.b16 %v8423, %v8422
        %v8451 = vsel %vm7478, %v8370, 0
        %8453 = vmatpush.bf16.msra.mxu0 %v8431
        %8454 = vmatpush.bf16.msra.mxu0 %v8430
        %8455 = vmatpush.bf16.msra.mxu0 %v8429
        %8456 = vmatpush.bf16.msra.mxu0 %v8428
        %8457 = vmatpush.bf16.msra.mxu0 %v8427
        %8458 = vmatpush.bf16.msra.mxu0 %v8426
        %8459 = vmatpush.bf16.msra.mxu0 %v8425
        %8460 = vmatpush.bf16.msra.mxu0 %v8424
        %8461 = vmatmul.bf16.gmra.mxu0 %v8369
        %v8462 = vpop.f32.mrf.mxu0
        %v8463 = vadd.f32 0.0, %v8462
        %v8464 = vpop.f32.mrf.mxu0
        %8465 = vdwg.mxu0
        %8466 = vmatpush.bf16.msra.mxu0 0
        %8467 = vmatpush.bf16.msra.mxu0 0
        %8468 = vmatpush.bf16.msra.mxu0 0
        %8469 = vmatpush.bf16.msra.mxu0 %v8436
        %8470 = vmatpush.bf16.msra.mxu0 %v8435
        %8471 = vmatpush.bf16.msra.mxu0 %v8434
        %8472 = vmatpush.bf16.msra.mxu0 %v8433
        %8473 = vmatpush.bf16.msra.mxu0 %v8432
        %8474 = vmatmul.bf16.gmra.mxu0 %v8451
        %v8475 = vpop.f32.mrf.mxu0
        %v8476 = vadd.f32 %v8463, %v8475
        %v8477 = vpop.f32.mrf.mxu0
        %8478 = vdwg.mxu0
        %v8479 = vadd.f32 %v8341, %v8476
        %v8480 = vpack.c.bf16 %v7369, %v7369
        %v8481 = vpack.c.bf16 %v7370, %v7370
        %s8482 = scalar_lea.vmem [#allocation5], 832
        %v8483 = vld [vmem:[%s8482] sm:$0xf]
        %v8484 = vld [vmem:[%s8482 + $0x4] sm:$0xf]
        %v8485 = vld [vmem:[%s8482 + $0x8] sm:$0xf]
        %v8486 = vld [vmem:[%s8482 + $0xc] sm:$0xf]
        %v8487 = vld [vmem:[%s8482 + $0x10] sm:$0xf]
        %v8488 = vld [vmem:[%s8482 + $0x14] sm:$0xf]
        %v8489 = vld [vmem:[%s8482 + $0x18] sm:$0xf]
        %v8490 = vld [vmem:[%s8482 + $0x1c] sm:$0xf]
        %v8491 = vld [vmem:[%s8482 + $0x20] sm:$0xf]
        %v8492 = vld [vmem:[%s8482 + $0x24] sm:$0xf]
        %v8493 = vld [vmem:[%s8482 + $0x28] sm:$0xf]
        %v8494 = vld [vmem:[%s8482 + $0x2c] sm:$0xf]
        %v8495 = vld [vmem:[%s8482 + $0x30] sm:$0xf]
        %v8496 = vld [vmem:[%s8482 + $0x34] sm:$0xf]
        %v8497 = vld [vmem:[%s8482 + $0x38] sm:$0xf]
        %v8498 = vld [vmem:[%s8482 + $0x3c] sm:$0xf]
        %v8499 = vld [vmem:[%s8482 + $0x40] sm:$0xf]
        %v8500 = vld [vmem:[%s8482 + $0x44] sm:$0xf]
        %v8501 = vld [vmem:[%s8482 + $0x48] sm:$0xf]
        %v8502 = vld [vmem:[%s8482 + $0x4c] sm:$0xf]
        %v8503 = vld [vmem:[%s8482 + $0x50] sm:$0xf]
        %v8504 = vld [vmem:[%s8482 + $0x54] sm:$0xf]
        %v8505 = vld [vmem:[%s8482 + $0x58] sm:$0xf]
        %v8506 = vld [vmem:[%s8482 + $0x5c] sm:$0xf]
        %v8507 = vld [vmem:[%s8482 + $0x60] sm:$0xf]
        %v8508 = vld [vmem:[%s8482 + $0x64] sm:$0xf]
        %v8535 = vunpack.c.l.b16 %v8483
        %v8536 = vunpack.c.l.b16 %v8484
        %v8537 = vunpack.c.l.b16 %v8485
        %v8538 = vunpack.c.l.b16 %v8486
        %v8539 = vunpack.c.l.b16 %v8487
        %v8540 = vunpack.c.l.b16 %v8488
        %v8541 = vunpack.c.l.b16 %v8489
        %v8542 = vunpack.c.l.b16 %v8490
        %v8543 = vunpack.c.l.b16 %v8491
        %v8544 = vunpack.c.l.b16 %v8492
        %v8545 = vunpack.c.l.b16 %v8493
        %v8546 = vunpack.c.l.b16 %v8494
        %v8547 = vunpack.c.l.b16 %v8495
        %v8548 = vunpack.c.l.b16 %v8496
        %v8549 = vunpack.c.l.b16 %v8497
        %v8550 = vunpack.c.l.b16 %v8498
        %v8551 = vunpack.c.l.b16 %v8499
        %v8552 = vunpack.c.l.b16 %v8500
        %v8553 = vunpack.c.l.b16 %v8501
        %v8554 = vunpack.c.l.b16 %v8502
        %v8555 = vunpack.c.l.b16 %v8503
        %v8556 = vunpack.c.l.b16 %v8504
        %v8557 = vunpack.c.l.b16 %v8505
        %v8558 = vunpack.c.l.b16 %v8506
        %v8559 = vunpack.c.l.b16 %v8507
        %v8560 = vunpack.c.l.b16 %v8508
        %v8561 = vpack.c.b16 %v8536, %v8535
        %v8562 = vpack.c.b16 %v8538, %v8537
        %v8563 = vpack.c.b16 %v8540, %v8539
        %v8564 = vpack.c.b16 %v8542, %v8541
        %v8565 = vpack.c.b16 %v8544, %v8543
        %v8566 = vpack.c.b16 %v8546, %v8545
        %v8567 = vpack.c.b16 %v8548, %v8547
        %v8568 = vpack.c.b16 %v8550, %v8549
        %v8569 = vpack.c.b16 %v8552, %v8551
        %v8570 = vpack.c.b16 %v8554, %v8553
        %v8571 = vpack.c.b16 %v8556, %v8555
        %v8572 = vpack.c.b16 %v8558, %v8557
        %v8573 = vpack.c.b16 %v8560, %v8559
        %v8588 = vsel %vm7478, %v8481, 0
        %8590 = vmatpush.bf16.msra.mxu0 %v8568
        %8591 = vmatpush.bf16.msra.mxu0 %v8567
        %8592 = vmatpush.bf16.msra.mxu0 %v8566
        %8593 = vmatpush.bf16.msra.mxu0 %v8565
        %8594 = vmatpush.bf16.msra.mxu0 %v8564
        %8595 = vmatpush.bf16.msra.mxu0 %v8563
        %8596 = vmatpush.bf16.msra.mxu0 %v8562
        %8597 = vmatpush.bf16.msra.mxu0 %v8561
        %8598 = vmatmul.bf16.gmra.mxu0 %v8480
        %v8599 = vpop.f32.mrf.mxu0
        %v8600 = vadd.f32 0.0, %v8599
        %v8601 = vpop.f32.mrf.mxu0
        %8602 = vdwg.mxu0
        %8603 = vmatpush.bf16.msra.mxu0 0
        %8604 = vmatpush.bf16.msra.mxu0 0
        %8605 = vmatpush.bf16.msra.mxu0 0
        %8606 = vmatpush.bf16.msra.mxu0 %v8573
        %8607 = vmatpush.bf16.msra.mxu0 %v8572
        %8608 = vmatpush.bf16.msra.mxu0 %v8571
        %8609 = vmatpush.bf16.msra.mxu0 %v8570
        %8610 = vmatpush.bf16.msra.mxu0 %v8569
        %8611 = vmatmul.bf16.gmra.mxu0 %v8588
        %v8612 = vpop.f32.mrf.mxu0
        %v8613 = vadd.f32 %v8600, %v8612
        %v8614 = vpop.f32.mrf.mxu0
        %8615 = vdwg.mxu0
        %v8616 = vadd.f32 %v8479, %v8613
        %s8617 = scalar_lea.vmem [#allocation5], 936
        %v8618 = vld [vmem:[%s8617] sm:$0xf]
        %v8619 = vld [vmem:[%s8617 + $0x4] sm:$0xf]
        %v8620 = vld [vmem:[%s8617 + $0x8] sm:$0xf]
        %v8621 = vld [vmem:[%s8617 + $0xc] sm:$0xf]
        %v8622 = vld [vmem:[%s8617 + $0x10] sm:$0xf]
        %v8623 = vld [vmem:[%s8617 + $0x14] sm:$0xf]
        %v8624 = vld [vmem:[%s8617 + $0x18] sm:$0xf]
        %v8625 = vld [vmem:[%s8617 + $0x1c] sm:$0xf]
        %v8626 = vld [vmem:[%s8617 + $0x20] sm:$0xf]
        %v8627 = vld [vmem:[%s8617 + $0x24] sm:$0xf]
        %v8628 = vld [vmem:[%s8617 + $0x28] sm:$0xf]
        %v8629 = vld [vmem:[%s8617 + $0x2c] sm:$0xf]
        %v8630 = vld [vmem:[%s8617 + $0x30] sm:$0xf]
        %v8631 = vld [vmem:[%s8617 + $0x34] sm:$0xf]
        %v8632 = vld [vmem:[%s8617 + $0x38] sm:$0xf]
        %v8633 = vld [vmem:[%s8617 + $0x3c] sm:$0xf]
        %v8634 = vld [vmem:[%s8617 + $0x40] sm:$0xf]
        %v8635 = vld [vmem:[%s8617 + $0x44] sm:$0xf]
        %v8636 = vld [vmem:[%s8617 + $0x48] sm:$0xf]
        %v8637 = vld [vmem:[%s8617 + $0x4c] sm:$0xf]
        %v8638 = vld [vmem:[%s8617 + $0x50] sm:$0xf]
        %v8639 = vld [vmem:[%s8617 + $0x54] sm:$0xf]
        %v8640 = vld [vmem:[%s8617 + $0x58] sm:$0xf]
        %v8641 = vld [vmem:[%s8617 + $0x5c] sm:$0xf]
        %v8642 = vld [vmem:[%s8617 + $0x60] sm:$0xf]
        %v8643 = vld [vmem:[%s8617 + $0x64] sm:$0xf]
        %v8645 = vshrl.u32 %v8480, 16
        %v8647 = vshrl.u32 %v8481, 16
        %v8676 = vunpack.c.l.b16 %v8618
        %v8677 = vunpack.c.l.b16 %v8619
        %v8678 = vunpack.c.l.b16 %v8620
        %v8679 = vunpack.c.l.b16 %v8621
        %v8680 = vunpack.c.l.b16 %v8622
        %v8681 = vunpack.c.l.b16 %v8623
        %v8682 = vunpack.c.l.b16 %v8624
        %v8683 = vunpack.c.l.b16 %v8625
        %v8684 = vunpack.c.l.b16 %v8626
        %v8685 = vunpack.c.l.b16 %v8627
        %v8686 = vunpack.c.l.b16 %v8628
        %v8687 = vunpack.c.l.b16 %v8629
        %v8688 = vunpack.c.l.b16 %v8630
        %v8689 = vunpack.c.l.b16 %v8631
        %v8690 = vunpack.c.l.b16 %v8632
        %v8691 = vunpack.c.l.b16 %v8633
        %v8692 = vunpack.c.l.b16 %v8634
        %v8693 = vunpack.c.l.b16 %v8635
        %v8694 = vunpack.c.l.b16 %v8636
        %v8695 = vunpack.c.l.b16 %v8637
        %v8696 = vunpack.c.l.b16 %v8638
        %v8697 = vunpack.c.l.b16 %v8639
        %v8698 = vunpack.c.l.b16 %v8640
        %v8699 = vunpack.c.l.b16 %v8641
        %v8700 = vunpack.c.l.b16 %v8642
        %v8701 = vunpack.c.l.b16 %v8643
        %v8702 = vpack.c.b16 %v8677, %v8676
        %v8703 = vpack.c.b16 %v8679, %v8678
        %v8704 = vpack.c.b16 %v8681, %v8680
        %v8705 = vpack.c.b16 %v8683, %v8682
        %v8706 = vpack.c.b16 %v8685, %v8684
        %v8707 = vpack.c.b16 %v8687, %v8686
        %v8708 = vpack.c.b16 %v8689, %v8688
        %v8709 = vpack.c.b16 %v8691, %v8690
        %v8710 = vpack.c.b16 %v8693, %v8692
        %v8711 = vpack.c.b16 %v8695, %v8694
        %v8712 = vpack.c.b16 %v8697, %v8696
        %v8713 = vpack.c.b16 %v8699, %v8698
        %v8714 = vpack.c.b16 %v8701, %v8700
        %v8729 = vsel %vm7478, %v8647, 0
        %8731 = vmatpush.bf16.msra.mxu0 %v8709
        %8732 = vmatpush.bf16.msra.mxu0 %v8708
        %8733 = vmatpush.bf16.msra.mxu0 %v8707
        %8734 = vmatpush.bf16.msra.mxu0 %v8706
        %8735 = vmatpush.bf16.msra.mxu0 %v8705
        %8736 = vmatpush.bf16.msra.mxu0 %v8704
        %8737 = vmatpush.bf16.msra.mxu0 %v8703
        %8738 = vmatpush.bf16.msra.mxu0 %v8702
        %8739 = vmatmul.bf16.gmra.mxu0 %v8645
        %v8740 = vpop.f32.mrf.mxu0
        %v8741 = vadd.f32 0.0, %v8740
        %v8742 = vpop.f32.mrf.mxu0
        %8743 = vdwg.mxu0
        %8744 = vmatpush.bf16.msra.mxu0 0
        %8745 = vmatpush.bf16.msra.mxu0 0
        %8746 = vmatpush.bf16.msra.mxu0 0
        %8747 = vmatpush.bf16.msra.mxu0 %v8714
        %8748 = vmatpush.bf16.msra.mxu0 %v8713
        %8749 = vmatpush.bf16.msra.mxu0 %v8712
        %8750 = vmatpush.bf16.msra.mxu0 %v8711
        %8751 = vmatpush.bf16.msra.mxu0 %v8710
        %8752 = vmatmul.bf16.gmra.mxu0 %v8729
        %v8753 = vpop.f32.mrf.mxu0
        %v8754 = vadd.f32 %v8741, %v8753
        %v8755 = vpop.f32.mrf.mxu0
        %8756 = vdwg.mxu0
        %v8757 = vadd.f32 %v8616, %v8754
        %s8758 = scalar_lea.vmem [#allocation5], 1040
        %v8759 = vld [vmem:[%s8758] sm:$0xf]
        %v8760 = vld [vmem:[%s8758 + $0x4] sm:$0xf]
        %v8761 = vld [vmem:[%s8758 + $0x8] sm:$0xf]
        %v8762 = vld [vmem:[%s8758 + $0xc] sm:$0xf]
        %v8763 = vld [vmem:[%s8758 + $0x10] sm:$0xf]
        %v8764 = vld [vmem:[%s8758 + $0x14] sm:$0xf]
        %v8765 = vld [vmem:[%s8758 + $0x18] sm:$0xf]
        %v8766 = vld [vmem:[%s8758 + $0x1c] sm:$0xf]
        %v8767 = vld [vmem:[%s8758 + $0x20] sm:$0xf]
        %v8768 = vld [vmem:[%s8758 + $0x24] sm:$0xf]
        %v8769 = vld [vmem:[%s8758 + $0x28] sm:$0xf]
        %v8770 = vld [vmem:[%s8758 + $0x2c] sm:$0xf]
        %v8771 = vld [vmem:[%s8758 + $0x30] sm:$0xf]
        %v8772 = vld [vmem:[%s8758 + $0x34] sm:$0xf]
        %v8773 = vld [vmem:[%s8758 + $0x38] sm:$0xf]
        %v8774 = vld [vmem:[%s8758 + $0x3c] sm:$0xf]
        %v8775 = vld [vmem:[%s8758 + $0x40] sm:$0xf]
        %v8776 = vld [vmem:[%s8758 + $0x44] sm:$0xf]
        %v8777 = vld [vmem:[%s8758 + $0x48] sm:$0xf]
        %v8778 = vld [vmem:[%s8758 + $0x4c] sm:$0xf]
        %v8779 = vld [vmem:[%s8758 + $0x50] sm:$0xf]
        %v8780 = vld [vmem:[%s8758 + $0x54] sm:$0xf]
        %v8781 = vld [vmem:[%s8758 + $0x58] sm:$0xf]
        %v8782 = vld [vmem:[%s8758 + $0x5c] sm:$0xf]
        %v8783 = vld [vmem:[%s8758 + $0x60] sm:$0xf]
        %v8784 = vld [vmem:[%s8758 + $0x64] sm:$0xf]
        %v8787 = vrot.slane %v8480, 1
        %v8788 = vrot.slane %v8481, 1
        %v8816 = vunpack.c.l.b16 %v8759
        %v8817 = vunpack.c.l.b16 %v8760
        %v8818 = vunpack.c.l.b16 %v8761
        %v8819 = vunpack.c.l.b16 %v8762
        %v8820 = vunpack.c.l.b16 %v8763
        %v8821 = vunpack.c.l.b16 %v8764
        %v8822 = vunpack.c.l.b16 %v8765
        %v8823 = vunpack.c.l.b16 %v8766
        %v8824 = vunpack.c.l.b16 %v8767
        %v8825 = vunpack.c.l.b16 %v8768
        %v8826 = vunpack.c.l.b16 %v8769
        %v8827 = vunpack.c.l.b16 %v8770
        %v8828 = vunpack.c.l.b16 %v8771
        %v8829 = vunpack.c.l.b16 %v8772
        %v8830 = vunpack.c.l.b16 %v8773
        %v8831 = vunpack.c.l.b16 %v8774
        %v8832 = vunpack.c.l.b16 %v8775
        %v8833 = vunpack.c.l.b16 %v8776
        %v8834 = vunpack.c.l.b16 %v8777
        %v8835 = vunpack.c.l.b16 %v8778
        %v8836 = vunpack.c.l.b16 %v8779
        %v8837 = vunpack.c.l.b16 %v8780
        %v8838 = vunpack.c.l.b16 %v8781
        %v8839 = vunpack.c.l.b16 %v8782
        %v8840 = vunpack.c.l.b16 %v8783
        %v8841 = vunpack.c.l.b16 %v8784
        %v8842 = vpack.c.b16 %v8817, %v8816
        %v8843 = vpack.c.b16 %v8819, %v8818
        %v8844 = vpack.c.b16 %v8821, %v8820
        %v8845 = vpack.c.b16 %v8823, %v8822
        %v8846 = vpack.c.b16 %v8825, %v8824
        %v8847 = vpack.c.b16 %v8827, %v8826
        %v8848 = vpack.c.b16 %v8829, %v8828
        %v8849 = vpack.c.b16 %v8831, %v8830
        %v8850 = vpack.c.b16 %v8833, %v8832
        %v8851 = vpack.c.b16 %v8835, %v8834
        %v8852 = vpack.c.b16 %v8837, %v8836
        %v8853 = vpack.c.b16 %v8839, %v8838
        %v8854 = vpack.c.b16 %v8841, %v8840
        %v8869 = vsel %vm7478, %v8788, 0
        %8871 = vmatpush.bf16.msra.mxu0 %v8849
        %8872 = vmatpush.bf16.msra.mxu0 %v8848
        %8873 = vmatpush.bf16.msra.mxu0 %v8847
        %8874 = vmatpush.bf16.msra.mxu0 %v8846
        %8875 = vmatpush.bf16.msra.mxu0 %v8845
        %8876 = vmatpush.bf16.msra.mxu0 %v8844
        %8877 = vmatpush.bf16.msra.mxu0 %v8843
        %8878 = vmatpush.bf16.msra.mxu0 %v8842
        %8879 = vmatmul.bf16.gmra.mxu0 %v8787
        %v8880 = vpop.f32.mrf.mxu0
        %v8881 = vadd.f32 0.0, %v8880
        %v8882 = vpop.f32.mrf.mxu0
        %8883 = vdwg.mxu0
        %8884 = vmatpush.bf16.msra.mxu0 0
        %8885 = vmatpush.bf16.msra.mxu0 0
        %8886 = vmatpush.bf16.msra.mxu0 0
        %8887 = vmatpush.bf16.msra.mxu0 %v8854
        %8888 = vmatpush.bf16.msra.mxu0 %v8853
        %8889 = vmatpush.bf16.msra.mxu0 %v8852
        %8890 = vmatpush.bf16.msra.mxu0 %v8851
        %8891 = vmatpush.bf16.msra.mxu0 %v8850
        %8892 = vmatmul.bf16.gmra.mxu0 %v8869
        %v8893 = vpop.f32.mrf.mxu0
        %v8894 = vadd.f32 %v8881, %v8893
        %v8895 = vpop.f32.mrf.mxu0
        %8896 = vdwg.mxu0
        %v8897 = vadd.f32 %v8757, %v8894
        %s8898 = scalar_lea.vmem [#allocation5], 1144
        %v8899 = vld [vmem:[%s8898] sm:$0xf]
        %v8900 = vld [vmem:[%s8898 + $0x4] sm:$0xf]
        %v8901 = vld [vmem:[%s8898 + $0x8] sm:$0xf]
        %v8902 = vld [vmem:[%s8898 + $0xc] sm:$0xf]
        %v8903 = vld [vmem:[%s8898 + $0x10] sm:$0xf]
        %v8904 = vld [vmem:[%s8898 + $0x14] sm:$0xf]
        %v8905 = vld [vmem:[%s8898 + $0x18] sm:$0xf]
        %v8906 = vld [vmem:[%s8898 + $0x1c] sm:$0xf]
        %v8907 = vld [vmem:[%s8898 + $0x20] sm:$0xf]
        %v8908 = vld [vmem:[%s8898 + $0x24] sm:$0xf]
        %v8909 = vld [vmem:[%s8898 + $0x28] sm:$0xf]
        %v8910 = vld [vmem:[%s8898 + $0x2c] sm:$0xf]
        %v8911 = vld [vmem:[%s8898 + $0x30] sm:$0xf]
        %v8912 = vld [vmem:[%s8898 + $0x34] sm:$0xf]
        %v8913 = vld [vmem:[%s8898 + $0x38] sm:$0xf]
        %v8914 = vld [vmem:[%s8898 + $0x3c] sm:$0xf]
        %v8915 = vld [vmem:[%s8898 + $0x40] sm:$0xf]
        %v8916 = vld [vmem:[%s8898 + $0x44] sm:$0xf]
        %v8917 = vld [vmem:[%s8898 + $0x48] sm:$0xf]
        %v8918 = vld [vmem:[%s8898 + $0x4c] sm:$0xf]
        %v8919 = vld [vmem:[%s8898 + $0x50] sm:$0xf]
        %v8920 = vld [vmem:[%s8898 + $0x54] sm:$0xf]
        %v8921 = vld [vmem:[%s8898 + $0x58] sm:$0xf]
        %v8922 = vld [vmem:[%s8898 + $0x5c] sm:$0xf]
        %v8923 = vld [vmem:[%s8898 + $0x60] sm:$0xf]
        %v8924 = vld [vmem:[%s8898 + $0x64] sm:$0xf]
        %v8925 = vrot.slane %v8645, 1
        %v8926 = vrot.slane %v8647, 1
        %v8954 = vunpack.c.l.b16 %v8899
        %v8955 = vunpack.c.l.b16 %v8900
        %v8956 = vunpack.c.l.b16 %v8901
        %v8957 = vunpack.c.l.b16 %v8902
        %v8958 = vunpack.c.l.b16 %v8903
        %v8959 = vunpack.c.l.b16 %v8904
        %v8960 = vunpack.c.l.b16 %v8905
        %v8961 = vunpack.c.l.b16 %v8906
        %v8962 = vunpack.c.l.b16 %v8907
        %v8963 = vunpack.c.l.b16 %v8908
        %v8964 = vunpack.c.l.b16 %v8909
        %v8965 = vunpack.c.l.b16 %v8910
        %v8966 = vunpack.c.l.b16 %v8911
        %v8967 = vunpack.c.l.b16 %v8912
        %v8968 = vunpack.c.l.b16 %v8913
        %v8969 = vunpack.c.l.b16 %v8914
        %v8970 = vunpack.c.l.b16 %v8915
        %v8971 = vunpack.c.l.b16 %v8916
        %v8972 = vunpack.c.l.b16 %v8917
        %v8973 = vunpack.c.l.b16 %v8918
        %v8974 = vunpack.c.l.b16 %v8919
        %v8975 = vunpack.c.l.b16 %v8920
        %v8976 = vunpack.c.l.b16 %v8921
        %v8977 = vunpack.c.l.b16 %v8922
        %v8978 = vunpack.c.l.b16 %v8923
        %v8979 = vunpack.c.l.b16 %v8924
        %v8980 = vpack.c.b16 %v8955, %v8954
        %v8981 = vpack.c.b16 %v8957, %v8956
        %v8982 = vpack.c.b16 %v8959, %v8958
        %v8983 = vpack.c.b16 %v8961, %v8960
        %v8984 = vpack.c.b16 %v8963, %v8962
        %v8985 = vpack.c.b16 %v8965, %v8964
        %v8986 = vpack.c.b16 %v8967, %v8966
        %v8987 = vpack.c.b16 %v8969, %v8968
        %v8988 = vpack.c.b16 %v8971, %v8970
        %v8989 = vpack.c.b16 %v8973, %v8972
        %v8990 = vpack.c.b16 %v8975, %v8974
        %v8991 = vpack.c.b16 %v8977, %v8976
        %v8992 = vpack.c.b16 %v8979, %v8978
        %v9007 = vsel %vm7478, %v8926, 0
        %9009 = vmatpush.bf16.msra.mxu0 %v8987
        %9010 = vmatpush.bf16.msra.mxu0 %v8986
        %9011 = vmatpush.bf16.msra.mxu0 %v8985
        %9012 = vmatpush.bf16.msra.mxu0 %v8984
        %9013 = vmatpush.bf16.msra.mxu0 %v8983
        %9014 = vmatpush.bf16.msra.mxu0 %v8982
        %9015 = vmatpush.bf16.msra.mxu0 %v8981
        %9016 = vmatpush.bf16.msra.mxu0 %v8980
        %9017 = vmatmul.bf16.gmra.mxu0 %v8925
        %v9018 = vpop.f32.mrf.mxu0
        %v9019 = vadd.f32 0.0, %v9018
        %v9020 = vpop.f32.mrf.mxu0
        %9021 = vdwg.mxu0
        %9022 = vmatpush.bf16.msra.mxu0 0
        %9023 = vmatpush.bf16.msra.mxu0 0
        %9024 = vmatpush.bf16.msra.mxu0 0
        %9025 = vmatpush.bf16.msra.mxu0 %v8992
        %9026 = vmatpush.bf16.msra.mxu0 %v8991
        %9027 = vmatpush.bf16.msra.mxu0 %v8990
        %9028 = vmatpush.bf16.msra.mxu0 %v8989
        %9029 = vmatpush.bf16.msra.mxu0 %v8988
        %9030 = vmatmul.bf16.gmra.mxu0 %v9007
        %v9031 = vpop.f32.mrf.mxu0
        %v9032 = vadd.f32 %v9019, %v9031
        %v9033 = vpop.f32.mrf.mxu0
        %9034 = vdwg.mxu0
        %v9035 = vadd.f32 %v8897, %v9032
        %s9036 = scalar_lea.vmem [#allocation5], 1248
        %v9037 = vld [vmem:[%s9036] sm:$0xf]
        %v9038 = vld [vmem:[%s9036 + $0x4] sm:$0xf]
        %v9039 = vld [vmem:[%s9036 + $0x8] sm:$0xf]
        %v9040 = vld [vmem:[%s9036 + $0xc] sm:$0xf]
        %v9041 = vld [vmem:[%s9036 + $0x10] sm:$0xf]
        %v9042 = vld [vmem:[%s9036 + $0x14] sm:$0xf]
        %v9043 = vld [vmem:[%s9036 + $0x18] sm:$0xf]
        %v9044 = vld [vmem:[%s9036 + $0x1c] sm:$0xf]
        %v9045 = vld [vmem:[%s9036 + $0x20] sm:$0xf]
        %v9046 = vld [vmem:[%s9036 + $0x24] sm:$0xf]
        %v9047 = vld [vmem:[%s9036 + $0x28] sm:$0xf]
        %v9048 = vld [vmem:[%s9036 + $0x2c] sm:$0xf]
        %v9049 = vld [vmem:[%s9036 + $0x30] sm:$0xf]
        %v9050 = vld [vmem:[%s9036 + $0x34] sm:$0xf]
        %v9051 = vld [vmem:[%s9036 + $0x38] sm:$0xf]
        %v9052 = vld [vmem:[%s9036 + $0x3c] sm:$0xf]
        %v9053 = vld [vmem:[%s9036 + $0x40] sm:$0xf]
        %v9054 = vld [vmem:[%s9036 + $0x44] sm:$0xf]
        %v9055 = vld [vmem:[%s9036 + $0x48] sm:$0xf]
        %v9056 = vld [vmem:[%s9036 + $0x4c] sm:$0xf]
        %v9057 = vld [vmem:[%s9036 + $0x50] sm:$0xf]
        %v9058 = vld [vmem:[%s9036 + $0x54] sm:$0xf]
        %v9059 = vld [vmem:[%s9036 + $0x58] sm:$0xf]
        %v9060 = vld [vmem:[%s9036 + $0x5c] sm:$0xf]
        %v9061 = vld [vmem:[%s9036 + $0x60] sm:$0xf]
        %v9062 = vld [vmem:[%s9036 + $0x64] sm:$0xf]
        %v9063 = vrot.slane %v8480, 2
        %v9064 = vrot.slane %v8481, 2
        %v9092 = vunpack.c.l.b16 %v9037
        %v9093 = vunpack.c.l.b16 %v9038
        %v9094 = vunpack.c.l.b16 %v9039
        %v9095 = vunpack.c.l.b16 %v9040
        %v9096 = vunpack.c.l.b16 %v9041
        %v9097 = vunpack.c.l.b16 %v9042
        %v9098 = vunpack.c.l.b16 %v9043
        %v9099 = vunpack.c.l.b16 %v9044
        %v9100 = vunpack.c.l.b16 %v9045
        %v9101 = vunpack.c.l.b16 %v9046
        %v9102 = vunpack.c.l.b16 %v9047
        %v9103 = vunpack.c.l.b16 %v9048
        %v9104 = vunpack.c.l.b16 %v9049
        %v9105 = vunpack.c.l.b16 %v9050
        %v9106 = vunpack.c.l.b16 %v9051
        %v9107 = vunpack.c.l.b16 %v9052
        %v9108 = vunpack.c.l.b16 %v9053
        %v9109 = vunpack.c.l.b16 %v9054
        %v9110 = vunpack.c.l.b16 %v9055
        %v9111 = vunpack.c.l.b16 %v9056
        %v9112 = vunpack.c.l.b16 %v9057
        %v9113 = vunpack.c.l.b16 %v9058
        %v9114 = vunpack.c.l.b16 %v9059
        %v9115 = vunpack.c.l.b16 %v9060
        %v9116 = vunpack.c.l.b16 %v9061
        %v9117 = vunpack.c.l.b16 %v9062
        %v9118 = vpack.c.b16 %v9093, %v9092
        %v9119 = vpack.c.b16 %v9095, %v9094
        %v9120 = vpack.c.b16 %v9097, %v9096
        %v9121 = vpack.c.b16 %v9099, %v9098
        %v9122 = vpack.c.b16 %v9101, %v9100
        %v9123 = vpack.c.b16 %v9103, %v9102
        %v9124 = vpack.c.b16 %v9105, %v9104
        %v9125 = vpack.c.b16 %v9107, %v9106
        %v9126 = vpack.c.b16 %v9109, %v9108
        %v9127 = vpack.c.b16 %v9111, %v9110
        %v9128 = vpack.c.b16 %v9113, %v9112
        %v9129 = vpack.c.b16 %v9115, %v9114
        %v9130 = vpack.c.b16 %v9117, %v9116
        %v9145 = vsel %vm7478, %v9064, 0
        %9147 = vmatpush.bf16.msra.mxu0 %v9125
        %9148 = vmatpush.bf16.msra.mxu0 %v9124
        %9149 = vmatpush.bf16.msra.mxu0 %v9123
        %9150 = vmatpush.bf16.msra.mxu0 %v9122
        %9151 = vmatpush.bf16.msra.mxu0 %v9121
        %9152 = vmatpush.bf16.msra.mxu0 %v9120
        %9153 = vmatpush.bf16.msra.mxu0 %v9119
        %9154 = vmatpush.bf16.msra.mxu0 %v9118
        %9155 = vmatmul.bf16.gmra.mxu0 %v9063
        %v9156 = vpop.f32.mrf.mxu0
        %v9157 = vadd.f32 0.0, %v9156
        %v9158 = vpop.f32.mrf.mxu0
        %9159 = vdwg.mxu0
        %9160 = vmatpush.bf16.msra.mxu0 0
        %9161 = vmatpush.bf16.msra.mxu0 0
        %9162 = vmatpush.bf16.msra.mxu0 0
        %9163 = vmatpush.bf16.msra.mxu0 %v9130
        %9164 = vmatpush.bf16.msra.mxu0 %v9129
        %9165 = vmatpush.bf16.msra.mxu0 %v9128
        %9166 = vmatpush.bf16.msra.mxu0 %v9127
        %9167 = vmatpush.bf16.msra.mxu0 %v9126
        %9168 = vmatmul.bf16.gmra.mxu0 %v9145
        %v9169 = vpop.f32.mrf.mxu0
        %v9170 = vadd.f32 %v9157, %v9169
        %v9171 = vpop.f32.mrf.mxu0
        %9172 = vdwg.mxu0
        %v9173 = vadd.f32 %v9035, %v9170
        %v9174 = vmax.f32 %v9173, 0.0
        %v9175 = vpack.c.bf16 %v9174, %v9174
        %v9176 = vld [vmem:[%s11] sm:$0xf]
        %v9177 = vld [vmem:[%s11 + $0x4] sm:$0xf]
        %v9178 = vld [vmem:[%s11 + $0x8] sm:$0xf]
        %v9179 = vld [vmem:[%s11 + $0xc] sm:$0xf]
        %v9180 = vld [vmem:[%s11 + $0x10] sm:$0xf]
        %v9181 = vld [vmem:[%s11 + $0x14] sm:$0xf]
        %v9182 = vld [vmem:[%s11 + $0x18] sm:$0xf]
        %v9183 = vld [vmem:[%s11 + $0x1c] sm:$0xf]
        %v9184 = vld [vmem:[%s11 + $0x20] sm:$0xf]
        %v9185 = vld [vmem:[%s11 + $0x24] sm:$0xf]
        %v9186 = vld [vmem:[%s11 + $0x28] sm:$0xf]
        %v9187 = vld [vmem:[%s11 + $0x2c] sm:$0xf]
        %v9188 = vld [vmem:[%s11 + $0x30] sm:$0xf]
        %v9189 = vld [vmem:[%s11 + $0x34] sm:$0xf]
        %v9190 = vld [vmem:[%s11 + $0x38] sm:$0xf]
        %v9191 = vld [vmem:[%s12] sm:$0x1]
        %v9207 = vunpack.c.l.b16 %v9176
        %v9208 = vunpack.c.l.b16 %v9177
        %v9209 = vunpack.c.l.b16 %v9178
        %v9210 = vunpack.c.l.b16 %v9179
        %v9211 = vunpack.c.l.b16 %v9180
        %v9212 = vunpack.c.l.b16 %v9181
        %v9213 = vunpack.c.l.b16 %v9182
        %v9214 = vunpack.c.l.b16 %v9183
        %v9215 = vunpack.c.l.b16 %v9184
        %v9216 = vunpack.c.l.b16 %v9185
        %v9217 = vunpack.c.l.b16 %v9186
        %v9218 = vunpack.c.l.b16 %v9187
        %v9219 = vunpack.c.l.b16 %v9188
        %v9220 = vunpack.c.l.b16 %v9189
        %v9221 = vunpack.c.l.b16 %v9190
        %v9222 = vpack.c.b16 %v9208, %v9207
        %v9223 = vpack.c.b16 %v9210, %v9209
        %v9224 = vpack.c.b16 %v9212, %v9211
        %v9225 = vpack.c.b16 %v9214, %v9213
        %v9226 = vpack.c.b16 %v9216, %v9215
        %v9227 = vpack.c.b16 %v9218, %v9217
        %v9228 = vpack.c.b16 %v9220, %v9219
        %v9229 = vpack.c.b16 %v9221, %v9221
        %vm9237 = vcmask 982016
        %v9239 = vsel %vm9237, %v9175, 0
        %v9242 = vsel %vm3431, %v9229, 0
        %9244 = vmatpush.bf16.msra.mxu0 %v9242
        %9245 = vmatpush.bf16.msra.mxu0 %v9228
        %9246 = vmatpush.bf16.msra.mxu0 %v9227
        %9247 = vmatpush.bf16.msra.mxu0 %v9226
        %9248 = vmatpush.bf16.msra.mxu0 %v9225
        %9249 = vmatpush.bf16.msra.mxu0 %v9224
        %9250 = vmatpush.bf16.msra.mxu0 %v9223
        %9251 = vmatpush.bf16.msra.mxu0 %v9222
        %9252 = vmatmul.bf16.gmra.mxu0 %v9239
        %v9253 = vpop.f32.mrf.mxu0
        %v9254 = vadd.f32 %v9191, %v9253
        %v9255 = vpop.f32.mrf.mxu0
        %9256 = vdwg.mxu0
        %v9257 = vmax.f32 %v9254, 0.0
        %v9258 = vpack.c.bf16 %v9257, %v9257
        %v9259 = vld [vmem:[%s13] sm:$0xf]
        %v9260 = vld [vmem:[%s13 + $0x4] sm:$0xf]
        %v9261 = vld [vmem:[%s13 + $0x8] sm:$0xf]
        %v9262 = vld [vmem:[%s13 + $0xc] sm:$0xf]
        %v9263 = vld [vmem:[%s13 + $0x10] sm:$0xf]
        %v9264 = vld [vmem:[%s13 + $0x14] sm:$0xf]
        %v9265 = vld [vmem:[%s13 + $0x18] sm:$0xf]
        %v9266 = vld [vmem:[%s13 + $0x1c] sm:$0xf]
        %v9267 = vld [vmem:[%s13 + $0x20] sm:$0xf]
        %v9268 = vld [vmem:[%s13 + $0x24] sm:$0xf]
        %v9269 = vld [vmem:[%s13 + $0x28] sm:$0x3]
        %v9270 = vld [vmem:[%s14] sm:$0x1]
        %v9282 = vunpack.c.l.b16 %v9259
        %v9283 = vunpack.c.l.b16 %v9260
        %v9284 = vunpack.c.l.b16 %v9261
        %v9285 = vunpack.c.l.b16 %v9262
        %v9286 = vunpack.c.l.b16 %v9263
        %v9287 = vunpack.c.l.b16 %v9264
        %v9288 = vunpack.c.l.b16 %v9265
        %v9289 = vunpack.c.l.b16 %v9266
        %v9290 = vunpack.c.l.b16 %v9267
        %v9291 = vunpack.c.l.b16 %v9268
        %v9292 = vunpack.c.l.b16 %v9269
        %v9293 = vpack.c.b16 %v9283, %v9282
        %v9294 = vpack.c.b16 %v9285, %v9284
        %v9295 = vpack.c.b16 %v9287, %v9286
        %v9296 = vpack.c.b16 %v9289, %v9288
        %v9297 = vpack.c.b16 %v9291, %v9290
        %v9298 = vpack.c.b16 %v9292, %v9292
        %vm9304 = vcmask 687104
        %v9306 = vsel %vm9304, %v9258, 0
        %v9309 = vsel %vm4318, %v9298, 0
        %9311 = vmatpush.bf16.msra.mxu0 0
        %9312 = vmatpush.bf16.msra.mxu0 0
        %9313 = vmatpush.bf16.msra.mxu0 %v9309
        %9314 = vmatpush.bf16.msra.mxu0 %v9297
        %9315 = vmatpush.bf16.msra.mxu0 %v9296
        %9316 = vmatpush.bf16.msra.mxu0 %v9295
        %9317 = vmatpush.bf16.msra.mxu0 %v9294
        %9318 = vmatpush.bf16.msra.mxu0 %v9293
        %9319 = vmatmul.bf16.gmra.mxu0 %v9306
        %v9320 = vpop.f32.mrf.mxu0
        %v9321 = vadd.f32 %v9270, %v9320
        %v9322 = vpop.f32.mrf.mxu0
        %9323 = vdwg.mxu0
        %vm9324 = vcmask 73728
        %v9325 = vsel %vm9324, %v9321, -inf
        %9326 = vmax.xlane.f32.xlu0 %v9325
        %v9327 = vpop.xlane.xlu0 %9326
        %v9328 = vsub.f32 %v9321, %v9327
        %v9329 = vmul.f32 %v9328, 1.442695
        %v9330 = vpow.pop %v9329
        %v9331 = vsel %vm9324, %v9330, 0.0
        %9332 = vadd.xlane.f32.xlu0 %v9331
        %v9333 = vpop.xlane.xlu0 %9332
        %v9334 = vlog2.pop %v9333
        %v9335 = vmul.f32 %v9334, 0.6931472
        %v9336 = vsub.f32 %v9328, %v9335
        %9337 = vst.msk [vmem:[%s520] sm:$0x1] %vm9324, %v9336
        %s9338 = sand.u32 %s359, 1
        %s9339 = scalar_lea.sflag [#allocation4], %s9338
        %s9340 = sand.u32 %s359, 1
        %s9341 = scalar_lea.vmem [#allocation7], %s9340
        // Predicated region
        $region89: #{_forward_impl.1} parent=79 // pred_check
          %p9342 = pneg %p369
        $region90: #{_forward_impl.1} parent=79 // pred_check_branch
          %9344 = sbr.rel (%p9342) target = $region92
        $region91: #{_forward_impl.1} parent=79 // pred_region
          %9346 = vsyncadd %s9339, 0
          %s9347 = scalar_lea.hbm %s15, %s31
          %s9349 = sshll.u32 %s9341, 4
          %s9350 = int_to_ptr.vmem [resolvable:$true] %s9349
          %s9351 = sshll.u32 %s9347, 4
          %s9352 = int_to_ptr.hbm [resolvable:$true] %s9351
          %9354 = dma.vmem_to_hbm [thread:$0]  %s9350, 16, %s9352, %s9339
        $region92: #{_forward_impl.1} parent=79 // pred_fallthru
          _
      $region80: #{_forward_impl.1} parent=5 // pred_fallthru
        _
      %p9355 = scmp.le.s32.totalorder 2, %s26
      // Predicated region
      $region93: #{_forward_impl.1} parent=5 // pred_check
        %p9356 = pneg %p9355
      $region94: #{_forward_impl.1} parent=5 // pred_check_branch
        %9358 = sbr.rel (%p9356) target = $region96
      $region95: #{_forward_impl.1} parent=5 // pred_region
        %s9359 = ssub.s32 %s26, 2
        // Predicated region
        $region97: #{_forward_impl.1} parent=95 // pred_check
          %p9360 = pneg %p375
        $region98: #{_forward_impl.1} parent=95 // pred_check_branch
          %9362 = sbr.rel (%p9360) target = $region100
        $region99: #{_forward_impl.1} parent=95 // pred_region
          %s9363 = sand.u32 %s360, 1
          %s9364 = scalar_lea.sflag [#allocation4], %s9363
          %s9365 = sand.u32 %s360, 1
          %s9366 = scalar_lea.vmem [#allocation7], %s9365
          %9368 = dma.done %s9364, 16
        $region100: #{_forward_impl.1} parent=95 // pred_fallthru
          _
      $region96: #{_forward_impl.1} parent=5 // pred_fallthru
        _
    $region6: #{_forward_impl.1} parent=1 // loop_footer
      %s30 = sadd.s32 1, %s26
    $region7: #{_forward_impl.1} parent=1 // loop_footer_branch
      %25 = sbr.rel target = $region3
    $region8: #{_forward_impl.1} parent=1 // loop_exit
      _
    %9369 = vsyncpa [#allocation3], 1
    %s9370 = scalar_lea.sflag [#allocation3], 1
    %9371 = vsyncpa %s9370, 1
    %9372 = vsyncpa [#allocation6], 1
    %9373 = vsyncpa [#allocation4], 1
    %s9374 = scalar_lea.sflag [#allocation4], 1
    %9375 = vsyncpa %s9374, 1

</llo_original>
